<compile_context>
chip_gen: v7x
topology: tpu7x:2x2x1
jax: 0.10.0
libtpu: 0.0.40
codegen_flags: <defaults>
</compile_context>

<pallas_src>
import jax
import jax.numpy as jnp
from jax.experimental import pallas as pl
from jax.experimental.pallas import tpu as pltpu

L_IN = 1664   # fixed by nn.Linear(1664, d_model)
MID = 256     # self.mid

_INV_SQRT2 = 0.7071067811865476
_VMEM_BUDGET = 36 * 1024 * 1024      # per-step estimate budget (safe on v7x's 64 MiB)
_VMEM_LIMIT_CAP = 48 * 1024 * 1024   # never raise the scoped limit past this


def _erf_pos(az):
    # erf(az) for az >= 0, Abramowitz & Stegun 7.1.26 (|err| ~1e-7; the approximate
    # EUP reciprocal relaxes that to ~1e-4 -- fine for a loss).  recip + exp both run
    # on the EUP slot, leaving only the Horner polynomial on VALU.
    a1, a2, a3, a4, a5 = 0.254829592, -0.284496736, 1.421413741, -1.453152027, 1.061405429
    p = 0.3275911
    t = pl.reciprocal(1.0 + p * az, approx=True)
    poly = ((((a5 * t + a4) * t + a3) * t + a2) * t + a1) * t
    return 1.0 - poly * jnp.exp(-(az * az))


def _gelu(x):
    # exact (erf-based) GELU, matching torch.nn.GELU() default
    z = x * _INV_SQRT2
    e = _erf_pos(jnp.abs(z))
    erf_z = jnp.where(z < 0.0, -e, e)
    return 0.5 * x * (1.0 + erf_z)


def _celoss_kernel(x_ref, t_ref,
                   w1_ref, b1_ref, w2_ref, b2_ref, w3_ref, b3_ref,
                   w4_ref, b4_ref, wh_ref, bh_ref,
                   out_ref):
    i = pl.program_id(0)
    bb, _, d = x_ref.shape          # (BB, L, D) input slab for this grid step
    cdt = w1_ref.dtype              # compute dtype of the big matmuls (bf16 or f32)

    # Fuse the batch: lane-concat the (L, D) slabs into a single (L, BB*D) operand.
    # (The cast is a no-op when the producer already emits bf16 activations.)
    x_cat = jnp.concatenate([x_ref[j].astype(cdt) for j in range(bb)], axis=-1)

    # DT_pre_len1 + GELU (transposed): (D, L) @ (L, BB*D) -> (D, BB*D), f32 accum.
    h1t = _gelu(jnp.dot(w1_ref[...], x_cat,
                        preferred_element_type=jnp.float32) + b1_ref[...])

    # DT_pre_len2 + GELU (transposed): (MID, D) @ (D, BB*D) -> (MID, BB*D).
    h2t = _gelu(jnp.dot(w2_ref[...], h1t.astype(cdt),
                        preferred_element_type=jnp.float32) + b2_ref[...])

    # DT_pre_len3 + GELU: Linear(MID, 1) as a sublane reduction -> (1, BB*D).
    fsum = jnp.sum(h2t * w3_ref[...], axis=0, keepdims=True)
    frow = _gelu(fsum + b3_ref[...])                                   # (1, BB*D)

    # rearrange 'b i l -> b l i': gather the per-batch feature rows -> (BB, D).
    g = jnp.concatenate([frow[:, j * d:(j + 1) * d] for j in range(bb)], axis=0)

    # DT_pre_len4 + GELU: (BB, D) @ (D, MID) -> (BB, MID)   (tiny, kept f32).
    p = _gelu(jnp.dot(g, w4_ref[...],
                      preferred_element_type=jnp.float32) + b4_ref[...])

    # kd / kon / koff heads fused into one (MID, 3) matmul -> (BB, 3).
    heads = jnp.dot(p, wh_ref[...],
                    preferred_element_type=jnp.float32) + bh_ref[...]

    # Targets live in one resident VMEM block; slice this step's rows by program_id.
    t = t_ref[i][:bb]                                                  # (BB, 3) = [kd, kon, koff]
    kd_p, koff_p = heads[:, 0:1], heads[:, 2:3]
    e_kd = kd_p - t[:, 0:1]
    e_off = koff_p - t[:, 2:3]
    e_kon = (koff_p - kd_p) - t[:, 1:2]   # matches torch: MSE(koff_pre - kd_pre, kon)

    s_kd2 = jnp.sum(e_kd * e_kd)
    s_off2 = jnp.sum(e_off * e_off)
    s_kon2 = jnp.sum(e_kon * e_kon)
    s_kd1 = jnp.sum(jnp.abs(e_kd))
    s_off1 = jnp.sum(jnp.abs(e_off))

    # Pack the 5 partial sums into the rows of an (8, 128) tile (lane-dense output).
    ridx = jax.lax.broadcasted_iota(jnp.int32, (8, 128), 0)
    tile = (jnp.where(ridx == 0, s_kd2, 0.0)
            + jnp.where(ridx == 1, s_off2, 0.0)
            + jnp.where(ridx == 2, s_kon2, 0.0)
            + jnp.where(ridx == 3, s_kd1, 0.0)
            + jnp.where(ridx == 4, s_off1, 0.0))
    out_ref[0] = tile.astype(jnp.float32)


def _vmem_estimate(bb, d, in_itemsize, w_itemsize):
    """Rough per-step VMEM footprint (bytes) for a fused batch of `bb` elements."""
    return (2 * bb * L_IN * d * in_itemsize        # double-buffered input slab
            + bb * L_IN * d * 2                    # x_cat (bf16)
            + bb * d * (d + MID) * 4               # h1t + h2t (f32)
            + bb * d * (d + MID) * 2               # bf16 copies fed to the next matmul
            + (L_IN * d + MID * d + d * MID) * w_itemsize   # resident w1/w2/w4
            + 2 * 1024 * 1024)                     # biases, heads, output, misc temps


def _choose_bb(batch, d, in_itemsize, w_itemsize):
    """Largest bb <= 8 that fits the VMEM budget, divides B, and leaves >= 2 grid
    steps so both v7x TensorCores get work under dimension_semantics=("parallel",)."""
    assert batch > 0
    cap = 1
    for bb in range(1, min(8, batch) + 1):
        if _vmem_estimate(bb, d, in_itemsize, w_itemsize) <= _VMEM_BUDGET:
            cap = bb
    for bb in range(cap, 0, -1):
        if batch % bb == 0 and (batch // bb >= 2 or batch == 1):
            return bb
    return 1


def celoss_forward(params, inputs_pm, kd, kon, koff,
                   optimizer_idx=0, split="train",
                   kd_weight=1.0, kon_weight=1.0, koff_weight=1.0):
    """Mirrors CELoss.forward(inputs_pm, kd, kon, koff, optimizer_idx, split).

    inputs_pm may be f32 or bf16 (b, 1664, d_model); it is passed to the kernel
    untouched (no wrapper-side cast / transpose -- cast upstream for the bf16 win).
    """
    assert optimizer_idx == 0
    del kon_weight  # never used by the reference forward() (only kd/koff weight the loss)

    B, L, D = inputs_pm.shape
    assert L == L_IN and B > 0
    # D not a multiple of 128 still compiles (full-dim lane block) but masks lanes
    # on every matmul/DMA -- a perf cliff, not a correctness issue.

    in_itemsize = jnp.dtype(inputs_pm.dtype).itemsize
    w_itemsize = jnp.dtype(params["w1"].dtype).itemsize
    bb = _choose_bb(B, D, in_itemsize, w_itemsize)
    nb = B // bb

    # Targets packed as one resident (nb, 8, 3) block (rows >= bb are zero padding
    # and never read by the kernel).  A single DMA instead of nb tiny ragged ones.
    t_full = jnp.stack([kd, kon, koff], axis=1).astype(jnp.float32)        # (B, 3)
    targets = jnp.zeros((nb, 8, 3), jnp.float32).at[:, :bb, :].set(
        t_full.reshape(nb, bb, 3))

    vmem_limit = int(min(_vmem_estimate(bb, D, in_itemsize, w_itemsize)
                         + 12 * 1024 * 1024, _VMEM_LIMIT_CAP))
    vmem_limit = max(vmem_limit, 32 * 1024 * 1024)

    # Advisory cost estimate so XLA schedules neighbors around the custom call.
    flops = int(B * (2 * D * L_IN * D + 2 * MID * D * D
                     + 2 * MID * D + 2 * D * MID + 2 * MID * 3))
    transcendentals = int(2 * B * (D * D + MID * D + D + MID))
    bytes_accessed = int(inputs_pm.size * in_itemsize
                         + targets.size * 4
                         + sum(int(p.size) * jnp.dtype(p.dtype).itemsize
                               for p in params.values())
                         + nb * 8 * 128 * 4)
    cost = pl.CostEstimate(flops=flops, transcendentals=transcendentals,
                           bytes_accessed=bytes_accessed)

    def _run(const_mode):
        def const_spec(a):
            # Constant block index -> DMA'd once, resident for the whole grid.
            idx = lambda i: (0,) * a.ndim
            if const_mode is None:
                return pl.BlockSpec(a.shape, idx)
            return pl.BlockSpec(a.shape, idx, pipeline_mode=const_mode)

        grid_spec = pltpu.PrefetchScalarGridSpec(
            num_scalar_prefetch=0,
            grid=(nb,),
            in_specs=[
                pl.BlockSpec((bb, L_IN, D), lambda i: (i, 0, 0)),   # pipelined input slab
                const_spec(targets),                                # resident targets
                const_spec(params["w1"]), const_spec(params["b1"]),
                const_spec(params["w2"]), const_spec(params["b2"]),
                const_spec(params["w3"]), const_spec(params["b3"]),
                const_spec(params["w4"]), const_spec(params["b4"]),
                const_spec(params["wh"]), const_spec(params["bh"]),
            ],
            out_specs=pl.BlockSpec((1, 8, 128), lambda i: (i, 0, 0)),
        )
        return pl.pallas_call(
            _celoss_kernel,
            out_shape=jax.ShapeDtypeStruct((nb, 8, 128), jnp.float32),
            grid_spec=grid_spec,
            cost_estimate=cost,
            compiler_params=pltpu.CompilerParams(
                dimension_semantics=("parallel",),   # megacore split of the batch grid
                vmem_limit_bytes=vmem_limit),
        )(inputs_pm, targets,
          params["w1"], params["b1"], params["w2"], params["b2"],
          params["w3"], params["b3"], params["w4"], params["b4"],
          params["wh"], params["bh"])

    try:
        # Weights / targets never change block index: single buffer, no dead VMEM.
        part_sums = _run(pl.Buffered(1))
    except Exception:
        # Fallback for jax versions without BlockSpec(pipeline_mode=...); only costs
        # the default (small) second buffer on the constant-index blocks.
        part_sums = _run(None)

    sums = jnp.sum(part_sums[:, :, 0], axis=0)        # (8,) sums over the whole batch
    inv_b = 1.0 / B
    loss_kd = sums[0] * inv_b
    loss_off = sums[1] * inv_b
    loss_kon = sums[2] * inv_b
    l1_kd = sums[3] * inv_b
    l1_off = sums[4] * inv_b
    loss = loss_kd * kd_weight + loss_off * koff_weight

    log = {
        f"{split}/loss": loss,
        f"{split}/loss_kd": loss_kd,
        f"{split}/loss_kon": loss_kon,
        f"{split}/loss_koff": loss_off,
        f"{split}/loss_kd_L1": l1_kd,
        f"{split}/loss_koff_L1": l1_off,
    }
    return loss, log


def init_params(key, d_model, matmul_dtype=jnp.bfloat16):
    """Deterministic init mirroring the nn.Linear shapes in CELoss.__init__.

    w1/w2 are stored in PyTorch (out, in) layout (so the kernel's transposed chain
    needs no transposes) and in bf16 by default; pass matmul_dtype=jnp.float32 for
    closer parity with the torch f32 reference.
    """
    ks = jax.random.split(key, 10)

    def uinit(k, shape, fan_in, dtype=jnp.float32):
        bound = 1.0 / (fan_in ** 0.5)
        return jax.random.uniform(k, shape, jnp.float32, -bound, bound).astype(dtype)

    return {
        # DT_pre_len1: Linear(1664, d_model) -> (out, in) = (d_model, 1664)
        "w1": uinit(ks[0], (d_model, L_IN), L_IN, matmul_dtype),
        "b1": uinit(ks[1], (d_model, 1), L_IN),
        # DT_pre_len2: Linear(d_model, 256) -> (out, in) = (256, d_model)
        "w2": uinit(ks[2], (MID, d_model), d_model, matmul_dtype),
        "b2": uinit(ks[3], (MID, 1), d_model),
        # DT_pre_len3: Linear(256, 1) -> stored as a (256, 1) column
        "w3": uinit(ks[4], (MID, 1), MID),
        "b3": uinit(ks[5], (1, 1), MID),
        # DT_pre_len4: Linear(d_model, 256) -> (in, out) = (d_model, 256)
        "w4": uinit(ks[6], (d_model, MID), d_model),
        "b4": uinit(ks[7], (1, MID), d_model),
        # kd_pre / kon_pre / koff_pre: three Linear(256, 1) fused into (256, 3)
        "wh": uinit(ks[8], (MID, 3), MID),
        "bh": uinit(ks[9], (1, 3), MID),
    }


if __name__ == "__main__":
    B, D_MODEL = 2, 128

    key = jax.random.PRNGKey(0)
    kp, kx, kkd, kkon, kkoff = jax.random.split(key, 5)

    params = init_params(kp, D_MODEL)
    inputs_pm = jax.random.normal(kx, (B, L_IN, D_MODEL), jnp.float32)   # (b, l=1664, i=d_model)
    kd = jax.random.normal(kkd, (B,), jnp.float32)
    kon = jax.random.normal(kkon, (B,), jnp.float32)
    koff = jax.random.normal(kkoff, (B,), jnp.float32)

    loss, log = celoss_forward(params, inputs_pm, kd, kon, koff,
                               optimizer_idx=0, split="train",
                               kd_weight=1.0, kon_weight=1.0, koff_weight=1.0)
    jax.block_until_ready(loss)
    jax.block_until_ready(log)
    print("KERNEL_OK")
</pallas_src>

<mosaic_0001>
module attributes {stable_mosaic.version = 11 : i64} {
  func.func @_celoss_kernel(%arg0: i32, %arg1: memref<1x1664x128xf32, #tpu.memory_space<vmem>>, %arg2: memref<2x8x3xf32, #tpu.memory_space<vmem>>, %arg3: memref<128x1664xbf16, #tpu.memory_space<vmem>>, %arg4: memref<128x1xf32, #tpu.memory_space<vmem>>, %arg5: memref<256x128xbf16, #tpu.memory_space<vmem>>, %arg6: memref<256x1xf32, #tpu.memory_space<vmem>>, %arg7: memref<256x1xf32, #tpu.memory_space<vmem>>, %arg8: memref<1x1xf32, #tpu.memory_space<vmem>>, %arg9: memref<128x256xf32, #tpu.memory_space<vmem>>, %arg10: memref<1x256xf32, #tpu.memory_space<vmem>>, %arg11: memref<256x3xf32, #tpu.memory_space<vmem>>, %arg12: memref<1x3xf32, #tpu.memory_space<vmem>>, %arg13: memref<1x8x128xf32, #tpu.memory_space<vmem>>) attributes {dimension_semantics = [#tpu.dimension_semantics<parallel>], iteration_bounds = array<i64: 2>, scalar_prefetch = 0 : i64, scratch_operands = 0 : i64, tpu.core_type = #tpu.core_type<tc>, window_params = [{transform_indices = @transform_0, window_bounds = array<i64: 1, 1664, 128>}, {pipeline_mode = #tpu.pipeline_mode<synchronous>, transform_indices = @transform_1, window_bounds = array<i64: 2, 8, 3>}, {pipeline_mode = #tpu.pipeline_mode<synchronous>, transform_indices = @transform_2, window_bounds = array<i64: 128, 1664>}, {pipeline_mode = #tpu.pipeline_mode<synchronous>, transform_indices = @transform_3, window_bounds = array<i64: 128, 1>}, {pipeline_mode = #tpu.pipeline_mode<synchronous>, transform_indices = @transform_4, window_bounds = array<i64: 256, 128>}, {pipeline_mode = #tpu.pipeline_mode<synchronous>, transform_indices = @transform_5, window_bounds = array<i64: 256, 1>}, {pipeline_mode = #tpu.pipeline_mode<synchronous>, transform_indices = @transform_6, window_bounds = array<i64: 256, 1>}, {pipeline_mode = #tpu.pipeline_mode<synchronous>, transform_indices = @transform_7, window_bounds = array<i64: 1, 1>}, {pipeline_mode = #tpu.pipeline_mode<synchronous>, transform_indices = @transform_8, window_bounds = array<i64: 128, 256>}, {pipeline_mode = #tpu.pipeline_mode<synchronous>, transform_indices = @transform_9, window_bounds = array<i64: 1, 256>}, {pipeline_mode = #tpu.pipeline_mode<synchronous>, transform_indices = @transform_10, window_bounds = array<i64: 256, 3>}, {pipeline_mode = #tpu.pipeline_mode<synchronous>, transform_indices = @transform_11, window_bounds = array<i64: 1, 3>}, {transform_indices = @transform_12, window_bounds = array<i64: 1, 8, 128>}]} {
    %c0 = arith.constant 0 : index
    %c0_0 = arith.constant 0 : index
    %c0_1 = arith.constant 0 : index
    %0 = vector.load %arg1[%c0, %c0_0, %c0_1] : memref<1x1664x128xf32, #tpu.memory_space<vmem>>, vector<1x1664x128xf32>
    %1 = vector.shape_cast %0 : vector<1x1664x128xf32> to vector<1664x128xf32>
    %2 = arith.truncf %1 : vector<1664x128xf32> to vector<1664x128xbf16>
    %c0_2 = arith.constant 0 : index
    %c0_3 = arith.constant 0 : index
    %3 = vector.load %arg3[%c0_2, %c0_3] : memref<128x1664xbf16, #tpu.memory_space<vmem>>, vector<128x1664xbf16>
    %cst = arith.constant dense<0.000000e+00> : vector<128x128xf32>
    %4 = tpu.matmul %3, %2, %cst {dimension_numbers = #tpu.dot_dimension_numbers<[1], [0], [0], [1], [0, 0, 1, 1], [], []>} : vector<128x1664xbf16>, vector<1664x128xbf16>, vector<128x128xf32> -> vector<128x128xf32>
    %c0_4 = arith.constant 0 : index
    %c0_5 = arith.constant 0 : index
    %5 = vector.load %arg4[%c0_4, %c0_5] : memref<128x1xf32, #tpu.memory_space<vmem>>, vector<128x1xf32>
    %6 = vector.broadcast %5 : vector<128x1xf32> to vector<128x128xf32>
    %7 = arith.addf %4, %6 : vector<128x128xf32>
    %cst_6 = arith.constant 0.707106769 : f32
    %8 = vector.broadcast %cst_6 : f32 to vector<128x128xf32>
    %9 = arith.mulf %7, %8 : vector<128x128xf32>
    %10 = math.absf %9 : vector<128x128xf32>
    %cst_7 = arith.constant 0.327591091 : f32
    %11 = vector.broadcast %cst_7 : f32 to vector<128x128xf32>
    %12 = arith.mulf %11, %10 : vector<128x128xf32>
    %cst_8 = arith.constant 1.000000e+00 : f32
    %13 = vector.broadcast %cst_8 : f32 to vector<128x128xf32>
    %14 = arith.addf %13, %12 : vector<128x128xf32>
    %15 = tpu.reciprocal %14 {approx = true} : vector<128x128xf32> -> vector<128x128xf32>
    %cst_9 = arith.constant 1.06140542 : f32
    %16 = vector.broadcast %cst_9 : f32 to vector<128x128xf32>
    %17 = arith.mulf %16, %15 : vector<128x128xf32>
    %cst_10 = arith.constant -1.45315206 : f32
    %18 = vector.broadcast %cst_10 : f32 to vector<128x128xf32>
    %19 = arith.addf %17, %18 : vector<128x128xf32>
    %20 = arith.mulf %19, %15 : vector<128x128xf32>
    %cst_11 = arith.constant 1.42141378 : f32
    %21 = vector.broadcast %cst_11 : f32 to vector<128x128xf32>
    %22 = arith.addf %20, %21 : vector<128x128xf32>
    %23 = arith.mulf %22, %15 : vector<128x128xf32>
    %cst_12 = arith.constant -0.284496725 : f32
    %24 = vector.broadcast %cst_12 : f32 to vector<128x128xf32>
    %25 = arith.addf %23, %24 : vector<128x128xf32>
    %26 = arith.mulf %25, %15 : vector<128x128xf32>
    %cst_13 = arith.constant 0.254829586 : f32
    %27 = vector.broadcast %cst_13 : f32 to vector<128x128xf32>
    %28 = arith.addf %26, %27 : vector<128x128xf32>
    %29 = arith.mulf %28, %15 : vector<128x128xf32>
    %30 = arith.mulf %10, %10 : vector<128x128xf32>
    %cst_14 = arith.constant 0.000000e+00 : f32
    %31 = vector.broadcast %cst_14 : f32 to vector<128x128xf32>
    %32 = arith.subf %31, %30 : vector<128x128xf32>
    %33 = math.exp %32 : vector<128x128xf32>
    %34 = arith.mulf %29, %33 : vector<128x128xf32>
    %cst_15 = arith.constant 1.000000e+00 : f32
    %35 = vector.broadcast %cst_15 : f32 to vector<128x128xf32>
    %36 = arith.subf %35, %34 : vector<128x128xf32>
    %cst_16 = arith.constant 0.000000e+00 : f32
    %37 = vector.broadcast %cst_16 : f32 to vector<128x128xf32>
    %38 = arith.cmpf olt, %9, %37 : vector<128x128xf32>
    %cst_17 = arith.constant 0.000000e+00 : f32
    %39 = vector.broadcast %cst_17 : f32 to vector<128x128xf32>
    %40 = arith.subf %39, %36 : vector<128x128xf32>
    %41 = arith.select %38, %40, %36 : vector<128x128xi1>, vector<128x128xf32>
    %cst_18 = arith.constant 5.000000e-01 : f32
    %42 = vector.broadcast %cst_18 : f32 to vector<128x128xf32>
    %43 = arith.mulf %42, %7 : vector<128x128xf32>
    %cst_19 = arith.constant 1.000000e+00 : f32
    %44 = vector.broadcast %cst_19 : f32 to vector<128x128xf32>
    %45 = arith.addf %44, %41 : vector<128x128xf32>
    %46 = arith.mulf %43, %45 : vector<128x128xf32>
    %c0_20 = arith.constant 0 : index
    %c0_21 = arith.constant 0 : index
    %47 = vector.load %arg5[%c0_20, %c0_21] : memref<256x128xbf16, #tpu.memory_space<vmem>>, vector<256x128xbf16>
    %48 = arith.truncf %46 : vector<128x128xf32> to vector<128x128xbf16>
    %cst_22 = arith.constant dense<0.000000e+00> : vector<256x128xf32>
    %49 = tpu.matmul %47, %48, %cst_22 {dimension_numbers = #tpu.dot_dimension_numbers<[1], [0], [0], [1], [0, 0, 1, 1], [], []>} : vector<256x128xbf16>, vector<128x128xbf16>, vector<256x128xf32> -> vector<256x128xf32>
    %c0_23 = arith.constant 0 : index
    %c0_24 = arith.constant 0 : index
    %50 = vector.load %arg6[%c0_23, %c0_24] : memref<256x1xf32, #tpu.memory_space<vmem>>, vector<256x1xf32>
    %51 = vector.broadcast %50 : vector<256x1xf32> to vector<256x128xf32>
    %52 = arith.addf %49, %51 : vector<256x128xf32>
    %cst_25 = arith.constant 0.707106769 : f32
    %53 = vector.broadcast %cst_25 : f32 to vector<256x128xf32>
    %54 = arith.mulf %52, %53 : vector<256x128xf32>
    %55 = math.absf %54 : vector<256x128xf32>
    %cst_26 = arith.constant 0.327591091 : f32
    %56 = vector.broadcast %cst_26 : f32 to vector<256x128xf32>
    %57 = arith.mulf %56, %55 : vector<256x128xf32>
    %cst_27 = arith.constant 1.000000e+00 : f32
    %58 = vector.broadcast %cst_27 : f32 to vector<256x128xf32>
    %59 = arith.addf %58, %57 : vector<256x128xf32>
    %60 = tpu.reciprocal %59 {approx = true} : vector<256x128xf32> -> vector<256x128xf32>
    %cst_28 = arith.constant 1.06140542 : f32
    %61 = vector.broadcast %cst_28 : f32 to vector<256x128xf32>
    %62 = arith.mulf %61, %60 : vector<256x128xf32>
    %cst_29 = arith.constant -1.45315206 : f32
    %63 = vector.broadcast %cst_29 : f32 to vector<256x128xf32>
    %64 = arith.addf %62, %63 : vector<256x128xf32>
    %65 = arith.mulf %64, %60 : vector<256x128xf32>
    %cst_30 = arith.constant 1.42141378 : f32
    %66 = vector.broadcast %cst_30 : f32 to vector<256x128xf32>
    %67 = arith.addf %65, %66 : vector<256x128xf32>
    %68 = arith.mulf %67, %60 : vector<256x128xf32>
    %cst_31 = arith.constant -0.284496725 : f32
    %69 = vector.broadcast %cst_31 : f32 to vector<256x128xf32>
    %70 = arith.addf %68, %69 : vector<256x128xf32>
    %71 = arith.mulf %70, %60 : vector<256x128xf32>
    %cst_32 = arith.constant 0.254829586 : f32
    %72 = vector.broadcast %cst_32 : f32 to vector<256x128xf32>
    %73 = arith.addf %71, %72 : vector<256x128xf32>
    %74 = arith.mulf %73, %60 : vector<256x128xf32>
    %75 = arith.mulf %55, %55 : vector<256x128xf32>
    %cst_33 = arith.constant 0.000000e+00 : f32
    %76 = vector.broadcast %cst_33 : f32 to vector<256x128xf32>
    %77 = arith.subf %76, %75 : vector<256x128xf32>
    %78 = math.exp %77 : vector<256x128xf32>
    %79 = arith.mulf %74, %78 : vector<256x128xf32>
    %cst_34 = arith.constant 1.000000e+00 : f32
    %80 = vector.broadcast %cst_34 : f32 to vector<256x128xf32>
    %81 = arith.subf %80, %79 : vector<256x128xf32>
    %cst_35 = arith.constant 0.000000e+00 : f32
    %82 = vector.broadcast %cst_35 : f32 to vector<256x128xf32>
    %83 = arith.cmpf olt, %54, %82 : vector<256x128xf32>
    %cst_36 = arith.constant 0.000000e+00 : f32
    %84 = vector.broadcast %cst_36 : f32 to vector<256x128xf32>
    %85 = arith.subf %84, %81 : vector<256x128xf32>
    %86 = arith.select %83, %85, %81 : vector<256x128xi1>, vector<256x128xf32>
    %cst_37 = arith.constant 5.000000e-01 : f32
    %87 = vector.broadcast %cst_37 : f32 to vector<256x128xf32>
    %88 = arith.mulf %87, %52 : vector<256x128xf32>
    %cst_38 = arith.constant 1.000000e+00 : f32
    %89 = vector.broadcast %cst_38 : f32 to vector<256x128xf32>
    %90 = arith.addf %89, %86 : vector<256x128xf32>
    %91 = arith.mulf %88, %90 : vector<256x128xf32>
    %c0_39 = arith.constant 0 : index
    %c0_40 = arith.constant 0 : index
    %92 = vector.load %arg7[%c0_39, %c0_40] : memref<256x1xf32, #tpu.memory_space<vmem>>, vector<256x1xf32>
    %93 = vector.broadcast %92 : vector<256x1xf32> to vector<256x128xf32>
    %94 = arith.mulf %91, %93 : vector<256x128xf32>
    %cst_41 = arith.constant dense<0.000000e+00> : vector<128xf32>
    %95 = vector.multi_reduction <add>, %94, %cst_41 [0] : vector<256x128xf32> to vector<128xf32>
    %96 = vector.shape_cast %95 : vector<128xf32> to vector<1x128xf32>
    %c0_42 = arith.constant 0 : index
    %c0_43 = arith.constant 0 : index
    %97 = vector.load %arg8[%c0_42, %c0_43] : memref<1x1xf32, #tpu.memory_space<vmem>>, vector<1x1xf32>
    %98 = vector.broadcast %97 : vector<1x1xf32> to vector<1x128xf32>
    %99 = arith.addf %96, %98 : vector<1x128xf32>
    %cst_44 = arith.constant 0.707106769 : f32
    %100 = vector.broadcast %cst_44 : f32 to vector<1x128xf32>
    %101 = arith.mulf %99, %100 : vector<1x128xf32>
    %102 = math.absf %101 : vector<1x128xf32>
    %cst_45 = arith.constant 0.327591091 : f32
    %103 = vector.broadcast %cst_45 : f32 to vector<1x128xf32>
    %104 = arith.mulf %103, %102 : vector<1x128xf32>
    %cst_46 = arith.constant 1.000000e+00 : f32
    %105 = vector.broadcast %cst_46 : f32 to vector<1x128xf32>
    %106 = arith.addf %105, %104 : vector<1x128xf32>
    %107 = tpu.reciprocal %106 {approx = true} : vector<1x128xf32> -> vector<1x128xf32>
    %cst_47 = arith.constant 1.06140542 : f32
    %108 = vector.broadcast %cst_47 : f32 to vector<1x128xf32>
    %109 = arith.mulf %108, %107 : vector<1x128xf32>
    %cst_48 = arith.constant -1.45315206 : f32
    %110 = vector.broadcast %cst_48 : f32 to vector<1x128xf32>
    %111 = arith.addf %109, %110 : vector<1x128xf32>
    %112 = arith.mulf %111, %107 : vector<1x128xf32>
    %cst_49 = arith.constant 1.42141378 : f32
    %113 = vector.broadcast %cst_49 : f32 to vector<1x128xf32>
    %114 = arith.addf %112, %113 : vector<1x128xf32>
    %115 = arith.mulf %114, %107 : vector<1x128xf32>
    %cst_50 = arith.constant -0.284496725 : f32
    %116 = vector.broadcast %cst_50 : f32 to vector<1x128xf32>
    %117 = arith.addf %115, %116 : vector<1x128xf32>
    %118 = arith.mulf %117, %107 : vector<1x128xf32>
    %cst_51 = arith.constant 0.254829586 : f32
    %119 = vector.broadcast %cst_51 : f32 to vector<1x128xf32>
    %120 = arith.addf %118, %119 : vector<1x128xf32>
    %121 = arith.mulf %120, %107 : vector<1x128xf32>
    %122 = arith.mulf %102, %102 : vector<1x128xf32>
    %cst_52 = arith.constant 0.000000e+00 : f32
    %123 = vector.broadcast %cst_52 : f32 to vector<1x128xf32>
    %124 = arith.subf %123, %122 : vector<1x128xf32>
    %125 = math.exp %124 : vector<1x128xf32>
    %126 = arith.mulf %121, %125 : vector<1x128xf32>
    %cst_53 = arith.constant 1.000000e+00 : f32
    %127 = vector.broadcast %cst_53 : f32 to vector<1x128xf32>
    %128 = arith.subf %127, %126 : vector<1x128xf32>
    %cst_54 = arith.constant 0.000000e+00 : f32
    %129 = vector.broadcast %cst_54 : f32 to vector<1x128xf32>
    %130 = arith.cmpf olt, %101, %129 : vector<1x128xf32>
    %cst_55 = arith.constant 0.000000e+00 : f32
    %131 = vector.broadcast %cst_55 : f32 to vector<1x128xf32>
    %132 = arith.subf %131, %128 : vector<1x128xf32>
    %133 = arith.select %130, %132, %128 : vector<1x128xi1>, vector<1x128xf32>
    %cst_56 = arith.constant 5.000000e-01 : f32
    %134 = vector.broadcast %cst_56 : f32 to vector<1x128xf32>
    %135 = arith.mulf %134, %99 : vector<1x128xf32>
    %cst_57 = arith.constant 1.000000e+00 : f32
    %136 = vector.broadcast %cst_57 : f32 to vector<1x128xf32>
    %137 = arith.addf %136, %133 : vector<1x128xf32>
    %138 = arith.mulf %135, %137 : vector<1x128xf32>
    %c0_58 = arith.constant 0 : index
    %c0_59 = arith.constant 0 : index
    %139 = vector.load %arg9[%c0_58, %c0_59] : memref<128x256xf32, #tpu.memory_space<vmem>>, vector<128x256xf32>
    %cst_60 = arith.constant dense<0.000000e+00> : vector<1x256xf32>
    %140 = tpu.matmul %138, %139, %cst_60 {dimension_numbers = #tpu.dot_dimension_numbers<[1], [0], [0], [1], [0, 0, 1, 1], [], []>} : vector<1x128xf32>, vector<128x256xf32>, vector<1x256xf32> -> vector<1x256xf32>
    %c0_61 = arith.constant 0 : index
    %c0_62 = arith.constant 0 : index
    %141 = vector.load %arg10[%c0_61, %c0_62] : memref<1x256xf32, #tpu.memory_space<vmem>>, vector<1x256xf32>
    %142 = arith.addf %140, %141 : vector<1x256xf32>
    %cst_63 = arith.constant 0.707106769 : f32
    %143 = vector.broadcast %cst_63 : f32 to vector<1x256xf32>
    %144 = arith.mulf %142, %143 : vector<1x256xf32>
    %145 = math.absf %144 : vector<1x256xf32>
    %cst_64 = arith.constant 0.327591091 : f32
    %146 = vector.broadcast %cst_64 : f32 to vector<1x256xf32>
    %147 = arith.mulf %146, %145 : vector<1x256xf32>
    %cst_65 = arith.constant 1.000000e+00 : f32
    %148 = vector.broadcast %cst_65 : f32 to vector<1x256xf32>
    %149 = arith.addf %148, %147 : vector<1x256xf32>
    %150 = tpu.reciprocal %149 {approx = true} : vector<1x256xf32> -> vector<1x256xf32>
    %cst_66 = arith.constant 1.06140542 : f32
    %151 = vector.broadcast %cst_66 : f32 to vector<1x256xf32>
    %152 = arith.mulf %151, %150 : vector<1x256xf32>
    %cst_67 = arith.constant -1.45315206 : f32
    %153 = vector.broadcast %cst_67 : f32 to vector<1x256xf32>
    %154 = arith.addf %152, %153 : vector<1x256xf32>
    %155 = arith.mulf %154, %150 : vector<1x256xf32>
    %cst_68 = arith.constant 1.42141378 : f32
    %156 = vector.broadcast %cst_68 : f32 to vector<1x256xf32>
    %157 = arith.addf %155, %156 : vector<1x256xf32>
    %158 = arith.mulf %157, %150 : vector<1x256xf32>
    %cst_69 = arith.constant -0.284496725 : f32
    %159 = vector.broadcast %cst_69 : f32 to vector<1x256xf32>
    %160 = arith.addf %158, %159 : vector<1x256xf32>
    %161 = arith.mulf %160, %150 : vector<1x256xf32>
    %cst_70 = arith.constant 0.254829586 : f32
    %162 = vector.broadcast %cst_70 : f32 to vector<1x256xf32>
    %163 = arith.addf %161, %162 : vector<1x256xf32>
    %164 = arith.mulf %163, %150 : vector<1x256xf32>
    %165 = arith.mulf %145, %145 : vector<1x256xf32>
    %cst_71 = arith.constant 0.000000e+00 : f32
    %166 = vector.broadcast %cst_71 : f32 to vector<1x256xf32>
    %167 = arith.subf %166, %165 : vector<1x256xf32>
    %168 = math.exp %167 : vector<1x256xf32>
    %169 = arith.mulf %164, %168 : vector<1x256xf32>
    %cst_72 = arith.constant 1.000000e+00 : f32
    %170 = vector.broadcast %cst_72 : f32 to vector<1x256xf32>
    %171 = arith.subf %170, %169 : vector<1x256xf32>
    %cst_73 = arith.constant 0.000000e+00 : f32
    %172 = vector.broadcast %cst_73 : f32 to vector<1x256xf32>
    %173 = arith.cmpf olt, %144, %172 : vector<1x256xf32>
    %cst_74 = arith.constant 0.000000e+00 : f32
    %174 = vector.broadcast %cst_74 : f32 to vector<1x256xf32>
    %175 = arith.subf %174, %171 : vector<1x256xf32>
    %176 = arith.select %173, %175, %171 : vector<1x256xi1>, vector<1x256xf32>
    %cst_75 = arith.constant 5.000000e-01 : f32
    %177 = vector.broadcast %cst_75 : f32 to vector<1x256xf32>
    %178 = arith.mulf %177, %142 : vector<1x256xf32>
    %cst_76 = arith.constant 1.000000e+00 : f32
    %179 = vector.broadcast %cst_76 : f32 to vector<1x256xf32>
    %180 = arith.addf %179, %176 : vector<1x256xf32>
    %181 = arith.mulf %178, %180 : vector<1x256xf32>
    %c0_77 = arith.constant 0 : index
    %c0_78 = arith.constant 0 : index
    %182 = vector.load %arg11[%c0_77, %c0_78] : memref<256x3xf32, #tpu.memory_space<vmem>>, vector<256x3xf32>
    %cst_79 = arith.constant dense<0.000000e+00> : vector<1x3xf32>
    %183 = tpu.matmul %181, %182, %cst_79 {dimension_numbers = #tpu.dot_dimension_numbers<[1], [0], [0], [1], [0, 0, 1, 1], [], []>} : vector<1x256xf32>, vector<256x3xf32>, vector<1x3xf32> -> vector<1x3xf32>
    %c0_80 = arith.constant 0 : index
    %c0_81 = arith.constant 0 : index
    %184 = vector.load %arg12[%c0_80, %c0_81] : memref<1x3xf32, #tpu.memory_space<vmem>>, vector<1x3xf32>
    %185 = arith.addf %183, %184 : vector<1x3xf32>
    %186 = arith.index_cast %arg0 : i32 to index
    %c0_82 = arith.constant 0 : index
    %c0_83 = arith.constant 0 : index
    %187 = vector.load %arg2[%186, %c0_82, %c0_83] : memref<2x8x3xf32, #tpu.memory_space<vmem>>, vector<1x8x3xf32>
    %188 = vector.shape_cast %187 : vector<1x8x3xf32> to vector<8x3xf32>
    %189 = vector.extract_strided_slice %188 {offsets = [0, 0], sizes = [1, 3], strides = [1, 1]} : vector<8x3xf32> to vector<1x3xf32>
    %190 = vector.extract_strided_slice %185 {offsets = [0, 0], sizes = [1, 1], strides = [1, 1]} : vector<1x3xf32> to vector<1x1xf32>
    %191 = vector.extract_strided_slice %185 {offsets = [0, 2], sizes = [1, 1], strides = [1, 1]} : vector<1x3xf32> to vector<1x1xf32>
    %192 = vector.extract_strided_slice %189 {offsets = [0, 0], sizes = [1, 1], strides = [1, 1]} : vector<1x3xf32> to vector<1x1xf32>
    %193 = arith.subf %190, %192 : vector<1x1xf32>
    %194 = vector.extract_strided_slice %189 {offsets = [0, 2], sizes = [1, 1], strides = [1, 1]} : vector<1x3xf32> to vector<1x1xf32>
    %195 = arith.subf %191, %194 : vector<1x1xf32>
    %196 = arith.subf %191, %190 : vector<1x1xf32>
    %197 = vector.extract_strided_slice %189 {offsets = [0, 1], sizes = [1, 1], strides = [1, 1]} : vector<1x3xf32> to vector<1x1xf32>
    %198 = arith.subf %196, %197 : vector<1x1xf32>
    %199 = arith.mulf %193, %193 : vector<1x1xf32>
    %200 = vector.shape_cast %199 : vector<1x1xf32> to vector<1x1x1xf32>
    %cst_84 = arith.constant dense<0.000000e+00> : vector<1xf32>
    %201 = vector.multi_reduction <add>, %200, %cst_84 [1, 2] : vector<1x1x1xf32> to vector<1xf32>
    %202 = vector.shape_cast %201 : vector<1xf32> to vector<1x1x1xf32>
    %203 = vector.extract %202[0, 0, 0] : f32 from vector<1x1x1xf32>
    %204 = arith.mulf %195, %195 : vector<1x1xf32>
    %205 = vector.shape_cast %204 : vector<1x1xf32> to vector<1x1x1xf32>
    %cst_85 = arith.constant dense<0.000000e+00> : vector<1xf32>
    %206 = vector.multi_reduction <add>, %205, %cst_85 [1, 2] : vector<1x1x1xf32> to vector<1xf32>
    %207 = vector.shape_cast %206 : vector<1xf32> to vector<1x1x1xf32>
    %208 = vector.extract %207[0, 0, 0] : f32 from vector<1x1x1xf32>
    %209 = arith.mulf %198, %198 : vector<1x1xf32>
    %210 = vector.shape_cast %209 : vector<1x1xf32> to vector<1x1x1xf32>
    %cst_86 = arith.constant dense<0.000000e+00> : vector<1xf32>
    %211 = vector.multi_reduction <add>, %210, %cst_86 [1, 2] : vector<1x1x1xf32> to vector<1xf32>
    %212 = vector.shape_cast %211 : vector<1xf32> to vector<1x1x1xf32>
    %213 = vector.extract %212[0, 0, 0] : f32 from vector<1x1x1xf32>
    %214 = math.absf %193 : vector<1x1xf32>
    %215 = vector.shape_cast %214 : vector<1x1xf32> to vector<1x1x1xf32>
    %cst_87 = arith.constant dense<0.000000e+00> : vector<1xf32>
    %216 = vector.multi_reduction <add>, %215, %cst_87 [1, 2] : vector<1x1x1xf32> to vector<1xf32>
    %217 = vector.shape_cast %216 : vector<1xf32> to vector<1x1x1xf32>
    %218 = vector.extract %217[0, 0, 0] : f32 from vector<1x1x1xf32>
    %219 = math.absf %195 : vector<1x1xf32>
    %220 = vector.shape_cast %219 : vector<1x1xf32> to vector<1x1x1xf32>
    %cst_88 = arith.constant dense<0.000000e+00> : vector<1xf32>
    %221 = vector.multi_reduction <add>, %220, %cst_88 [1, 2] : vector<1x1x1xf32> to vector<1xf32>
    %222 = vector.shape_cast %221 : vector<1xf32> to vector<1x1x1xf32>
    %223 = vector.extract %222[0, 0, 0] : f32 from vector<1x1x1xf32>
    %224 = tpu.iota {dimensions = array<i32: 0>} : vector<8x128xi32>
    %c0_i32 = arith.constant 0 : i32
    %225 = vector.broadcast %c0_i32 : i32 to vector<8x128xi32>
    %226 = arith.cmpi eq, %224, %225 : vector<8x128xi32>
    %cst_89 = arith.constant 0.000000e+00 : f32
    %227 = vector.broadcast %203 : f32 to vector<8x128xf32>
    %228 = vector.broadcast %cst_89 : f32 to vector<8x128xf32>
    %229 = arith.select %226, %227, %228 : vector<8x128xi1>, vector<8x128xf32>
    %c1_i32 = arith.constant 1 : i32
    %230 = vector.broadcast %c1_i32 : i32 to vector<8x128xi32>
    %231 = arith.cmpi eq, %224, %230 : vector<8x128xi32>
    %cst_90 = arith.constant 0.000000e+00 : f32
    %232 = vector.broadcast %208 : f32 to vector<8x128xf32>
    %233 = vector.broadcast %cst_90 : f32 to vector<8x128xf32>
    %234 = arith.select %231, %232, %233 : vector<8x128xi1>, vector<8x128xf32>
    %235 = arith.addf %229, %234 : vector<8x128xf32>
    %c2_i32 = arith.constant 2 : i32
    %236 = vector.broadcast %c2_i32 : i32 to vector<8x128xi32>
    %237 = arith.cmpi eq, %224, %236 : vector<8x128xi32>
    %cst_91 = arith.constant 0.000000e+00 : f32
    %238 = vector.broadcast %213 : f32 to vector<8x128xf32>
    %239 = vector.broadcast %cst_91 : f32 to vector<8x128xf32>
    %240 = arith.select %237, %238, %239 : vector<8x128xi1>, vector<8x128xf32>
    %241 = arith.addf %235, %240 : vector<8x128xf32>
    %c3_i32 = arith.constant 3 : i32
    %242 = vector.broadcast %c3_i32 : i32 to vector<8x128xi32>
    %243 = arith.cmpi eq, %224, %242 : vector<8x128xi32>
    %cst_92 = arith.constant 0.000000e+00 : f32
    %244 = vector.broadcast %218 : f32 to vector<8x128xf32>
    %245 = vector.broadcast %cst_92 : f32 to vector<8x128xf32>
    %246 = arith.select %243, %244, %245 : vector<8x128xi1>, vector<8x128xf32>
    %247 = arith.addf %241, %246 : vector<8x128xf32>
    %c4_i32 = arith.constant 4 : i32
    %248 = vector.broadcast %c4_i32 : i32 to vector<8x128xi32>
    %249 = arith.cmpi eq, %224, %248 : vector<8x128xi32>
    %cst_93 = arith.constant 0.000000e+00 : f32
    %250 = vector.broadcast %223 : f32 to vector<8x128xf32>
    %251 = vector.broadcast %cst_93 : f32 to vector<8x128xf32>
    %252 = arith.select %249, %250, %251 : vector<8x128xi1>, vector<8x128xf32>
    %253 = arith.addf %247, %252 : vector<8x128xf32>
    %c0_94 = arith.constant 0 : index
    %c0_95 = arith.constant 0 : index
    %c0_96 = arith.constant 0 : index
    %254 = vector.load %arg13[%c0_94, %c0_95, %c0_96] : memref<1x8x128xf32, #tpu.memory_space<vmem>>, vector<1x8x128xf32>
    %255 = vector.shape_cast %254 : vector<1x8x128xf32> to vector<8x128xf32>
    %256 = vector.shape_cast %253 : vector<8x128xf32> to vector<1x8x128xf32>
    tpu.vector_store %arg13[%c0_94, %c0_95, %c0_96], %256 {strides = array<i32>} : memref<1x8x128xf32, #tpu.memory_space<vmem>>, vector<1x8x128xf32>,
    return
  }
  func.func @transform_0(%arg0: i32) -> (i32, i32, i32) {
    %c0_i32 = arith.constant 0 : i32
    %c0_i32_0 = arith.constant 0 : i32
    %c0_i32_1 = arith.constant 0 : i32
    return %arg0, %c0_i32, %c0_i32_0 : i32, i32, i32
  }
  func.func @transform_1(%arg0: i32) -> (i32, i32, i32) {
    %c0_i32 = arith.constant 0 : i32
    %c0_i32_0 = arith.constant 0 : i32
    %c0_i32_1 = arith.constant 0 : i32
    %c0_i32_2 = arith.constant 0 : i32
    return %c0_i32, %c0_i32_0, %c0_i32_1 : i32, i32, i32
  }
  func.func @transform_2(%arg0: i32) -> (i32, i32) {
    %c0_i32 = arith.constant 0 : i32
    %c0_i32_0 = arith.constant 0 : i32
    %c0_i32_1 = arith.constant 0 : i32
    return %c0_i32, %c0_i32_0 : i32, i32
  }
  func.func @transform_3(%arg0: i32) -> (i32, i32) {
    %c0_i32 = arith.constant 0 : i32
    %c0_i32_0 = arith.constant 0 : i32
    %c0_i32_1 = arith.constant 0 : i32
    return %c0_i32, %c0_i32_0 : i32, i32
  }
  func.func @transform_4(%arg0: i32) -> (i32, i32) {
    %c0_i32 = arith.constant 0 : i32
    %c0_i32_0 = arith.constant 0 : i32
    %c0_i32_1 = arith.constant 0 : i32
    return %c0_i32, %c0_i32_0 : i32, i32
  }
  func.func @transform_5(%arg0: i32) -> (i32, i32) {
    %c0_i32 = arith.constant 0 : i32
    %c0_i32_0 = arith.constant 0 : i32
    %c0_i32_1 = arith.constant 0 : i32
    return %c0_i32, %c0_i32_0 : i32, i32
  }
  func.func @transform_6(%arg0: i32) -> (i32, i32) {
    %c0_i32 = arith.constant 0 : i32
    %c0_i32_0 = arith.constant 0 : i32
    %c0_i32_1 = arith.constant 0 : i32
    return %c0_i32, %c0_i32_0 : i32, i32
  }
  func.func @transform_7(%arg0: i32) -> (i32, i32) {
    %c0_i32 = arith.constant 0 : i32
    %c0_i32_0 = arith.constant 0 : i32
    %c0_i32_1 = arith.constant 0 : i32
    return %c0_i32, %c0_i32_0 : i32, i32
  }
  func.func @transform_8(%arg0: i32) -> (i32, i32) {
    %c0_i32 = arith.constant 0 : i32
    %c0_i32_0 = arith.constant 0 : i32
    %c0_i32_1 = arith.constant 0 : i32
    return %c0_i32, %c0_i32_0 : i32, i32
  }
  func.func @transform_9(%arg0: i32) -> (i32, i32) {
    %c0_i32 = arith.constant 0 : i32
    %c0_i32_0 = arith.constant 0 : i32
    %c0_i32_1 = arith.constant 0 : i32
    return %c0_i32, %c0_i32_0 : i32, i32
  }
  func.func @transform_10(%arg0: i32) -> (i32, i32) {
    %c0_i32 = arith.constant 0 : i32
    %c0_i32_0 = arith.constant 0 : i32
    %c0_i32_1 = arith.constant 0 : i32
    return %c0_i32, %c0_i32_0 : i32, i32
  }
  func.func @transform_11(%arg0: i32) -> (i32, i32) {
    %c0_i32 = arith.constant 0 : i32
    %c0_i32_0 = arith.constant 0 : i32
    %c0_i32_1 = arith.constant 0 : i32
    return %c0_i32, %c0_i32_0 : i32, i32
  }
  func.func @transform_12(%arg0: i32) -> (i32, i32, i32) {
    %c0_i32 = arith.constant 0 : i32
    %c0_i32_0 = arith.constant 0 : i32
    %c0_i32_1 = arith.constant 0 : i32
    return %arg0, %c0_i32, %c0_i32_0 : i32, i32, i32
  }
}

module attributes {stable_mosaic.version = 11 : i64} {
  func.func @_celoss_kernel(%arg0: i32, %arg1: memref<1x1664x128xf32, #tpu.memory_space<vmem>>, %arg2: memref<2x8x3xf32, #tpu.memory_space<vmem>>, %arg3: memref<128x1664xbf16, #tpu.memory_space<vmem>>, %arg4: memref<128x1xf32, #tpu.memory_space<vmem>>, %arg5: memref<256x128xbf16, #tpu.memory_space<vmem>>, %arg6: memref<256x1xf32, #tpu.memory_space<vmem>>, %arg7: memref<256x1xf32, #tpu.memory_space<vmem>>, %arg8: memref<1x1xf32, #tpu.memory_space<vmem>>, %arg9: memref<128x256xf32, #tpu.memory_space<vmem>>, %arg10: memref<1x256xf32, #tpu.memory_space<vmem>>, %arg11: memref<256x3xf32, #tpu.memory_space<vmem>>, %arg12: memref<1x3xf32, #tpu.memory_space<vmem>>, %arg13: memref<1x8x128xf32, #tpu.memory_space<vmem>>) attributes {dimension_semantics = [#tpu.dimension_semantics<parallel>], iteration_bounds = array<i64: 2>, scalar_prefetch = 0 : i64, scratch_operands = 0 : i64, tpu.core_type = #tpu.core_type<tc>, window_params = [{transform_indices = @transform_0, window_bounds = array<i64: 1, 1664, 128>}, {pipeline_mode = #tpu.pipeline_mode<synchronous>, transform_indices = @transform_1, window_bounds = array<i64: 2, 8, 3>}, {pipeline_mode = #tpu.pipeline_mode<synchronous>, transform_indices = @transform_2, window_bounds = array<i64: 128, 1664>}, {pipeline_mode = #tpu.pipeline_mode<synchronous>, transform_indices = @transform_3, window_bounds = array<i64: 128, 1>}, {pipeline_mode = #tpu.pipeline_mode<synchronous>, transform_indices = @transform_4, window_bounds = array<i64: 256, 128>}, {pipeline_mode = #tpu.pipeline_mode<synchronous>, transform_indices = @transform_5, window_bounds = array<i64: 256, 1>}, {pipeline_mode = #tpu.pipeline_mode<synchronous>, transform_indices = @transform_6, window_bounds = array<i64: 256, 1>}, {pipeline_mode = #tpu.pipeline_mode<synchronous>, transform_indices = @transform_7, window_bounds = array<i64: 1, 1>}, {pipeline_mode = #tpu.pipeline_mode<synchronous>, transform_indices = @transform_8, window_bounds = array<i64: 128, 256>}, {pipeline_mode = #tpu.pipeline_mode<synchronous>, transform_indices = @transform_9, window_bounds = array<i64: 1, 256>}, {pipeline_mode = #tpu.pipeline_mode<synchronous>, transform_indices = @transform_10, window_bounds = array<i64: 256, 3>}, {pipeline_mode = #tpu.pipeline_mode<synchronous>, transform_indices = @transform_11, window_bounds = array<i64: 1, 3>}, {transform_indices = @transform_12, window_bounds = array<i64: 1, 8, 128>}]} {
    %c0 = arith.constant 0 : index
    %c0_0 = arith.constant 0 : index
    %c0_1 = arith.constant 0 : index
    %0 = vector.load %arg1[%c0, %c0_0, %c0_1] : memref<1x1664x128xf32, #tpu.memory_space<vmem>>, vector<1x1664x128xf32>
    %1 = vector.shape_cast %0 : vector<1x1664x128xf32> to vector<1664x128xf32>
    %2 = arith.truncf %1 : vector<1664x128xf32> to vector<1664x128xbf16>
    %c0_2 = arith.constant 0 : index
    %c0_3 = arith.constant 0 : index
    %3 = vector.load %arg3[%c0_2, %c0_3] : memref<128x1664xbf16, #tpu.memory_space<vmem>>, vector<128x1664xbf16>
    %cst = arith.constant dense<0.000000e+00> : vector<128x128xf32>
    %4 = tpu.matmul %3, %2, %cst {dimension_numbers = #tpu.dot_dimension_numbers<[1], [0], [0], [1], [0, 0, 1, 1], [], []>} : vector<128x1664xbf16>, vector<1664x128xbf16>, vector<128x128xf32> -> vector<128x128xf32>
    %c0_4 = arith.constant 0 : index
    %c0_5 = arith.constant 0 : index
    %5 = vector.load %arg4[%c0_4, %c0_5] : memref<128x1xf32, #tpu.memory_space<vmem>>, vector<128x1xf32>
    %6 = vector.broadcast %5 : vector<128x1xf32> to vector<128x128xf32>
    %7 = arith.addf %4, %6 : vector<128x128xf32>
    %cst_6 = arith.constant 0.707106769 : f32
    %8 = vector.broadcast %cst_6 : f32 to vector<128x128xf32>
    %9 = arith.mulf %7, %8 : vector<128x128xf32>
    %10 = math.absf %9 : vector<128x128xf32>
    %cst_7 = arith.constant 0.327591091 : f32
    %11 = vector.broadcast %cst_7 : f32 to vector<128x128xf32>
    %12 = arith.mulf %11, %10 : vector<128x128xf32>
    %cst_8 = arith.constant 1.000000e+00 : f32
    %13 = vector.broadcast %cst_8 : f32 to vector<128x128xf32>
    %14 = arith.addf %13, %12 : vector<128x128xf32>
    %15 = tpu.reciprocal %14 {approx = true} : vector<128x128xf32> -> vector<128x128xf32>
    %cst_9 = arith.constant 1.06140542 : f32
    %16 = vector.broadcast %cst_9 : f32 to vector<128x128xf32>
    %17 = arith.mulf %16, %15 : vector<128x128xf32>
    %cst_10 = arith.constant -1.45315206 : f32
    %18 = vector.broadcast %cst_10 : f32 to vector<128x128xf32>
    %19 = arith.addf %17, %18 : vector<128x128xf32>
    %20 = arith.mulf %19, %15 : vector<128x128xf32>
    %cst_11 = arith.constant 1.42141378 : f32
    %21 = vector.broadcast %cst_11 : f32 to vector<128x128xf32>
    %22 = arith.addf %20, %21 : vector<128x128xf32>
    %23 = arith.mulf %22, %15 : vector<128x128xf32>
    %cst_12 = arith.constant -0.284496725 : f32
    %24 = vector.broadcast %cst_12 : f32 to vector<128x128xf32>
    %25 = arith.addf %23, %24 : vector<128x128xf32>
    %26 = arith.mulf %25, %15 : vector<128x128xf32>
    %cst_13 = arith.constant 0.254829586 : f32
    %27 = vector.broadcast %cst_13 : f32 to vector<128x128xf32>
    %28 = arith.addf %26, %27 : vector<128x128xf32>
    %29 = arith.mulf %28, %15 : vector<128x128xf32>
    %30 = arith.mulf %10, %10 : vector<128x128xf32>
    %cst_14 = arith.constant 0.000000e+00 : f32
    %31 = vector.broadcast %cst_14 : f32 to vector<128x128xf32>
    %32 = arith.subf %31, %30 : vector<128x128xf32>
    %33 = math.exp %32 : vector<128x128xf32>
    %34 = arith.mulf %29, %33 : vector<128x128xf32>
    %cst_15 = arith.constant 1.000000e+00 : f32
    %35 = vector.broadcast %cst_15 : f32 to vector<128x128xf32>
    %36 = arith.subf %35, %34 : vector<128x128xf32>
    %cst_16 = arith.constant 0.000000e+00 : f32
    %37 = vector.broadcast %cst_16 : f32 to vector<128x128xf32>
    %38 = arith.cmpf olt, %9, %37 : vector<128x128xf32>
    %cst_17 = arith.constant 0.000000e+00 : f32
    %39 = vector.broadcast %cst_17 : f32 to vector<128x128xf32>
    %40 = arith.subf %39, %36 : vector<128x128xf32>
    %41 = arith.select %38, %40, %36 : vector<128x128xi1>, vector<128x128xf32>
    %cst_18 = arith.constant 5.000000e-01 : f32
    %42 = vector.broadcast %cst_18 : f32 to vector<128x128xf32>
    %43 = arith.mulf %42, %7 : vector<128x128xf32>
    %cst_19 = arith.constant 1.000000e+00 : f32
    %44 = vector.broadcast %cst_19 : f32 to vector<128x128xf32>
    %45 = arith.addf %44, %41 : vector<128x128xf32>
    %46 = arith.mulf %43, %45 : vector<128x128xf32>
    %c0_20 = arith.constant 0 : index
    %c0_21 = arith.constant 0 : index
    %47 = vector.load %arg5[%c0_20, %c0_21] : memref<256x128xbf16, #tpu.memory_space<vmem>>, vector<256x128xbf16>
    %48 = arith.truncf %46 : vector<128x128xf32> to vector<128x128xbf16>
    %cst_22 = arith.constant dense<0.000000e+00> : vector<256x128xf32>
    %49 = tpu.matmul %47, %48, %cst_22 {dimension_numbers = #tpu.dot_dimension_numbers<[1], [0], [0], [1], [0, 0, 1, 1], [], []>} : vector<256x128xbf16>, vector<128x128xbf16>, vector<256x128xf32> -> vector<256x128xf32>
    %c0_23 = arith.constant 0 : index
    %c0_24 = arith.constant 0 : index
    %50 = vector.load %arg6[%c0_23, %c0_24] : memref<256x1xf32, #tpu.memory_space<vmem>>, vector<256x1xf32>
    %51 = vector.broadcast %50 : vector<256x1xf32> to vector<256x128xf32>
    %52 = arith.addf %49, %51 : vector<256x128xf32>
    %cst_25 = arith.constant 0.707106769 : f32
    %53 = vector.broadcast %cst_25 : f32 to vector<256x128xf32>
    %54 = arith.mulf %52, %53 : vector<256x128xf32>
    %55 = math.absf %54 : vector<256x128xf32>
    %cst_26 = arith.constant 0.327591091 : f32
    %56 = vector.broadcast %cst_26 : f32 to vector<256x128xf32>
    %57 = arith.mulf %56, %55 : vector<256x128xf32>
    %cst_27 = arith.constant 1.000000e+00 : f32
    %58 = vector.broadcast %cst_27 : f32 to vector<256x128xf32>
    %59 = arith.addf %58, %57 : vector<256x128xf32>
    %60 = tpu.reciprocal %59 {approx = true} : vector<256x128xf32> -> vector<256x128xf32>
    %cst_28 = arith.constant 1.06140542 : f32
    %61 = vector.broadcast %cst_28 : f32 to vector<256x128xf32>
    %62 = arith.mulf %61, %60 : vector<256x128xf32>
    %cst_29 = arith.constant -1.45315206 : f32
    %63 = vector.broadcast %cst_29 : f32 to vector<256x128xf32>
    %64 = arith.addf %62, %63 : vector<256x128xf32>
    %65 = arith.mulf %64, %60 : vector<256x128xf32>
    %cst_30 = arith.constant 1.42141378 : f32
    %66 = vector.broadcast %cst_30 : f32 to vector<256x128xf32>
    %67 = arith.addf %65, %66 : vector<256x128xf32>
    %68 = arith.mulf %67, %60 : vector<256x128xf32>
    %cst_31 = arith.constant -0.284496725 : f32
    %69 = vector.broadcast %cst_31 : f32 to vector<256x128xf32>
    %70 = arith.addf %68, %69 : vector<256x128xf32>
    %71 = arith.mulf %70, %60 : vector<256x128xf32>
    %cst_32 = arith.constant 0.254829586 : f32
    %72 = vector.broadcast %cst_32 : f32 to vector<256x128xf32>
    %73 = arith.addf %71, %72 : vector<256x128xf32>
    %74 = arith.mulf %73, %60 : vector<256x128xf32>
    %75 = arith.mulf %55, %55 : vector<256x128xf32>
    %cst_33 = arith.constant 0.000000e+00 : f32
    %76 = vector.broadcast %cst_33 : f32 to vector<256x128xf32>
    %77 = arith.subf %76, %75 : vector<256x128xf32>
    %78 = math.exp %77 : vector<256x128xf32>
    %79 = arith.mulf %74, %78 : vector<256x128xf32>
    %cst_34 = arith.constant 1.000000e+00 : f32
    %80 = vector.broadcast %cst_34 : f32 to vector<256x128xf32>
    %81 = arith.subf %80, %79 : vector<256x128xf32>
    %cst_35 = arith.constant 0.000000e+00 : f32
    %82 = vector.broadcast %cst_35 : f32 to vector<256x128xf32>
    %83 = arith.cmpf olt, %54, %82 : vector<256x128xf32>
    %cst_36 = arith.constant 0.000000e+00 : f32
    %84 = vector.broadcast %cst_36 : f32 to vector<256x128xf32>
    %85 = arith.subf %84, %81 : vector<256x128xf32>
    %86 = arith.select %83, %85, %81 : vector<256x128xi1>, vector<256x128xf32>
    %cst_37 = arith.constant 5.000000e-01 : f32
    %87 = vector.broadcast %cst_37 : f32 to vector<256x128xf32>
    %88 = arith.mulf %87, %52 : vector<256x128xf32>
    %cst_38 = arith.constant 1.000000e+00 : f32
    %89 = vector.broadcast %cst_38 : f32 to vector<256x128xf32>
    %90 = arith.addf %89, %86 : vector<256x128xf32>
    %91 = arith.mulf %88, %90 : vector<256x128xf32>
    %c0_39 = arith.constant 0 : index
    %c0_40 = arith.constant 0 : index
    %92 = vector.load %arg7[%c0_39, %c0_40] : memref<256x1xf32, #tpu.memory_space<vmem>>, vector<256x1xf32>
    %93 = vector.broadcast %92 : vector<256x1xf32> to vector<256x128xf32>
    %94 = arith.mulf %91, %93 : vector<256x128xf32>
    %cst_41 = arith.constant dense<0.000000e+00> : vector<128xf32>
    %95 = vector.multi_reduction <add>, %94, %cst_41 [0] : vector<256x128xf32> to vector<128xf32>
    %96 = vector.shape_cast %95 : vector<128xf32> to vector<1x128xf32>
    %c0_42 = arith.constant 0 : index
    %c0_43 = arith.constant 0 : index
    %97 = vector.load %arg8[%c0_42, %c0_43] : memref<1x1xf32, #tpu.memory_space<vmem>>, vector<1x1xf32>
    %98 = vector.broadcast %97 : vector<1x1xf32> to vector<1x128xf32>
    %99 = arith.addf %96, %98 : vector<1x128xf32>
    %cst_44 = arith.constant 0.707106769 : f32
    %100 = vector.broadcast %cst_44 : f32 to vector<1x128xf32>
    %101 = arith.mulf %99, %100 : vector<1x128xf32>
    %102 = math.absf %101 : vector<1x128xf32>
    %cst_45 = arith.constant 0.327591091 : f32
    %103 = vector.broadcast %cst_45 : f32 to vector<1x128xf32>
    %104 = arith.mulf %103, %102 : vector<1x128xf32>
    %cst_46 = arith.constant 1.000000e+00 : f32
    %105 = vector.broadcast %cst_46 : f32 to vector<1x128xf32>
    %106 = arith.addf %105, %104 : vector<1x128xf32>
    %107 = tpu.reciprocal %106 {approx = true} : vector<1x128xf32> -> vector<1x128xf32>
    %cst_47 = arith.constant 1.06140542 : f32
    %108 = vector.broadcast %cst_47 : f32 to vector<1x128xf32>
    %109 = arith.mulf %108, %107 : vector<1x128xf32>
    %cst_48 = arith.constant -1.45315206 : f32
    %110 = vector.broadcast %cst_48 : f32 to vector<1x128xf32>
    %111 = arith.addf %109, %110 : vector<1x128xf32>
    %112 = arith.mulf %111, %107 : vector<1x128xf32>
    %cst_49 = arith.constant 1.42141378 : f32
    %113 = vector.broadcast %cst_49 : f32 to vector<1x128xf32>
    %114 = arith.addf %112, %113 : vector<1x128xf32>
    %115 = arith.mulf %114, %107 : vector<1x128xf32>
    %cst_50 = arith.constant -0.284496725 : f32
    %116 = vector.broadcast %cst_50 : f32 to vector<1x128xf32>
    %117 = arith.addf %115, %116 : vector<1x128xf32>
    %118 = arith.mulf %117, %107 : vector<1x128xf32>
    %cst_51 = arith.constant 0.254829586 : f32
    %119 = vector.broadcast %cst_51 : f32 to vector<1x128xf32>
    %120 = arith.addf %118, %119 : vector<1x128xf32>
    %121 = arith.mulf %120, %107 : vector<1x128xf32>
    %122 = arith.mulf %102, %102 : vector<1x128xf32>
    %cst_52 = arith.constant 0.000000e+00 : f32
    %123 = vector.broadcast %cst_52 : f32 to vector<1x128xf32>
    %124 = arith.subf %123, %122 : vector<1x128xf32>
    %125 = math.exp %124 : vector<1x128xf32>
    %126 = arith.mulf %121, %125 : vector<1x128xf32>
    %cst_53 = arith.constant 1.000000e+00 : f32
    %127 = vector.broadcast %cst_53 : f32 to vector<1x128xf32>
    %128 = arith.subf %127, %126 : vector<1x128xf32>
    %cst_54 = arith.constant 0.000000e+00 : f32
    %129 = vector.broadcast %cst_54 : f32 to vector<1x128xf32>
    %130 = arith.cmpf olt, %101, %129 : vector<1x128xf32>
    %cst_55 = arith.constant 0.000000e+00 : f32
    %131 = vector.broadcast %cst_55 : f32 to vector<1x128xf32>
    %132 = arith.subf %131, %128 : vector<1x128xf32>
    %133 = arith.select %130, %132, %128 : vector<1x128xi1>, vector<1x128xf32>
    %cst_56 = arith.constant 5.000000e-01 : f32
    %134 = vector.broadcast %cst_56 : f32 to vector<1x128xf32>
    %135 = arith.mulf %134, %99 : vector<1x128xf32>
    %cst_57 = arith.constant 1.000000e+00 : f32
    %136 = vector.broadcast %cst_57 : f32 to vector<1x128xf32>
    %137 = arith.addf %136, %133 : vector<1x128xf32>
    %138 = arith.mulf %135, %137 : vector<1x128xf32>
    %c0_58 = arith.constant 0 : index
    %c0_59 = arith.constant 0 : index
    %139 = vector.load %arg9[%c0_58, %c0_59] : memref<128x256xf32, #tpu.memory_space<vmem>>, vector<128x256xf32>
    %cst_60 = arith.constant dense<0.000000e+00> : vector<1x256xf32>
    %140 = tpu.matmul %138, %139, %cst_60 {dimension_numbers = #tpu.dot_dimension_numbers<[1], [0], [0], [1], [0, 0, 1, 1], [], []>} : vector<1x128xf32>, vector<128x256xf32>, vector<1x256xf32> -> vector<1x256xf32>
    %c0_61 = arith.constant 0 : index
    %c0_62 = arith.constant 0 : index
    %141 = vector.load %arg10[%c0_61, %c0_62] : memref<1x256xf32, #tpu.memory_space<vmem>>, vector<1x256xf32>
    %142 = arith.addf %140, %141 : vector<1x256xf32>
    %cst_63 = arith.constant 0.707106769 : f32
    %143 = vector.broadcast %cst_63 : f32 to vector<1x256xf32>
    %144 = arith.mulf %142, %143 : vector<1x256xf32>
    %145 = math.absf %144 : vector<1x256xf32>
    %cst_64 = arith.constant 0.327591091 : f32
    %146 = vector.broadcast %cst_64 : f32 to vector<1x256xf32>
    %147 = arith.mulf %146, %145 : vector<1x256xf32>
    %cst_65 = arith.constant 1.000000e+00 : f32
    %148 = vector.broadcast %cst_65 : f32 to vector<1x256xf32>
    %149 = arith.addf %148, %147 : vector<1x256xf32>
    %150 = tpu.reciprocal %149 {approx = true} : vector<1x256xf32> -> vector<1x256xf32>
    %cst_66 = arith.constant 1.06140542 : f32
    %151 = vector.broadcast %cst_66 : f32 to vector<1x256xf32>
    %152 = arith.mulf %151, %150 : vector<1x256xf32>
    %cst_67 = arith.constant -1.45315206 : f32
    %153 = vector.broadcast %cst_67 : f32 to vector<1x256xf32>
    %154 = arith.addf %152, %153 : vector<1x256xf32>
    %155 = arith.mulf %154, %150 : vector<1x256xf32>
    %cst_68 = arith.constant 1.42141378 : f32
    %156 = vector.broadcast %cst_68 : f32 to vector<1x256xf32>
    %157 = arith.addf %155, %156 : vector<1x256xf32>
    %158 = arith.mulf %157, %150 : vector<1x256xf32>
    %cst_69 = arith.constant -0.284496725 : f32
    %159 = vector.broadcast %cst_69 : f32 to vector<1x256xf32>
    %160 = arith.addf %158, %159 : vector<1x256xf32>
    %161 = arith.mulf %160, %150 : vector<1x256xf32>
    %cst_70 = arith.constant 0.254829586 : f32
    %162 = vector.broadcast %cst_70 : f32 to vector<1x256xf32>
    %163 = arith.addf %161, %162 : vector<1x256xf32>
    %164 = arith.mulf %163, %150 : vector<1x256xf32>
    %165 = arith.mulf %145, %145 : vector<1x256xf32>
    %cst_71 = arith.constant 0.000000e+00 : f32
    %166 = vector.broadcast %cst_71 : f32 to vector<1x256xf32>
    %167 = arith.subf %166, %165 : vector<1x256xf32>
    %168 = math.exp %167 : vector<1x256xf32>
    %169 = arith.mulf %164, %168 : vector<1x256xf32>
    %cst_72 = arith.constant 1.000000e+00 : f32
    %170 = vector.broadcast %cst_72 : f32 to vector<1x256xf32>
    %171 = arith.subf %170, %169 : vector<1x256xf32>
    %cst_73 = arith.constant 0.000000e+00 : f32
    %172 = vector.broadcast %cst_73 : f32 to vector<1x256xf32>
    %173 = arith.cmpf olt, %144, %172 : vector<1x256xf32>
    %cst_74 = arith.constant 0.000000e+00 : f32
    %174 = vector.broadcast %cst_74 : f32 to vector<1x256xf32>
    %175 = arith.subf %174, %171 : vector<1x256xf32>
    %176 = arith.select %173, %175, %171 : vector<1x256xi1>, vector<1x256xf32>
    %cst_75 = arith.constant 5.000000e-01 : f32
    %177 = vector.broadcast %cst_75 : f32 to vector<1x256xf32>
    %178 = arith.mulf %177, %142 : vector<1x256xf32>
    %cst_76 = arith.constant 1.000000e+00 : f32
    %179 = vector.broadcast %cst_76 : f32 to vector<1x256xf32>
    %180 = arith.addf %179, %176 : vector<1x256xf32>
    %181 = arith.mulf %178, %180 : vector<1x256xf32>
    %c0_77 = arith.constant 0 : index
    %c0_78 = arith.constant 0 : index
    %182 = vector.load %arg11[%c0_77, %c0_78] : memref<256x3xf32, #tpu.memory_space<vmem>>, vector<256x3xf32>
    %cst_79 = arith.constant dense<0.000000e+00> : vector<1x3xf32>
    %183 = tpu.matmul %181, %182, %cst_79 {dimension_numbers = #tpu.dot_dimension_numbers<[1], [0], [0], [1], [0, 0, 1, 1], [], []>} : vector<1x256xf32>, vector<256x3xf32>, vector<1x3xf32> -> vector<1x3xf32>
    %c0_80 = arith.constant 0 : index
    %c0_81 = arith.constant 0 : index
    %184 = vector.load %arg12[%c0_80, %c0_81] : memref<1x3xf32, #tpu.memory_space<vmem>>, vector<1x3xf32>
    %185 = arith.addf %183, %184 : vector<1x3xf32>
    %186 = arith.index_cast %arg0 : i32 to index
    %c0_82 = arith.constant 0 : index
    %c0_83 = arith.constant 0 : index
    %187 = vector.load %arg2[%186, %c0_82, %c0_83] : memref<2x8x3xf32, #tpu.memory_space<vmem>>, vector<1x8x3xf32>
    %188 = vector.shape_cast %187 : vector<1x8x3xf32> to vector<8x3xf32>
    %189 = vector.extract_strided_slice %188 {offsets = [0, 0], sizes = [1, 3], strides = [1, 1]} : vector<8x3xf32> to vector<1x3xf32>
    %190 = vector.extract_strided_slice %185 {offsets = [0, 0], sizes = [1, 1], strides = [1, 1]} : vector<1x3xf32> to vector<1x1xf32>
    %191 = vector.extract_strided_slice %185 {offsets = [0, 2], sizes = [1, 1], strides = [1, 1]} : vector<1x3xf32> to vector<1x1xf32>
    %192 = vector.extract_strided_slice %189 {offsets = [0, 0], sizes = [1, 1], strides = [1, 1]} : vector<1x3xf32> to vector<1x1xf32>
    %193 = arith.subf %190, %192 : vector<1x1xf32>
    %194 = vector.extract_strided_slice %189 {offsets = [0, 2], sizes = [1, 1], strides = [1, 1]} : vector<1x3xf32> to vector<1x1xf32>
    %195 = arith.subf %191, %194 : vector<1x1xf32>
    %196 = arith.subf %191, %190 : vector<1x1xf32>
    %197 = vector.extract_strided_slice %189 {offsets = [0, 1], sizes = [1, 1], strides = [1, 1]} : vector<1x3xf32> to vector<1x1xf32>
    %198 = arith.subf %196, %197 : vector<1x1xf32>
    %199 = arith.mulf %193, %193 : vector<1x1xf32>
    %200 = vector.shape_cast %199 : vector<1x1xf32> to vector<1x1x1xf32>
    %cst_84 = arith.constant dense<0.000000e+00> : vector<1xf32>
    %201 = vector.multi_reduction <add>, %200, %cst_84 [1, 2] : vector<1x1x1xf32> to vector<1xf32>
    %202 = vector.shape_cast %201 : vector<1xf32> to vector<1x1x1xf32>
    %203 = vector.extract %202[0, 0, 0] : f32 from vector<1x1x1xf32>
    %204 = arith.mulf %195, %195 : vector<1x1xf32>
    %205 = vector.shape_cast %204 : vector<1x1xf32> to vector<1x1x1xf32>
    %cst_85 = arith.constant dense<0.000000e+00> : vector<1xf32>
    %206 = vector.multi_reduction <add>, %205, %cst_85 [1, 2] : vector<1x1x1xf32> to vector<1xf32>
    %207 = vector.shape_cast %206 : vector<1xf32> to vector<1x1x1xf32>
    %208 = vector.extract %207[0, 0, 0] : f32 from vector<1x1x1xf32>
    %209 = arith.mulf %198, %198 : vector<1x1xf32>
    %210 = vector.shape_cast %209 : vector<1x1xf32> to vector<1x1x1xf32>
    %cst_86 = arith.constant dense<0.000000e+00> : vector<1xf32>
    %211 = vector.multi_reduction <add>, %210, %cst_86 [1, 2] : vector<1x1x1xf32> to vector<1xf32>
    %212 = vector.shape_cast %211 : vector<1xf32> to vector<1x1x1xf32>
    %213 = vector.extract %212[0, 0, 0] : f32 from vector<1x1x1xf32>
    %214 = math.absf %193 : vector<1x1xf32>
    %215 = vector.shape_cast %214 : vector<1x1xf32> to vector<1x1x1xf32>
    %cst_87 = arith.constant dense<0.000000e+00> : vector<1xf32>
    %216 = vector.multi_reduction <add>, %215, %cst_87 [1, 2] : vector<1x1x1xf32> to vector<1xf32>
    %217 = vector.shape_cast %216 : vector<1xf32> to vector<1x1x1xf32>
    %218 = vector.extract %217[0, 0, 0] : f32 from vector<1x1x1xf32>
    %219 = math.absf %195 : vector<1x1xf32>
    %220 = vector.shape_cast %219 : vector<1x1xf32> to vector<1x1x1xf32>
    %cst_88 = arith.constant dense<0.000000e+00> : vector<1xf32>
    %221 = vector.multi_reduction <add>, %220, %cst_88 [1, 2] : vector<1x1x1xf32> to vector<1xf32>
    %222 = vector.shape_cast %221 : vector<1xf32> to vector<1x1x1xf32>
    %223 = vector.extract %222[0, 0, 0] : f32 from vector<1x1x1xf32>
    %224 = tpu.iota {dimensions = array<i32: 0>} : vector<8x128xi32>
    %c0_i32 = arith.constant 0 : i32
    %225 = vector.broadcast %c0_i32 : i32 to vector<8x128xi32>
    %226 = arith.cmpi eq, %224, %225 : vector<8x128xi32>
    %cst_89 = arith.constant 0.000000e+00 : f32
    %227 = vector.broadcast %203 : f32 to vector<8x128xf32>
    %228 = vector.broadcast %cst_89 : f32 to vector<8x128xf32>
    %229 = arith.select %226, %227, %228 : vector<8x128xi1>, vector<8x128xf32>
    %c1_i32 = arith.constant 1 : i32
    %230 = vector.broadcast %c1_i32 : i32 to vector<8x128xi32>
    %231 = arith.cmpi eq, %224, %230 : vector<8x128xi32>
    %cst_90 = arith.constant 0.000000e+00 : f32
    %232 = vector.broadcast %208 : f32 to vector<8x128xf32>
    %233 = vector.broadcast %cst_90 : f32 to vector<8x128xf32>
    %234 = arith.select %231, %232, %233 : vector<8x128xi1>, vector<8x128xf32>
    %235 = arith.addf %229, %234 : vector<8x128xf32>
    %c2_i32 = arith.constant 2 : i32
    %236 = vector.broadcast %c2_i32 : i32 to vector<8x128xi32>
    %237 = arith.cmpi eq, %224, %236 : vector<8x128xi32>
    %cst_91 = arith.constant 0.000000e+00 : f32
    %238 = vector.broadcast %213 : f32 to vector<8x128xf32>
    %239 = vector.broadcast %cst_91 : f32 to vector<8x128xf32>
    %240 = arith.select %237, %238, %239 : vector<8x128xi1>, vector<8x128xf32>
    %241 = arith.addf %235, %240 : vector<8x128xf32>
    %c3_i32 = arith.constant 3 : i32
    %242 = vector.broadcast %c3_i32 : i32 to vector<8x128xi32>
    %243 = arith.cmpi eq, %224, %242 : vector<8x128xi32>
    %cst_92 = arith.constant 0.000000e+00 : f32
    %244 = vector.broadcast %218 : f32 to vector<8x128xf32>
    %245 = vector.broadcast %cst_92 : f32 to vector<8x128xf32>
    %246 = arith.select %243, %244, %245 : vector<8x128xi1>, vector<8x128xf32>
    %247 = arith.addf %241, %246 : vector<8x128xf32>
    %c4_i32 = arith.constant 4 : i32
    %248 = vector.broadcast %c4_i32 : i32 to vector<8x128xi32>
    %249 = arith.cmpi eq, %224, %248 : vector<8x128xi32>
    %cst_93 = arith.constant 0.000000e+00 : f32
    %250 = vector.broadcast %223 : f32 to vector<8x128xf32>
    %251 = vector.broadcast %cst_93 : f32 to vector<8x128xf32>
    %252 = arith.select %249, %250, %251 : vector<8x128xi1>, vector<8x128xf32>
    %253 = arith.addf %247, %252 : vector<8x128xf32>
    %c0_94 = arith.constant 0 : index
    %c0_95 = arith.constant 0 : index
    %c0_96 = arith.constant 0 : index
    %254 = vector.load %arg13[%c0_94, %c0_95, %c0_96] : memref<1x8x128xf32, #tpu.memory_space<vmem>>, vector<1x8x128xf32>
    %255 = vector.shape_cast %254 : vector<1x8x128xf32> to vector<8x128xf32>
    %256 = vector.shape_cast %253 : vector<8x128xf32> to vector<1x8x128xf32>
    tpu.vector_store %arg13[%c0_94, %c0_95, %c0_96], %256 {strides = array<i32>} : memref<1x8x128xf32, #tpu.memory_space<vmem>>, vector<1x8x128xf32>,
    return
  }
  func.func @transform_0(%arg0: i32) -> (i32, i32, i32) {
    %c0_i32 = arith.constant 0 : i32
    %c0_i32_0 = arith.constant 0 : i32
    %c0_i32_1 = arith.constant 0 : i32
    return %arg0, %c0_i32, %c0_i32_0 : i32, i32, i32
  }
  func.func @transform_1(%arg0: i32) -> (i32, i32, i32) {
    %c0_i32 = arith.constant 0 : i32
    %c0_i32_0 = arith.constant 0 : i32
    %c0_i32_1 = arith.constant 0 : i32
    %c0_i32_2 = arith.constant 0 : i32
    return %c0_i32, %c0_i32_0, %c0_i32_1 : i32, i32, i32
  }
  func.func @transform_2(%arg0: i32) -> (i32, i32) {
    %c0_i32 = arith.constant 0 : i32
    %c0_i32_0 = arith.constant 0 : i32
    %c0_i32_1 = arith.constant 0 : i32
    return %c0_i32, %c0_i32_0 : i32, i32
  }
  func.func @transform_3(%arg0: i32) -> (i32, i32) {
    %c0_i32 = arith.constant 0 : i32
    %c0_i32_0 = arith.constant 0 : i32
    %c0_i32_1 = arith.constant 0 : i32
    return %c0_i32, %c0_i32_0 : i32, i32
  }
  func.func @transform_4(%arg0: i32) -> (i32, i32) {
    %c0_i32 = arith.constant 0 : i32
    %c0_i32_0 = arith.constant 0 : i32
    %c0_i32_1 = arith.constant 0 : i32
    return %c0_i32, %c0_i32_0 : i32, i32
  }
  func.func @transform_5(%arg0: i32) -> (i32, i32) {
    %c0_i32 = arith.constant 0 : i32
    %c0_i32_0 = arith.constant 0 : i32
    %c0_i32_1 = arith.constant 0 : i32
    return %c0_i32, %c0_i32_0 : i32, i32
  }
  func.func @transform_6(%arg0: i32) -> (i32, i32) {
    %c0_i32 = arith.constant 0 : i32
    %c0_i32_0 = arith.constant 0 : i32
    %c0_i32_1 = arith.constant 0 : i32
    return %c0_i32, %c0_i32_0 : i32, i32
  }
  func.func @transform_7(%arg0: i32) -> (i32, i32) {
    %c0_i32 = arith.constant 0 : i32
    %c0_i32_0 = arith.constant 0 : i32
    %c0_i32_1 = arith.constant 0 : i32
    return %c0_i32, %c0_i32_0 : i32, i32
  }
  func.func @transform_8(%arg0: i32) -> (i32, i32) {
    %c0_i32 = arith.constant 0 : i32
    %c0_i32_0 = arith.constant 0 : i32
    %c0_i32_1 = arith.constant 0 : i32
    return %c0_i32, %c0_i32_0 : i32, i32
  }
  func.func @transform_9(%arg0: i32) -> (i32, i32) {
    %c0_i32 = arith.constant 0 : i32
    %c0_i32_0 = arith.constant 0 : i32
    %c0_i32_1 = arith.constant 0 : i32
    return %c0_i32, %c0_i32_0 : i32, i32
  }
  func.func @transform_10(%arg0: i32) -> (i32, i32) {
    %c0_i32 = arith.constant 0 : i32
    %c0_i32_0 = arith.constant 0 : i32
    %c0_i32_1 = arith.constant 0 : i32
    return %c0_i32, %c0_i32_0 : i32, i32
  }
  func.func @transform_11(%arg0: i32) -> (i32, i32) {
    %c0_i32 = arith.constant 0 : i32
    %c0_i32_0 = arith.constant 0 : i32
    %c0_i32_1 = arith.constant 0 : i32
    return %c0_i32, %c0_i32_0 : i32, i32
  }
  func.func @transform_12(%arg0: i32) -> (i32, i32, i32) {
    %c0_i32 = arith.constant 0 : i32
    %c0_i32_0 = arith.constant 0 : i32
    %c0_i32_1 = arith.constant 0 : i32
    return %arg0, %c0_i32, %c0_i32_0 : i32, i32, i32
  }
}

</mosaic_0001>

<llo_original>
// kernel: tpu_custom_call.1
$region0: #{tpu_custom_call.1}
  #allocation0 [shape = 'u32[]', space=smem, size = 0x4, offset = 0x4, fixed_abs, tag = 'smem constant byte address 0x4 - core index']
  #allocation1 [shape = 'u32[144,128]{1,0:T(1,128)}', space=vmem, size = 0x12000, scoped, tag = 'internal scratch']
  #allocation2 [shape = 'f32[1,1]{1,0:T(1,128)S(1)}', space=vmem, size = 0x200, scoped, tag = 'scoped memory for tpu_custom_call.1']
  %s0 = inlined_call_operand.hbm [shape: f32[2,1664,128], index: 0, kind: input, shape index: {}]
  %s1 = inlined_call_operand.vmem [shape: f32[2,8,3], index: 1, kind: input, shape index: {}]
  %s2 = inlined_call_operand.hbm [shape: bf16[128,1664], index: 2, kind: input, shape index: {}]
  %s3 = inlined_call_operand.vmem [shape: f32[128,1], index: 3, kind: input, shape index: {}]
  %s4 = inlined_call_operand.hbm [shape: bf16[256,128], index: 4, kind: input, shape index: {}]
  %s5 = inlined_call_operand.vmem [shape: f32[256,1], index: 5, kind: input, shape index: {}]
  %s6 = inlined_call_operand.vmem [shape: f32[256,1], index: 6, kind: input, shape index: {}]
  %s7 = inlined_call_operand.<no memory space> [shape: f32[1,1], index: 7, kind: input, shape index: {}]
  %s8 = inlined_call_operand.hbm [shape: f32[128,256], index: 8, kind: input, shape index: {}]
  %s9 = inlined_call_operand.hbm [shape: f32[1,256], index: 9, kind: input, shape index: {}]
  %s10 = inlined_call_operand.vmem [shape: f32[256,3], index: 10, kind: input, shape index: {}]
  %s11 = inlined_call_operand.hbm [shape: f32[1,3], index: 11, kind: input, shape index: {}]
  %s12 = inlined_call_operand.hbm [shape: f32[2,8,128], index: 12, kind: output, shape index: {}]
  %s13 = sld [smem:[#allocation0]]
  $region105: #{tpu_custom_call.1} parent=0
    _
  %s15 = ssub.s32 1, %s13
  %s16 = scalar_select 0, %s15, %s13
  %v17 = vstv %s7
  %18 = vst [vmem:[#allocation2] sm:$0x1] %v17
  $region1: #{tpu_custom_call.1} parent=0
    #allocation3 [shape = 'u8[1703936]{0}', space=vmem, size = 0x1a0000, scoped, tag = 'input window, operand 0']
    #allocation4 [shape = 's32[2]{0}', space=sflag, size = 0x8, scoped, tag = 'scoped memory for tpu_custom_call.1']
    #allocation5 [shape = 's32[2]{0}', space=sflag, size = 0x8, scoped, tag = 'scoped memory for tpu_custom_call.1']
    #allocation6 [shape = 'u8[425984]{0}', space=vmem, size = 0x68000, scoped, tag = 'input window, operand 2, single buffered']
    #allocation7 [shape = 's32[1]{0}', space=sflag, size = 0x4, scoped, tag = 'scoped memory for tpu_custom_call.1']
    #allocation8 [shape = 'u8[65536]{0}', space=vmem, size = 0x10000, scoped, tag = 'input window, operand 4, single buffered']
    #allocation9 [shape = 'u8[131072]{0}', space=vmem, size = 0x20000, scoped, tag = 'input window, operand 8, single buffered']
    #allocation10 [shape = 's32[1]{0}', space=sflag, size = 0x4, scoped, tag = 'scoped memory for tpu_custom_call.1']
    #allocation11 [shape = 'u8[1024]{0}', space=vmem, size = 0x400, scoped, tag = 'input window, operand 9, single buffered']
    #allocation12 [shape = 'u8[512]{0}', space=vmem, size = 0x400, scoped, tag = 'input window, operand 11, single buffered']
    #allocation13 [shape = 's32[1]{0}', space=sflag, size = 0x4, scoped, tag = 'scoped memory for tpu_custom_call.1']
    #allocation14 [shape = 'u8[8192]{0}', space=vmem, size = 0x2000, scoped, tag = 'output window, operand 0']
    %19 = vsyncpa [#allocation4], 0
    %s20 = scalar_lea.sflag [#allocation4], 1
    %21 = vsyncpa %s20, 0
    %22 = vsyncpa [#allocation7], 0
    %23 = vsyncpa [#allocation10], 0
    %24 = vsyncpa [#allocation13], 0
    %25 = vsyncpa [#allocation5], 0
    %s26 = scalar_lea.sflag [#allocation5], 1
    %27 = vsyncpa %s26, 0
    loop: start=0, step=1, limit=4
    $region2: #{tpu_custom_call.1} parent=1 // loop_pre_header
      _
    $region3: #{tpu_custom_call.1} parent=1 // loop_header
      %s29 = sphi 0, %s33
      %p30 = scmp.ge.s32.totalorder %s29, 4
      %s39 = sphi 0, %s41
      %s42 = sphi 0, %s39
      %s43 = sphi 0, %s42
      %s59 = sphi 0, %s43
      %s63 = sphi 0, %s63
      %s65 = sphi 0, %s63
      %s66 = sphi 0, %s65
      %s80 = sphi 0, %s66
      %s84 = sphi 0, %s84
      %s86 = sphi 0, %s84
      %s87 = sphi 0, %s86
      %s101 = sphi 0, %s87
      %s105 = sphi 0, %s105
      %s107 = sphi 0, %s105
      %s108 = sphi 0, %s107
      %s122 = sphi 0, %s108
      %s126 = sphi 0, %s126
      %s128 = sphi 0, %s126
      %s129 = sphi 0, %s128
      %s143 = sphi 0, %s129
      %s147 = sphi 0, %s147
      %s149 = sphi 0, %s147
      %s150 = sphi 0, %s149
      %s164 = sphi 0, %s150
      %s168 = sphi 0, %s168
      %s170 = sphi 0, %s168
      %s171 = sphi 0, %s170
      %s185 = sphi 0, %s171
      %s189 = sphi 0, %s189
      %s191 = sphi 0, %s189
      %s192 = sphi 0, %s191
      %s206 = sphi 0, %s192
      %s210 = sphi 0, %s210
      %s212 = sphi 0, %s210
      %s213 = sphi 0, %s212
      %s227 = sphi 0, %s213
      %s231 = sphi 0, %s231
      %s233 = sphi 0, %s231
      %s234 = sphi 0, %s233
      %s248 = sphi 0, %s234
      %s252 = sphi 0, %s252
      %s254 = sphi 0, %s252
      %s255 = sphi 0, %s254
      %s269 = sphi 0, %s255
      %s273 = sphi 0, %s273
      %s275 = sphi 0, %s273
      %s276 = sphi 0, %s275
      %s290 = sphi 0, %s276
      %s296 = sphi 0, %s298
      %s299 = sphi 0, %s296
      %s300 = sphi 0, %s299
      %s316 = sphi 0, %s300
    $region4: #{tpu_custom_call.1} parent=1 // loop_header_branch
      %32 = sbr.rel (%p30) target = $region8
    $region5: #{tpu_custom_call.1} parent=1 // loop_body
      %s34 = ssub.s32 %s29, 1
      %s35 = ssub.s32 %s29, 2
      %s36 = sadd.s32 %s29, 1
      %s37 = ssub.s32 %s29, %s36
      %p38 = scmp.eq.s32.totalorder %s37, 0
      %s40 = sadd.s32 %s39, 1
      %s41 = scalar_select %p38, %s39, %s40
      %p44 = pneg %p38
      %p45 = scmp.eq.s32.totalorder %s29, 1
      %p46 = por %p44, %p45
      %p47 = scmp.ne.s32.totalorder %s39, %s42
      %p48 = scmp.eq.s32.totalorder %s29, 0
      %p49 = por %p47, %p48
      %p50 = scmp.ne.s32.totalorder %s39, %s42
      %p51 = scmp.eq.s32.totalorder %s34, 1
      %p52 = por %p50, %p51
      %p53 = scmp.ne.s32.totalorder %s42, %s43
      %p54 = scmp.eq.s32.totalorder %s34, 0
      %p55 = por %p53, %p54
      %p56 = scmp.ne.s32.totalorder %s42, %s43
      %p57 = scmp.eq.s32.totalorder %s35, 1
      %p58 = por %p56, %p57
      %p60 = scmp.ne.s32.totalorder %s43, %s59
      %p61 = scmp.eq.s32.totalorder %s35, 0
      %p62 = por %p60, %p61
      %s64 = sadd.s32 %s63, 1
      %p67 = scmp.eq.s32.totalorder %s29, 1
      %p68 = scmp.ne.s32.totalorder %s63, %s65
      %p69 = scmp.eq.s32.totalorder %s29, 0
      %p70 = por %p68, %p69
      %p71 = scmp.ne.s32.totalorder %s63, %s65
      %p72 = scmp.eq.s32.totalorder %s34, 1
      %p73 = por %p71, %p72
      %p74 = scmp.ne.s32.totalorder %s65, %s66
      %p75 = scmp.eq.s32.totalorder %s34, 0
      %p76 = por %p74, %p75
      %p77 = scmp.ne.s32.totalorder %s65, %s66
      %p78 = scmp.eq.s32.totalorder %s35, 1
      %p79 = por %p77, %p78
      %p81 = scmp.ne.s32.totalorder %s66, %s80
      %p82 = scmp.eq.s32.totalorder %s35, 0
      %p83 = por %p81, %p82
      %s85 = sadd.s32 %s84, 1
      %p88 = scmp.eq.s32.totalorder %s29, 1
      %p89 = scmp.ne.s32.totalorder %s84, %s86
      %p90 = scmp.eq.s32.totalorder %s29, 0
      %p91 = por %p89, %p90
      %p92 = scmp.ne.s32.totalorder %s84, %s86
      %p93 = scmp.eq.s32.totalorder %s34, 1
      %p94 = por %p92, %p93
      %p95 = scmp.ne.s32.totalorder %s86, %s87
      %p96 = scmp.eq.s32.totalorder %s34, 0
      %p97 = por %p95, %p96
      %p98 = scmp.ne.s32.totalorder %s86, %s87
      %p99 = scmp.eq.s32.totalorder %s35, 1
      %p100 = por %p98, %p99
      %p102 = scmp.ne.s32.totalorder %s87, %s101
      %p103 = scmp.eq.s32.totalorder %s35, 0
      %p104 = por %p102, %p103
      %s106 = sadd.s32 %s105, 1
      %p109 = scmp.eq.s32.totalorder %s29, 1
      %p110 = scmp.ne.s32.totalorder %s105, %s107
      %p111 = scmp.eq.s32.totalorder %s29, 0
      %p112 = por %p110, %p111
      %p113 = scmp.ne.s32.totalorder %s105, %s107
      %p114 = scmp.eq.s32.totalorder %s34, 1
      %p115 = por %p113, %p114
      %p116 = scmp.ne.s32.totalorder %s107, %s108
      %p117 = scmp.eq.s32.totalorder %s34, 0
      %p118 = por %p116, %p117
      %p119 = scmp.ne.s32.totalorder %s107, %s108
      %p120 = scmp.eq.s32.totalorder %s35, 1
      %p121 = por %p119, %p120
      %p123 = scmp.ne.s32.totalorder %s108, %s122
      %p124 = scmp.eq.s32.totalorder %s35, 0
      %p125 = por %p123, %p124
      %s127 = sadd.s32 %s126, 1
      %p130 = scmp.eq.s32.totalorder %s29, 1
      %p131 = scmp.ne.s32.totalorder %s126, %s128
      %p132 = scmp.eq.s32.totalorder %s29, 0
      %p133 = por %p131, %p132
      %p134 = scmp.ne.s32.totalorder %s126, %s128
      %p135 = scmp.eq.s32.totalorder %s34, 1
      %p136 = por %p134, %p135
      %p137 = scmp.ne.s32.totalorder %s128, %s129
      %p138 = scmp.eq.s32.totalorder %s34, 0
      %p139 = por %p137, %p138
      %p140 = scmp.ne.s32.totalorder %s128, %s129
      %p141 = scmp.eq.s32.totalorder %s35, 1
      %p142 = por %p140, %p141
      %p144 = scmp.ne.s32.totalorder %s129, %s143
      %p145 = scmp.eq.s32.totalorder %s35, 0
      %p146 = por %p144, %p145
      %s148 = sadd.s32 %s147, 1
      %p151 = scmp.eq.s32.totalorder %s29, 1
      %p152 = scmp.ne.s32.totalorder %s147, %s149
      %p153 = scmp.eq.s32.totalorder %s29, 0
      %p154 = por %p152, %p153
      %p155 = scmp.ne.s32.totalorder %s147, %s149
      %p156 = scmp.eq.s32.totalorder %s34, 1
      %p157 = por %p155, %p156
      %p158 = scmp.ne.s32.totalorder %s149, %s150
      %p159 = scmp.eq.s32.totalorder %s34, 0
      %p160 = por %p158, %p159
      %p161 = scmp.ne.s32.totalorder %s149, %s150
      %p162 = scmp.eq.s32.totalorder %s35, 1
      %p163 = por %p161, %p162
      %p165 = scmp.ne.s32.totalorder %s150, %s164
      %p166 = scmp.eq.s32.totalorder %s35, 0
      %p167 = por %p165, %p166
      %s169 = sadd.s32 %s168, 1
      %p172 = scmp.eq.s32.totalorder %s29, 1
      %p173 = scmp.ne.s32.totalorder %s168, %s170
      %p174 = scmp.eq.s32.totalorder %s29, 0
      %p175 = por %p173, %p174
      %p176 = scmp.ne.s32.totalorder %s168, %s170
      %p177 = scmp.eq.s32.totalorder %s34, 1
      %p178 = por %p176, %p177
      %p179 = scmp.ne.s32.totalorder %s170, %s171
      %p180 = scmp.eq.s32.totalorder %s34, 0
      %p181 = por %p179, %p180
      %p182 = scmp.ne.s32.totalorder %s170, %s171
      %p183 = scmp.eq.s32.totalorder %s35, 1
      %p184 = por %p182, %p183
      %p186 = scmp.ne.s32.totalorder %s171, %s185
      %p187 = scmp.eq.s32.totalorder %s35, 0
      %p188 = por %p186, %p187
      %s190 = sadd.s32 %s189, 1
      %p193 = scmp.eq.s32.totalorder %s29, 1
      %p194 = scmp.ne.s32.totalorder %s189, %s191
      %p195 = scmp.eq.s32.totalorder %s29, 0
      %p196 = por %p194, %p195
      %p197 = scmp.ne.s32.totalorder %s189, %s191
      %p198 = scmp.eq.s32.totalorder %s34, 1
      %p199 = por %p197, %p198
      %p200 = scmp.ne.s32.totalorder %s191, %s192
      %p201 = scmp.eq.s32.totalorder %s34, 0
      %p202 = por %p200, %p201
      %p203 = scmp.ne.s32.totalorder %s191, %s192
      %p204 = scmp.eq.s32.totalorder %s35, 1
      %p205 = por %p203, %p204
      %p207 = scmp.ne.s32.totalorder %s192, %s206
      %p208 = scmp.eq.s32.totalorder %s35, 0
      %p209 = por %p207, %p208
      %s211 = sadd.s32 %s210, 1
      %p214 = scmp.eq.s32.totalorder %s29, 1
      %p215 = scmp.ne.s32.totalorder %s210, %s212
      %p216 = scmp.eq.s32.totalorder %s29, 0
      %p217 = por %p215, %p216
      %p218 = scmp.ne.s32.totalorder %s210, %s212
      %p219 = scmp.eq.s32.totalorder %s34, 1
      %p220 = por %p218, %p219
      %p221 = scmp.ne.s32.totalorder %s212, %s213
      %p222 = scmp.eq.s32.totalorder %s34, 0
      %p223 = por %p221, %p222
      %p224 = scmp.ne.s32.totalorder %s212, %s213
      %p225 = scmp.eq.s32.totalorder %s35, 1
      %p226 = por %p224, %p225
      %p228 = scmp.ne.s32.totalorder %s213, %s227
      %p229 = scmp.eq.s32.totalorder %s35, 0
      %p230 = por %p228, %p229
      %s232 = sadd.s32 %s231, 1
      %p235 = scmp.eq.s32.totalorder %s29, 1
      %p236 = scmp.ne.s32.totalorder %s231, %s233
      %p237 = scmp.eq.s32.totalorder %s29, 0
      %p238 = por %p236, %p237
      %p239 = scmp.ne.s32.totalorder %s231, %s233
      %p240 = scmp.eq.s32.totalorder %s34, 1
      %p241 = por %p239, %p240
      %p242 = scmp.ne.s32.totalorder %s233, %s234
      %p243 = scmp.eq.s32.totalorder %s34, 0
      %p244 = por %p242, %p243
      %p245 = scmp.ne.s32.totalorder %s233, %s234
      %p246 = scmp.eq.s32.totalorder %s35, 1
      %p247 = por %p245, %p246
      %p249 = scmp.ne.s32.totalorder %s234, %s248
      %p250 = scmp.eq.s32.totalorder %s35, 0
      %p251 = por %p249, %p250
      %s253 = sadd.s32 %s252, 1
      %p256 = scmp.eq.s32.totalorder %s29, 1
      %p257 = scmp.ne.s32.totalorder %s252, %s254
      %p258 = scmp.eq.s32.totalorder %s29, 0
      %p259 = por %p257, %p258
      %p260 = scmp.ne.s32.totalorder %s252, %s254
      %p261 = scmp.eq.s32.totalorder %s34, 1
      %p262 = por %p260, %p261
      %p263 = scmp.ne.s32.totalorder %s254, %s255
      %p264 = scmp.eq.s32.totalorder %s34, 0
      %p265 = por %p263, %p264
      %p266 = scmp.ne.s32.totalorder %s254, %s255
      %p267 = scmp.eq.s32.totalorder %s35, 1
      %p268 = por %p266, %p267
      %p270 = scmp.ne.s32.totalorder %s255, %s269
      %p271 = scmp.eq.s32.totalorder %s35, 0
      %p272 = por %p270, %p271
      %s274 = sadd.s32 %s273, 1
      %p277 = scmp.eq.s32.totalorder %s29, 1
      %p278 = scmp.ne.s32.totalorder %s273, %s275
      %p279 = scmp.eq.s32.totalorder %s29, 0
      %p280 = por %p278, %p279
      %p281 = scmp.ne.s32.totalorder %s273, %s275
      %p282 = scmp.eq.s32.totalorder %s34, 1
      %p283 = por %p281, %p282
      %p284 = scmp.ne.s32.totalorder %s275, %s276
      %p285 = scmp.eq.s32.totalorder %s34, 0
      %p286 = por %p284, %p285
      %p287 = scmp.ne.s32.totalorder %s275, %s276
      %p288 = scmp.eq.s32.totalorder %s35, 1
      %p289 = por %p287, %p288
      %p291 = scmp.ne.s32.totalorder %s276, %s290
      %p292 = scmp.eq.s32.totalorder %s35, 0
      %p293 = por %p291, %p292
      %s294 = ssub.s32 %s29, %s36
      %p295 = scmp.eq.s32.totalorder %s294, 0
      %s297 = sadd.s32 %s296, 1
      %s298 = scalar_select %p295, %s296, %s297
      %p301 = pneg %p295
      %p302 = scmp.eq.s32.totalorder %s29, 1
      %p303 = por %p301, %p302
      %p304 = scmp.ne.s32.totalorder %s296, %s299
      %p305 = scmp.eq.s32.totalorder %s29, 0
      %p306 = por %p304, %p305
      %p307 = scmp.ne.s32.totalorder %s296, %s299
      %p308 = scmp.eq.s32.totalorder %s34, 1
      %p309 = por %p307, %p308
      %p310 = scmp.ne.s32.totalorder %s299, %s300
      %p311 = scmp.eq.s32.totalorder %s34, 0
      %p312 = por %p310, %p311
      %p313 = scmp.ne.s32.totalorder %s299, %s300
      %p314 = scmp.eq.s32.totalorder %s35, 1
      %p315 = por %p313, %p314
      %p317 = scmp.ne.s32.totalorder %s300, %s316
      %p318 = scmp.eq.s32.totalorder %s35, 0
      %p319 = por %p317, %p318
      %p320 = scmp.le.s32.totalorder 1, %s29
      %p321 = scmp.lt.s32.totalorder %s29, 3
      %p322 = pnand %p320, %p321
      %p323 = pneg %p322
      // Predicated region
      $region9: #{tpu_custom_call.1} parent=5 // pred_check
        _
      $region10: #{tpu_custom_call.1} parent=5 // pred_check_branch
        %325 = sbr.rel (%p322) target = $region12
      $region11: #{tpu_custom_call.1} parent=5 // pred_region
        %s326 = ssub.s32 %s29, 1
        // Predicated region
        $region13: #{tpu_custom_call.1} parent=11 // pred_check
          %p327 = pneg %p76
        $region14: #{tpu_custom_call.1} parent=11 // pred_check_branch
          %329 = sbr.rel (%p327) target = $region16
        $region15: #{tpu_custom_call.1} parent=11 // pred_region
          _
        $region16: #{tpu_custom_call.1} parent=11 // pred_fallthru
          _
        // Predicated region
        $region17: #{tpu_custom_call.1} parent=11 // pred_check
          %p330 = pneg %p97
        $region18: #{tpu_custom_call.1} parent=11 // pred_check_branch
          %332 = sbr.rel (%p330) target = $region20
        $region19: #{tpu_custom_call.1} parent=11 // pred_region
          %s334 = ssub.s32 13312, 13312
          %335 = vsyncadd [#allocation7], %s334
          %s336 = sshll.u32 [#allocation6], 4
          %s337 = int_to_ptr.vmem [resolvable:$true] %s336
          %342 = dma.hbm_to_vmem [thread:$0]  %s2, 13312, %s337, [#allocation7], 832, 832, 52
        $region20: #{tpu_custom_call.1} parent=11 // pred_fallthru
          _
        // Predicated region
        $region21: #{tpu_custom_call.1} parent=11 // pred_check
          %p343 = pneg %p118
        $region22: #{tpu_custom_call.1} parent=11 // pred_check_branch
          %345 = sbr.rel (%p343) target = $region24
        $region23: #{tpu_custom_call.1} parent=11 // pred_region
          _
        $region24: #{tpu_custom_call.1} parent=11 // pred_fallthru
          _
        // Predicated region
        $region25: #{tpu_custom_call.1} parent=11 // pred_check
          %p346 = pneg %p139
        $region26: #{tpu_custom_call.1} parent=11 // pred_check_branch
          %348 = sbr.rel (%p346) target = $region28
        $region27: #{tpu_custom_call.1} parent=11 // pred_region
          %s350 = ssub.s32 2048, 2048
          %351 = vsyncadd [#allocation7], %s350
          %s352 = sshll.u32 [#allocation8], 4
          %s353 = int_to_ptr.vmem [resolvable:$true] %s352
          %358 = dma.hbm_to_vmem [thread:$0]  %s4, 2048, %s353, [#allocation7], 64, 64, 4
        $region28: #{tpu_custom_call.1} parent=11 // pred_fallthru
          _
        // Predicated region
        $region29: #{tpu_custom_call.1} parent=11 // pred_check
          %p359 = pneg %p160
        $region30: #{tpu_custom_call.1} parent=11 // pred_check_branch
          %361 = sbr.rel (%p359) target = $region32
        $region31: #{tpu_custom_call.1} parent=11 // pred_region
          _
        $region32: #{tpu_custom_call.1} parent=11 // pred_fallthru
          _
        // Predicated region
        $region33: #{tpu_custom_call.1} parent=11 // pred_check
          %p362 = pneg %p181
        $region34: #{tpu_custom_call.1} parent=11 // pred_check_branch
          %364 = sbr.rel (%p362) target = $region36
        $region35: #{tpu_custom_call.1} parent=11 // pred_region
          _
        $region36: #{tpu_custom_call.1} parent=11 // pred_fallthru
          _
        // Predicated region
        $region37: #{tpu_custom_call.1} parent=11 // pred_check
          %p365 = pneg %p202
        $region38: #{tpu_custom_call.1} parent=11 // pred_check_branch
          %367 = sbr.rel (%p365) target = $region40
        $region39: #{tpu_custom_call.1} parent=11 // pred_region
          _
        $region40: #{tpu_custom_call.1} parent=11 // pred_fallthru
          _
        // Predicated region
        $region41: #{tpu_custom_call.1} parent=11 // pred_check
          %p368 = pneg %p223
        $region42: #{tpu_custom_call.1} parent=11 // pred_check_branch
          %370 = sbr.rel (%p368) target = $region44
        $region43: #{tpu_custom_call.1} parent=11 // pred_region
          %s372 = ssub.s32 4096, 4096
          %373 = vsyncadd [#allocation10], %s372
          %s374 = sshll.u32 [#allocation9], 4
          %s375 = int_to_ptr.vmem [resolvable:$true] %s374
          %380 = dma.hbm_to_vmem [thread:$0]  %s8, 4096, %s375, [#allocation10], 256, 256, 16
        $region44: #{tpu_custom_call.1} parent=11 // pred_fallthru
          _
        // Predicated region
        $region45: #{tpu_custom_call.1} parent=11 // pred_check
          %p381 = pneg %p244
        $region46: #{tpu_custom_call.1} parent=11 // pred_check_branch
          %383 = sbr.rel (%p381) target = $region48
        $region47: #{tpu_custom_call.1} parent=11 // pred_region
          %s385 = ssub.s32 32, 32
          %386 = vsyncadd [#allocation10], %s385
          %s388 = sshll.u32 [#allocation11], 4
          %s389 = int_to_ptr.vmem [resolvable:$true] %s388
          %391 = dma.hbm_to_vmem [thread:$0]  %s9, 32, %s389, [#allocation10]
        $region48: #{tpu_custom_call.1} parent=11 // pred_fallthru
          _
        // Predicated region
        $region49: #{tpu_custom_call.1} parent=11 // pred_check
          %p392 = pneg %p265
        $region50: #{tpu_custom_call.1} parent=11 // pred_check_branch
          %394 = sbr.rel (%p392) target = $region52
        $region51: #{tpu_custom_call.1} parent=11 // pred_region
          _
        $region52: #{tpu_custom_call.1} parent=11 // pred_fallthru
          _
        // Predicated region
        $region53: #{tpu_custom_call.1} parent=11 // pred_check
          %p395 = pneg %p286
        $region54: #{tpu_custom_call.1} parent=11 // pred_check_branch
          %397 = sbr.rel (%p395) target = $region56
        $region55: #{tpu_custom_call.1} parent=11 // pred_region
          %s399 = ssub.s32 16, 16
          %400 = vsyncadd [#allocation13], %s399
          %s402 = sshll.u32 [#allocation12], 4
          %s403 = int_to_ptr.vmem [resolvable:$true] %s402
          %405 = dma.hbm_to_vmem [thread:$0]  %s11, 16, %s403, [#allocation13]
        $region56: #{tpu_custom_call.1} parent=11 // pred_fallthru
          _
      $region12: #{tpu_custom_call.1} parent=5 // pred_fallthru
        _
      %p406 = scmp.lt.s32.totalorder %s29, 2
      // Predicated region
      $region57: #{tpu_custom_call.1} parent=5 // pred_check
        %p407 = pneg %p406
      $region58: #{tpu_custom_call.1} parent=5 // pred_check_branch
        %409 = sbr.rel (%p407) target = $region60
      $region59: #{tpu_custom_call.1} parent=5 // pred_region
        // Predicated region
        $region61: #{tpu_custom_call.1} parent=59 // pred_check
          %p410 = pneg %p49
        $region62: #{tpu_custom_call.1} parent=59 // pred_check_branch
          %412 = sbr.rel (%p410) target = $region64
        $region63: #{tpu_custom_call.1} parent=59 // pred_region
          %s413 = sand.u32 %s39, 1
          %s414 = scalar_lea.sflag [#allocation4], %s413
          %s415 = sand.u32 %s39, 1
          %s416 = smul.addr %s415, 1664
          %s417 = scalar_lea.vmem [#allocation3], %s416
          %s419 = ssub.s32 26624, 26624
          %420 = vsyncadd %s414, %s419
          %s421 = smul.addr %s29, 208
          %s422 = smul.addr %s421, 128
          %s423 = scalar_lea.hbm %s0, %s422
          %s424 = sshll.u32 %s417, 4
          %s425 = int_to_ptr.vmem [resolvable:$true] %s424
          %430 = dma.hbm_to_vmem [thread:$0]  %s423, 26624, %s425, %s414, 128, 128, 8
        $region64: #{tpu_custom_call.1} parent=59 // pred_fallthru
          _
      $region60: #{tpu_custom_call.1} parent=5 // pred_fallthru
        _
      %p431 = scmp.le.s32.totalorder 1, %s29
      %p432 = scmp.lt.s32.totalorder %s29, 3
      %p433 = pnand %p431, %p432
      %p434 = pneg %p433
      // Predicated region
      $region65: #{tpu_custom_call.1} parent=5 // pred_check
        _
      $region66: #{tpu_custom_call.1} parent=5 // pred_check_branch
        %436 = sbr.rel (%p433) target = $region68
      $region67: #{tpu_custom_call.1} parent=5 // pred_region
        %s437 = ssub.s32 %s29, 1
        %s438 = sand.u32 %s42, 1
        %s439 = scalar_lea.sflag [#allocation4], %s438
        %s440 = sand.u32 %s42, 1
        %s441 = smul.addr %s440, 1664
        %s442 = scalar_lea.vmem [#allocation3], %s441
        // Predicated region
        $region69: #{tpu_custom_call.1} parent=67 // pred_check
          %p443 = pneg %p55
        $region70: #{tpu_custom_call.1} parent=67 // pred_check_branch
          %445 = sbr.rel (%p443) target = $region72
        $region71: #{tpu_custom_call.1} parent=67 // pred_region
          %446 = dma.done %s439, 26624
        $region72: #{tpu_custom_call.1} parent=67 // pred_fallthru
          _
        // Predicated region
        $region73: #{tpu_custom_call.1} parent=67 // pred_check
          %p447 = pneg %p97
        $region74: #{tpu_custom_call.1} parent=67 // pred_check_branch
          %449 = sbr.rel (%p447) target = $region76
        $region75: #{tpu_custom_call.1} parent=67 // pred_region
          %450 = dma.done [#allocation7], 13312
        $region76: #{tpu_custom_call.1} parent=67 // pred_fallthru
          _
        // Predicated region
        $region77: #{tpu_custom_call.1} parent=67 // pred_check
          %p451 = pneg %p139
        $region78: #{tpu_custom_call.1} parent=67 // pred_check_branch
          %453 = sbr.rel (%p451) target = $region80
        $region79: #{tpu_custom_call.1} parent=67 // pred_region
          %454 = dma.done [#allocation7], 2048
        $region80: #{tpu_custom_call.1} parent=67 // pred_fallthru
          _
        // Predicated region
        $region81: #{tpu_custom_call.1} parent=67 // pred_check
          %p455 = pneg %p223
        $region82: #{tpu_custom_call.1} parent=67 // pred_check_branch
          %457 = sbr.rel (%p455) target = $region84
        $region83: #{tpu_custom_call.1} parent=67 // pred_region
          %458 = dma.done [#allocation10], 4096
        $region84: #{tpu_custom_call.1} parent=67 // pred_fallthru
          _
        // Predicated region
        $region85: #{tpu_custom_call.1} parent=67 // pred_check
          %p459 = pneg %p244
        $region86: #{tpu_custom_call.1} parent=67 // pred_check_branch
          %461 = sbr.rel (%p459) target = $region88
        $region87: #{tpu_custom_call.1} parent=67 // pred_region
          %462 = dma.done [#allocation10], 32
        $region88: #{tpu_custom_call.1} parent=67 // pred_fallthru
          _
        // Predicated region
        $region89: #{tpu_custom_call.1} parent=67 // pred_check
          %p463 = pneg %p286
        $region90: #{tpu_custom_call.1} parent=67 // pred_check_branch
          %465 = sbr.rel (%p463) target = $region92
        $region91: #{tpu_custom_call.1} parent=67 // pred_region
          %466 = dma.done [#allocation13], 16
        $region92: #{tpu_custom_call.1} parent=67 // pred_fallthru
          _
        %s467 = sand.u32 %s42, 1
        %s468 = scalar_lea.sflag [#allocation4], %s467
        %s469 = sand.u32 %s42, 1
        %s470 = smul.addr %s469, 1664
        %s471 = scalar_lea.vmem [#allocation3], %s470
        %p472 = pneg %p55
        %p473 = pneg %p52
        %p474 = pneg %p76
        %p475 = pneg %p73
        %p476 = pneg %p97
        %p477 = pneg %p94
        %p478 = pneg %p118
        %p479 = pneg %p115
        %p480 = pneg %p139
        %p481 = pneg %p136
        %p482 = pneg %p160
        %p483 = pneg %p157
        %p484 = pneg %p181
        %p485 = pneg %p178
        %p486 = pneg %p202
        %p487 = pneg %p199
        %p488 = pneg %p223
        %p489 = pneg %p220
        %p490 = pneg %p244
        %p491 = pneg %p241
        %p492 = pneg %p265
        %p493 = pneg %p262
        %p494 = pneg %p286
        %p495 = pneg %p283
        %p496 = pneg %p312
        %p497 = pneg %p309
        %s498 = sand.u32 %s299, 1
        %s499 = scalar_lea.sflag [#allocation5], %s498
        %s500 = sand.u32 %s299, 1
        %s501 = smul.addr %s500, 8
        %s502 = scalar_lea.vmem [#allocation14], %s501
        %v504 = vld [vmem:[%s442] sm:$0xff]
        %v505 = vld [vmem:[%s442 + $0x8] sm:$0xff]
        %v506 = vld [vmem:[%s442 + $0x10] sm:$0xff]
        %v507 = vld [vmem:[%s442 + $0x18] sm:$0xff]
        %v508 = vld [vmem:[%s442 + $0x20] sm:$0xff]
        %v509 = vld [vmem:[%s442 + $0x28] sm:$0xff]
        %v510 = vld [vmem:[%s442 + $0x30] sm:$0xff]
        %v511 = vld [vmem:[%s442 + $0x38] sm:$0xff]
        %v512 = vld [vmem:[%s442 + $0x40] sm:$0xff]
        %v513 = vld [vmem:[%s442 + $0x48] sm:$0xff]
        %v514 = vld [vmem:[%s442 + $0x50] sm:$0xff]
        %v515 = vld [vmem:[%s442 + $0x58] sm:$0xff]
        %v516 = vld [vmem:[%s442 + $0x60] sm:$0xff]
        %v517 = vld [vmem:[%s442 + $0x68] sm:$0xff]
        %v518 = vld [vmem:[%s442 + $0x70] sm:$0xff]
        %v519 = vld [vmem:[%s442 + $0x78] sm:$0xff]
        %v520 = vld [vmem:[%s442 + $0x80] sm:$0xff]
        %v521 = vld [vmem:[%s442 + $0x88] sm:$0xff]
        %v522 = vld [vmem:[%s442 + $0x90] sm:$0xff]
        %v523 = vld [vmem:[%s442 + $0x98] sm:$0xff]
        %v524 = vld [vmem:[%s442 + $0xa0] sm:$0xff]
        %v525 = vld [vmem:[%s442 + $0xa8] sm:$0xff]
        %v526 = vld [vmem:[%s442 + $0xb0] sm:$0xff]
        %v527 = vld [vmem:[%s442 + $0xb8] sm:$0xff]
        %v528 = vld [vmem:[%s442 + $0xc0] sm:$0xff]
        %v529 = vld [vmem:[%s442 + $0xc8] sm:$0xff]
        %v530 = vld [vmem:[%s442 + $0xd0] sm:$0xff]
        %v531 = vld [vmem:[%s442 + $0xd8] sm:$0xff]
        %v532 = vld [vmem:[%s442 + $0xe0] sm:$0xff]
        %v533 = vld [vmem:[%s442 + $0xe8] sm:$0xff]
        %v534 = vld [vmem:[%s442 + $0xf0] sm:$0xff]
        %v535 = vld [vmem:[%s442 + $0xf8] sm:$0xff]
        %v536 = vld [vmem:[%s442 + $0x100] sm:$0xff]
        %v537 = vld [vmem:[%s442 + $0x108] sm:$0xff]
        %v538 = vld [vmem:[%s442 + $0x110] sm:$0xff]
        %v539 = vld [vmem:[%s442 + $0x118] sm:$0xff]
        %v540 = vld [vmem:[%s442 + $0x120] sm:$0xff]
        %v541 = vld [vmem:[%s442 + $0x128] sm:$0xff]
        %v542 = vld [vmem:[%s442 + $0x130] sm:$0xff]
        %v543 = vld [vmem:[%s442 + $0x138] sm:$0xff]
        %v544 = vld [vmem:[%s442 + $0x140] sm:$0xff]
        %v545 = vld [vmem:[%s442 + $0x148] sm:$0xff]
        %v546 = vld [vmem:[%s442 + $0x150] sm:$0xff]
        %v547 = vld [vmem:[%s442 + $0x158] sm:$0xff]
        %v548 = vld [vmem:[%s442 + $0x160] sm:$0xff]
        %v549 = vld [vmem:[%s442 + $0x168] sm:$0xff]
        %v550 = vld [vmem:[%s442 + $0x170] sm:$0xff]
        %v551 = vld [vmem:[%s442 + $0x178] sm:$0xff]
        %v552 = vld [vmem:[%s442 + $0x180] sm:$0xff]
        %v553 = vld [vmem:[%s442 + $0x188] sm:$0xff]
        %v554 = vld [vmem:[%s442 + $0x190] sm:$0xff]
        %v555 = vld [vmem:[%s442 + $0x198] sm:$0xff]
        %v556 = vld [vmem:[%s442 + $0x1a0] sm:$0xff]
        %v557 = vld [vmem:[%s442 + $0x1a8] sm:$0xff]
        %v558 = vld [vmem:[%s442 + $0x1b0] sm:$0xff]
        %v559 = vld [vmem:[%s442 + $0x1b8] sm:$0xff]
        %v560 = vld [vmem:[%s442 + $0x1c0] sm:$0xff]
        %v561 = vld [vmem:[%s442 + $0x1c8] sm:$0xff]
        %v562 = vld [vmem:[%s442 + $0x1d0] sm:$0xff]
        %v563 = vld [vmem:[%s442 + $0x1d8] sm:$0xff]
        %v564 = vld [vmem:[%s442 + $0x1e0] sm:$0xff]
        %v565 = vld [vmem:[%s442 + $0x1e8] sm:$0xff]
        %v566 = vld [vmem:[%s442 + $0x1f0] sm:$0xff]
        %v567 = vld [vmem:[%s442 + $0x1f8] sm:$0xff]
        %v568 = vld [vmem:[%s442 + $0x200] sm:$0xff]
        %v569 = vld [vmem:[%s442 + $0x208] sm:$0xff]
        %v570 = vld [vmem:[%s442 + $0x210] sm:$0xff]
        %v571 = vld [vmem:[%s442 + $0x218] sm:$0xff]
        %v572 = vld [vmem:[%s442 + $0x220] sm:$0xff]
        %v573 = vld [vmem:[%s442 + $0x228] sm:$0xff]
        %v574 = vld [vmem:[%s442 + $0x230] sm:$0xff]
        %v575 = vld [vmem:[%s442 + $0x238] sm:$0xff]
        %v576 = vld [vmem:[%s442 + $0x240] sm:$0xff]
        %v577 = vld [vmem:[%s442 + $0x248] sm:$0xff]
        %v578 = vld [vmem:[%s442 + $0x250] sm:$0xff]
        %v579 = vld [vmem:[%s442 + $0x258] sm:$0xff]
        %v580 = vld [vmem:[%s442 + $0x260] sm:$0xff]
        %v581 = vld [vmem:[%s442 + $0x268] sm:$0xff]
        %v582 = vld [vmem:[%s442 + $0x270] sm:$0xff]
        %v583 = vld [vmem:[%s442 + $0x278] sm:$0xff]
        %v584 = vld [vmem:[%s442 + $0x280] sm:$0xff]
        %v585 = vld [vmem:[%s442 + $0x288] sm:$0xff]
        %v586 = vld [vmem:[%s442 + $0x290] sm:$0xff]
        %v587 = vld [vmem:[%s442 + $0x298] sm:$0xff]
        %v588 = vld [vmem:[%s442 + $0x2a0] sm:$0xff]
        %v589 = vld [vmem:[%s442 + $0x2a8] sm:$0xff]
        %v590 = vld [vmem:[%s442 + $0x2b0] sm:$0xff]
        %v591 = vld [vmem:[%s442 + $0x2b8] sm:$0xff]
        %v592 = vld [vmem:[%s442 + $0x2c0] sm:$0xff]
        %v593 = vld [vmem:[%s442 + $0x2c8] sm:$0xff]
        %v594 = vld [vmem:[%s442 + $0x2d0] sm:$0xff]
        %v595 = vld [vmem:[%s442 + $0x2d8] sm:$0xff]
        %v596 = vld [vmem:[%s442 + $0x2e0] sm:$0xff]
        %v597 = vld [vmem:[%s442 + $0x2e8] sm:$0xff]
        %v598 = vld [vmem:[%s442 + $0x2f0] sm:$0xff]
        %v599 = vld [vmem:[%s442 + $0x2f8] sm:$0xff]
        %v600 = vld [vmem:[%s442 + $0x300] sm:$0xff]
        %v601 = vld [vmem:[%s442 + $0x308] sm:$0xff]
        %v602 = vld [vmem:[%s442 + $0x310] sm:$0xff]
        %v603 = vld [vmem:[%s442 + $0x318] sm:$0xff]
        %v604 = vld [vmem:[%s442 + $0x320] sm:$0xff]
        %v605 = vld [vmem:[%s442 + $0x328] sm:$0xff]
        %v606 = vld [vmem:[%s442 + $0x330] sm:$0xff]
        %v607 = vld [vmem:[%s442 + $0x338] sm:$0xff]
        %v608 = vld [vmem:[%s442 + $0x340] sm:$0xff]
        %v609 = vld [vmem:[%s442 + $0x348] sm:$0xff]
        %v610 = vld [vmem:[%s442 + $0x350] sm:$0xff]
        %v611 = vld [vmem:[%s442 + $0x358] sm:$0xff]
        %v612 = vld [vmem:[%s442 + $0x360] sm:$0xff]
        %v613 = vld [vmem:[%s442 + $0x368] sm:$0xff]
        %v614 = vld [vmem:[%s442 + $0x370] sm:$0xff]
        %v615 = vld [vmem:[%s442 + $0x378] sm:$0xff]
        %v616 = vld [vmem:[%s442 + $0x380] sm:$0xff]
        %v617 = vld [vmem:[%s442 + $0x388] sm:$0xff]
        %v618 = vld [vmem:[%s442 + $0x390] sm:$0xff]
        %v619 = vld [vmem:[%s442 + $0x398] sm:$0xff]
        %v620 = vld [vmem:[%s442 + $0x3a0] sm:$0xff]
        %v621 = vld [vmem:[%s442 + $0x3a8] sm:$0xff]
        %v622 = vld [vmem:[%s442 + $0x3b0] sm:$0xff]
        %v623 = vld [vmem:[%s442 + $0x3b8] sm:$0xff]
        %v624 = vld [vmem:[%s442 + $0x3c0] sm:$0xff]
        %v625 = vld [vmem:[%s442 + $0x3c8] sm:$0xff]
        %v626 = vld [vmem:[%s442 + $0x3d0] sm:$0xff]
        %v627 = vld [vmem:[%s442 + $0x3d8] sm:$0xff]
        %v628 = vld [vmem:[%s442 + $0x3e0] sm:$0xff]
        %v629 = vld [vmem:[%s442 + $0x3e8] sm:$0xff]
        %v630 = vld [vmem:[%s442 + $0x3f0] sm:$0xff]
        %v631 = vld [vmem:[%s442 + $0x3f8] sm:$0xff]
        %v632 = vld [vmem:[%s442 + $0x400] sm:$0xff]
        %v633 = vld [vmem:[%s442 + $0x408] sm:$0xff]
        %v634 = vld [vmem:[%s442 + $0x410] sm:$0xff]
        %v635 = vld [vmem:[%s442 + $0x418] sm:$0xff]
        %v636 = vld [vmem:[%s442 + $0x420] sm:$0xff]
        %v637 = vld [vmem:[%s442 + $0x428] sm:$0xff]
        %v638 = vld [vmem:[%s442 + $0x430] sm:$0xff]
        %v639 = vld [vmem:[%s442 + $0x438] sm:$0xff]
        %v640 = vld [vmem:[%s442 + $0x440] sm:$0xff]
        %v641 = vld [vmem:[%s442 + $0x448] sm:$0xff]
        %v642 = vld [vmem:[%s442 + $0x450] sm:$0xff]
        %v643 = vld [vmem:[%s442 + $0x458] sm:$0xff]
        %v644 = vld [vmem:[%s442 + $0x460] sm:$0xff]
        %v645 = vld [vmem:[%s442 + $0x468] sm:$0xff]
        %v646 = vld [vmem:[%s442 + $0x470] sm:$0xff]
        %v647 = vld [vmem:[%s442 + $0x478] sm:$0xff]
        %v648 = vld [vmem:[%s442 + $0x480] sm:$0xff]
        %v649 = vld [vmem:[%s442 + $0x488] sm:$0xff]
        %v650 = vld [vmem:[%s442 + $0x490] sm:$0xff]
        %v651 = vld [vmem:[%s442 + $0x498] sm:$0xff]
        %v652 = vld [vmem:[%s442 + $0x4a0] sm:$0xff]
        %v653 = vld [vmem:[%s442 + $0x4a8] sm:$0xff]
        %v654 = vld [vmem:[%s442 + $0x4b0] sm:$0xff]
        %v655 = vld [vmem:[%s442 + $0x4b8] sm:$0xff]
        %v656 = vld [vmem:[%s442 + $0x4c0] sm:$0xff]
        %v657 = vld [vmem:[%s442 + $0x4c8] sm:$0xff]
        %v658 = vld [vmem:[%s442 + $0x4d0] sm:$0xff]
        %v659 = vld [vmem:[%s442 + $0x4d8] sm:$0xff]
        %v660 = vld [vmem:[%s442 + $0x4e0] sm:$0xff]
        %v661 = vld [vmem:[%s442 + $0x4e8] sm:$0xff]
        %v662 = vld [vmem:[%s442 + $0x4f0] sm:$0xff]
        %v663 = vld [vmem:[%s442 + $0x4f8] sm:$0xff]
        %v664 = vld [vmem:[%s442 + $0x500] sm:$0xff]
        %v665 = vld [vmem:[%s442 + $0x508] sm:$0xff]
        %v666 = vld [vmem:[%s442 + $0x510] sm:$0xff]
        %v667 = vld [vmem:[%s442 + $0x518] sm:$0xff]
        %v668 = vld [vmem:[%s442 + $0x520] sm:$0xff]
        %v669 = vld [vmem:[%s442 + $0x528] sm:$0xff]
        %v670 = vld [vmem:[%s442 + $0x530] sm:$0xff]
        %v671 = vld [vmem:[%s442 + $0x538] sm:$0xff]
        %v672 = vld [vmem:[%s442 + $0x540] sm:$0xff]
        %v673 = vld [vmem:[%s442 + $0x548] sm:$0xff]
        %v674 = vld [vmem:[%s442 + $0x550] sm:$0xff]
        %v675 = vld [vmem:[%s442 + $0x558] sm:$0xff]
        %v676 = vld [vmem:[%s442 + $0x560] sm:$0xff]
        %v677 = vld [vmem:[%s442 + $0x568] sm:$0xff]
        %v678 = vld [vmem:[%s442 + $0x570] sm:$0xff]
        %v679 = vld [vmem:[%s442 + $0x578] sm:$0xff]
        %v680 = vld [vmem:[%s442 + $0x580] sm:$0xff]
        %v681 = vld [vmem:[%s442 + $0x588] sm:$0xff]
        %v682 = vld [vmem:[%s442 + $0x590] sm:$0xff]
        %v683 = vld [vmem:[%s442 + $0x598] sm:$0xff]
        %v684 = vld [vmem:[%s442 + $0x5a0] sm:$0xff]
        %v685 = vld [vmem:[%s442 + $0x5a8] sm:$0xff]
        %v686 = vld [vmem:[%s442 + $0x5b0] sm:$0xff]
        %v687 = vld [vmem:[%s442 + $0x5b8] sm:$0xff]
        %v688 = vld [vmem:[%s442 + $0x5c0] sm:$0xff]
        %v689 = vld [vmem:[%s442 + $0x5c8] sm:$0xff]
        %v690 = vld [vmem:[%s442 + $0x5d0] sm:$0xff]
        %v691 = vld [vmem:[%s442 + $0x5d8] sm:$0xff]
        %v692 = vld [vmem:[%s442 + $0x5e0] sm:$0xff]
        %v693 = vld [vmem:[%s442 + $0x5e8] sm:$0xff]
        %v694 = vld [vmem:[%s442 + $0x5f0] sm:$0xff]
        %v695 = vld [vmem:[%s442 + $0x5f8] sm:$0xff]
        %v696 = vld [vmem:[%s442 + $0x600] sm:$0xff]
        %v697 = vld [vmem:[%s442 + $0x608] sm:$0xff]
        %v698 = vld [vmem:[%s442 + $0x610] sm:$0xff]
        %v699 = vld [vmem:[%s442 + $0x618] sm:$0xff]
        %v700 = vld [vmem:[%s442 + $0x620] sm:$0xff]
        %v701 = vld [vmem:[%s442 + $0x628] sm:$0xff]
        %v702 = vld [vmem:[%s442 + $0x630] sm:$0xff]
        %v703 = vld [vmem:[%s442 + $0x638] sm:$0xff]
        %v704 = vld [vmem:[%s442 + $0x640] sm:$0xff]
        %v705 = vld [vmem:[%s442 + $0x648] sm:$0xff]
        %v706 = vld [vmem:[%s442 + $0x650] sm:$0xff]
        %v707 = vld [vmem:[%s442 + $0x658] sm:$0xff]
        %v708 = vld [vmem:[%s442 + $0x660] sm:$0xff]
        %v709 = vld [vmem:[%s442 + $0x668] sm:$0xff]
        %v710 = vld [vmem:[%s442 + $0x670] sm:$0xff]
        %v711 = vld [vmem:[%s442 + $0x678] sm:$0xff]
        %v712 = vpack.c.bf16 %v505, %v504
        %v713 = vpack.c.bf16 %v507, %v506
        %v714 = vpack.c.bf16 %v509, %v508
        %v715 = vpack.c.bf16 %v511, %v510
        %v716 = vpack.c.bf16 %v513, %v512
        %v717 = vpack.c.bf16 %v515, %v514
        %v718 = vpack.c.bf16 %v517, %v516
        %v719 = vpack.c.bf16 %v519, %v518
        %v720 = vpack.c.bf16 %v521, %v520
        %v721 = vpack.c.bf16 %v523, %v522
        %v722 = vpack.c.bf16 %v525, %v524
        %v723 = vpack.c.bf16 %v527, %v526
        %v724 = vpack.c.bf16 %v529, %v528
        %v725 = vpack.c.bf16 %v531, %v530
        %v726 = vpack.c.bf16 %v533, %v532
        %v727 = vpack.c.bf16 %v535, %v534
        %v728 = vpack.c.bf16 %v537, %v536
        %v729 = vpack.c.bf16 %v539, %v538
        %v730 = vpack.c.bf16 %v541, %v540
        %v731 = vpack.c.bf16 %v543, %v542
        %v732 = vpack.c.bf16 %v545, %v544
        %v733 = vpack.c.bf16 %v547, %v546
        %v734 = vpack.c.bf16 %v549, %v548
        %v735 = vpack.c.bf16 %v551, %v550
        %v736 = vpack.c.bf16 %v553, %v552
        %v737 = vpack.c.bf16 %v555, %v554
        %v738 = vpack.c.bf16 %v557, %v556
        %v739 = vpack.c.bf16 %v559, %v558
        %v740 = vpack.c.bf16 %v561, %v560
        %v741 = vpack.c.bf16 %v563, %v562
        %v742 = vpack.c.bf16 %v565, %v564
        %v743 = vpack.c.bf16 %v567, %v566
        %v744 = vpack.c.bf16 %v569, %v568
        %v745 = vpack.c.bf16 %v571, %v570
        %v746 = vpack.c.bf16 %v573, %v572
        %v747 = vpack.c.bf16 %v575, %v574
        %v748 = vpack.c.bf16 %v577, %v576
        %v749 = vpack.c.bf16 %v579, %v578
        %v750 = vpack.c.bf16 %v581, %v580
        %v751 = vpack.c.bf16 %v583, %v582
        %v752 = vpack.c.bf16 %v585, %v584
        %v753 = vpack.c.bf16 %v587, %v586
        %v754 = vpack.c.bf16 %v589, %v588
        %v755 = vpack.c.bf16 %v591, %v590
        %v756 = vpack.c.bf16 %v593, %v592
        %v757 = vpack.c.bf16 %v595, %v594
        %v758 = vpack.c.bf16 %v597, %v596
        %v759 = vpack.c.bf16 %v599, %v598
        %v760 = vpack.c.bf16 %v601, %v600
        %v761 = vpack.c.bf16 %v603, %v602
        %v762 = vpack.c.bf16 %v605, %v604
        %v763 = vpack.c.bf16 %v607, %v606
        %v764 = vpack.c.bf16 %v609, %v608
        %v765 = vpack.c.bf16 %v611, %v610
        %v766 = vpack.c.bf16 %v613, %v612
        %v767 = vpack.c.bf16 %v615, %v614
        %v768 = vpack.c.bf16 %v617, %v616
        %v769 = vpack.c.bf16 %v619, %v618
        %v770 = vpack.c.bf16 %v621, %v620
        %v771 = vpack.c.bf16 %v623, %v622
        %v772 = vpack.c.bf16 %v625, %v624
        %v773 = vpack.c.bf16 %v627, %v626
        %v774 = vpack.c.bf16 %v629, %v628
        %v775 = vpack.c.bf16 %v631, %v630
        %v776 = vpack.c.bf16 %v633, %v632
        %v777 = vpack.c.bf16 %v635, %v634
        %v778 = vpack.c.bf16 %v637, %v636
        %v779 = vpack.c.bf16 %v639, %v638
        %v780 = vpack.c.bf16 %v641, %v640
        %v781 = vpack.c.bf16 %v643, %v642
        %v782 = vpack.c.bf16 %v645, %v644
        %v783 = vpack.c.bf16 %v647, %v646
        %v784 = vpack.c.bf16 %v649, %v648
        %v785 = vpack.c.bf16 %v651, %v650
        %v786 = vpack.c.bf16 %v653, %v652
        %v787 = vpack.c.bf16 %v655, %v654
        %v788 = vpack.c.bf16 %v657, %v656
        %v789 = vpack.c.bf16 %v659, %v658
        %v790 = vpack.c.bf16 %v661, %v660
        %v791 = vpack.c.bf16 %v663, %v662
        %v792 = vpack.c.bf16 %v665, %v664
        %v793 = vpack.c.bf16 %v667, %v666
        %v794 = vpack.c.bf16 %v669, %v668
        %v795 = vpack.c.bf16 %v671, %v670
        %v796 = vpack.c.bf16 %v673, %v672
        %v797 = vpack.c.bf16 %v675, %v674
        %v798 = vpack.c.bf16 %v677, %v676
        %v799 = vpack.c.bf16 %v679, %v678
        %v800 = vpack.c.bf16 %v681, %v680
        %v801 = vpack.c.bf16 %v683, %v682
        %v802 = vpack.c.bf16 %v685, %v684
        %v803 = vpack.c.bf16 %v687, %v686
        %v804 = vpack.c.bf16 %v689, %v688
        %v805 = vpack.c.bf16 %v691, %v690
        %v806 = vpack.c.bf16 %v693, %v692
        %v807 = vpack.c.bf16 %v695, %v694
        %v808 = vpack.c.bf16 %v697, %v696
        %v809 = vpack.c.bf16 %v699, %v698
        %v810 = vpack.c.bf16 %v701, %v700
        %v811 = vpack.c.bf16 %v703, %v702
        %v812 = vpack.c.bf16 %v705, %v704
        %v813 = vpack.c.bf16 %v707, %v706
        %v814 = vpack.c.bf16 %v709, %v708
        %v815 = vpack.c.bf16 %v711, %v710
        %v816 = vld [vmem:[#allocation6] sm:$0xff]
        %v817 = vld [vmem:[#allocation6 + $0x8] sm:$0xff]
        %v818 = vld [vmem:[#allocation6 + $0x10] sm:$0xff]
        %v819 = vld [vmem:[#allocation6 + $0x18] sm:$0xff]
        %v820 = vld [vmem:[#allocation6 + $0x20] sm:$0xff]
        %v821 = vld [vmem:[#allocation6 + $0x28] sm:$0xff]
        %v822 = vld [vmem:[#allocation6 + $0x30] sm:$0xf]
        %v823 = vld [vmem:[#allocation6 + $0x34] sm:$0xff]
        %v824 = vld [vmem:[#allocation6 + $0x3c] sm:$0xff]
        %v825 = vld [vmem:[#allocation6 + $0x44] sm:$0xff]
        %v826 = vld [vmem:[#allocation6 + $0x4c] sm:$0xff]
        %v827 = vld [vmem:[#allocation6 + $0x54] sm:$0xff]
        %v828 = vld [vmem:[#allocation6 + $0x5c] sm:$0xff]
        %v829 = vld [vmem:[#allocation6 + $0x64] sm:$0xf]
        %v830 = vld [vmem:[#allocation6 + $0x68] sm:$0xff]
        %v831 = vld [vmem:[#allocation6 + $0x70] sm:$0xff]
        %v832 = vld [vmem:[#allocation6 + $0x78] sm:$0xff]
        %v833 = vld [vmem:[#allocation6 + $0x80] sm:$0xff]
        %v834 = vld [vmem:[#allocation6 + $0x88] sm:$0xff]
        %v835 = vld [vmem:[#allocation6 + $0x90] sm:$0xff]
        %v836 = vld [vmem:[#allocation6 + $0x98] sm:$0xf]
        %v837 = vld [vmem:[#allocation6 + $0x9c] sm:$0xff]
        %v838 = vld [vmem:[#allocation6 + $0xa4] sm:$0xff]
        %v839 = vld [vmem:[#allocation6 + $0xac] sm:$0xff]
        %v840 = vld [vmem:[#allocation6 + $0xb4] sm:$0xff]
        %v841 = vld [vmem:[#allocation6 + $0xbc] sm:$0xff]
        %v842 = vld [vmem:[#allocation6 + $0xc4] sm:$0xff]
        %v843 = vld [vmem:[#allocation6 + $0xcc] sm:$0xf]
        %v844 = vld [vmem:[#allocation6 + $0xd0] sm:$0xff]
        %v845 = vld [vmem:[#allocation6 + $0xd8] sm:$0xff]
        %v846 = vld [vmem:[#allocation6 + $0xe0] sm:$0xff]
        %v847 = vld [vmem:[#allocation6 + $0xe8] sm:$0xff]
        %v848 = vld [vmem:[#allocation6 + $0xf0] sm:$0xff]
        %v849 = vld [vmem:[#allocation6 + $0xf8] sm:$0xff]
        %v850 = vld [vmem:[#allocation6 + $0x100] sm:$0xf]
        %v851 = vld [vmem:[#allocation6 + $0x104] sm:$0xff]
        %v852 = vld [vmem:[#allocation6 + $0x10c] sm:$0xff]
        %v853 = vld [vmem:[#allocation6 + $0x114] sm:$0xff]
        %v854 = vld [vmem:[#allocation6 + $0x11c] sm:$0xff]
        %v855 = vld [vmem:[#allocation6 + $0x124] sm:$0xff]
        %v856 = vld [vmem:[#allocation6 + $0x12c] sm:$0xff]
        %v857 = vld [vmem:[#allocation6 + $0x134] sm:$0xf]
        %v858 = vld [vmem:[#allocation6 + $0x138] sm:$0xff]
        %v859 = vld [vmem:[#allocation6 + $0x140] sm:$0xff]
        %v860 = vld [vmem:[#allocation6 + $0x148] sm:$0xff]
        %v861 = vld [vmem:[#allocation6 + $0x150] sm:$0xff]
        %v862 = vld [vmem:[#allocation6 + $0x158] sm:$0xff]
        %v863 = vld [vmem:[#allocation6 + $0x160] sm:$0xff]
        %v864 = vld [vmem:[#allocation6 + $0x168] sm:$0xf]
        %v865 = vld [vmem:[#allocation6 + $0x16c] sm:$0xff]
        %v866 = vld [vmem:[#allocation6 + $0x174] sm:$0xff]
        %v867 = vld [vmem:[#allocation6 + $0x17c] sm:$0xff]
        %v868 = vld [vmem:[#allocation6 + $0x184] sm:$0xff]
        %v869 = vld [vmem:[#allocation6 + $0x18c] sm:$0xff]
        %v870 = vld [vmem:[#allocation6 + $0x194] sm:$0xff]
        %v871 = vld [vmem:[#allocation6 + $0x19c] sm:$0xf]
        %v872 = vld [vmem:[#allocation6 + $0x1a0] sm:$0xff]
        %v873 = vld [vmem:[#allocation6 + $0x1a8] sm:$0xff]
        %v874 = vld [vmem:[#allocation6 + $0x1b0] sm:$0xff]
        %v875 = vld [vmem:[#allocation6 + $0x1b8] sm:$0xff]
        %v876 = vld [vmem:[#allocation6 + $0x1c0] sm:$0xff]
        %v877 = vld [vmem:[#allocation6 + $0x1c8] sm:$0xff]
        %v878 = vld [vmem:[#allocation6 + $0x1d0] sm:$0xf]
        %v879 = vld [vmem:[#allocation6 + $0x1d4] sm:$0xff]
        %v880 = vld [vmem:[#allocation6 + $0x1dc] sm:$0xff]
        %v881 = vld [vmem:[#allocation6 + $0x1e4] sm:$0xff]
        %v882 = vld [vmem:[#allocation6 + $0x1ec] sm:$0xff]
        %v883 = vld [vmem:[#allocation6 + $0x1f4] sm:$0xff]
        %v884 = vld [vmem:[#allocation6 + $0x1fc] sm:$0xff]
        %v885 = vld [vmem:[#allocation6 + $0x204] sm:$0xf]
        %v886 = vld [vmem:[#allocation6 + $0x208] sm:$0xff]
        %v887 = vld [vmem:[#allocation6 + $0x210] sm:$0xff]
        %v888 = vld [vmem:[#allocation6 + $0x218] sm:$0xff]
        %v889 = vld [vmem:[#allocation6 + $0x220] sm:$0xff]
        %v890 = vld [vmem:[#allocation6 + $0x228] sm:$0xff]
        %v891 = vld [vmem:[#allocation6 + $0x230] sm:$0xff]
        %v892 = vld [vmem:[#allocation6 + $0x238] sm:$0xf]
        %v893 = vld [vmem:[#allocation6 + $0x23c] sm:$0xff]
        %v894 = vld [vmem:[#allocation6 + $0x244] sm:$0xff]
        %v895 = vld [vmem:[#allocation6 + $0x24c] sm:$0xff]
        %v896 = vld [vmem:[#allocation6 + $0x254] sm:$0xff]
        %v897 = vld [vmem:[#allocation6 + $0x25c] sm:$0xff]
        %v898 = vld [vmem:[#allocation6 + $0x264] sm:$0xff]
        %v899 = vld [vmem:[#allocation6 + $0x26c] sm:$0xf]
        %v900 = vld [vmem:[#allocation6 + $0x270] sm:$0xff]
        %v901 = vld [vmem:[#allocation6 + $0x278] sm:$0xff]
        %v902 = vld [vmem:[#allocation6 + $0x280] sm:$0xff]
        %v903 = vld [vmem:[#allocation6 + $0x288] sm:$0xff]
        %v904 = vld [vmem:[#allocation6 + $0x290] sm:$0xff]
        %v905 = vld [vmem:[#allocation6 + $0x298] sm:$0xff]
        %v906 = vld [vmem:[#allocation6 + $0x2a0] sm:$0xf]
        %v907 = vld [vmem:[#allocation6 + $0x2a4] sm:$0xff]
        %v908 = vld [vmem:[#allocation6 + $0x2ac] sm:$0xff]
        %v909 = vld [vmem:[#allocation6 + $0x2b4] sm:$0xff]
        %v910 = vld [vmem:[#allocation6 + $0x2bc] sm:$0xff]
        %v911 = vld [vmem:[#allocation6 + $0x2c4] sm:$0xff]
        %v912 = vld [vmem:[#allocation6 + $0x2cc] sm:$0xff]
        %v913 = vld [vmem:[#allocation6 + $0x2d4] sm:$0xf]
        %v914 = vld [vmem:[#allocation6 + $0x2d8] sm:$0xff]
        %v915 = vld [vmem:[#allocation6 + $0x2e0] sm:$0xff]
        %v916 = vld [vmem:[#allocation6 + $0x2e8] sm:$0xff]
        %v917 = vld [vmem:[#allocation6 + $0x2f0] sm:$0xff]
        %v918 = vld [vmem:[#allocation6 + $0x2f8] sm:$0xff]
        %v919 = vld [vmem:[#allocation6 + $0x300] sm:$0xff]
        %v920 = vld [vmem:[#allocation6 + $0x308] sm:$0xf]
        %v921 = vld [vmem:[#allocation6 + $0x30c] sm:$0xff]
        %v922 = vld [vmem:[#allocation6 + $0x314] sm:$0xff]
        %v923 = vld [vmem:[#allocation6 + $0x31c] sm:$0xff]
        %v924 = vld [vmem:[#allocation6 + $0x324] sm:$0xff]
        %v925 = vld [vmem:[#allocation6 + $0x32c] sm:$0xff]
        %v926 = vld [vmem:[#allocation6 + $0x334] sm:$0xff]
        %v927 = vld [vmem:[#allocation6 + $0x33c] sm:$0xf]
        %v928 = vld [vmem:[%s3] sm:$0xff]
        %v929 = vld [vmem:[%s3 + $0x8] sm:$0xff]
        %v930 = vld [vmem:[%s3 + $0x10] sm:$0xff]
        %v931 = vld [vmem:[%s3 + $0x18] sm:$0xff]
        %v932 = vld [vmem:[%s3 + $0x20] sm:$0xff]
        %v933 = vld [vmem:[%s3 + $0x28] sm:$0xff]
        %v934 = vld [vmem:[%s3 + $0x30] sm:$0xff]
        %v935 = vld [vmem:[%s3 + $0x38] sm:$0xff]
        %v936 = vld [vmem:[%s3 + $0x40] sm:$0xff]
        %v937 = vld [vmem:[%s3 + $0x48] sm:$0xff]
        %v938 = vld [vmem:[%s3 + $0x50] sm:$0xff]
        %v939 = vld [vmem:[%s3 + $0x58] sm:$0xff]
        %v940 = vld [vmem:[%s3 + $0x60] sm:$0xff]
        %v941 = vld [vmem:[%s3 + $0x68] sm:$0xff]
        %v942 = vld [vmem:[%s3 + $0x70] sm:$0xff]
        %v943 = vld [vmem:[%s3 + $0x78] sm:$0xff]
        %945 = vset.pattern.permute.xlu0 0
        %946 = vperm.xlu0 %945, %v928
        %v947 = vpop.permute.xlu0 %946
        %950 = vset.pattern.permute.xlu0 0
        %951 = vperm.xlu0 %950, %v929
        %v952 = vpop.permute.xlu0 %951
        %955 = vset.pattern.permute.xlu0 0
        %956 = vperm.xlu0 %955, %v930
        %v957 = vpop.permute.xlu0 %956
        %960 = vset.pattern.permute.xlu0 0
        %961 = vperm.xlu0 %960, %v931
        %v962 = vpop.permute.xlu0 %961
        %965 = vset.pattern.permute.xlu0 0
        %966 = vperm.xlu0 %965, %v932
        %v967 = vpop.permute.xlu0 %966
        %970 = vset.pattern.permute.xlu0 0
        %971 = vperm.xlu0 %970, %v933
        %v972 = vpop.permute.xlu0 %971
        %975 = vset.pattern.permute.xlu0 0
        %976 = vperm.xlu0 %975, %v934
        %v977 = vpop.permute.xlu0 %976
        %980 = vset.pattern.permute.xlu0 0
        %981 = vperm.xlu0 %980, %v935
        %v982 = vpop.permute.xlu0 %981
        %985 = vset.pattern.permute.xlu0 0
        %986 = vperm.xlu0 %985, %v936
        %v987 = vpop.permute.xlu0 %986
        %990 = vset.pattern.permute.xlu0 0
        %991 = vperm.xlu0 %990, %v937
        %v992 = vpop.permute.xlu0 %991
        %995 = vset.pattern.permute.xlu0 0
        %996 = vperm.xlu0 %995, %v938
        %v997 = vpop.permute.xlu0 %996
        %1000 = vset.pattern.permute.xlu0 0
        %1001 = vperm.xlu0 %1000, %v939
        %v1002 = vpop.permute.xlu0 %1001
        %1005 = vset.pattern.permute.xlu0 0
        %1006 = vperm.xlu0 %1005, %v940
        %v1007 = vpop.permute.xlu0 %1006
        %1010 = vset.pattern.permute.xlu0 0
        %1011 = vperm.xlu0 %1010, %v941
        %v1012 = vpop.permute.xlu0 %1011
        %1015 = vset.pattern.permute.xlu0 0
        %1016 = vperm.xlu0 %1015, %v942
        %v1017 = vpop.permute.xlu0 %1016
        %1020 = vset.pattern.permute.xlu0 0
        %1021 = vperm.xlu0 %1020, %v943
        %v1022 = vpop.permute.xlu0 %1021
        %v1136 = vunpack.c.l.b16 %v816
        %v1137 = vunpack.c.h.b16 %v816
        %v1138 = vunpack.c.l.b16 %v817
        %v1139 = vunpack.c.h.b16 %v817
        %v1140 = vunpack.c.l.b16 %v818
        %v1141 = vunpack.c.h.b16 %v818
        %v1142 = vunpack.c.l.b16 %v819
        %v1143 = vunpack.c.h.b16 %v819
        %v1144 = vunpack.c.l.b16 %v820
        %v1145 = vunpack.c.h.b16 %v820
        %v1146 = vunpack.c.l.b16 %v821
        %v1147 = vunpack.c.h.b16 %v821
        %v1148 = vunpack.c.l.b16 %v822
        %v1149 = vunpack.c.l.b16 %v823
        %v1150 = vunpack.c.h.b16 %v823
        %v1151 = vunpack.c.l.b16 %v824
        %v1152 = vunpack.c.h.b16 %v824
        %v1153 = vunpack.c.l.b16 %v825
        %v1154 = vunpack.c.h.b16 %v825
        %v1155 = vunpack.c.l.b16 %v826
        %v1156 = vunpack.c.h.b16 %v826
        %v1157 = vunpack.c.l.b16 %v827
        %v1158 = vunpack.c.h.b16 %v827
        %v1159 = vunpack.c.l.b16 %v828
        %v1160 = vunpack.c.h.b16 %v828
        %v1161 = vunpack.c.l.b16 %v829
        %v1162 = vunpack.c.l.b16 %v830
        %v1163 = vunpack.c.h.b16 %v830
        %v1164 = vunpack.c.l.b16 %v831
        %v1165 = vunpack.c.h.b16 %v831
        %v1166 = vunpack.c.l.b16 %v832
        %v1167 = vunpack.c.h.b16 %v832
        %v1168 = vunpack.c.l.b16 %v833
        %v1169 = vunpack.c.h.b16 %v833
        %v1170 = vunpack.c.l.b16 %v834
        %v1171 = vunpack.c.h.b16 %v834
        %v1172 = vunpack.c.l.b16 %v835
        %v1173 = vunpack.c.h.b16 %v835
        %v1174 = vunpack.c.l.b16 %v836
        %v1175 = vunpack.c.l.b16 %v837
        %v1176 = vunpack.c.h.b16 %v837
        %v1177 = vunpack.c.l.b16 %v838
        %v1178 = vunpack.c.h.b16 %v838
        %v1179 = vunpack.c.l.b16 %v839
        %v1180 = vunpack.c.h.b16 %v839
        %v1181 = vunpack.c.l.b16 %v840
        %v1182 = vunpack.c.h.b16 %v840
        %v1183 = vunpack.c.l.b16 %v841
        %v1184 = vunpack.c.h.b16 %v841
        %v1185 = vunpack.c.l.b16 %v842
        %v1186 = vunpack.c.h.b16 %v842
        %v1187 = vunpack.c.l.b16 %v843
        %v1188 = vunpack.c.l.b16 %v844
        %v1189 = vunpack.c.h.b16 %v844
        %v1190 = vunpack.c.l.b16 %v845
        %v1191 = vunpack.c.h.b16 %v845
        %v1192 = vunpack.c.l.b16 %v846
        %v1193 = vunpack.c.h.b16 %v846
        %v1194 = vunpack.c.l.b16 %v847
        %v1195 = vunpack.c.h.b16 %v847
        %v1196 = vunpack.c.l.b16 %v848
        %v1197 = vunpack.c.h.b16 %v848
        %v1198 = vunpack.c.l.b16 %v849
        %v1199 = vunpack.c.h.b16 %v849
        %v1200 = vunpack.c.l.b16 %v850
        %v1201 = vunpack.c.l.b16 %v851
        %v1202 = vunpack.c.h.b16 %v851
        %v1203 = vunpack.c.l.b16 %v852
        %v1204 = vunpack.c.h.b16 %v852
        %v1205 = vunpack.c.l.b16 %v853
        %v1206 = vunpack.c.h.b16 %v853
        %v1207 = vunpack.c.l.b16 %v854
        %v1208 = vunpack.c.h.b16 %v854
        %v1209 = vunpack.c.l.b16 %v855
        %v1210 = vunpack.c.h.b16 %v855
        %v1211 = vunpack.c.l.b16 %v856
        %v1212 = vunpack.c.h.b16 %v856
        %v1213 = vunpack.c.l.b16 %v857
        %v1214 = vunpack.c.l.b16 %v858
        %v1215 = vunpack.c.h.b16 %v858
        %v1216 = vunpack.c.l.b16 %v859
        %v1217 = vunpack.c.h.b16 %v859
        %v1218 = vunpack.c.l.b16 %v860
        %v1219 = vunpack.c.h.b16 %v860
        %v1220 = vunpack.c.l.b16 %v861
        %v1221 = vunpack.c.h.b16 %v861
        %v1222 = vunpack.c.l.b16 %v862
        %v1223 = vunpack.c.h.b16 %v862
        %v1224 = vunpack.c.l.b16 %v863
        %v1225 = vunpack.c.h.b16 %v863
        %v1226 = vunpack.c.l.b16 %v864
        %v1227 = vunpack.c.l.b16 %v865
        %v1228 = vunpack.c.h.b16 %v865
        %v1229 = vunpack.c.l.b16 %v866
        %v1230 = vunpack.c.h.b16 %v866
        %v1231 = vunpack.c.l.b16 %v867
        %v1232 = vunpack.c.h.b16 %v867
        %v1233 = vunpack.c.l.b16 %v868
        %v1234 = vunpack.c.h.b16 %v868
        %v1235 = vunpack.c.l.b16 %v869
        %v1236 = vunpack.c.h.b16 %v869
        %v1237 = vunpack.c.l.b16 %v870
        %v1238 = vunpack.c.h.b16 %v870
        %v1239 = vunpack.c.l.b16 %v871
        %v1240 = vunpack.c.l.b16 %v872
        %v1241 = vunpack.c.h.b16 %v872
        %v1242 = vunpack.c.l.b16 %v873
        %v1243 = vunpack.c.h.b16 %v873
        %v1244 = vunpack.c.l.b16 %v874
        %v1245 = vunpack.c.h.b16 %v874
        %v1246 = vunpack.c.l.b16 %v875
        %v1247 = vunpack.c.h.b16 %v875
        %v1248 = vunpack.c.l.b16 %v876
        %v1249 = vunpack.c.h.b16 %v876
        %v1250 = vunpack.c.l.b16 %v877
        %v1251 = vunpack.c.h.b16 %v877
        %v1252 = vunpack.c.l.b16 %v878
        %v1253 = vunpack.c.l.b16 %v879
        %v1254 = vunpack.c.h.b16 %v879
        %v1255 = vunpack.c.l.b16 %v880
        %v1256 = vunpack.c.h.b16 %v880
        %v1257 = vunpack.c.l.b16 %v881
        %v1258 = vunpack.c.h.b16 %v881
        %v1259 = vunpack.c.l.b16 %v882
        %v1260 = vunpack.c.h.b16 %v882
        %v1261 = vunpack.c.l.b16 %v883
        %v1262 = vunpack.c.h.b16 %v883
        %v1263 = vunpack.c.l.b16 %v884
        %v1264 = vunpack.c.h.b16 %v884
        %v1265 = vunpack.c.l.b16 %v885
        %v1266 = vunpack.c.l.b16 %v886
        %v1267 = vunpack.c.h.b16 %v886
        %v1268 = vunpack.c.l.b16 %v887
        %v1269 = vunpack.c.h.b16 %v887
        %v1270 = vunpack.c.l.b16 %v888
        %v1271 = vunpack.c.h.b16 %v888
        %v1272 = vunpack.c.l.b16 %v889
        %v1273 = vunpack.c.h.b16 %v889
        %v1274 = vunpack.c.l.b16 %v890
        %v1275 = vunpack.c.h.b16 %v890
        %v1276 = vunpack.c.l.b16 %v891
        %v1277 = vunpack.c.h.b16 %v891
        %v1278 = vunpack.c.l.b16 %v892
        %v1279 = vunpack.c.l.b16 %v893
        %v1280 = vunpack.c.h.b16 %v893
        %v1281 = vunpack.c.l.b16 %v894
        %v1282 = vunpack.c.h.b16 %v894
        %v1283 = vunpack.c.l.b16 %v895
        %v1284 = vunpack.c.h.b16 %v895
        %v1285 = vunpack.c.l.b16 %v896
        %v1286 = vunpack.c.h.b16 %v896
        %v1287 = vunpack.c.l.b16 %v897
        %v1288 = vunpack.c.h.b16 %v897
        %v1289 = vunpack.c.l.b16 %v898
        %v1290 = vunpack.c.h.b16 %v898
        %v1291 = vunpack.c.l.b16 %v899
        %v1292 = vunpack.c.l.b16 %v900
        %v1293 = vunpack.c.h.b16 %v900
        %v1294 = vunpack.c.l.b16 %v901
        %v1295 = vunpack.c.h.b16 %v901
        %v1296 = vunpack.c.l.b16 %v902
        %v1297 = vunpack.c.h.b16 %v902
        %v1298 = vunpack.c.l.b16 %v903
        %v1299 = vunpack.c.h.b16 %v903
        %v1300 = vunpack.c.l.b16 %v904
        %v1301 = vunpack.c.h.b16 %v904
        %v1302 = vunpack.c.l.b16 %v905
        %v1303 = vunpack.c.h.b16 %v905
        %v1304 = vunpack.c.l.b16 %v906
        %v1305 = vunpack.c.l.b16 %v907
        %v1306 = vunpack.c.h.b16 %v907
        %v1307 = vunpack.c.l.b16 %v908
        %v1308 = vunpack.c.h.b16 %v908
        %v1309 = vunpack.c.l.b16 %v909
        %v1310 = vunpack.c.h.b16 %v909
        %v1311 = vunpack.c.l.b16 %v910
        %v1312 = vunpack.c.h.b16 %v910
        %v1313 = vunpack.c.l.b16 %v911
        %v1314 = vunpack.c.h.b16 %v911
        %v1315 = vunpack.c.l.b16 %v912
        %v1316 = vunpack.c.h.b16 %v912
        %v1317 = vunpack.c.l.b16 %v913
        %v1318 = vunpack.c.l.b16 %v914
        %v1319 = vunpack.c.h.b16 %v914
        %v1320 = vunpack.c.l.b16 %v915
        %v1321 = vunpack.c.h.b16 %v915
        %v1322 = vunpack.c.l.b16 %v916
        %v1323 = vunpack.c.h.b16 %v916
        %v1324 = vunpack.c.l.b16 %v917
        %v1325 = vunpack.c.h.b16 %v917
        %v1326 = vunpack.c.l.b16 %v918
        %v1327 = vunpack.c.h.b16 %v918
        %v1328 = vunpack.c.l.b16 %v919
        %v1329 = vunpack.c.h.b16 %v919
        %v1330 = vunpack.c.l.b16 %v920
        %v1331 = vunpack.c.l.b16 %v921
        %v1332 = vunpack.c.h.b16 %v921
        %v1333 = vunpack.c.l.b16 %v922
        %v1334 = vunpack.c.h.b16 %v922
        %v1335 = vunpack.c.l.b16 %v923
        %v1336 = vunpack.c.h.b16 %v923
        %v1337 = vunpack.c.l.b16 %v924
        %v1338 = vunpack.c.h.b16 %v924
        %v1339 = vunpack.c.l.b16 %v925
        %v1340 = vunpack.c.h.b16 %v925
        %v1341 = vunpack.c.l.b16 %v926
        %v1342 = vunpack.c.h.b16 %v926
        %v1343 = vunpack.c.l.b16 %v927
        %v1344 = vpack.c.b16 %v1149, %v1136
        %v1345 = vpack.c.b16 %v1150, %v1137
        %v1346 = vpack.c.b16 %v1151, %v1138
        %v1347 = vpack.c.b16 %v1152, %v1139
        %v1348 = vpack.c.b16 %v1153, %v1140
        %v1349 = vpack.c.b16 %v1154, %v1141
        %v1350 = vpack.c.b16 %v1155, %v1142
        %v1351 = vpack.c.b16 %v1156, %v1143
        %v1352 = vpack.c.b16 %v1157, %v1144
        %v1353 = vpack.c.b16 %v1158, %v1145
        %v1354 = vpack.c.b16 %v1159, %v1146
        %v1355 = vpack.c.b16 %v1160, %v1147
        %v1356 = vpack.c.b16 %v1161, %v1148
        %v1357 = vpack.c.b16 %v1175, %v1162
        %v1358 = vpack.c.b16 %v1176, %v1163
        %v1359 = vpack.c.b16 %v1177, %v1164
        %v1360 = vpack.c.b16 %v1178, %v1165
        %v1361 = vpack.c.b16 %v1179, %v1166
        %v1362 = vpack.c.b16 %v1180, %v1167
        %v1363 = vpack.c.b16 %v1181, %v1168
        %v1364 = vpack.c.b16 %v1182, %v1169
        %v1365 = vpack.c.b16 %v1183, %v1170
        %v1366 = vpack.c.b16 %v1184, %v1171
        %v1367 = vpack.c.b16 %v1185, %v1172
        %v1368 = vpack.c.b16 %v1186, %v1173
        %v1369 = vpack.c.b16 %v1187, %v1174
        %v1370 = vpack.c.b16 %v1201, %v1188
        %v1371 = vpack.c.b16 %v1202, %v1189
        %v1372 = vpack.c.b16 %v1203, %v1190
        %v1373 = vpack.c.b16 %v1204, %v1191
        %v1374 = vpack.c.b16 %v1205, %v1192
        %v1375 = vpack.c.b16 %v1206, %v1193
        %v1376 = vpack.c.b16 %v1207, %v1194
        %v1377 = vpack.c.b16 %v1208, %v1195
        %v1378 = vpack.c.b16 %v1209, %v1196
        %v1379 = vpack.c.b16 %v1210, %v1197
        %v1380 = vpack.c.b16 %v1211, %v1198
        %v1381 = vpack.c.b16 %v1212, %v1199
        %v1382 = vpack.c.b16 %v1213, %v1200
        %v1383 = vpack.c.b16 %v1227, %v1214
        %v1384 = vpack.c.b16 %v1228, %v1215
        %v1385 = vpack.c.b16 %v1229, %v1216
        %v1386 = vpack.c.b16 %v1230, %v1217
        %v1387 = vpack.c.b16 %v1231, %v1218
        %v1388 = vpack.c.b16 %v1232, %v1219
        %v1389 = vpack.c.b16 %v1233, %v1220
        %v1390 = vpack.c.b16 %v1234, %v1221
        %v1391 = vpack.c.b16 %v1235, %v1222
        %v1392 = vpack.c.b16 %v1236, %v1223
        %v1393 = vpack.c.b16 %v1237, %v1224
        %v1394 = vpack.c.b16 %v1238, %v1225
        %v1395 = vpack.c.b16 %v1239, %v1226
        %v1396 = vpack.c.b16 %v1253, %v1240
        %v1397 = vpack.c.b16 %v1254, %v1241
        %v1398 = vpack.c.b16 %v1255, %v1242
        %v1399 = vpack.c.b16 %v1256, %v1243
        %v1400 = vpack.c.b16 %v1257, %v1244
        %v1401 = vpack.c.b16 %v1258, %v1245
        %v1402 = vpack.c.b16 %v1259, %v1246
        %v1403 = vpack.c.b16 %v1260, %v1247
        %v1404 = vpack.c.b16 %v1261, %v1248
        %v1405 = vpack.c.b16 %v1262, %v1249
        %v1406 = vpack.c.b16 %v1263, %v1250
        %v1407 = vpack.c.b16 %v1264, %v1251
        %v1408 = vpack.c.b16 %v1265, %v1252
        %v1409 = vpack.c.b16 %v1279, %v1266
        %v1410 = vpack.c.b16 %v1280, %v1267
        %v1411 = vpack.c.b16 %v1281, %v1268
        %v1412 = vpack.c.b16 %v1282, %v1269
        %v1413 = vpack.c.b16 %v1283, %v1270
        %v1414 = vpack.c.b16 %v1284, %v1271
        %v1415 = vpack.c.b16 %v1285, %v1272
        %v1416 = vpack.c.b16 %v1286, %v1273
        %v1417 = vpack.c.b16 %v1287, %v1274
        %v1418 = vpack.c.b16 %v1288, %v1275
        %v1419 = vpack.c.b16 %v1289, %v1276
        %v1420 = vpack.c.b16 %v1290, %v1277
        %v1421 = vpack.c.b16 %v1291, %v1278
        %v1422 = vpack.c.b16 %v1305, %v1292
        %v1423 = vpack.c.b16 %v1306, %v1293
        %v1424 = vpack.c.b16 %v1307, %v1294
        %v1425 = vpack.c.b16 %v1308, %v1295
        %v1426 = vpack.c.b16 %v1309, %v1296
        %v1427 = vpack.c.b16 %v1310, %v1297
        %v1428 = vpack.c.b16 %v1311, %v1298
        %v1429 = vpack.c.b16 %v1312, %v1299
        %v1430 = vpack.c.b16 %v1313, %v1300
        %v1431 = vpack.c.b16 %v1314, %v1301
        %v1432 = vpack.c.b16 %v1315, %v1302
        %v1433 = vpack.c.b16 %v1316, %v1303
        %v1434 = vpack.c.b16 %v1317, %v1304
        %v1435 = vpack.c.b16 %v1331, %v1318
        %v1436 = vpack.c.b16 %v1332, %v1319
        %v1437 = vpack.c.b16 %v1333, %v1320
        %v1438 = vpack.c.b16 %v1334, %v1321
        %v1439 = vpack.c.b16 %v1335, %v1322
        %v1440 = vpack.c.b16 %v1336, %v1323
        %v1441 = vpack.c.b16 %v1337, %v1324
        %v1442 = vpack.c.b16 %v1338, %v1325
        %v1443 = vpack.c.b16 %v1339, %v1326
        %v1444 = vpack.c.b16 %v1340, %v1327
        %v1445 = vpack.c.b16 %v1341, %v1328
        %v1446 = vpack.c.b16 %v1342, %v1329
        %v1447 = vpack.c.b16 %v1343, %v1330
        %1552 = vmatprep.subr.bf16.mxu0 0
        %1553 = vmatpush1.bf16.msra.mxu0 %v712
        %1554 = vmatprep.subr.bf16.mxu0 0
        %1555 = vmatpush1.bf16.msra.mxu0 %v713
        %1556 = vmatprep.subr.bf16.mxu0 0
        %1557 = vmatpush1.bf16.msra.mxu0 %v714
        %1558 = vmatprep.subr.bf16.mxu0 0
        %1559 = vmatpush1.bf16.msra.mxu0 %v715
        %1560 = vmatprep.subr.bf16.mxu0 0
        %1561 = vmatpush1.bf16.msra.mxu0 %v716
        %1562 = vmatprep.subr.bf16.mxu0 0
        %1563 = vmatpush1.bf16.msra.mxu0 %v717
        %1564 = vmatprep.subr.bf16.mxu0 0
        %1565 = vmatpush1.bf16.msra.mxu0 %v718
        %1566 = vmatprep.subr.bf16.mxu0 0
        %1567 = vmatpush1.bf16.msra.mxu0 %v719
        %1568 = vmatprep.subr.bf16.mxu0 0
        %1569 = vmatpush1.bf16.msra.mxu0 %v720
        %1570 = vmatprep.subr.bf16.mxu0 0
        %1571 = vmatpush1.bf16.msra.mxu0 %v721
        %1572 = vmatprep.subr.bf16.mxu0 0
        %1573 = vmatpush1.bf16.msra.mxu0 %v722
        %1574 = vmatprep.subr.bf16.mxu0 0
        %1575 = vmatpush1.bf16.msra.mxu0 %v723
        %1576 = vmatprep.subr.bf16.mxu0 0
        %1577 = vmatpush1.bf16.msra.mxu0 %v724
        %1578 = vmatprep.subr.bf16.mxu0 0
        %1579 = vmatpush1.bf16.msra.mxu0 %v725
        %1580 = vmatprep.subr.bf16.mxu0 0
        %1581 = vmatpush1.bf16.msra.mxu0 %v726
        %1582 = vmatprep.subr.bf16.mxu0 0
        %1583 = vmatpush1.bf16.msra.mxu0 %v727
        %1584 = vmatprep.mubr.bf16.mxu0 %v1345
        %1585 = vmatmul.mubr.bf16.gmra.mrb[0].mxu0 %v1344
        %v1586 = vpop.f32.mrb[0].mxu0
        %v1587 = vadd.f32 %v947, %v1586
        %v1588 = vpop.f32.mrb[0].mxu0
        %v1589 = vpop.f32.mrb[0].mxu0
        %v1590 = vadd.f32 %v952, %v1589
        %v1591 = vpop.f32.mrb[0].mxu0
        %1592 = vmatprep.mubr.bf16.mxu0 %v1358
        %1593 = vmatmul.mubr.bf16.gmra.mrb[0].mxu0 %v1357
        %v1594 = vpop.f32.mrb[0].mxu0
        %v1595 = vadd.f32 %v957, %v1594
        %v1596 = vpop.f32.mrb[0].mxu0
        %v1597 = vpop.f32.mrb[0].mxu0
        %v1598 = vadd.f32 %v962, %v1597
        %v1599 = vpop.f32.mrb[0].mxu0
        %1600 = vmatprep.mubr.bf16.mxu0 %v1371
        %1601 = vmatmul.mubr.bf16.gmra.mrb[0].mxu0 %v1370
        %v1602 = vpop.f32.mrb[0].mxu0
        %v1603 = vadd.f32 %v967, %v1602
        %v1604 = vpop.f32.mrb[0].mxu0
        %v1605 = vpop.f32.mrb[0].mxu0
        %v1606 = vadd.f32 %v972, %v1605
        %v1607 = vpop.f32.mrb[0].mxu0
        %1608 = vmatprep.mubr.bf16.mxu0 %v1384
        %1609 = vmatmul.mubr.bf16.gmra.mrb[0].mxu0 %v1383
        %v1610 = vpop.f32.mrb[0].mxu0
        %v1611 = vadd.f32 %v977, %v1610
        %v1612 = vpop.f32.mrb[0].mxu0
        %v1613 = vpop.f32.mrb[0].mxu0
        %v1614 = vadd.f32 %v982, %v1613
        %v1615 = vpop.f32.mrb[0].mxu0
        %1616 = vmatprep.mubr.bf16.mxu0 %v1397
        %1617 = vmatmul.mubr.bf16.gmra.mrb[0].mxu0 %v1396
        %v1618 = vpop.f32.mrb[0].mxu0
        %v1619 = vadd.f32 %v987, %v1618
        %v1620 = vpop.f32.mrb[0].mxu0
        %v1621 = vpop.f32.mrb[0].mxu0
        %v1622 = vadd.f32 %v992, %v1621
        %v1623 = vpop.f32.mrb[0].mxu0
        %1624 = vmatprep.mubr.bf16.mxu0 %v1410
        %1625 = vmatmul.mubr.bf16.gmra.mrb[0].mxu0 %v1409
        %v1626 = vpop.f32.mrb[0].mxu0
        %v1627 = vadd.f32 %v997, %v1626
        %v1628 = vpop.f32.mrb[0].mxu0
        %v1629 = vpop.f32.mrb[0].mxu0
        %v1630 = vadd.f32 %v1002, %v1629
        %v1631 = vpop.f32.mrb[0].mxu0
        %1632 = vmatprep.mubr.bf16.mxu0 %v1423
        %1633 = vmatmul.mubr.bf16.gmra.mrb[0].mxu0 %v1422
        %v1634 = vpop.f32.mrb[0].mxu0
        %v1635 = vadd.f32 %v1007, %v1634
        %v1636 = vpop.f32.mrb[0].mxu0
        %v1637 = vpop.f32.mrb[0].mxu0
        %v1638 = vadd.f32 %v1012, %v1637
        %v1639 = vpop.f32.mrb[0].mxu0
        %1640 = vmatprep.mubr.bf16.mxu0 %v1436
        %1641 = vmatmul.mubr.bf16.gmra.mrb[0].mxu0 %v1435
        %v1642 = vpop.f32.mrb[0].mxu0
        %v1643 = vadd.f32 %v1017, %v1642
        %v1644 = vpop.f32.mrb[0].mxu0
        %v1645 = vpop.f32.mrb[0].mxu0
        %v1646 = vadd.f32 %v1022, %v1645
        %v1647 = vpop.f32.mrb[0].mxu0
        %1648 = vdwg.mxu0
        %1649 = vmatprep.subr.bf16.mxu0 0
        %1650 = vmatpush1.bf16.msra.mxu0 %v728
        %1651 = vmatprep.subr.bf16.mxu0 0
        %1652 = vmatpush1.bf16.msra.mxu0 %v729
        %1653 = vmatprep.subr.bf16.mxu0 0
        %1654 = vmatpush1.bf16.msra.mxu0 %v730
        %1655 = vmatprep.subr.bf16.mxu0 0
        %1656 = vmatpush1.bf16.msra.mxu0 %v731
        %1657 = vmatprep.subr.bf16.mxu0 0
        %1658 = vmatpush1.bf16.msra.mxu0 %v732
        %1659 = vmatprep.subr.bf16.mxu0 0
        %1660 = vmatpush1.bf16.msra.mxu0 %v733
        %1661 = vmatprep.subr.bf16.mxu0 0
        %1662 = vmatpush1.bf16.msra.mxu0 %v734
        %1663 = vmatprep.subr.bf16.mxu0 0
        %1664 = vmatpush1.bf16.msra.mxu0 %v735
        %1665 = vmatprep.subr.bf16.mxu0 0
        %1666 = vmatpush1.bf16.msra.mxu0 %v736
        %1667 = vmatprep.subr.bf16.mxu0 0
        %1668 = vmatpush1.bf16.msra.mxu0 %v737
        %1669 = vmatprep.subr.bf16.mxu0 0
        %1670 = vmatpush1.bf16.msra.mxu0 %v738
        %1671 = vmatprep.subr.bf16.mxu0 0
        %1672 = vmatpush1.bf16.msra.mxu0 %v739
        %1673 = vmatprep.subr.bf16.mxu0 0
        %1674 = vmatpush1.bf16.msra.mxu0 %v740
        %1675 = vmatprep.subr.bf16.mxu0 0
        %1676 = vmatpush1.bf16.msra.mxu0 %v741
        %1677 = vmatprep.subr.bf16.mxu0 0
        %1678 = vmatpush1.bf16.msra.mxu0 %v742
        %1679 = vmatprep.subr.bf16.mxu0 0
        %1680 = vmatpush1.bf16.msra.mxu0 %v743
        %1681 = vmatprep.mubr.bf16.mxu0 %v1347
        %1682 = vmatmul.mubr.bf16.gmra.mrb[0].mxu0 %v1346
        %v1683 = vpop.f32.mrb[0].mxu0
        %v1684 = vadd.f32 %v1587, %v1683
        %v1685 = vpop.f32.mrb[0].mxu0
        %v1686 = vpop.f32.mrb[0].mxu0
        %v1687 = vadd.f32 %v1590, %v1686
        %v1688 = vpop.f32.mrb[0].mxu0
        %1689 = vmatprep.mubr.bf16.mxu0 %v1360
        %1690 = vmatmul.mubr.bf16.gmra.mrb[0].mxu0 %v1359
        %v1691 = vpop.f32.mrb[0].mxu0
        %v1692 = vadd.f32 %v1595, %v1691
        %v1693 = vpop.f32.mrb[0].mxu0
        %v1694 = vpop.f32.mrb[0].mxu0
        %v1695 = vadd.f32 %v1598, %v1694
        %v1696 = vpop.f32.mrb[0].mxu0
        %1697 = vmatprep.mubr.bf16.mxu0 %v1373
        %1698 = vmatmul.mubr.bf16.gmra.mrb[0].mxu0 %v1372
        %v1699 = vpop.f32.mrb[0].mxu0
        %v1700 = vadd.f32 %v1603, %v1699
        %v1701 = vpop.f32.mrb[0].mxu0
        %v1702 = vpop.f32.mrb[0].mxu0
        %v1703 = vadd.f32 %v1606, %v1702
        %v1704 = vpop.f32.mrb[0].mxu0
        %1705 = vmatprep.mubr.bf16.mxu0 %v1386
        %1706 = vmatmul.mubr.bf16.gmra.mrb[0].mxu0 %v1385
        %v1707 = vpop.f32.mrb[0].mxu0
        %v1708 = vadd.f32 %v1611, %v1707
        %v1709 = vpop.f32.mrb[0].mxu0
        %v1710 = vpop.f32.mrb[0].mxu0
        %v1711 = vadd.f32 %v1614, %v1710
        %v1712 = vpop.f32.mrb[0].mxu0
        %1713 = vmatprep.mubr.bf16.mxu0 %v1399
        %1714 = vmatmul.mubr.bf16.gmra.mrb[0].mxu0 %v1398
        %v1715 = vpop.f32.mrb[0].mxu0
        %v1716 = vadd.f32 %v1619, %v1715
        %v1717 = vpop.f32.mrb[0].mxu0
        %v1718 = vpop.f32.mrb[0].mxu0
        %v1719 = vadd.f32 %v1622, %v1718
        %v1720 = vpop.f32.mrb[0].mxu0
        %1721 = vmatprep.mubr.bf16.mxu0 %v1412
        %1722 = vmatmul.mubr.bf16.gmra.mrb[0].mxu0 %v1411
        %v1723 = vpop.f32.mrb[0].mxu0
        %v1724 = vadd.f32 %v1627, %v1723
        %v1725 = vpop.f32.mrb[0].mxu0
        %v1726 = vpop.f32.mrb[0].mxu0
        %v1727 = vadd.f32 %v1630, %v1726
        %v1728 = vpop.f32.mrb[0].mxu0
        %1729 = vmatprep.mubr.bf16.mxu0 %v1425
        %1730 = vmatmul.mubr.bf16.gmra.mrb[0].mxu0 %v1424
        %v1731 = vpop.f32.mrb[0].mxu0
        %v1732 = vadd.f32 %v1635, %v1731
        %v1733 = vpop.f32.mrb[0].mxu0
        %v1734 = vpop.f32.mrb[0].mxu0
        %v1735 = vadd.f32 %v1638, %v1734
        %v1736 = vpop.f32.mrb[0].mxu0
        %1737 = vmatprep.mubr.bf16.mxu0 %v1438
        %1738 = vmatmul.mubr.bf16.gmra.mrb[0].mxu0 %v1437
        %v1739 = vpop.f32.mrb[0].mxu0
        %v1740 = vadd.f32 %v1643, %v1739
        %v1741 = vpop.f32.mrb[0].mxu0
        %v1742 = vpop.f32.mrb[0].mxu0
        %v1743 = vadd.f32 %v1646, %v1742
        %v1744 = vpop.f32.mrb[0].mxu0
        %1745 = vdwg.mxu0
        %1746 = vmatprep.subr.bf16.mxu0 0
        %1747 = vmatpush1.bf16.msra.mxu0 %v744
        %1748 = vmatprep.subr.bf16.mxu0 0
        %1749 = vmatpush1.bf16.msra.mxu0 %v745
        %1750 = vmatprep.subr.bf16.mxu0 0
        %1751 = vmatpush1.bf16.msra.mxu0 %v746
        %1752 = vmatprep.subr.bf16.mxu0 0
        %1753 = vmatpush1.bf16.msra.mxu0 %v747
        %1754 = vmatprep.subr.bf16.mxu0 0
        %1755 = vmatpush1.bf16.msra.mxu0 %v748
        %1756 = vmatprep.subr.bf16.mxu0 0
        %1757 = vmatpush1.bf16.msra.mxu0 %v749
        %1758 = vmatprep.subr.bf16.mxu0 0
        %1759 = vmatpush1.bf16.msra.mxu0 %v750
        %1760 = vmatprep.subr.bf16.mxu0 0
        %1761 = vmatpush1.bf16.msra.mxu0 %v751
        %1762 = vmatprep.subr.bf16.mxu0 0
        %1763 = vmatpush1.bf16.msra.mxu0 %v752
        %1764 = vmatprep.subr.bf16.mxu0 0
        %1765 = vmatpush1.bf16.msra.mxu0 %v753
        %1766 = vmatprep.subr.bf16.mxu0 0
        %1767 = vmatpush1.bf16.msra.mxu0 %v754
        %1768 = vmatprep.subr.bf16.mxu0 0
        %1769 = vmatpush1.bf16.msra.mxu0 %v755
        %1770 = vmatprep.subr.bf16.mxu0 0
        %1771 = vmatpush1.bf16.msra.mxu0 %v756
        %1772 = vmatprep.subr.bf16.mxu0 0
        %1773 = vmatpush1.bf16.msra.mxu0 %v757
        %1774 = vmatprep.subr.bf16.mxu0 0
        %1775 = vmatpush1.bf16.msra.mxu0 %v758
        %1776 = vmatprep.subr.bf16.mxu0 0
        %1777 = vmatpush1.bf16.msra.mxu0 %v759
        %1778 = vmatprep.mubr.bf16.mxu0 %v1349
        %1779 = vmatmul.mubr.bf16.gmra.mrb[0].mxu0 %v1348
        %v1780 = vpop.f32.mrb[0].mxu0
        %v1781 = vadd.f32 %v1684, %v1780
        %v1782 = vpop.f32.mrb[0].mxu0
        %v1783 = vpop.f32.mrb[0].mxu0
        %v1784 = vadd.f32 %v1687, %v1783
        %v1785 = vpop.f32.mrb[0].mxu0
        %1786 = vmatprep.mubr.bf16.mxu0 %v1362
        %1787 = vmatmul.mubr.bf16.gmra.mrb[0].mxu0 %v1361
        %v1788 = vpop.f32.mrb[0].mxu0
        %v1789 = vadd.f32 %v1692, %v1788
        %v1790 = vpop.f32.mrb[0].mxu0
        %v1791 = vpop.f32.mrb[0].mxu0
        %v1792 = vadd.f32 %v1695, %v1791
        %v1793 = vpop.f32.mrb[0].mxu0
        %1794 = vmatprep.mubr.bf16.mxu0 %v1375
        %1795 = vmatmul.mubr.bf16.gmra.mrb[0].mxu0 %v1374
        %v1796 = vpop.f32.mrb[0].mxu0
        %v1797 = vadd.f32 %v1700, %v1796
        %v1798 = vpop.f32.mrb[0].mxu0
        %v1799 = vpop.f32.mrb[0].mxu0
        %v1800 = vadd.f32 %v1703, %v1799
        %v1801 = vpop.f32.mrb[0].mxu0
        %1802 = vmatprep.mubr.bf16.mxu0 %v1388
        %1803 = vmatmul.mubr.bf16.gmra.mrb[0].mxu0 %v1387
        %v1804 = vpop.f32.mrb[0].mxu0
        %v1805 = vadd.f32 %v1708, %v1804
        %v1806 = vpop.f32.mrb[0].mxu0
        %v1807 = vpop.f32.mrb[0].mxu0
        %v1808 = vadd.f32 %v1711, %v1807
        %v1809 = vpop.f32.mrb[0].mxu0
        %1810 = vmatprep.mubr.bf16.mxu0 %v1401
        %1811 = vmatmul.mubr.bf16.gmra.mrb[0].mxu0 %v1400
        %v1812 = vpop.f32.mrb[0].mxu0
        %v1813 = vadd.f32 %v1716, %v1812
        %v1814 = vpop.f32.mrb[0].mxu0
        %v1815 = vpop.f32.mrb[0].mxu0
        %v1816 = vadd.f32 %v1719, %v1815
        %v1817 = vpop.f32.mrb[0].mxu0
        %1818 = vmatprep.mubr.bf16.mxu0 %v1414
        %1819 = vmatmul.mubr.bf16.gmra.mrb[0].mxu0 %v1413
        %v1820 = vpop.f32.mrb[0].mxu0
        %v1821 = vadd.f32 %v1724, %v1820
        %v1822 = vpop.f32.mrb[0].mxu0
        %v1823 = vpop.f32.mrb[0].mxu0
        %v1824 = vadd.f32 %v1727, %v1823
        %v1825 = vpop.f32.mrb[0].mxu0
        %1826 = vmatprep.mubr.bf16.mxu0 %v1427
        %1827 = vmatmul.mubr.bf16.gmra.mrb[0].mxu0 %v1426
        %v1828 = vpop.f32.mrb[0].mxu0
        %v1829 = vadd.f32 %v1732, %v1828
        %v1830 = vpop.f32.mrb[0].mxu0
        %v1831 = vpop.f32.mrb[0].mxu0
        %v1832 = vadd.f32 %v1735, %v1831
        %v1833 = vpop.f32.mrb[0].mxu0
        %1834 = vmatprep.mubr.bf16.mxu0 %v1440
        %1835 = vmatmul.mubr.bf16.gmra.mrb[0].mxu0 %v1439
        %v1836 = vpop.f32.mrb[0].mxu0
        %v1837 = vadd.f32 %v1740, %v1836
        %v1838 = vpop.f32.mrb[0].mxu0
        %v1839 = vpop.f32.mrb[0].mxu0
        %v1840 = vadd.f32 %v1743, %v1839
        %v1841 = vpop.f32.mrb[0].mxu0
        %1842 = vdwg.mxu0
        %1843 = vmatprep.subr.bf16.mxu0 0
        %1844 = vmatpush1.bf16.msra.mxu0 %v760
        %1845 = vmatprep.subr.bf16.mxu0 0
        %1846 = vmatpush1.bf16.msra.mxu0 %v761
        %1847 = vmatprep.subr.bf16.mxu0 0
        %1848 = vmatpush1.bf16.msra.mxu0 %v762
        %1849 = vmatprep.subr.bf16.mxu0 0
        %1850 = vmatpush1.bf16.msra.mxu0 %v763
        %1851 = vmatprep.subr.bf16.mxu0 0
        %1852 = vmatpush1.bf16.msra.mxu0 %v764
        %1853 = vmatprep.subr.bf16.mxu0 0
        %1854 = vmatpush1.bf16.msra.mxu0 %v765
        %1855 = vmatprep.subr.bf16.mxu0 0
        %1856 = vmatpush1.bf16.msra.mxu0 %v766
        %1857 = vmatprep.subr.bf16.mxu0 0
        %1858 = vmatpush1.bf16.msra.mxu0 %v767
        %1859 = vmatprep.subr.bf16.mxu0 0
        %1860 = vmatpush1.bf16.msra.mxu0 %v768
        %1861 = vmatprep.subr.bf16.mxu0 0
        %1862 = vmatpush1.bf16.msra.mxu0 %v769
        %1863 = vmatprep.subr.bf16.mxu0 0
        %1864 = vmatpush1.bf16.msra.mxu0 %v770
        %1865 = vmatprep.subr.bf16.mxu0 0
        %1866 = vmatpush1.bf16.msra.mxu0 %v771
        %1867 = vmatprep.subr.bf16.mxu0 0
        %1868 = vmatpush1.bf16.msra.mxu0 %v772
        %1869 = vmatprep.subr.bf16.mxu0 0
        %1870 = vmatpush1.bf16.msra.mxu0 %v773
        %1871 = vmatprep.subr.bf16.mxu0 0
        %1872 = vmatpush1.bf16.msra.mxu0 %v774
        %1873 = vmatprep.subr.bf16.mxu0 0
        %1874 = vmatpush1.bf16.msra.mxu0 %v775
        %1875 = vmatprep.mubr.bf16.mxu0 %v1351
        %1876 = vmatmul.mubr.bf16.gmra.mrb[0].mxu0 %v1350
        %v1877 = vpop.f32.mrb[0].mxu0
        %v1878 = vadd.f32 %v1781, %v1877
        %v1879 = vpop.f32.mrb[0].mxu0
        %v1880 = vpop.f32.mrb[0].mxu0
        %v1881 = vadd.f32 %v1784, %v1880
        %v1882 = vpop.f32.mrb[0].mxu0
        %1883 = vmatprep.mubr.bf16.mxu0 %v1364
        %1884 = vmatmul.mubr.bf16.gmra.mrb[0].mxu0 %v1363
        %v1885 = vpop.f32.mrb[0].mxu0
        %v1886 = vadd.f32 %v1789, %v1885
        %v1887 = vpop.f32.mrb[0].mxu0
        %v1888 = vpop.f32.mrb[0].mxu0
        %v1889 = vadd.f32 %v1792, %v1888
        %v1890 = vpop.f32.mrb[0].mxu0
        %1891 = vmatprep.mubr.bf16.mxu0 %v1377
        %1892 = vmatmul.mubr.bf16.gmra.mrb[0].mxu0 %v1376
        %v1893 = vpop.f32.mrb[0].mxu0
        %v1894 = vadd.f32 %v1797, %v1893
        %v1895 = vpop.f32.mrb[0].mxu0
        %v1896 = vpop.f32.mrb[0].mxu0
        %v1897 = vadd.f32 %v1800, %v1896
        %v1898 = vpop.f32.mrb[0].mxu0
        %1899 = vmatprep.mubr.bf16.mxu0 %v1390
        %1900 = vmatmul.mubr.bf16.gmra.mrb[0].mxu0 %v1389
        %v1901 = vpop.f32.mrb[0].mxu0
        %v1902 = vadd.f32 %v1805, %v1901
        %v1903 = vpop.f32.mrb[0].mxu0
        %v1904 = vpop.f32.mrb[0].mxu0
        %v1905 = vadd.f32 %v1808, %v1904
        %v1906 = vpop.f32.mrb[0].mxu0
        %1907 = vmatprep.mubr.bf16.mxu0 %v1403
        %1908 = vmatmul.mubr.bf16.gmra.mrb[0].mxu0 %v1402
        %v1909 = vpop.f32.mrb[0].mxu0
        %v1910 = vadd.f32 %v1813, %v1909
        %v1911 = vpop.f32.mrb[0].mxu0
        %v1912 = vpop.f32.mrb[0].mxu0
        %v1913 = vadd.f32 %v1816, %v1912
        %v1914 = vpop.f32.mrb[0].mxu0
        %1915 = vmatprep.mubr.bf16.mxu0 %v1416
        %1916 = vmatmul.mubr.bf16.gmra.mrb[0].mxu0 %v1415
        %v1917 = vpop.f32.mrb[0].mxu0
        %v1918 = vadd.f32 %v1821, %v1917
        %v1919 = vpop.f32.mrb[0].mxu0
        %v1920 = vpop.f32.mrb[0].mxu0
        %v1921 = vadd.f32 %v1824, %v1920
        %v1922 = vpop.f32.mrb[0].mxu0
        %1923 = vmatprep.mubr.bf16.mxu0 %v1429
        %1924 = vmatmul.mubr.bf16.gmra.mrb[0].mxu0 %v1428
        %v1925 = vpop.f32.mrb[0].mxu0
        %v1926 = vadd.f32 %v1829, %v1925
        %v1927 = vpop.f32.mrb[0].mxu0
        %v1928 = vpop.f32.mrb[0].mxu0
        %v1929 = vadd.f32 %v1832, %v1928
        %v1930 = vpop.f32.mrb[0].mxu0
        %1931 = vmatprep.mubr.bf16.mxu0 %v1442
        %1932 = vmatmul.mubr.bf16.gmra.mrb[0].mxu0 %v1441
        %v1933 = vpop.f32.mrb[0].mxu0
        %v1934 = vadd.f32 %v1837, %v1933
        %v1935 = vpop.f32.mrb[0].mxu0
        %v1936 = vpop.f32.mrb[0].mxu0
        %v1937 = vadd.f32 %v1840, %v1936
        %v1938 = vpop.f32.mrb[0].mxu0
        %1939 = vdwg.mxu0
        %1940 = vmatprep.subr.bf16.mxu0 0
        %1941 = vmatpush1.bf16.msra.mxu0 %v776
        %1942 = vmatprep.subr.bf16.mxu0 0
        %1943 = vmatpush1.bf16.msra.mxu0 %v777
        %1944 = vmatprep.subr.bf16.mxu0 0
        %1945 = vmatpush1.bf16.msra.mxu0 %v778
        %1946 = vmatprep.subr.bf16.mxu0 0
        %1947 = vmatpush1.bf16.msra.mxu0 %v779
        %1948 = vmatprep.subr.bf16.mxu0 0
        %1949 = vmatpush1.bf16.msra.mxu0 %v780
        %1950 = vmatprep.subr.bf16.mxu0 0
        %1951 = vmatpush1.bf16.msra.mxu0 %v781
        %1952 = vmatprep.subr.bf16.mxu0 0
        %1953 = vmatpush1.bf16.msra.mxu0 %v782
        %1954 = vmatprep.subr.bf16.mxu0 0
        %1955 = vmatpush1.bf16.msra.mxu0 %v783
        %1956 = vmatprep.subr.bf16.mxu0 0
        %1957 = vmatpush1.bf16.msra.mxu0 %v784
        %1958 = vmatprep.subr.bf16.mxu0 0
        %1959 = vmatpush1.bf16.msra.mxu0 %v785
        %1960 = vmatprep.subr.bf16.mxu0 0
        %1961 = vmatpush1.bf16.msra.mxu0 %v786
        %1962 = vmatprep.subr.bf16.mxu0 0
        %1963 = vmatpush1.bf16.msra.mxu0 %v787
        %1964 = vmatprep.subr.bf16.mxu0 0
        %1965 = vmatpush1.bf16.msra.mxu0 %v788
        %1966 = vmatprep.subr.bf16.mxu0 0
        %1967 = vmatpush1.bf16.msra.mxu0 %v789
        %1968 = vmatprep.subr.bf16.mxu0 0
        %1969 = vmatpush1.bf16.msra.mxu0 %v790
        %1970 = vmatprep.subr.bf16.mxu0 0
        %1971 = vmatpush1.bf16.msra.mxu0 %v791
        %1972 = vmatprep.mubr.bf16.mxu0 %v1353
        %1973 = vmatmul.mubr.bf16.gmra.mrb[0].mxu0 %v1352
        %v1974 = vpop.f32.mrb[0].mxu0
        %v1975 = vadd.f32 %v1878, %v1974
        %v1976 = vpop.f32.mrb[0].mxu0
        %v1977 = vpop.f32.mrb[0].mxu0
        %v1978 = vadd.f32 %v1881, %v1977
        %v1979 = vpop.f32.mrb[0].mxu0
        %1980 = vmatprep.mubr.bf16.mxu0 %v1366
        %1981 = vmatmul.mubr.bf16.gmra.mrb[0].mxu0 %v1365
        %v1982 = vpop.f32.mrb[0].mxu0
        %v1983 = vadd.f32 %v1886, %v1982
        %v1984 = vpop.f32.mrb[0].mxu0
        %v1985 = vpop.f32.mrb[0].mxu0
        %v1986 = vadd.f32 %v1889, %v1985
        %v1987 = vpop.f32.mrb[0].mxu0
        %1988 = vmatprep.mubr.bf16.mxu0 %v1379
        %1989 = vmatmul.mubr.bf16.gmra.mrb[0].mxu0 %v1378
        %v1990 = vpop.f32.mrb[0].mxu0
        %v1991 = vadd.f32 %v1894, %v1990
        %v1992 = vpop.f32.mrb[0].mxu0
        %v1993 = vpop.f32.mrb[0].mxu0
        %v1994 = vadd.f32 %v1897, %v1993
        %v1995 = vpop.f32.mrb[0].mxu0
        %1996 = vmatprep.mubr.bf16.mxu0 %v1392
        %1997 = vmatmul.mubr.bf16.gmra.mrb[0].mxu0 %v1391
        %v1998 = vpop.f32.mrb[0].mxu0
        %v1999 = vadd.f32 %v1902, %v1998
        %v2000 = vpop.f32.mrb[0].mxu0
        %v2001 = vpop.f32.mrb[0].mxu0
        %v2002 = vadd.f32 %v1905, %v2001
        %v2003 = vpop.f32.mrb[0].mxu0
        %2004 = vmatprep.mubr.bf16.mxu0 %v1405
        %2005 = vmatmul.mubr.bf16.gmra.mrb[0].mxu0 %v1404
        %v2006 = vpop.f32.mrb[0].mxu0
        %v2007 = vadd.f32 %v1910, %v2006
        %v2008 = vpop.f32.mrb[0].mxu0
        %v2009 = vpop.f32.mrb[0].mxu0
        %v2010 = vadd.f32 %v1913, %v2009
        %v2011 = vpop.f32.mrb[0].mxu0
        %2012 = vmatprep.mubr.bf16.mxu0 %v1418
        %2013 = vmatmul.mubr.bf16.gmra.mrb[0].mxu0 %v1417
        %v2014 = vpop.f32.mrb[0].mxu0
        %v2015 = vadd.f32 %v1918, %v2014
        %v2016 = vpop.f32.mrb[0].mxu0
        %v2017 = vpop.f32.mrb[0].mxu0
        %v2018 = vadd.f32 %v1921, %v2017
        %v2019 = vpop.f32.mrb[0].mxu0
        %2020 = vmatprep.mubr.bf16.mxu0 %v1431
        %2021 = vmatmul.mubr.bf16.gmra.mrb[0].mxu0 %v1430
        %v2022 = vpop.f32.mrb[0].mxu0
        %v2023 = vadd.f32 %v1926, %v2022
        %v2024 = vpop.f32.mrb[0].mxu0
        %v2025 = vpop.f32.mrb[0].mxu0
        %v2026 = vadd.f32 %v1929, %v2025
        %v2027 = vpop.f32.mrb[0].mxu0
        %2028 = vmatprep.mubr.bf16.mxu0 %v1444
        %2029 = vmatmul.mubr.bf16.gmra.mrb[0].mxu0 %v1443
        %v2030 = vpop.f32.mrb[0].mxu0
        %v2031 = vadd.f32 %v1934, %v2030
        %v2032 = vpop.f32.mrb[0].mxu0
        %v2033 = vpop.f32.mrb[0].mxu0
        %v2034 = vadd.f32 %v1937, %v2033
        %v2035 = vpop.f32.mrb[0].mxu0
        %2036 = vdwg.mxu0
        %2037 = vmatprep.subr.bf16.mxu0 0
        %2038 = vmatpush1.bf16.msra.mxu0 %v792
        %2039 = vmatprep.subr.bf16.mxu0 0
        %2040 = vmatpush1.bf16.msra.mxu0 %v793
        %2041 = vmatprep.subr.bf16.mxu0 0
        %2042 = vmatpush1.bf16.msra.mxu0 %v794
        %2043 = vmatprep.subr.bf16.mxu0 0
        %2044 = vmatpush1.bf16.msra.mxu0 %v795
        %2045 = vmatprep.subr.bf16.mxu0 0
        %2046 = vmatpush1.bf16.msra.mxu0 %v796
        %2047 = vmatprep.subr.bf16.mxu0 0
        %2048 = vmatpush1.bf16.msra.mxu0 %v797
        %2049 = vmatprep.subr.bf16.mxu0 0
        %2050 = vmatpush1.bf16.msra.mxu0 %v798
        %2051 = vmatprep.subr.bf16.mxu0 0
        %2052 = vmatpush1.bf16.msra.mxu0 %v799
        %2053 = vmatprep.subr.bf16.mxu0 0
        %2054 = vmatpush1.bf16.msra.mxu0 %v800
        %2055 = vmatprep.subr.bf16.mxu0 0
        %2056 = vmatpush1.bf16.msra.mxu0 %v801
        %2057 = vmatprep.subr.bf16.mxu0 0
        %2058 = vmatpush1.bf16.msra.mxu0 %v802
        %2059 = vmatprep.subr.bf16.mxu0 0
        %2060 = vmatpush1.bf16.msra.mxu0 %v803
        %2061 = vmatprep.subr.bf16.mxu0 0
        %2062 = vmatpush1.bf16.msra.mxu0 %v804
        %2063 = vmatprep.subr.bf16.mxu0 0
        %2064 = vmatpush1.bf16.msra.mxu0 %v805
        %2065 = vmatprep.subr.bf16.mxu0 0
        %2066 = vmatpush1.bf16.msra.mxu0 %v806
        %2067 = vmatprep.subr.bf16.mxu0 0
        %2068 = vmatpush1.bf16.msra.mxu0 %v807
        %2069 = vmatprep.mubr.bf16.mxu0 %v1355
        %2070 = vmatmul.mubr.bf16.gmra.mrb[0].mxu0 %v1354
        %v2071 = vpop.f32.mrb[0].mxu0
        %v2072 = vadd.f32 %v1975, %v2071
        %v2073 = vpop.f32.mrb[0].mxu0
        %v2074 = vpop.f32.mrb[0].mxu0
        %v2075 = vadd.f32 %v1978, %v2074
        %v2076 = vpop.f32.mrb[0].mxu0
        %2077 = vmatprep.mubr.bf16.mxu0 %v1368
        %2078 = vmatmul.mubr.bf16.gmra.mrb[0].mxu0 %v1367
        %v2079 = vpop.f32.mrb[0].mxu0
        %v2080 = vadd.f32 %v1983, %v2079
        %v2081 = vpop.f32.mrb[0].mxu0
        %v2082 = vpop.f32.mrb[0].mxu0
        %v2083 = vadd.f32 %v1986, %v2082
        %v2084 = vpop.f32.mrb[0].mxu0
        %2085 = vmatprep.mubr.bf16.mxu0 %v1381
        %2086 = vmatmul.mubr.bf16.gmra.mrb[0].mxu0 %v1380
        %v2087 = vpop.f32.mrb[0].mxu0
        %v2088 = vadd.f32 %v1991, %v2087
        %v2089 = vpop.f32.mrb[0].mxu0
        %v2090 = vpop.f32.mrb[0].mxu0
        %v2091 = vadd.f32 %v1994, %v2090
        %v2092 = vpop.f32.mrb[0].mxu0
        %2093 = vmatprep.mubr.bf16.mxu0 %v1394
        %2094 = vmatmul.mubr.bf16.gmra.mrb[0].mxu0 %v1393
        %v2095 = vpop.f32.mrb[0].mxu0
        %v2096 = vadd.f32 %v1999, %v2095
        %v2097 = vpop.f32.mrb[0].mxu0
        %v2098 = vpop.f32.mrb[0].mxu0
        %v2099 = vadd.f32 %v2002, %v2098
        %v2100 = vpop.f32.mrb[0].mxu0
        %2101 = vmatprep.mubr.bf16.mxu0 %v1407
        %2102 = vmatmul.mubr.bf16.gmra.mrb[0].mxu0 %v1406
        %v2103 = vpop.f32.mrb[0].mxu0
        %v2104 = vadd.f32 %v2007, %v2103
        %v2105 = vpop.f32.mrb[0].mxu0
        %v2106 = vpop.f32.mrb[0].mxu0
        %v2107 = vadd.f32 %v2010, %v2106
        %v2108 = vpop.f32.mrb[0].mxu0
        %2109 = vmatprep.mubr.bf16.mxu0 %v1420
        %2110 = vmatmul.mubr.bf16.gmra.mrb[0].mxu0 %v1419
        %v2111 = vpop.f32.mrb[0].mxu0
        %v2112 = vadd.f32 %v2015, %v2111
        %v2113 = vpop.f32.mrb[0].mxu0
        %v2114 = vpop.f32.mrb[0].mxu0
        %v2115 = vadd.f32 %v2018, %v2114
        %v2116 = vpop.f32.mrb[0].mxu0
        %2117 = vmatprep.mubr.bf16.mxu0 %v1433
        %2118 = vmatmul.mubr.bf16.gmra.mrb[0].mxu0 %v1432
        %v2119 = vpop.f32.mrb[0].mxu0
        %v2120 = vadd.f32 %v2023, %v2119
        %v2121 = vpop.f32.mrb[0].mxu0
        %v2122 = vpop.f32.mrb[0].mxu0
        %v2123 = vadd.f32 %v2026, %v2122
        %v2124 = vpop.f32.mrb[0].mxu0
        %2125 = vmatprep.mubr.bf16.mxu0 %v1446
        %2126 = vmatmul.mubr.bf16.gmra.mrb[0].mxu0 %v1445
        %v2127 = vpop.f32.mrb[0].mxu0
        %v2128 = vadd.f32 %v2031, %v2127
        %v2129 = vpop.f32.mrb[0].mxu0
        %v2130 = vpop.f32.mrb[0].mxu0
        %v2131 = vadd.f32 %v2034, %v2130
        %v2132 = vpop.f32.mrb[0].mxu0
        %2133 = vdwg.mxu0
        %2134 = vmatprep.subr.bf16.mxu0 0
        %2135 = vmatpush1.bf16.msra.mxu0 %v808
        %2136 = vmatprep.subr.bf16.mxu0 0
        %2137 = vmatpush1.bf16.msra.mxu0 %v809
        %2138 = vmatprep.subr.bf16.mxu0 0
        %2139 = vmatpush1.bf16.msra.mxu0 %v810
        %2140 = vmatprep.subr.bf16.mxu0 0
        %2141 = vmatpush1.bf16.msra.mxu0 %v811
        %2142 = vmatprep.subr.bf16.mxu0 0
        %2143 = vmatpush1.bf16.msra.mxu0 %v812
        %2144 = vmatprep.subr.bf16.mxu0 0
        %2145 = vmatpush1.bf16.msra.mxu0 %v813
        %2146 = vmatprep.subr.bf16.mxu0 0
        %2147 = vmatpush1.bf16.msra.mxu0 %v814
        %2148 = vmatprep.subr.bf16.mxu0 0
        %2149 = vmatpush1.bf16.msra.mxu0 %v815
        %2150 = vmatprep.subr.bf16.mxu0 0
        %2151 = vmatpush1.bf16.msra.mxu0 0
        %2152 = vmatprep.subr.bf16.mxu0 0
        %2153 = vmatpush1.bf16.msra.mxu0 0
        %2154 = vmatprep.subr.bf16.mxu0 0
        %2155 = vmatpush1.bf16.msra.mxu0 0
        %2156 = vmatprep.subr.bf16.mxu0 0
        %2157 = vmatpush1.bf16.msra.mxu0 0
        %2158 = vmatprep.subr.bf16.mxu0 0
        %2159 = vmatpush1.bf16.msra.mxu0 0
        %2160 = vmatprep.subr.bf16.mxu0 0
        %2161 = vmatpush1.bf16.msra.mxu0 0
        %2162 = vmatprep.subr.bf16.mxu0 0
        %2163 = vmatpush1.bf16.msra.mxu0 0
        %2164 = vmatprep.subr.bf16.mxu0 0
        %2165 = vmatpush1.bf16.msra.mxu0 0
        %2166 = vmatprep.mubr.bf16.mxu0 0
        %2167 = vmatmul.mubr.bf16.gmra.mrb[0].mxu0 %v1356
        %v2168 = vpop.f32.mrb[0].mxu0
        %v2169 = vadd.f32 %v2072, %v2168
        %v2170 = vpop.f32.mrb[0].mxu0
        %v2171 = vpop.f32.mrb[0].mxu0
        %v2172 = vadd.f32 %v2075, %v2171
        %v2173 = vpop.f32.mrb[0].mxu0
        %2174 = vmatprep.mubr.bf16.mxu0 0
        %2175 = vmatmul.mubr.bf16.gmra.mrb[0].mxu0 %v1369
        %v2176 = vpop.f32.mrb[0].mxu0
        %v2177 = vadd.f32 %v2080, %v2176
        %v2178 = vpop.f32.mrb[0].mxu0
        %v2179 = vpop.f32.mrb[0].mxu0
        %v2180 = vadd.f32 %v2083, %v2179
        %v2181 = vpop.f32.mrb[0].mxu0
        %2182 = vmatprep.mubr.bf16.mxu0 0
        %2183 = vmatmul.mubr.bf16.gmra.mrb[0].mxu0 %v1382
        %v2184 = vpop.f32.mrb[0].mxu0
        %v2185 = vadd.f32 %v2088, %v2184
        %v2186 = vpop.f32.mrb[0].mxu0
        %v2187 = vpop.f32.mrb[0].mxu0
        %v2188 = vadd.f32 %v2091, %v2187
        %v2189 = vpop.f32.mrb[0].mxu0
        %2190 = vmatprep.mubr.bf16.mxu0 0
        %2191 = vmatmul.mubr.bf16.gmra.mrb[0].mxu0 %v1395
        %v2192 = vpop.f32.mrb[0].mxu0
        %v2193 = vadd.f32 %v2096, %v2192
        %v2194 = vpop.f32.mrb[0].mxu0
        %v2195 = vpop.f32.mrb[0].mxu0
        %v2196 = vadd.f32 %v2099, %v2195
        %v2197 = vpop.f32.mrb[0].mxu0
        %2198 = vmatprep.mubr.bf16.mxu0 0
        %2199 = vmatmul.mubr.bf16.gmra.mrb[0].mxu0 %v1408
        %v2200 = vpop.f32.mrb[0].mxu0
        %v2201 = vadd.f32 %v2104, %v2200
        %v2202 = vpop.f32.mrb[0].mxu0
        %v2203 = vpop.f32.mrb[0].mxu0
        %v2204 = vadd.f32 %v2107, %v2203
        %v2205 = vpop.f32.mrb[0].mxu0
        %2206 = vmatprep.mubr.bf16.mxu0 0
        %2207 = vmatmul.mubr.bf16.gmra.mrb[0].mxu0 %v1421
        %v2208 = vpop.f32.mrb[0].mxu0
        %v2209 = vadd.f32 %v2112, %v2208
        %v2210 = vpop.f32.mrb[0].mxu0
        %v2211 = vpop.f32.mrb[0].mxu0
        %v2212 = vadd.f32 %v2115, %v2211
        %v2213 = vpop.f32.mrb[0].mxu0
        %2214 = vmatprep.mubr.bf16.mxu0 0
        %2215 = vmatmul.mubr.bf16.gmra.mrb[0].mxu0 %v1434
        %v2216 = vpop.f32.mrb[0].mxu0
        %v2217 = vadd.f32 %v2120, %v2216
        %v2218 = vpop.f32.mrb[0].mxu0
        %v2219 = vpop.f32.mrb[0].mxu0
        %v2220 = vadd.f32 %v2123, %v2219
        %v2221 = vpop.f32.mrb[0].mxu0
        %2222 = vmatprep.mubr.bf16.mxu0 0
        %2223 = vmatmul.mubr.bf16.gmra.mrb[0].mxu0 %v1447
        %v2224 = vpop.f32.mrb[0].mxu0
        %v2225 = vadd.f32 %v2128, %v2224
        %v2226 = vpop.f32.mrb[0].mxu0
        %v2227 = vpop.f32.mrb[0].mxu0
        %v2228 = vadd.f32 %v2131, %v2227
        %v2229 = vpop.f32.mrb[0].mxu0
        %2230 = vdwg.mxu0
        %v2231 = vmul.f32 %v2169, 0.70710677
        %v2232 = vmul.f32 %v2172, 0.70710677
        %v2233 = vmul.f32 %v2177, 0.70710677
        %v2234 = vmul.f32 %v2180, 0.70710677
        %v2235 = vmul.f32 %v2185, 0.70710677
        %v2236 = vmul.f32 %v2188, 0.70710677
        %v2237 = vmul.f32 %v2193, 0.70710677
        %v2238 = vmul.f32 %v2196, 0.70710677
        %v2239 = vmul.f32 %v2201, 0.70710677
        %v2240 = vmul.f32 %v2204, 0.70710677
        %v2241 = vmul.f32 %v2209, 0.70710677
        %v2242 = vmul.f32 %v2212, 0.70710677
        %v2243 = vmul.f32 %v2217, 0.70710677
        %v2244 = vmul.f32 %v2220, 0.70710677
        %v2245 = vmul.f32 %v2225, 0.70710677
        %v2246 = vmul.f32 %v2228, 0.70710677
        %v2247 = vand.u32 2147483647, %v2231
        %v2248 = vand.u32 2147483647, %v2232
        %v2249 = vand.u32 2147483647, %v2233
        %v2250 = vand.u32 2147483647, %v2234
        %v2251 = vand.u32 2147483647, %v2235
        %v2252 = vand.u32 2147483647, %v2236
        %v2253 = vand.u32 2147483647, %v2237
        %v2254 = vand.u32 2147483647, %v2238
        %v2255 = vand.u32 2147483647, %v2239
        %v2256 = vand.u32 2147483647, %v2240
        %v2257 = vand.u32 2147483647, %v2241
        %v2258 = vand.u32 2147483647, %v2242
        %v2259 = vand.u32 2147483647, %v2243
        %v2260 = vand.u32 2147483647, %v2244
        %v2261 = vand.u32 2147483647, %v2245
        %v2262 = vand.u32 2147483647, %v2246
        %v2263 = vmul.f32 %v2247, 0.3275911
        %v2264 = vmul.f32 %v2248, 0.3275911
        %v2265 = vmul.f32 %v2249, 0.3275911
        %v2266 = vmul.f32 %v2250, 0.3275911
        %v2267 = vmul.f32 %v2251, 0.3275911
        %v2268 = vmul.f32 %v2252, 0.3275911
        %v2269 = vmul.f32 %v2253, 0.3275911
        %v2270 = vmul.f32 %v2254, 0.3275911
        %v2271 = vmul.f32 %v2255, 0.3275911
        %v2272 = vmul.f32 %v2256, 0.3275911
        %v2273 = vmul.f32 %v2257, 0.3275911
        %v2274 = vmul.f32 %v2258, 0.3275911
        %v2275 = vmul.f32 %v2259, 0.3275911
        %v2276 = vmul.f32 %v2260, 0.3275911
        %v2277 = vmul.f32 %v2261, 0.3275911
        %v2278 = vmul.f32 %v2262, 0.3275911
        %v2279 = vadd.f32 %v2263, 1.0
        %v2280 = vadd.f32 %v2264, 1.0
        %v2281 = vadd.f32 %v2265, 1.0
        %v2282 = vadd.f32 %v2266, 1.0
        %v2283 = vadd.f32 %v2267, 1.0
        %v2284 = vadd.f32 %v2268, 1.0
        %v2285 = vadd.f32 %v2269, 1.0
        %v2286 = vadd.f32 %v2270, 1.0
        %v2287 = vadd.f32 %v2271, 1.0
        %v2288 = vadd.f32 %v2272, 1.0
        %v2289 = vadd.f32 %v2273, 1.0
        %v2290 = vadd.f32 %v2274, 1.0
        %v2291 = vadd.f32 %v2275, 1.0
        %v2292 = vadd.f32 %v2276, 1.0
        %v2293 = vadd.f32 %v2277, 1.0
        %v2294 = vadd.f32 %v2278, 1.0
        %v2295 = vrcp.pop %v2279
        %v2296 = vrcp.pop %v2280
        %v2297 = vrcp.pop %v2281
        %v2298 = vrcp.pop %v2282
        %v2299 = vrcp.pop %v2283
        %v2300 = vrcp.pop %v2284
        %v2301 = vrcp.pop %v2285
        %v2302 = vrcp.pop %v2286
        %v2303 = vrcp.pop %v2287
        %v2304 = vrcp.pop %v2288
        %v2305 = vrcp.pop %v2289
        %v2306 = vrcp.pop %v2290
        %v2307 = vrcp.pop %v2291
        %v2308 = vrcp.pop %v2292
        %v2309 = vrcp.pop %v2293
        %v2310 = vrcp.pop %v2294
        %v2311 = vmul.f32 %v2295, 1.0614054
        %v2312 = vmul.f32 %v2296, 1.0614054
        %v2313 = vmul.f32 %v2297, 1.0614054
        %v2314 = vmul.f32 %v2298, 1.0614054
        %v2315 = vmul.f32 %v2299, 1.0614054
        %v2316 = vmul.f32 %v2300, 1.0614054
        %v2317 = vmul.f32 %v2301, 1.0614054
        %v2318 = vmul.f32 %v2302, 1.0614054
        %v2319 = vmul.f32 %v2303, 1.0614054
        %v2320 = vmul.f32 %v2304, 1.0614054
        %v2321 = vmul.f32 %v2305, 1.0614054
        %v2322 = vmul.f32 %v2306, 1.0614054
        %v2323 = vmul.f32 %v2307, 1.0614054
        %v2324 = vmul.f32 %v2308, 1.0614054
        %v2325 = vmul.f32 %v2309, 1.0614054
        %v2326 = vmul.f32 %v2310, 1.0614054
        %v2327 = vadd.f32 %v2311, -1.4531521
        %v2328 = vadd.f32 %v2312, -1.4531521
        %v2329 = vadd.f32 %v2313, -1.4531521
        %v2330 = vadd.f32 %v2314, -1.4531521
        %v2331 = vadd.f32 %v2315, -1.4531521
        %v2332 = vadd.f32 %v2316, -1.4531521
        %v2333 = vadd.f32 %v2317, -1.4531521
        %v2334 = vadd.f32 %v2318, -1.4531521
        %v2335 = vadd.f32 %v2319, -1.4531521
        %v2336 = vadd.f32 %v2320, -1.4531521
        %v2337 = vadd.f32 %v2321, -1.4531521
        %v2338 = vadd.f32 %v2322, -1.4531521
        %v2339 = vadd.f32 %v2323, -1.4531521
        %v2340 = vadd.f32 %v2324, -1.4531521
        %v2341 = vadd.f32 %v2325, -1.4531521
        %v2342 = vadd.f32 %v2326, -1.4531521
        %v2343 = vmul.f32 %v2327, %v2295
        %v2344 = vmul.f32 %v2328, %v2296
        %v2345 = vmul.f32 %v2329, %v2297
        %v2346 = vmul.f32 %v2330, %v2298
        %v2347 = vmul.f32 %v2331, %v2299
        %v2348 = vmul.f32 %v2332, %v2300
        %v2349 = vmul.f32 %v2333, %v2301
        %v2350 = vmul.f32 %v2334, %v2302
        %v2351 = vmul.f32 %v2335, %v2303
        %v2352 = vmul.f32 %v2336, %v2304
        %v2353 = vmul.f32 %v2337, %v2305
        %v2354 = vmul.f32 %v2338, %v2306
        %v2355 = vmul.f32 %v2339, %v2307
        %v2356 = vmul.f32 %v2340, %v2308
        %v2357 = vmul.f32 %v2341, %v2309
        %v2358 = vmul.f32 %v2342, %v2310
        %v2359 = vadd.f32 %v2343, 1.4214138
        %v2360 = vadd.f32 %v2344, 1.4214138
        %v2361 = vadd.f32 %v2345, 1.4214138
        %v2362 = vadd.f32 %v2346, 1.4214138
        %v2363 = vadd.f32 %v2347, 1.4214138
        %v2364 = vadd.f32 %v2348, 1.4214138
        %v2365 = vadd.f32 %v2349, 1.4214138
        %v2366 = vadd.f32 %v2350, 1.4214138
        %v2367 = vadd.f32 %v2351, 1.4214138
        %v2368 = vadd.f32 %v2352, 1.4214138
        %v2369 = vadd.f32 %v2353, 1.4214138
        %v2370 = vadd.f32 %v2354, 1.4214138
        %v2371 = vadd.f32 %v2355, 1.4214138
        %v2372 = vadd.f32 %v2356, 1.4214138
        %v2373 = vadd.f32 %v2357, 1.4214138
        %v2374 = vadd.f32 %v2358, 1.4214138
        %v2375 = vmul.f32 %v2359, %v2295
        %v2376 = vmul.f32 %v2360, %v2296
        %v2377 = vmul.f32 %v2361, %v2297
        %v2378 = vmul.f32 %v2362, %v2298
        %v2379 = vmul.f32 %v2363, %v2299
        %v2380 = vmul.f32 %v2364, %v2300
        %v2381 = vmul.f32 %v2365, %v2301
        %v2382 = vmul.f32 %v2366, %v2302
        %v2383 = vmul.f32 %v2367, %v2303
        %v2384 = vmul.f32 %v2368, %v2304
        %v2385 = vmul.f32 %v2369, %v2305
        %v2386 = vmul.f32 %v2370, %v2306
        %v2387 = vmul.f32 %v2371, %v2307
        %v2388 = vmul.f32 %v2372, %v2308
        %v2389 = vmul.f32 %v2373, %v2309
        %v2390 = vmul.f32 %v2374, %v2310
        %v2391 = vadd.f32 %v2375, -0.28449672
        %v2392 = vadd.f32 %v2376, -0.28449672
        %v2393 = vadd.f32 %v2377, -0.28449672
        %v2394 = vadd.f32 %v2378, -0.28449672
        %v2395 = vadd.f32 %v2379, -0.28449672
        %v2396 = vadd.f32 %v2380, -0.28449672
        %v2397 = vadd.f32 %v2381, -0.28449672
        %v2398 = vadd.f32 %v2382, -0.28449672
        %v2399 = vadd.f32 %v2383, -0.28449672
        %v2400 = vadd.f32 %v2384, -0.28449672
        %v2401 = vadd.f32 %v2385, -0.28449672
        %v2402 = vadd.f32 %v2386, -0.28449672
        %v2403 = vadd.f32 %v2387, -0.28449672
        %v2404 = vadd.f32 %v2388, -0.28449672
        %v2405 = vadd.f32 %v2389, -0.28449672
        %v2406 = vadd.f32 %v2390, -0.28449672
        %v2407 = vmul.f32 %v2391, %v2295
        %v2408 = vmul.f32 %v2392, %v2296
        %v2409 = vmul.f32 %v2393, %v2297
        %v2410 = vmul.f32 %v2394, %v2298
        %v2411 = vmul.f32 %v2395, %v2299
        %v2412 = vmul.f32 %v2396, %v2300
        %v2413 = vmul.f32 %v2397, %v2301
        %v2414 = vmul.f32 %v2398, %v2302
        %v2415 = vmul.f32 %v2399, %v2303
        %v2416 = vmul.f32 %v2400, %v2304
        %v2417 = vmul.f32 %v2401, %v2305
        %v2418 = vmul.f32 %v2402, %v2306
        %v2419 = vmul.f32 %v2403, %v2307
        %v2420 = vmul.f32 %v2404, %v2308
        %v2421 = vmul.f32 %v2405, %v2309
        %v2422 = vmul.f32 %v2406, %v2310
        %v2423 = vadd.f32 %v2407, 0.2548296
        %v2424 = vadd.f32 %v2408, 0.2548296
        %v2425 = vadd.f32 %v2409, 0.2548296
        %v2426 = vadd.f32 %v2410, 0.2548296
        %v2427 = vadd.f32 %v2411, 0.2548296
        %v2428 = vadd.f32 %v2412, 0.2548296
        %v2429 = vadd.f32 %v2413, 0.2548296
        %v2430 = vadd.f32 %v2414, 0.2548296
        %v2431 = vadd.f32 %v2415, 0.2548296
        %v2432 = vadd.f32 %v2416, 0.2548296
        %v2433 = vadd.f32 %v2417, 0.2548296
        %v2434 = vadd.f32 %v2418, 0.2548296
        %v2435 = vadd.f32 %v2419, 0.2548296
        %v2436 = vadd.f32 %v2420, 0.2548296
        %v2437 = vadd.f32 %v2421, 0.2548296
        %v2438 = vadd.f32 %v2422, 0.2548296
        %v2439 = vmul.f32 %v2423, %v2295
        %v2440 = vmul.f32 %v2424, %v2296
        %v2441 = vmul.f32 %v2425, %v2297
        %v2442 = vmul.f32 %v2426, %v2298
        %v2443 = vmul.f32 %v2427, %v2299
        %v2444 = vmul.f32 %v2428, %v2300
        %v2445 = vmul.f32 %v2429, %v2301
        %v2446 = vmul.f32 %v2430, %v2302
        %v2447 = vmul.f32 %v2431, %v2303
        %v2448 = vmul.f32 %v2432, %v2304
        %v2449 = vmul.f32 %v2433, %v2305
        %v2450 = vmul.f32 %v2434, %v2306
        %v2451 = vmul.f32 %v2435, %v2307
        %v2452 = vmul.f32 %v2436, %v2308
        %v2453 = vmul.f32 %v2437, %v2309
        %v2454 = vmul.f32 %v2438, %v2310
        %v2455 = vmul.f32 %v2247, %v2247
        %v2456 = vmul.f32 %v2248, %v2248
        %v2457 = vmul.f32 %v2249, %v2249
        %v2458 = vmul.f32 %v2250, %v2250
        %v2459 = vmul.f32 %v2251, %v2251
        %v2460 = vmul.f32 %v2252, %v2252
        %v2461 = vmul.f32 %v2253, %v2253
        %v2462 = vmul.f32 %v2254, %v2254
        %v2463 = vmul.f32 %v2255, %v2255
        %v2464 = vmul.f32 %v2256, %v2256
        %v2465 = vmul.f32 %v2257, %v2257
        %v2466 = vmul.f32 %v2258, %v2258
        %v2467 = vmul.f32 %v2259, %v2259
        %v2468 = vmul.f32 %v2260, %v2260
        %v2469 = vmul.f32 %v2261, %v2261
        %v2470 = vmul.f32 %v2262, %v2262
        %v2471 = vsub.f32 0.0, %v2455
        %v2472 = vsub.f32 0.0, %v2456
        %v2473 = vsub.f32 0.0, %v2457
        %v2474 = vsub.f32 0.0, %v2458
        %v2475 = vsub.f32 0.0, %v2459
        %v2476 = vsub.f32 0.0, %v2460
        %v2477 = vsub.f32 0.0, %v2461
        %v2478 = vsub.f32 0.0, %v2462
        %v2479 = vsub.f32 0.0, %v2463
        %v2480 = vsub.f32 0.0, %v2464
        %v2481 = vsub.f32 0.0, %v2465
        %v2482 = vsub.f32 0.0, %v2466
        %v2483 = vsub.f32 0.0, %v2467
        %v2484 = vsub.f32 0.0, %v2468
        %v2485 = vsub.f32 0.0, %v2469
        %v2486 = vsub.f32 0.0, %v2470
        %v2487 = vmul.f32 %v2471, 1.442695
        %v2488 = vpow.pop %v2487
        %v2489 = vmul.f32 %v2472, 1.442695
        %v2490 = vpow.pop %v2489
        %v2491 = vmul.f32 %v2473, 1.442695
        %v2492 = vpow.pop %v2491
        %v2493 = vmul.f32 %v2474, 1.442695
        %v2494 = vpow.pop %v2493
        %v2495 = vmul.f32 %v2475, 1.442695
        %v2496 = vpow.pop %v2495
        %v2497 = vmul.f32 %v2476, 1.442695
        %v2498 = vpow.pop %v2497
        %v2499 = vmul.f32 %v2477, 1.442695
        %v2500 = vpow.pop %v2499
        %v2501 = vmul.f32 %v2478, 1.442695
        %v2502 = vpow.pop %v2501
        %v2503 = vmul.f32 %v2479, 1.442695
        %v2504 = vpow.pop %v2503
        %v2505 = vmul.f32 %v2480, 1.442695
        %v2506 = vpow.pop %v2505
        %v2507 = vmul.f32 %v2481, 1.442695
        %v2508 = vpow.pop %v2507
        %v2509 = vmul.f32 %v2482, 1.442695
        %v2510 = vpow.pop %v2509
        %v2511 = vmul.f32 %v2483, 1.442695
        %v2512 = vpow.pop %v2511
        %v2513 = vmul.f32 %v2484, 1.442695
        %v2514 = vpow.pop %v2513
        %v2515 = vmul.f32 %v2485, 1.442695
        %v2516 = vpow.pop %v2515
        %v2517 = vmul.f32 %v2486, 1.442695
        %v2518 = vpow.pop %v2517
        %v2519 = vmul.f32 %v2439, %v2488
        %v2520 = vmul.f32 %v2440, %v2490
        %v2521 = vmul.f32 %v2441, %v2492
        %v2522 = vmul.f32 %v2442, %v2494
        %v2523 = vmul.f32 %v2443, %v2496
        %v2524 = vmul.f32 %v2444, %v2498
        %v2525 = vmul.f32 %v2445, %v2500
        %v2526 = vmul.f32 %v2446, %v2502
        %v2527 = vmul.f32 %v2447, %v2504
        %v2528 = vmul.f32 %v2448, %v2506
        %v2529 = vmul.f32 %v2449, %v2508
        %v2530 = vmul.f32 %v2450, %v2510
        %v2531 = vmul.f32 %v2451, %v2512
        %v2532 = vmul.f32 %v2452, %v2514
        %v2533 = vmul.f32 %v2453, %v2516
        %v2534 = vmul.f32 %v2454, %v2518
        %v2535 = vsub.f32 1.0, %v2519
        %v2536 = vsub.f32 1.0, %v2520
        %v2537 = vsub.f32 1.0, %v2521
        %v2538 = vsub.f32 1.0, %v2522
        %v2539 = vsub.f32 1.0, %v2523
        %v2540 = vsub.f32 1.0, %v2524
        %v2541 = vsub.f32 1.0, %v2525
        %v2542 = vsub.f32 1.0, %v2526
        %v2543 = vsub.f32 1.0, %v2527
        %v2544 = vsub.f32 1.0, %v2528
        %v2545 = vsub.f32 1.0, %v2529
        %v2546 = vsub.f32 1.0, %v2530
        %v2547 = vsub.f32 1.0, %v2531
        %v2548 = vsub.f32 1.0, %v2532
        %v2549 = vsub.f32 1.0, %v2533
        %v2550 = vsub.f32 1.0, %v2534
        %vm2551 = vcmp.lt.f32.partialorder %v2231, 0.0
        %vm2552 = vcmp.lt.f32.partialorder %v2232, 0.0
        %vm2553 = vcmp.lt.f32.partialorder %v2233, 0.0
        %vm2554 = vcmp.lt.f32.partialorder %v2234, 0.0
        %vm2555 = vcmp.lt.f32.partialorder %v2235, 0.0
        %vm2556 = vcmp.lt.f32.partialorder %v2236, 0.0
        %vm2557 = vcmp.lt.f32.partialorder %v2237, 0.0
        %vm2558 = vcmp.lt.f32.partialorder %v2238, 0.0
        %vm2559 = vcmp.lt.f32.partialorder %v2239, 0.0
        %vm2560 = vcmp.lt.f32.partialorder %v2240, 0.0
        %vm2561 = vcmp.lt.f32.partialorder %v2241, 0.0
        %vm2562 = vcmp.lt.f32.partialorder %v2242, 0.0
        %vm2563 = vcmp.lt.f32.partialorder %v2243, 0.0
        %vm2564 = vcmp.lt.f32.partialorder %v2244, 0.0
        %vm2565 = vcmp.lt.f32.partialorder %v2245, 0.0
        %vm2566 = vcmp.lt.f32.partialorder %v2246, 0.0
        %v2567 = vsub.f32 0.0, %v2535
        %v2568 = vsub.f32 0.0, %v2536
        %v2569 = vsub.f32 0.0, %v2537
        %v2570 = vsub.f32 0.0, %v2538
        %v2571 = vsub.f32 0.0, %v2539
        %v2572 = vsub.f32 0.0, %v2540
        %v2573 = vsub.f32 0.0, %v2541
        %v2574 = vsub.f32 0.0, %v2542
        %v2575 = vsub.f32 0.0, %v2543
        %v2576 = vsub.f32 0.0, %v2544
        %v2577 = vsub.f32 0.0, %v2545
        %v2578 = vsub.f32 0.0, %v2546
        %v2579 = vsub.f32 0.0, %v2547
        %v2580 = vsub.f32 0.0, %v2548
        %v2581 = vsub.f32 0.0, %v2549
        %v2582 = vsub.f32 0.0, %v2550
        %v2583 = vsel %vm2551, %v2567, %v2535
        %v2584 = vsel %vm2552, %v2568, %v2536
        %v2585 = vsel %vm2553, %v2569, %v2537
        %v2586 = vsel %vm2554, %v2570, %v2538
        %v2587 = vsel %vm2555, %v2571, %v2539
        %v2588 = vsel %vm2556, %v2572, %v2540
        %v2589 = vsel %vm2557, %v2573, %v2541
        %v2590 = vsel %vm2558, %v2574, %v2542
        %v2591 = vsel %vm2559, %v2575, %v2543
        %v2592 = vsel %vm2560, %v2576, %v2544
        %v2593 = vsel %vm2561, %v2577, %v2545
        %v2594 = vsel %vm2562, %v2578, %v2546
        %v2595 = vsel %vm2563, %v2579, %v2547
        %v2596 = vsel %vm2564, %v2580, %v2548
        %v2597 = vsel %vm2565, %v2581, %v2549
        %v2598 = vsel %vm2566, %v2582, %v2550
        %v2599 = vmul.f32 %v2169, 0.5
        %v2600 = vmul.f32 %v2172, 0.5
        %v2601 = vmul.f32 %v2177, 0.5
        %v2602 = vmul.f32 %v2180, 0.5
        %v2603 = vmul.f32 %v2185, 0.5
        %v2604 = vmul.f32 %v2188, 0.5
        %v2605 = vmul.f32 %v2193, 0.5
        %v2606 = vmul.f32 %v2196, 0.5
        %v2607 = vmul.f32 %v2201, 0.5
        %v2608 = vmul.f32 %v2204, 0.5
        %v2609 = vmul.f32 %v2209, 0.5
        %v2610 = vmul.f32 %v2212, 0.5
        %v2611 = vmul.f32 %v2217, 0.5
        %v2612 = vmul.f32 %v2220, 0.5
        %v2613 = vmul.f32 %v2225, 0.5
        %v2614 = vmul.f32 %v2228, 0.5
        %v2615 = vadd.f32 %v2583, 1.0
        %v2616 = vadd.f32 %v2584, 1.0
        %v2617 = vadd.f32 %v2585, 1.0
        %v2618 = vadd.f32 %v2586, 1.0
        %v2619 = vadd.f32 %v2587, 1.0
        %v2620 = vadd.f32 %v2588, 1.0
        %v2621 = vadd.f32 %v2589, 1.0
        %v2622 = vadd.f32 %v2590, 1.0
        %v2623 = vadd.f32 %v2591, 1.0
        %v2624 = vadd.f32 %v2592, 1.0
        %v2625 = vadd.f32 %v2593, 1.0
        %v2626 = vadd.f32 %v2594, 1.0
        %v2627 = vadd.f32 %v2595, 1.0
        %v2628 = vadd.f32 %v2596, 1.0
        %v2629 = vadd.f32 %v2597, 1.0
        %v2630 = vadd.f32 %v2598, 1.0
        %v2631 = vmul.f32 %v2599, %v2615
        %v2632 = vmul.f32 %v2600, %v2616
        %v2633 = vmul.f32 %v2601, %v2617
        %v2634 = vmul.f32 %v2602, %v2618
        %v2635 = vmul.f32 %v2603, %v2619
        %v2636 = vmul.f32 %v2604, %v2620
        %v2637 = vmul.f32 %v2605, %v2621
        %v2638 = vmul.f32 %v2606, %v2622
        %v2639 = vmul.f32 %v2607, %v2623
        %v2640 = vmul.f32 %v2608, %v2624
        %v2641 = vmul.f32 %v2609, %v2625
        %v2642 = vmul.f32 %v2610, %v2626
        %v2643 = vmul.f32 %v2611, %v2627
        %v2644 = vmul.f32 %v2612, %v2628
        %v2645 = vmul.f32 %v2613, %v2629
        %v2646 = vmul.f32 %v2614, %v2630
        %v2647 = vld [vmem:[#allocation8] sm:$0xf]
        %v2648 = vld [vmem:[#allocation8 + $0x4] sm:$0xf]
        %v2649 = vld [vmem:[#allocation8 + $0x8] sm:$0xf]
        %v2650 = vld [vmem:[#allocation8 + $0xc] sm:$0xf]
        %v2651 = vld [vmem:[#allocation8 + $0x10] sm:$0xf]
        %v2652 = vld [vmem:[#allocation8 + $0x14] sm:$0xf]
        %v2653 = vld [vmem:[#allocation8 + $0x18] sm:$0xf]
        %v2654 = vld [vmem:[#allocation8 + $0x1c] sm:$0xf]
        %v2655 = vld [vmem:[#allocation8 + $0x20] sm:$0xf]
        %v2656 = vld [vmem:[#allocation8 + $0x24] sm:$0xf]
        %v2657 = vld [vmem:[#allocation8 + $0x28] sm:$0xf]
        %v2658 = vld [vmem:[#allocation8 + $0x2c] sm:$0xf]
        %v2659 = vld [vmem:[#allocation8 + $0x30] sm:$0xf]
        %v2660 = vld [vmem:[#allocation8 + $0x34] sm:$0xf]
        %v2661 = vld [vmem:[#allocation8 + $0x38] sm:$0xf]
        %v2662 = vld [vmem:[#allocation8 + $0x3c] sm:$0xf]
        %v2663 = vld [vmem:[#allocation8 + $0x40] sm:$0xf]
        %v2664 = vld [vmem:[#allocation8 + $0x44] sm:$0xf]
        %v2665 = vld [vmem:[#allocation8 + $0x48] sm:$0xf]
        %v2666 = vld [vmem:[#allocation8 + $0x4c] sm:$0xf]
        %v2667 = vld [vmem:[#allocation8 + $0x50] sm:$0xf]
        %v2668 = vld [vmem:[#allocation8 + $0x54] sm:$0xf]
        %v2669 = vld [vmem:[#allocation8 + $0x58] sm:$0xf]
        %v2670 = vld [vmem:[#allocation8 + $0x5c] sm:$0xf]
        %v2671 = vld [vmem:[#allocation8 + $0x60] sm:$0xf]
        %v2672 = vld [vmem:[#allocation8 + $0x64] sm:$0xf]
        %v2673 = vld [vmem:[#allocation8 + $0x68] sm:$0xf]
        %v2674 = vld [vmem:[#allocation8 + $0x6c] sm:$0xf]
        %v2675 = vld [vmem:[#allocation8 + $0x70] sm:$0xf]
        %v2676 = vld [vmem:[#allocation8 + $0x74] sm:$0xf]
        %v2677 = vld [vmem:[#allocation8 + $0x78] sm:$0xf]
        %v2678 = vld [vmem:[#allocation8 + $0x7c] sm:$0xf]
        %v2679 = vpack.c.bf16 %v2632, %v2631
        %v2680 = vpack.c.bf16 %v2634, %v2633
        %v2681 = vpack.c.bf16 %v2636, %v2635
        %v2682 = vpack.c.bf16 %v2638, %v2637
        %v2683 = vpack.c.bf16 %v2640, %v2639
        %v2684 = vpack.c.bf16 %v2642, %v2641
        %v2685 = vpack.c.bf16 %v2644, %v2643
        %v2686 = vpack.c.bf16 %v2646, %v2645
        %v2687 = vld [vmem:[%s5] sm:$0xff]
        %v2688 = vld [vmem:[%s5 + $0x8] sm:$0xff]
        %v2689 = vld [vmem:[%s5 + $0x10] sm:$0xff]
        %v2690 = vld [vmem:[%s5 + $0x18] sm:$0xff]
        %v2691 = vld [vmem:[%s5 + $0x20] sm:$0xff]
        %v2692 = vld [vmem:[%s5 + $0x28] sm:$0xff]
        %v2693 = vld [vmem:[%s5 + $0x30] sm:$0xff]
        %v2694 = vld [vmem:[%s5 + $0x38] sm:$0xff]
        %v2695 = vld [vmem:[%s5 + $0x40] sm:$0xff]
        %v2696 = vld [vmem:[%s5 + $0x48] sm:$0xff]
        %v2697 = vld [vmem:[%s5 + $0x50] sm:$0xff]
        %v2698 = vld [vmem:[%s5 + $0x58] sm:$0xff]
        %v2699 = vld [vmem:[%s5 + $0x60] sm:$0xff]
        %v2700 = vld [vmem:[%s5 + $0x68] sm:$0xff]
        %v2701 = vld [vmem:[%s5 + $0x70] sm:$0xff]
        %v2702 = vld [vmem:[%s5 + $0x78] sm:$0xff]
        %v2703 = vld [vmem:[%s5 + $0x80] sm:$0xff]
        %v2704 = vld [vmem:[%s5 + $0x88] sm:$0xff]
        %v2705 = vld [vmem:[%s5 + $0x90] sm:$0xff]
        %v2706 = vld [vmem:[%s5 + $0x98] sm:$0xff]
        %v2707 = vld [vmem:[%s5 + $0xa0] sm:$0xff]
        %v2708 = vld [vmem:[%s5 + $0xa8] sm:$0xff]
        %v2709 = vld [vmem:[%s5 + $0xb0] sm:$0xff]
        %v2710 = vld [vmem:[%s5 + $0xb8] sm:$0xff]
        %v2711 = vld [vmem:[%s5 + $0xc0] sm:$0xff]
        %v2712 = vld [vmem:[%s5 + $0xc8] sm:$0xff]
        %v2713 = vld [vmem:[%s5 + $0xd0] sm:$0xff]
        %v2714 = vld [vmem:[%s5 + $0xd8] sm:$0xff]
        %v2715 = vld [vmem:[%s5 + $0xe0] sm:$0xff]
        %v2716 = vld [vmem:[%s5 + $0xe8] sm:$0xff]
        %v2717 = vld [vmem:[%s5 + $0xf0] sm:$0xff]
        %v2718 = vld [vmem:[%s5 + $0xf8] sm:$0xff]
        %2720 = vset.pattern.permute.xlu0 0
        %2721 = vperm.xlu0 %2720, %v2687
        %v2722 = vpop.permute.xlu0 %2721
        %2725 = vset.pattern.permute.xlu0 0
        %2726 = vperm.xlu0 %2725, %v2688
        %v2727 = vpop.permute.xlu0 %2726
        %2730 = vset.pattern.permute.xlu0 0
        %2731 = vperm.xlu0 %2730, %v2689
        %v2732 = vpop.permute.xlu0 %2731
        %2735 = vset.pattern.permute.xlu0 0
        %2736 = vperm.xlu0 %2735, %v2690
        %v2737 = vpop.permute.xlu0 %2736
        %2740 = vset.pattern.permute.xlu0 0
        %2741 = vperm.xlu0 %2740, %v2691
        %v2742 = vpop.permute.xlu0 %2741
        %2745 = vset.pattern.permute.xlu0 0
        %2746 = vperm.xlu0 %2745, %v2692
        %v2747 = vpop.permute.xlu0 %2746
        %2750 = vset.pattern.permute.xlu0 0
        %2751 = vperm.xlu0 %2750, %v2693
        %v2752 = vpop.permute.xlu0 %2751
        %2755 = vset.pattern.permute.xlu0 0
        %2756 = vperm.xlu0 %2755, %v2694
        %v2757 = vpop.permute.xlu0 %2756
        %2760 = vset.pattern.permute.xlu0 0
        %2761 = vperm.xlu0 %2760, %v2695
        %v2762 = vpop.permute.xlu0 %2761
        %2765 = vset.pattern.permute.xlu0 0
        %2766 = vperm.xlu0 %2765, %v2696
        %v2767 = vpop.permute.xlu0 %2766
        %2770 = vset.pattern.permute.xlu0 0
        %2771 = vperm.xlu0 %2770, %v2697
        %v2772 = vpop.permute.xlu0 %2771
        %2775 = vset.pattern.permute.xlu0 0
        %2776 = vperm.xlu0 %2775, %v2698
        %v2777 = vpop.permute.xlu0 %2776
        %2780 = vset.pattern.permute.xlu0 0
        %2781 = vperm.xlu0 %2780, %v2699
        %v2782 = vpop.permute.xlu0 %2781
        %2785 = vset.pattern.permute.xlu0 0
        %2786 = vperm.xlu0 %2785, %v2700
        %v2787 = vpop.permute.xlu0 %2786
        %2790 = vset.pattern.permute.xlu0 0
        %2791 = vperm.xlu0 %2790, %v2701
        %v2792 = vpop.permute.xlu0 %2791
        %2795 = vset.pattern.permute.xlu0 0
        %2796 = vperm.xlu0 %2795, %v2702
        %v2797 = vpop.permute.xlu0 %2796
        %2800 = vset.pattern.permute.xlu0 0
        %2801 = vperm.xlu0 %2800, %v2703
        %v2802 = vpop.permute.xlu0 %2801
        %2805 = vset.pattern.permute.xlu0 0
        %2806 = vperm.xlu0 %2805, %v2704
        %v2807 = vpop.permute.xlu0 %2806
        %2810 = vset.pattern.permute.xlu0 0
        %2811 = vperm.xlu0 %2810, %v2705
        %v2812 = vpop.permute.xlu0 %2811
        %2815 = vset.pattern.permute.xlu0 0
        %2816 = vperm.xlu0 %2815, %v2706
        %v2817 = vpop.permute.xlu0 %2816
        %2820 = vset.pattern.permute.xlu0 0
        %2821 = vperm.xlu0 %2820, %v2707
        %v2822 = vpop.permute.xlu0 %2821
        %2825 = vset.pattern.permute.xlu0 0
        %2826 = vperm.xlu0 %2825, %v2708
        %v2827 = vpop.permute.xlu0 %2826
        %2830 = vset.pattern.permute.xlu0 0
        %2831 = vperm.xlu0 %2830, %v2709
        %v2832 = vpop.permute.xlu0 %2831
        %2835 = vset.pattern.permute.xlu0 0
        %2836 = vperm.xlu0 %2835, %v2710
        %v2837 = vpop.permute.xlu0 %2836
        %2840 = vset.pattern.permute.xlu0 0
        %2841 = vperm.xlu0 %2840, %v2711
        %v2842 = vpop.permute.xlu0 %2841
        %2845 = vset.pattern.permute.xlu0 0
        %2846 = vperm.xlu0 %2845, %v2712
        %v2847 = vpop.permute.xlu0 %2846
        %2850 = vset.pattern.permute.xlu0 0
        %2851 = vperm.xlu0 %2850, %v2713
        %v2852 = vpop.permute.xlu0 %2851
        %2855 = vset.pattern.permute.xlu0 0
        %2856 = vperm.xlu0 %2855, %v2714
        %v2857 = vpop.permute.xlu0 %2856
        %2860 = vset.pattern.permute.xlu0 0
        %2861 = vperm.xlu0 %2860, %v2715
        %v2862 = vpop.permute.xlu0 %2861
        %2865 = vset.pattern.permute.xlu0 0
        %2866 = vperm.xlu0 %2865, %v2716
        %v2867 = vpop.permute.xlu0 %2866
        %2870 = vset.pattern.permute.xlu0 0
        %2871 = vperm.xlu0 %2870, %v2717
        %v2872 = vpop.permute.xlu0 %2871
        %2875 = vset.pattern.permute.xlu0 0
        %2876 = vperm.xlu0 %2875, %v2718
        %v2877 = vpop.permute.xlu0 %2876
        %v2911 = vunpack.c.l.b16 %v2647
        %v2912 = vunpack.c.l.b16 %v2648
        %v2913 = vunpack.c.l.b16 %v2649
        %v2914 = vunpack.c.l.b16 %v2650
        %v2915 = vunpack.c.l.b16 %v2651
        %v2916 = vunpack.c.l.b16 %v2652
        %v2917 = vunpack.c.l.b16 %v2653
        %v2918 = vunpack.c.l.b16 %v2654
        %v2919 = vunpack.c.l.b16 %v2655
        %v2920 = vunpack.c.l.b16 %v2656
        %v2921 = vunpack.c.l.b16 %v2657
        %v2922 = vunpack.c.l.b16 %v2658
        %v2923 = vunpack.c.l.b16 %v2659
        %v2924 = vunpack.c.l.b16 %v2660
        %v2925 = vunpack.c.l.b16 %v2661
        %v2926 = vunpack.c.l.b16 %v2662
        %v2927 = vunpack.c.l.b16 %v2663
        %v2928 = vunpack.c.l.b16 %v2664
        %v2929 = vunpack.c.l.b16 %v2665
        %v2930 = vunpack.c.l.b16 %v2666
        %v2931 = vunpack.c.l.b16 %v2667
        %v2932 = vunpack.c.l.b16 %v2668
        %v2933 = vunpack.c.l.b16 %v2669
        %v2934 = vunpack.c.l.b16 %v2670
        %v2935 = vunpack.c.l.b16 %v2671
        %v2936 = vunpack.c.l.b16 %v2672
        %v2937 = vunpack.c.l.b16 %v2673
        %v2938 = vunpack.c.l.b16 %v2674
        %v2939 = vunpack.c.l.b16 %v2675
        %v2940 = vunpack.c.l.b16 %v2676
        %v2941 = vunpack.c.l.b16 %v2677
        %v2942 = vunpack.c.l.b16 %v2678
        %v2943 = vpack.c.b16 %v2912, %v2911
        %v2944 = vpack.c.b16 %v2914, %v2913
        %v2945 = vpack.c.b16 %v2916, %v2915
        %v2946 = vpack.c.b16 %v2918, %v2917
        %v2947 = vpack.c.b16 %v2920, %v2919
        %v2948 = vpack.c.b16 %v2922, %v2921
        %v2949 = vpack.c.b16 %v2924, %v2923
        %v2950 = vpack.c.b16 %v2926, %v2925
        %v2951 = vpack.c.b16 %v2928, %v2927
        %v2952 = vpack.c.b16 %v2930, %v2929
        %v2953 = vpack.c.b16 %v2932, %v2931
        %v2954 = vpack.c.b16 %v2934, %v2933
        %v2955 = vpack.c.b16 %v2936, %v2935
        %v2956 = vpack.c.b16 %v2938, %v2937
        %v2957 = vpack.c.b16 %v2940, %v2939
        %v2958 = vpack.c.b16 %v2942, %v2941
        %2975 = vmatprep.subr.bf16.mxu0 0
        %2976 = vmatpush1.bf16.msra.mxu0 %v2679
        %2977 = vmatprep.subr.bf16.mxu0 0
        %2978 = vmatpush1.bf16.msra.mxu0 %v2680
        %2979 = vmatprep.subr.bf16.mxu0 0
        %2980 = vmatpush1.bf16.msra.mxu0 %v2681
        %2981 = vmatprep.subr.bf16.mxu0 0
        %2982 = vmatpush1.bf16.msra.mxu0 %v2682
        %2983 = vmatprep.subr.bf16.mxu0 0
        %2984 = vmatpush1.bf16.msra.mxu0 %v2683
        %2985 = vmatprep.subr.bf16.mxu0 0
        %2986 = vmatpush1.bf16.msra.mxu0 %v2684
        %2987 = vmatprep.subr.bf16.mxu0 0
        %2988 = vmatpush1.bf16.msra.mxu0 %v2685
        %2989 = vmatprep.subr.bf16.mxu0 0
        %2990 = vmatpush1.bf16.msra.mxu0 %v2686
        %2991 = vmatprep.subr.bf16.mxu0 0
        %2992 = vmatpush1.bf16.msra.mxu0 0
        %2993 = vmatprep.subr.bf16.mxu0 0
        %2994 = vmatpush1.bf16.msra.mxu0 0
        %2995 = vmatprep.subr.bf16.mxu0 0
        %2996 = vmatpush1.bf16.msra.mxu0 0
        %2997 = vmatprep.subr.bf16.mxu0 0
        %2998 = vmatpush1.bf16.msra.mxu0 0
        %2999 = vmatprep.subr.bf16.mxu0 0
        %3000 = vmatpush1.bf16.msra.mxu0 0
        %3001 = vmatprep.subr.bf16.mxu0 0
        %3002 = vmatpush1.bf16.msra.mxu0 0
        %3003 = vmatprep.subr.bf16.mxu0 0
        %3004 = vmatpush1.bf16.msra.mxu0 0
        %3005 = vmatprep.subr.bf16.mxu0 0
        %3006 = vmatpush1.bf16.msra.mxu0 0
        %3007 = vmatprep.mubr.bf16.mxu0 0
        %3008 = vmatmul.mubr.bf16.gmra.mrb[0].mxu0 %v2943
        %v3009 = vpop.f32.mrb[0].mxu0
        %v3010 = vadd.f32 %v2722, %v3009
        %v3011 = vpop.f32.mrb[0].mxu0
        %v3012 = vpop.f32.mrb[0].mxu0
        %v3013 = vadd.f32 %v2727, %v3012
        %v3014 = vpop.f32.mrb[0].mxu0
        %3015 = vmatprep.mubr.bf16.mxu0 0
        %3016 = vmatmul.mubr.bf16.gmra.mrb[0].mxu0 %v2944
        %v3017 = vpop.f32.mrb[0].mxu0
        %v3018 = vadd.f32 %v2732, %v3017
        %v3019 = vpop.f32.mrb[0].mxu0
        %v3020 = vpop.f32.mrb[0].mxu0
        %v3021 = vadd.f32 %v2737, %v3020
        %v3022 = vpop.f32.mrb[0].mxu0
        %3023 = vmatprep.mubr.bf16.mxu0 0
        %3024 = vmatmul.mubr.bf16.gmra.mrb[0].mxu0 %v2945
        %v3025 = vpop.f32.mrb[0].mxu0
        %v3026 = vadd.f32 %v2742, %v3025
        %v3027 = vpop.f32.mrb[0].mxu0
        %v3028 = vpop.f32.mrb[0].mxu0
        %v3029 = vadd.f32 %v2747, %v3028
        %v3030 = vpop.f32.mrb[0].mxu0
        %3031 = vmatprep.mubr.bf16.mxu0 0
        %3032 = vmatmul.mubr.bf16.gmra.mrb[0].mxu0 %v2946
        %v3033 = vpop.f32.mrb[0].mxu0
        %v3034 = vadd.f32 %v2752, %v3033
        %v3035 = vpop.f32.mrb[0].mxu0
        %v3036 = vpop.f32.mrb[0].mxu0
        %v3037 = vadd.f32 %v2757, %v3036
        %v3038 = vpop.f32.mrb[0].mxu0
        %3039 = vmatprep.mubr.bf16.mxu0 0
        %3040 = vmatmul.mubr.bf16.gmra.mrb[0].mxu0 %v2947
        %v3041 = vpop.f32.mrb[0].mxu0
        %v3042 = vadd.f32 %v2762, %v3041
        %v3043 = vpop.f32.mrb[0].mxu0
        %v3044 = vpop.f32.mrb[0].mxu0
        %v3045 = vadd.f32 %v2767, %v3044
        %v3046 = vpop.f32.mrb[0].mxu0
        %3047 = vmatprep.mubr.bf16.mxu0 0
        %3048 = vmatmul.mubr.bf16.gmra.mrb[0].mxu0 %v2948
        %v3049 = vpop.f32.mrb[0].mxu0
        %v3050 = vadd.f32 %v2772, %v3049
        %v3051 = vpop.f32.mrb[0].mxu0
        %v3052 = vpop.f32.mrb[0].mxu0
        %v3053 = vadd.f32 %v2777, %v3052
        %v3054 = vpop.f32.mrb[0].mxu0
        %3055 = vmatprep.mubr.bf16.mxu0 0
        %3056 = vmatmul.mubr.bf16.gmra.mrb[0].mxu0 %v2949
        %v3057 = vpop.f32.mrb[0].mxu0
        %v3058 = vadd.f32 %v2782, %v3057
        %v3059 = vpop.f32.mrb[0].mxu0
        %v3060 = vpop.f32.mrb[0].mxu0
        %v3061 = vadd.f32 %v2787, %v3060
        %v3062 = vpop.f32.mrb[0].mxu0
        %3063 = vmatprep.mubr.bf16.mxu0 0
        %3064 = vmatmul.mubr.bf16.gmra.mrb[0].mxu0 %v2950
        %v3065 = vpop.f32.mrb[0].mxu0
        %v3066 = vadd.f32 %v2792, %v3065
        %v3067 = vpop.f32.mrb[0].mxu0
        %v3068 = vpop.f32.mrb[0].mxu0
        %v3069 = vadd.f32 %v2797, %v3068
        %v3070 = vpop.f32.mrb[0].mxu0
        %3071 = vmatprep.mubr.bf16.mxu0 0
        %3072 = vmatmul.mubr.bf16.gmra.mrb[0].mxu0 %v2951
        %v3073 = vpop.f32.mrb[0].mxu0
        %v3074 = vadd.f32 %v2802, %v3073
        %v3075 = vpop.f32.mrb[0].mxu0
        %v3076 = vpop.f32.mrb[0].mxu0
        %v3077 = vadd.f32 %v2807, %v3076
        %v3078 = vpop.f32.mrb[0].mxu0
        %3079 = vmatprep.mubr.bf16.mxu0 0
        %3080 = vmatmul.mubr.bf16.gmra.mrb[0].mxu0 %v2952
        %v3081 = vpop.f32.mrb[0].mxu0
        %v3082 = vadd.f32 %v2812, %v3081
        %v3083 = vpop.f32.mrb[0].mxu0
        %v3084 = vpop.f32.mrb[0].mxu0
        %v3085 = vadd.f32 %v2817, %v3084
        %v3086 = vpop.f32.mrb[0].mxu0
        %3087 = vmatprep.mubr.bf16.mxu0 0
        %3088 = vmatmul.mubr.bf16.gmra.mrb[0].mxu0 %v2953
        %v3089 = vpop.f32.mrb[0].mxu0
        %v3090 = vadd.f32 %v2822, %v3089
        %v3091 = vpop.f32.mrb[0].mxu0
        %v3092 = vpop.f32.mrb[0].mxu0
        %v3093 = vadd.f32 %v2827, %v3092
        %v3094 = vpop.f32.mrb[0].mxu0
        %3095 = vmatprep.mubr.bf16.mxu0 0
        %3096 = vmatmul.mubr.bf16.gmra.mrb[0].mxu0 %v2954
        %v3097 = vpop.f32.mrb[0].mxu0
        %v3098 = vadd.f32 %v2832, %v3097
        %v3099 = vpop.f32.mrb[0].mxu0
        %v3100 = vpop.f32.mrb[0].mxu0
        %v3101 = vadd.f32 %v2837, %v3100
        %v3102 = vpop.f32.mrb[0].mxu0
        %3103 = vmatprep.mubr.bf16.mxu0 0
        %3104 = vmatmul.mubr.bf16.gmra.mrb[0].mxu0 %v2955
        %v3105 = vpop.f32.mrb[0].mxu0
        %v3106 = vadd.f32 %v2842, %v3105
        %v3107 = vpop.f32.mrb[0].mxu0
        %v3108 = vpop.f32.mrb[0].mxu0
        %v3109 = vadd.f32 %v2847, %v3108
        %v3110 = vpop.f32.mrb[0].mxu0
        %3111 = vmatprep.mubr.bf16.mxu0 0
        %3112 = vmatmul.mubr.bf16.gmra.mrb[0].mxu0 %v2956
        %v3113 = vpop.f32.mrb[0].mxu0
        %v3114 = vadd.f32 %v2852, %v3113
        %v3115 = vpop.f32.mrb[0].mxu0
        %v3116 = vpop.f32.mrb[0].mxu0
        %v3117 = vadd.f32 %v2857, %v3116
        %v3118 = vpop.f32.mrb[0].mxu0
        %3119 = vmatprep.mubr.bf16.mxu0 0
        %3120 = vmatmul.mubr.bf16.gmra.mrb[0].mxu0 %v2957
        %v3121 = vpop.f32.mrb[0].mxu0
        %v3122 = vadd.f32 %v2862, %v3121
        %v3123 = vpop.f32.mrb[0].mxu0
        %v3124 = vpop.f32.mrb[0].mxu0
        %v3125 = vadd.f32 %v2867, %v3124
        %v3126 = vpop.f32.mrb[0].mxu0
        %3127 = vmatprep.mubr.bf16.mxu0 0
        %3128 = vmatmul.mubr.bf16.gmra.mrb[0].mxu0 %v2958
        %v3129 = vpop.f32.mrb[0].mxu0
        %v3130 = vadd.f32 %v2872, %v3129
        %v3131 = vpop.f32.mrb[0].mxu0
        %v3132 = vpop.f32.mrb[0].mxu0
        %v3133 = vadd.f32 %v2877, %v3132
        %v3134 = vpop.f32.mrb[0].mxu0
        %3135 = vdwg.mxu0
        %v3136 = vmul.f32 %v3010, 0.70710677
        %v3137 = vmul.f32 %v3013, 0.70710677
        %v3138 = vmul.f32 %v3018, 0.70710677
        %v3139 = vmul.f32 %v3021, 0.70710677
        %v3140 = vmul.f32 %v3026, 0.70710677
        %v3141 = vmul.f32 %v3029, 0.70710677
        %v3142 = vmul.f32 %v3034, 0.70710677
        %v3143 = vmul.f32 %v3037, 0.70710677
        %v3144 = vmul.f32 %v3042, 0.70710677
        %v3145 = vmul.f32 %v3045, 0.70710677
        %v3146 = vmul.f32 %v3050, 0.70710677
        %v3147 = vmul.f32 %v3053, 0.70710677
        %v3148 = vmul.f32 %v3058, 0.70710677
        %v3149 = vmul.f32 %v3061, 0.70710677
        %v3150 = vmul.f32 %v3066, 0.70710677
        %v3151 = vmul.f32 %v3069, 0.70710677
        %v3152 = vmul.f32 %v3074, 0.70710677
        %v3153 = vmul.f32 %v3077, 0.70710677
        %v3154 = vmul.f32 %v3082, 0.70710677
        %v3155 = vmul.f32 %v3085, 0.70710677
        %v3156 = vmul.f32 %v3090, 0.70710677
        %v3157 = vmul.f32 %v3093, 0.70710677
        %v3158 = vmul.f32 %v3098, 0.70710677
        %v3159 = vmul.f32 %v3101, 0.70710677
        %v3160 = vmul.f32 %v3106, 0.70710677
        %v3161 = vmul.f32 %v3109, 0.70710677
        %v3162 = vmul.f32 %v3114, 0.70710677
        %v3163 = vmul.f32 %v3117, 0.70710677
        %v3164 = vmul.f32 %v3122, 0.70710677
        %v3165 = vmul.f32 %v3125, 0.70710677
        %v3166 = vmul.f32 %v3130, 0.70710677
        %v3167 = vmul.f32 %v3133, 0.70710677
        %v3168 = vand.u32 2147483647, %v3136
        %v3169 = vand.u32 2147483647, %v3137
        %v3170 = vand.u32 2147483647, %v3138
        %v3171 = vand.u32 2147483647, %v3139
        %v3172 = vand.u32 2147483647, %v3140
        %v3173 = vand.u32 2147483647, %v3141
        %v3174 = vand.u32 2147483647, %v3142
        %v3175 = vand.u32 2147483647, %v3143
        %v3176 = vand.u32 2147483647, %v3144
        %v3177 = vand.u32 2147483647, %v3145
        %v3178 = vand.u32 2147483647, %v3146
        %v3179 = vand.u32 2147483647, %v3147
        %v3180 = vand.u32 2147483647, %v3148
        %v3181 = vand.u32 2147483647, %v3149
        %v3182 = vand.u32 2147483647, %v3150
        %v3183 = vand.u32 2147483647, %v3151
        %v3184 = vand.u32 2147483647, %v3152
        %v3185 = vand.u32 2147483647, %v3153
        %v3186 = vand.u32 2147483647, %v3154
        %v3187 = vand.u32 2147483647, %v3155
        %v3188 = vand.u32 2147483647, %v3156
        %v3189 = vand.u32 2147483647, %v3157
        %v3190 = vand.u32 2147483647, %v3158
        %v3191 = vand.u32 2147483647, %v3159
        %v3192 = vand.u32 2147483647, %v3160
        %v3193 = vand.u32 2147483647, %v3161
        %v3194 = vand.u32 2147483647, %v3162
        %v3195 = vand.u32 2147483647, %v3163
        %v3196 = vand.u32 2147483647, %v3164
        %v3197 = vand.u32 2147483647, %v3165
        %v3198 = vand.u32 2147483647, %v3166
        %v3199 = vand.u32 2147483647, %v3167
        %v3200 = vmul.f32 %v3168, 0.3275911
        %v3201 = vmul.f32 %v3169, 0.3275911
        %v3202 = vmul.f32 %v3170, 0.3275911
        %v3203 = vmul.f32 %v3171, 0.3275911
        %v3204 = vmul.f32 %v3172, 0.3275911
        %v3205 = vmul.f32 %v3173, 0.3275911
        %v3206 = vmul.f32 %v3174, 0.3275911
        %v3207 = vmul.f32 %v3175, 0.3275911
        %v3208 = vmul.f32 %v3176, 0.3275911
        %v3209 = vmul.f32 %v3177, 0.3275911
        %v3210 = vmul.f32 %v3178, 0.3275911
        %v3211 = vmul.f32 %v3179, 0.3275911
        %v3212 = vmul.f32 %v3180, 0.3275911
        %v3213 = vmul.f32 %v3181, 0.3275911
        %v3214 = vmul.f32 %v3182, 0.3275911
        %v3215 = vmul.f32 %v3183, 0.3275911
        %v3216 = vmul.f32 %v3184, 0.3275911
        %v3217 = vmul.f32 %v3185, 0.3275911
        %v3218 = vmul.f32 %v3186, 0.3275911
        %v3219 = vmul.f32 %v3187, 0.3275911
        %v3220 = vmul.f32 %v3188, 0.3275911
        %v3221 = vmul.f32 %v3189, 0.3275911
        %v3222 = vmul.f32 %v3190, 0.3275911
        %v3223 = vmul.f32 %v3191, 0.3275911
        %v3224 = vmul.f32 %v3192, 0.3275911
        %v3225 = vmul.f32 %v3193, 0.3275911
        %v3226 = vmul.f32 %v3194, 0.3275911
        %v3227 = vmul.f32 %v3195, 0.3275911
        %v3228 = vmul.f32 %v3196, 0.3275911
        %v3229 = vmul.f32 %v3197, 0.3275911
        %v3230 = vmul.f32 %v3198, 0.3275911
        %v3231 = vmul.f32 %v3199, 0.3275911
        %v3232 = vadd.f32 %v3200, 1.0
        %v3233 = vadd.f32 %v3201, 1.0
        %v3234 = vadd.f32 %v3202, 1.0
        %v3235 = vadd.f32 %v3203, 1.0
        %v3236 = vadd.f32 %v3204, 1.0
        %v3237 = vadd.f32 %v3205, 1.0
        %v3238 = vadd.f32 %v3206, 1.0
        %v3239 = vadd.f32 %v3207, 1.0
        %v3240 = vadd.f32 %v3208, 1.0
        %v3241 = vadd.f32 %v3209, 1.0
        %v3242 = vadd.f32 %v3210, 1.0
        %v3243 = vadd.f32 %v3211, 1.0
        %v3244 = vadd.f32 %v3212, 1.0
        %v3245 = vadd.f32 %v3213, 1.0
        %v3246 = vadd.f32 %v3214, 1.0
        %v3247 = vadd.f32 %v3215, 1.0
        %v3248 = vadd.f32 %v3216, 1.0
        %v3249 = vadd.f32 %v3217, 1.0
        %v3250 = vadd.f32 %v3218, 1.0
        %v3251 = vadd.f32 %v3219, 1.0
        %v3252 = vadd.f32 %v3220, 1.0
        %v3253 = vadd.f32 %v3221, 1.0
        %v3254 = vadd.f32 %v3222, 1.0
        %v3255 = vadd.f32 %v3223, 1.0
        %v3256 = vadd.f32 %v3224, 1.0
        %v3257 = vadd.f32 %v3225, 1.0
        %v3258 = vadd.f32 %v3226, 1.0
        %v3259 = vadd.f32 %v3227, 1.0
        %v3260 = vadd.f32 %v3228, 1.0
        %v3261 = vadd.f32 %v3229, 1.0
        %v3262 = vadd.f32 %v3230, 1.0
        %v3263 = vadd.f32 %v3231, 1.0
        %v3264 = vrcp.pop %v3232
        %v3265 = vrcp.pop %v3233
        %v3266 = vrcp.pop %v3234
        %v3267 = vrcp.pop %v3235
        %v3268 = vrcp.pop %v3236
        %v3269 = vrcp.pop %v3237
        %v3270 = vrcp.pop %v3238
        %v3271 = vrcp.pop %v3239
        %v3272 = vrcp.pop %v3240
        %v3273 = vrcp.pop %v3241
        %v3274 = vrcp.pop %v3242
        %v3275 = vrcp.pop %v3243
        %v3276 = vrcp.pop %v3244
        %v3277 = vrcp.pop %v3245
        %v3278 = vrcp.pop %v3246
        %v3279 = vrcp.pop %v3247
        %v3280 = vrcp.pop %v3248
        %v3281 = vrcp.pop %v3249
        %v3282 = vrcp.pop %v3250
        %v3283 = vrcp.pop %v3251
        %v3284 = vrcp.pop %v3252
        %v3285 = vrcp.pop %v3253
        %v3286 = vrcp.pop %v3254
        %v3287 = vrcp.pop %v3255
        %v3288 = vrcp.pop %v3256
        %v3289 = vrcp.pop %v3257
        %v3290 = vrcp.pop %v3258
        %v3291 = vrcp.pop %v3259
        %v3292 = vrcp.pop %v3260
        %v3293 = vrcp.pop %v3261
        %v3294 = vrcp.pop %v3262
        %v3295 = vrcp.pop %v3263
        %v3296 = vmul.f32 %v3264, 1.0614054
        %v3297 = vmul.f32 %v3265, 1.0614054
        %v3298 = vmul.f32 %v3266, 1.0614054
        %v3299 = vmul.f32 %v3267, 1.0614054
        %v3300 = vmul.f32 %v3268, 1.0614054
        %v3301 = vmul.f32 %v3269, 1.0614054
        %v3302 = vmul.f32 %v3270, 1.0614054
        %v3303 = vmul.f32 %v3271, 1.0614054
        %v3304 = vmul.f32 %v3272, 1.0614054
        %v3305 = vmul.f32 %v3273, 1.0614054
        %v3306 = vmul.f32 %v3274, 1.0614054
        %v3307 = vmul.f32 %v3275, 1.0614054
        %v3308 = vmul.f32 %v3276, 1.0614054
        %v3309 = vmul.f32 %v3277, 1.0614054
        %v3310 = vmul.f32 %v3278, 1.0614054
        %v3311 = vmul.f32 %v3279, 1.0614054
        %v3312 = vmul.f32 %v3280, 1.0614054
        %v3313 = vmul.f32 %v3281, 1.0614054
        %v3314 = vmul.f32 %v3282, 1.0614054
        %v3315 = vmul.f32 %v3283, 1.0614054
        %v3316 = vmul.f32 %v3284, 1.0614054
        %v3317 = vmul.f32 %v3285, 1.0614054
        %v3318 = vmul.f32 %v3286, 1.0614054
        %v3319 = vmul.f32 %v3287, 1.0614054
        %v3320 = vmul.f32 %v3288, 1.0614054
        %v3321 = vmul.f32 %v3289, 1.0614054
        %v3322 = vmul.f32 %v3290, 1.0614054
        %v3323 = vmul.f32 %v3291, 1.0614054
        %v3324 = vmul.f32 %v3292, 1.0614054
        %v3325 = vmul.f32 %v3293, 1.0614054
        %v3326 = vmul.f32 %v3294, 1.0614054
        %v3327 = vmul.f32 %v3295, 1.0614054
        %v3328 = vadd.f32 %v3296, -1.4531521
        %v3329 = vadd.f32 %v3297, -1.4531521
        %v3330 = vadd.f32 %v3298, -1.4531521
        %v3331 = vadd.f32 %v3299, -1.4531521
        %v3332 = vadd.f32 %v3300, -1.4531521
        %v3333 = vadd.f32 %v3301, -1.4531521
        %v3334 = vadd.f32 %v3302, -1.4531521
        %v3335 = vadd.f32 %v3303, -1.4531521
        %v3336 = vadd.f32 %v3304, -1.4531521
        %v3337 = vadd.f32 %v3305, -1.4531521
        %v3338 = vadd.f32 %v3306, -1.4531521
        %v3339 = vadd.f32 %v3307, -1.4531521
        %v3340 = vadd.f32 %v3308, -1.4531521
        %v3341 = vadd.f32 %v3309, -1.4531521
        %v3342 = vadd.f32 %v3310, -1.4531521
        %v3343 = vadd.f32 %v3311, -1.4531521
        %v3344 = vadd.f32 %v3312, -1.4531521
        %v3345 = vadd.f32 %v3313, -1.4531521
        %v3346 = vadd.f32 %v3314, -1.4531521
        %v3347 = vadd.f32 %v3315, -1.4531521
        %v3348 = vadd.f32 %v3316, -1.4531521
        %v3349 = vadd.f32 %v3317, -1.4531521
        %v3350 = vadd.f32 %v3318, -1.4531521
        %v3351 = vadd.f32 %v3319, -1.4531521
        %v3352 = vadd.f32 %v3320, -1.4531521
        %v3353 = vadd.f32 %v3321, -1.4531521
        %v3354 = vadd.f32 %v3322, -1.4531521
        %v3355 = vadd.f32 %v3323, -1.4531521
        %v3356 = vadd.f32 %v3324, -1.4531521
        %v3357 = vadd.f32 %v3325, -1.4531521
        %v3358 = vadd.f32 %v3326, -1.4531521
        %v3359 = vadd.f32 %v3327, -1.4531521
        %v3360 = vmul.f32 %v3328, %v3264
        %v3361 = vmul.f32 %v3329, %v3265
        %v3362 = vmul.f32 %v3330, %v3266
        %v3363 = vmul.f32 %v3331, %v3267
        %v3364 = vmul.f32 %v3332, %v3268
        %v3365 = vmul.f32 %v3333, %v3269
        %v3366 = vmul.f32 %v3334, %v3270
        %v3367 = vmul.f32 %v3335, %v3271
        %v3368 = vmul.f32 %v3336, %v3272
        %v3369 = vmul.f32 %v3337, %v3273
        %v3370 = vmul.f32 %v3338, %v3274
        %v3371 = vmul.f32 %v3339, %v3275
        %v3372 = vmul.f32 %v3340, %v3276
        %v3373 = vmul.f32 %v3341, %v3277
        %v3374 = vmul.f32 %v3342, %v3278
        %v3375 = vmul.f32 %v3343, %v3279
        %v3376 = vmul.f32 %v3344, %v3280
        %v3377 = vmul.f32 %v3345, %v3281
        %v3378 = vmul.f32 %v3346, %v3282
        %v3379 = vmul.f32 %v3347, %v3283
        %v3380 = vmul.f32 %v3348, %v3284
        %v3381 = vmul.f32 %v3349, %v3285
        %v3382 = vmul.f32 %v3350, %v3286
        %v3383 = vmul.f32 %v3351, %v3287
        %v3384 = vmul.f32 %v3352, %v3288
        %v3385 = vmul.f32 %v3353, %v3289
        %v3386 = vmul.f32 %v3354, %v3290
        %v3387 = vmul.f32 %v3355, %v3291
        %v3388 = vmul.f32 %v3356, %v3292
        %v3389 = vmul.f32 %v3357, %v3293
        %v3390 = vmul.f32 %v3358, %v3294
        %v3391 = vmul.f32 %v3359, %v3295
        %v3392 = vadd.f32 %v3360, 1.4214138
        %v3393 = vadd.f32 %v3361, 1.4214138
        %v3394 = vadd.f32 %v3362, 1.4214138
        %v3395 = vadd.f32 %v3363, 1.4214138
        %v3396 = vadd.f32 %v3364, 1.4214138
        %v3397 = vadd.f32 %v3365, 1.4214138
        %v3398 = vadd.f32 %v3366, 1.4214138
        %v3399 = vadd.f32 %v3367, 1.4214138
        %v3400 = vadd.f32 %v3368, 1.4214138
        %v3401 = vadd.f32 %v3369, 1.4214138
        %v3402 = vadd.f32 %v3370, 1.4214138
        %v3403 = vadd.f32 %v3371, 1.4214138
        %v3404 = vadd.f32 %v3372, 1.4214138
        %v3405 = vadd.f32 %v3373, 1.4214138
        %v3406 = vadd.f32 %v3374, 1.4214138
        %v3407 = vadd.f32 %v3375, 1.4214138
        %v3408 = vadd.f32 %v3376, 1.4214138
        %v3409 = vadd.f32 %v3377, 1.4214138
        %v3410 = vadd.f32 %v3378, 1.4214138
        %v3411 = vadd.f32 %v3379, 1.4214138
        %v3412 = vadd.f32 %v3380, 1.4214138
        %v3413 = vadd.f32 %v3381, 1.4214138
        %v3414 = vadd.f32 %v3382, 1.4214138
        %v3415 = vadd.f32 %v3383, 1.4214138
        %v3416 = vadd.f32 %v3384, 1.4214138
        %v3417 = vadd.f32 %v3385, 1.4214138
        %v3418 = vadd.f32 %v3386, 1.4214138
        %v3419 = vadd.f32 %v3387, 1.4214138
        %v3420 = vadd.f32 %v3388, 1.4214138
        %v3421 = vadd.f32 %v3389, 1.4214138
        %v3422 = vadd.f32 %v3390, 1.4214138
        %v3423 = vadd.f32 %v3391, 1.4214138
        %v3424 = vmul.f32 %v3392, %v3264
        %v3425 = vmul.f32 %v3393, %v3265
        %v3426 = vmul.f32 %v3394, %v3266
        %v3427 = vmul.f32 %v3395, %v3267
        %v3428 = vmul.f32 %v3396, %v3268
        %v3429 = vmul.f32 %v3397, %v3269
        %v3430 = vmul.f32 %v3398, %v3270
        %v3431 = vmul.f32 %v3399, %v3271
        %v3432 = vmul.f32 %v3400, %v3272
        %v3433 = vmul.f32 %v3401, %v3273
        %v3434 = vmul.f32 %v3402, %v3274
        %v3435 = vmul.f32 %v3403, %v3275
        %v3436 = vmul.f32 %v3404, %v3276
        %v3437 = vmul.f32 %v3405, %v3277
        %v3438 = vmul.f32 %v3406, %v3278
        %v3439 = vmul.f32 %v3407, %v3279
        %v3440 = vmul.f32 %v3408, %v3280
        %v3441 = vmul.f32 %v3409, %v3281
        %v3442 = vmul.f32 %v3410, %v3282
        %v3443 = vmul.f32 %v3411, %v3283
        %v3444 = vmul.f32 %v3412, %v3284
        %v3445 = vmul.f32 %v3413, %v3285
        %v3446 = vmul.f32 %v3414, %v3286
        %v3447 = vmul.f32 %v3415, %v3287
        %v3448 = vmul.f32 %v3416, %v3288
        %v3449 = vmul.f32 %v3417, %v3289
        %v3450 = vmul.f32 %v3418, %v3290
        %v3451 = vmul.f32 %v3419, %v3291
        %v3452 = vmul.f32 %v3420, %v3292
        %v3453 = vmul.f32 %v3421, %v3293
        %v3454 = vmul.f32 %v3422, %v3294
        %v3455 = vmul.f32 %v3423, %v3295
        %v3456 = vadd.f32 %v3424, -0.28449672
        %v3457 = vadd.f32 %v3425, -0.28449672
        %v3458 = vadd.f32 %v3426, -0.28449672
        %v3459 = vadd.f32 %v3427, -0.28449672
        %v3460 = vadd.f32 %v3428, -0.28449672
        %v3461 = vadd.f32 %v3429, -0.28449672
        %v3462 = vadd.f32 %v3430, -0.28449672
        %v3463 = vadd.f32 %v3431, -0.28449672
        %v3464 = vadd.f32 %v3432, -0.28449672
        %v3465 = vadd.f32 %v3433, -0.28449672
        %v3466 = vadd.f32 %v3434, -0.28449672
        %v3467 = vadd.f32 %v3435, -0.28449672
        %v3468 = vadd.f32 %v3436, -0.28449672
        %v3469 = vadd.f32 %v3437, -0.28449672
        %v3470 = vadd.f32 %v3438, -0.28449672
        %v3471 = vadd.f32 %v3439, -0.28449672
        %v3472 = vadd.f32 %v3440, -0.28449672
        %v3473 = vadd.f32 %v3441, -0.28449672
        %v3474 = vadd.f32 %v3442, -0.28449672
        %v3475 = vadd.f32 %v3443, -0.28449672
        %v3476 = vadd.f32 %v3444, -0.28449672
        %v3477 = vadd.f32 %v3445, -0.28449672
        %v3478 = vadd.f32 %v3446, -0.28449672
        %v3479 = vadd.f32 %v3447, -0.28449672
        %v3480 = vadd.f32 %v3448, -0.28449672
        %v3481 = vadd.f32 %v3449, -0.28449672
        %v3482 = vadd.f32 %v3450, -0.28449672
        %v3483 = vadd.f32 %v3451, -0.28449672
        %v3484 = vadd.f32 %v3452, -0.28449672
        %v3485 = vadd.f32 %v3453, -0.28449672
        %v3486 = vadd.f32 %v3454, -0.28449672
        %v3487 = vadd.f32 %v3455, -0.28449672
        %v3488 = vmul.f32 %v3456, %v3264
        %v3489 = vmul.f32 %v3457, %v3265
        %v3490 = vmul.f32 %v3458, %v3266
        %v3491 = vmul.f32 %v3459, %v3267
        %v3492 = vmul.f32 %v3460, %v3268
        %v3493 = vmul.f32 %v3461, %v3269
        %v3494 = vmul.f32 %v3462, %v3270
        %v3495 = vmul.f32 %v3463, %v3271
        %v3496 = vmul.f32 %v3464, %v3272
        %v3497 = vmul.f32 %v3465, %v3273
        %v3498 = vmul.f32 %v3466, %v3274
        %v3499 = vmul.f32 %v3467, %v3275
        %v3500 = vmul.f32 %v3468, %v3276
        %v3501 = vmul.f32 %v3469, %v3277
        %v3502 = vmul.f32 %v3470, %v3278
        %v3503 = vmul.f32 %v3471, %v3279
        %v3504 = vmul.f32 %v3472, %v3280
        %v3505 = vmul.f32 %v3473, %v3281
        %v3506 = vmul.f32 %v3474, %v3282
        %v3507 = vmul.f32 %v3475, %v3283
        %v3508 = vmul.f32 %v3476, %v3284
        %v3509 = vmul.f32 %v3477, %v3285
        %v3510 = vmul.f32 %v3478, %v3286
        %v3511 = vmul.f32 %v3479, %v3287
        %v3512 = vmul.f32 %v3480, %v3288
        %v3513 = vmul.f32 %v3481, %v3289
        %v3514 = vmul.f32 %v3482, %v3290
        %v3515 = vmul.f32 %v3483, %v3291
        %v3516 = vmul.f32 %v3484, %v3292
        %v3517 = vmul.f32 %v3485, %v3293
        %v3518 = vmul.f32 %v3486, %v3294
        %v3519 = vmul.f32 %v3487, %v3295
        %v3520 = vadd.f32 %v3488, 0.2548296
        %v3521 = vadd.f32 %v3489, 0.2548296
        %v3522 = vadd.f32 %v3490, 0.2548296
        %v3523 = vadd.f32 %v3491, 0.2548296
        %v3524 = vadd.f32 %v3492, 0.2548296
        %v3525 = vadd.f32 %v3493, 0.2548296
        %v3526 = vadd.f32 %v3494, 0.2548296
        %v3527 = vadd.f32 %v3495, 0.2548296
        %v3528 = vadd.f32 %v3496, 0.2548296
        %v3529 = vadd.f32 %v3497, 0.2548296
        %v3530 = vadd.f32 %v3498, 0.2548296
        %v3531 = vadd.f32 %v3499, 0.2548296
        %v3532 = vadd.f32 %v3500, 0.2548296
        %v3533 = vadd.f32 %v3501, 0.2548296
        %v3534 = vadd.f32 %v3502, 0.2548296
        %v3535 = vadd.f32 %v3503, 0.2548296
        %v3536 = vadd.f32 %v3504, 0.2548296
        %v3537 = vadd.f32 %v3505, 0.2548296
        %v3538 = vadd.f32 %v3506, 0.2548296
        %v3539 = vadd.f32 %v3507, 0.2548296
        %v3540 = vadd.f32 %v3508, 0.2548296
        %v3541 = vadd.f32 %v3509, 0.2548296
        %v3542 = vadd.f32 %v3510, 0.2548296
        %v3543 = vadd.f32 %v3511, 0.2548296
        %v3544 = vadd.f32 %v3512, 0.2548296
        %v3545 = vadd.f32 %v3513, 0.2548296
        %v3546 = vadd.f32 %v3514, 0.2548296
        %v3547 = vadd.f32 %v3515, 0.2548296
        %v3548 = vadd.f32 %v3516, 0.2548296
        %v3549 = vadd.f32 %v3517, 0.2548296
        %v3550 = vadd.f32 %v3518, 0.2548296
        %v3551 = vadd.f32 %v3519, 0.2548296
        %v3552 = vmul.f32 %v3520, %v3264
        %v3553 = vmul.f32 %v3521, %v3265
        %v3554 = vmul.f32 %v3522, %v3266
        %v3555 = vmul.f32 %v3523, %v3267
        %v3556 = vmul.f32 %v3524, %v3268
        %v3557 = vmul.f32 %v3525, %v3269
        %v3558 = vmul.f32 %v3526, %v3270
        %v3559 = vmul.f32 %v3527, %v3271
        %v3560 = vmul.f32 %v3528, %v3272
        %v3561 = vmul.f32 %v3529, %v3273
        %v3562 = vmul.f32 %v3530, %v3274
        %v3563 = vmul.f32 %v3531, %v3275
        %v3564 = vmul.f32 %v3532, %v3276
        %v3565 = vmul.f32 %v3533, %v3277
        %v3566 = vmul.f32 %v3534, %v3278
        %v3567 = vmul.f32 %v3535, %v3279
        %v3568 = vmul.f32 %v3536, %v3280
        %v3569 = vmul.f32 %v3537, %v3281
        %v3570 = vmul.f32 %v3538, %v3282
        %v3571 = vmul.f32 %v3539, %v3283
        %v3572 = vmul.f32 %v3540, %v3284
        %v3573 = vmul.f32 %v3541, %v3285
        %v3574 = vmul.f32 %v3542, %v3286
        %v3575 = vmul.f32 %v3543, %v3287
        %v3576 = vmul.f32 %v3544, %v3288
        %v3577 = vmul.f32 %v3545, %v3289
        %v3578 = vmul.f32 %v3546, %v3290
        %v3579 = vmul.f32 %v3547, %v3291
        %v3580 = vmul.f32 %v3548, %v3292
        %v3581 = vmul.f32 %v3549, %v3293
        %v3582 = vmul.f32 %v3550, %v3294
        %v3583 = vmul.f32 %v3551, %v3295
        %v3584 = vmul.f32 %v3168, %v3168
        %v3585 = vmul.f32 %v3169, %v3169
        %v3586 = vmul.f32 %v3170, %v3170
        %v3587 = vmul.f32 %v3171, %v3171
        %v3588 = vmul.f32 %v3172, %v3172
        %v3589 = vmul.f32 %v3173, %v3173
        %v3590 = vmul.f32 %v3174, %v3174
        %v3591 = vmul.f32 %v3175, %v3175
        %v3592 = vmul.f32 %v3176, %v3176
        %v3593 = vmul.f32 %v3177, %v3177
        %v3594 = vmul.f32 %v3178, %v3178
        %v3595 = vmul.f32 %v3179, %v3179
        %v3596 = vmul.f32 %v3180, %v3180
        %v3597 = vmul.f32 %v3181, %v3181
        %v3598 = vmul.f32 %v3182, %v3182
        %v3599 = vmul.f32 %v3183, %v3183
        %v3600 = vmul.f32 %v3184, %v3184
        %v3601 = vmul.f32 %v3185, %v3185
        %v3602 = vmul.f32 %v3186, %v3186
        %v3603 = vmul.f32 %v3187, %v3187
        %v3604 = vmul.f32 %v3188, %v3188
        %v3605 = vmul.f32 %v3189, %v3189
        %v3606 = vmul.f32 %v3190, %v3190
        %v3607 = vmul.f32 %v3191, %v3191
        %v3608 = vmul.f32 %v3192, %v3192
        %v3609 = vmul.f32 %v3193, %v3193
        %v3610 = vmul.f32 %v3194, %v3194
        %v3611 = vmul.f32 %v3195, %v3195
        %v3612 = vmul.f32 %v3196, %v3196
        %v3613 = vmul.f32 %v3197, %v3197
        %v3614 = vmul.f32 %v3198, %v3198
        %v3615 = vmul.f32 %v3199, %v3199
        %v3616 = vsub.f32 0.0, %v3584
        %v3617 = vsub.f32 0.0, %v3585
        %v3618 = vsub.f32 0.0, %v3586
        %v3619 = vsub.f32 0.0, %v3587
        %v3620 = vsub.f32 0.0, %v3588
        %v3621 = vsub.f32 0.0, %v3589
        %v3622 = vsub.f32 0.0, %v3590
        %v3623 = vsub.f32 0.0, %v3591
        %v3624 = vsub.f32 0.0, %v3592
        %v3625 = vsub.f32 0.0, %v3593
        %v3626 = vsub.f32 0.0, %v3594
        %v3627 = vsub.f32 0.0, %v3595
        %v3628 = vsub.f32 0.0, %v3596
        %v3629 = vsub.f32 0.0, %v3597
        %v3630 = vsub.f32 0.0, %v3598
        %v3631 = vsub.f32 0.0, %v3599
        %v3632 = vsub.f32 0.0, %v3600
        %v3633 = vsub.f32 0.0, %v3601
        %v3634 = vsub.f32 0.0, %v3602
        %v3635 = vsub.f32 0.0, %v3603
        %v3636 = vsub.f32 0.0, %v3604
        %v3637 = vsub.f32 0.0, %v3605
        %v3638 = vsub.f32 0.0, %v3606
        %v3639 = vsub.f32 0.0, %v3607
        %v3640 = vsub.f32 0.0, %v3608
        %v3641 = vsub.f32 0.0, %v3609
        %v3642 = vsub.f32 0.0, %v3610
        %v3643 = vsub.f32 0.0, %v3611
        %v3644 = vsub.f32 0.0, %v3612
        %v3645 = vsub.f32 0.0, %v3613
        %v3646 = vsub.f32 0.0, %v3614
        %v3647 = vsub.f32 0.0, %v3615
        %v3648 = vmul.f32 %v3616, 1.442695
        %v3649 = vpow.pop %v3648
        %v3650 = vmul.f32 %v3617, 1.442695
        %v3651 = vpow.pop %v3650
        %v3652 = vmul.f32 %v3618, 1.442695
        %v3653 = vpow.pop %v3652
        %v3654 = vmul.f32 %v3619, 1.442695
        %v3655 = vpow.pop %v3654
        %v3656 = vmul.f32 %v3620, 1.442695
        %v3657 = vpow.pop %v3656
        %v3658 = vmul.f32 %v3621, 1.442695
        %v3659 = vpow.pop %v3658
        %v3660 = vmul.f32 %v3622, 1.442695
        %v3661 = vpow.pop %v3660
        %v3662 = vmul.f32 %v3623, 1.442695
        %v3663 = vpow.pop %v3662
        %v3664 = vmul.f32 %v3624, 1.442695
        %v3665 = vpow.pop %v3664
        %v3666 = vmul.f32 %v3625, 1.442695
        %v3667 = vpow.pop %v3666
        %v3668 = vmul.f32 %v3626, 1.442695
        %v3669 = vpow.pop %v3668
        %v3670 = vmul.f32 %v3627, 1.442695
        %v3671 = vpow.pop %v3670
        %v3672 = vmul.f32 %v3628, 1.442695
        %v3673 = vpow.pop %v3672
        %v3674 = vmul.f32 %v3629, 1.442695
        %v3675 = vpow.pop %v3674
        %v3676 = vmul.f32 %v3630, 1.442695
        %v3677 = vpow.pop %v3676
        %v3678 = vmul.f32 %v3631, 1.442695
        %v3679 = vpow.pop %v3678
        %v3680 = vmul.f32 %v3632, 1.442695
        %v3681 = vpow.pop %v3680
        %v3682 = vmul.f32 %v3633, 1.442695
        %v3683 = vpow.pop %v3682
        %v3684 = vmul.f32 %v3634, 1.442695
        %v3685 = vpow.pop %v3684
        %v3686 = vmul.f32 %v3635, 1.442695
        %v3687 = vpow.pop %v3686
        %v3688 = vmul.f32 %v3636, 1.442695
        %v3689 = vpow.pop %v3688
        %v3690 = vmul.f32 %v3637, 1.442695
        %v3691 = vpow.pop %v3690
        %v3692 = vmul.f32 %v3638, 1.442695
        %v3693 = vpow.pop %v3692
        %v3694 = vmul.f32 %v3639, 1.442695
        %v3695 = vpow.pop %v3694
        %v3696 = vmul.f32 %v3640, 1.442695
        %v3697 = vpow.pop %v3696
        %v3698 = vmul.f32 %v3641, 1.442695
        %v3699 = vpow.pop %v3698
        %v3700 = vmul.f32 %v3642, 1.442695
        %v3701 = vpow.pop %v3700
        %v3702 = vmul.f32 %v3643, 1.442695
        %v3703 = vpow.pop %v3702
        %v3704 = vmul.f32 %v3644, 1.442695
        %v3705 = vpow.pop %v3704
        %v3706 = vmul.f32 %v3645, 1.442695
        %v3707 = vpow.pop %v3706
        %v3708 = vmul.f32 %v3646, 1.442695
        %v3709 = vpow.pop %v3708
        %v3710 = vmul.f32 %v3647, 1.442695
        %v3711 = vpow.pop %v3710
        %v3712 = vmul.f32 %v3552, %v3649
        %v3713 = vmul.f32 %v3553, %v3651
        %v3714 = vmul.f32 %v3554, %v3653
        %v3715 = vmul.f32 %v3555, %v3655
        %v3716 = vmul.f32 %v3556, %v3657
        %v3717 = vmul.f32 %v3557, %v3659
        %v3718 = vmul.f32 %v3558, %v3661
        %v3719 = vmul.f32 %v3559, %v3663
        %v3720 = vmul.f32 %v3560, %v3665
        %v3721 = vmul.f32 %v3561, %v3667
        %v3722 = vmul.f32 %v3562, %v3669
        %v3723 = vmul.f32 %v3563, %v3671
        %v3724 = vmul.f32 %v3564, %v3673
        %v3725 = vmul.f32 %v3565, %v3675
        %v3726 = vmul.f32 %v3566, %v3677
        %v3727 = vmul.f32 %v3567, %v3679
        %v3728 = vmul.f32 %v3568, %v3681
        %v3729 = vmul.f32 %v3569, %v3683
        %v3730 = vmul.f32 %v3570, %v3685
        %v3731 = vmul.f32 %v3571, %v3687
        %v3732 = vmul.f32 %v3572, %v3689
        %v3733 = vmul.f32 %v3573, %v3691
        %v3734 = vmul.f32 %v3574, %v3693
        %v3735 = vmul.f32 %v3575, %v3695
        %v3736 = vmul.f32 %v3576, %v3697
        %v3737 = vmul.f32 %v3577, %v3699
        %v3738 = vmul.f32 %v3578, %v3701
        %v3739 = vmul.f32 %v3579, %v3703
        %v3740 = vmul.f32 %v3580, %v3705
        %v3741 = vmul.f32 %v3581, %v3707
        %v3742 = vmul.f32 %v3582, %v3709
        %v3743 = vmul.f32 %v3583, %v3711
        %v3744 = vsub.f32 1.0, %v3712
        %v3745 = vsub.f32 1.0, %v3713
        %v3746 = vsub.f32 1.0, %v3714
        %v3747 = vsub.f32 1.0, %v3715
        %v3748 = vsub.f32 1.0, %v3716
        %v3749 = vsub.f32 1.0, %v3717
        %v3750 = vsub.f32 1.0, %v3718
        %v3751 = vsub.f32 1.0, %v3719
        %v3752 = vsub.f32 1.0, %v3720
        %v3753 = vsub.f32 1.0, %v3721
        %v3754 = vsub.f32 1.0, %v3722
        %v3755 = vsub.f32 1.0, %v3723
        %v3756 = vsub.f32 1.0, %v3724
        %v3757 = vsub.f32 1.0, %v3725
        %v3758 = vsub.f32 1.0, %v3726
        %v3759 = vsub.f32 1.0, %v3727
        %v3760 = vsub.f32 1.0, %v3728
        %v3761 = vsub.f32 1.0, %v3729
        %v3762 = vsub.f32 1.0, %v3730
        %v3763 = vsub.f32 1.0, %v3731
        %v3764 = vsub.f32 1.0, %v3732
        %v3765 = vsub.f32 1.0, %v3733
        %v3766 = vsub.f32 1.0, %v3734
        %v3767 = vsub.f32 1.0, %v3735
        %v3768 = vsub.f32 1.0, %v3736
        %v3769 = vsub.f32 1.0, %v3737
        %v3770 = vsub.f32 1.0, %v3738
        %v3771 = vsub.f32 1.0, %v3739
        %v3772 = vsub.f32 1.0, %v3740
        %v3773 = vsub.f32 1.0, %v3741
        %v3774 = vsub.f32 1.0, %v3742
        %v3775 = vsub.f32 1.0, %v3743
        %vm3776 = vcmp.lt.f32.partialorder %v3136, 0.0
        %vm3777 = vcmp.lt.f32.partialorder %v3137, 0.0
        %vm3778 = vcmp.lt.f32.partialorder %v3138, 0.0
        %vm3779 = vcmp.lt.f32.partialorder %v3139, 0.0
        %vm3780 = vcmp.lt.f32.partialorder %v3140, 0.0
        %vm3781 = vcmp.lt.f32.partialorder %v3141, 0.0
        %vm3782 = vcmp.lt.f32.partialorder %v3142, 0.0
        %vm3783 = vcmp.lt.f32.partialorder %v3143, 0.0
        %vm3784 = vcmp.lt.f32.partialorder %v3144, 0.0
        %vm3785 = vcmp.lt.f32.partialorder %v3145, 0.0
        %vm3786 = vcmp.lt.f32.partialorder %v3146, 0.0
        %vm3787 = vcmp.lt.f32.partialorder %v3147, 0.0
        %vm3788 = vcmp.lt.f32.partialorder %v3148, 0.0
        %vm3789 = vcmp.lt.f32.partialorder %v3149, 0.0
        %vm3790 = vcmp.lt.f32.partialorder %v3150, 0.0
        %vm3791 = vcmp.lt.f32.partialorder %v3151, 0.0
        %vm3792 = vcmp.lt.f32.partialorder %v3152, 0.0
        %vm3793 = vcmp.lt.f32.partialorder %v3153, 0.0
        %vm3794 = vcmp.lt.f32.partialorder %v3154, 0.0
        %vm3795 = vcmp.lt.f32.partialorder %v3155, 0.0
        %vm3796 = vcmp.lt.f32.partialorder %v3156, 0.0
        %vm3797 = vcmp.lt.f32.partialorder %v3157, 0.0
        %vm3798 = vcmp.lt.f32.partialorder %v3158, 0.0
        %vm3799 = vcmp.lt.f32.partialorder %v3159, 0.0
        %vm3800 = vcmp.lt.f32.partialorder %v3160, 0.0
        %vm3801 = vcmp.lt.f32.partialorder %v3161, 0.0
        %vm3802 = vcmp.lt.f32.partialorder %v3162, 0.0
        %vm3803 = vcmp.lt.f32.partialorder %v3163, 0.0
        %vm3804 = vcmp.lt.f32.partialorder %v3164, 0.0
        %vm3805 = vcmp.lt.f32.partialorder %v3165, 0.0
        %vm3806 = vcmp.lt.f32.partialorder %v3166, 0.0
        %vm3807 = vcmp.lt.f32.partialorder %v3167, 0.0
        %v3808 = vsub.f32 0.0, %v3744
        %v3809 = vsub.f32 0.0, %v3745
        %v3810 = vsub.f32 0.0, %v3746
        %v3811 = vsub.f32 0.0, %v3747
        %v3812 = vsub.f32 0.0, %v3748
        %v3813 = vsub.f32 0.0, %v3749
        %v3814 = vsub.f32 0.0, %v3750
        %v3815 = vsub.f32 0.0, %v3751
        %v3816 = vsub.f32 0.0, %v3752
        %v3817 = vsub.f32 0.0, %v3753
        %v3818 = vsub.f32 0.0, %v3754
        %v3819 = vsub.f32 0.0, %v3755
        %v3820 = vsub.f32 0.0, %v3756
        %v3821 = vsub.f32 0.0, %v3757
        %v3822 = vsub.f32 0.0, %v3758
        %v3823 = vsub.f32 0.0, %v3759
        %v3824 = vsub.f32 0.0, %v3760
        %v3825 = vsub.f32 0.0, %v3761
        %v3826 = vsub.f32 0.0, %v3762
        %v3827 = vsub.f32 0.0, %v3763
        %v3828 = vsub.f32 0.0, %v3764
        %v3829 = vsub.f32 0.0, %v3765
        %v3830 = vsub.f32 0.0, %v3766
        %v3831 = vsub.f32 0.0, %v3767
        %v3832 = vsub.f32 0.0, %v3768
        %v3833 = vsub.f32 0.0, %v3769
        %v3834 = vsub.f32 0.0, %v3770
        %v3835 = vsub.f32 0.0, %v3771
        %v3836 = vsub.f32 0.0, %v3772
        %v3837 = vsub.f32 0.0, %v3773
        %v3838 = vsub.f32 0.0, %v3774
        %v3839 = vsub.f32 0.0, %v3775
        %v3840 = vsel %vm3776, %v3808, %v3744
        %v3841 = vsel %vm3777, %v3809, %v3745
        %v3842 = vsel %vm3778, %v3810, %v3746
        %v3843 = vsel %vm3779, %v3811, %v3747
        %v3844 = vsel %vm3780, %v3812, %v3748
        %v3845 = vsel %vm3781, %v3813, %v3749
        %v3846 = vsel %vm3782, %v3814, %v3750
        %v3847 = vsel %vm3783, %v3815, %v3751
        %v3848 = vsel %vm3784, %v3816, %v3752
        %v3849 = vsel %vm3785, %v3817, %v3753
        %v3850 = vsel %vm3786, %v3818, %v3754
        %v3851 = vsel %vm3787, %v3819, %v3755
        %v3852 = vsel %vm3788, %v3820, %v3756
        %v3853 = vsel %vm3789, %v3821, %v3757
        %v3854 = vsel %vm3790, %v3822, %v3758
        %v3855 = vsel %vm3791, %v3823, %v3759
        %v3856 = vsel %vm3792, %v3824, %v3760
        %v3857 = vsel %vm3793, %v3825, %v3761
        %v3858 = vsel %vm3794, %v3826, %v3762
        %v3859 = vsel %vm3795, %v3827, %v3763
        %v3860 = vsel %vm3796, %v3828, %v3764
        %v3861 = vsel %vm3797, %v3829, %v3765
        %v3862 = vsel %vm3798, %v3830, %v3766
        %v3863 = vsel %vm3799, %v3831, %v3767
        %v3864 = vsel %vm3800, %v3832, %v3768
        %v3865 = vsel %vm3801, %v3833, %v3769
        %v3866 = vsel %vm3802, %v3834, %v3770
        %v3867 = vsel %vm3803, %v3835, %v3771
        %v3868 = vsel %vm3804, %v3836, %v3772
        %v3869 = vsel %vm3805, %v3837, %v3773
        %v3870 = vsel %vm3806, %v3838, %v3774
        %v3871 = vsel %vm3807, %v3839, %v3775
        %v3872 = vmul.f32 %v3010, 0.5
        %v3873 = vmul.f32 %v3013, 0.5
        %v3874 = vmul.f32 %v3018, 0.5
        %v3875 = vmul.f32 %v3021, 0.5
        %v3876 = vmul.f32 %v3026, 0.5
        %v3877 = vmul.f32 %v3029, 0.5
        %v3878 = vmul.f32 %v3034, 0.5
        %v3879 = vmul.f32 %v3037, 0.5
        %v3880 = vmul.f32 %v3042, 0.5
        %v3881 = vmul.f32 %v3045, 0.5
        %v3882 = vmul.f32 %v3050, 0.5
        %v3883 = vmul.f32 %v3053, 0.5
        %v3884 = vmul.f32 %v3058, 0.5
        %v3885 = vmul.f32 %v3061, 0.5
        %v3886 = vmul.f32 %v3066, 0.5
        %v3887 = vmul.f32 %v3069, 0.5
        %v3888 = vmul.f32 %v3074, 0.5
        %v3889 = vmul.f32 %v3077, 0.5
        %v3890 = vmul.f32 %v3082, 0.5
        %v3891 = vmul.f32 %v3085, 0.5
        %v3892 = vmul.f32 %v3090, 0.5
        %v3893 = vmul.f32 %v3093, 0.5
        %v3894 = vmul.f32 %v3098, 0.5
        %v3895 = vmul.f32 %v3101, 0.5
        %v3896 = vmul.f32 %v3106, 0.5
        %v3897 = vmul.f32 %v3109, 0.5
        %v3898 = vmul.f32 %v3114, 0.5
        %v3899 = vmul.f32 %v3117, 0.5
        %v3900 = vmul.f32 %v3122, 0.5
        %v3901 = vmul.f32 %v3125, 0.5
        %v3902 = vmul.f32 %v3130, 0.5
        %v3903 = vmul.f32 %v3133, 0.5
        %v3904 = vadd.f32 %v3840, 1.0
        %v3905 = vadd.f32 %v3841, 1.0
        %v3906 = vadd.f32 %v3842, 1.0
        %v3907 = vadd.f32 %v3843, 1.0
        %v3908 = vadd.f32 %v3844, 1.0
        %v3909 = vadd.f32 %v3845, 1.0
        %v3910 = vadd.f32 %v3846, 1.0
        %v3911 = vadd.f32 %v3847, 1.0
        %v3912 = vadd.f32 %v3848, 1.0
        %v3913 = vadd.f32 %v3849, 1.0
        %v3914 = vadd.f32 %v3850, 1.0
        %v3915 = vadd.f32 %v3851, 1.0
        %v3916 = vadd.f32 %v3852, 1.0
        %v3917 = vadd.f32 %v3853, 1.0
        %v3918 = vadd.f32 %v3854, 1.0
        %v3919 = vadd.f32 %v3855, 1.0
        %v3920 = vadd.f32 %v3856, 1.0
        %v3921 = vadd.f32 %v3857, 1.0
        %v3922 = vadd.f32 %v3858, 1.0
        %v3923 = vadd.f32 %v3859, 1.0
        %v3924 = vadd.f32 %v3860, 1.0
        %v3925 = vadd.f32 %v3861, 1.0
        %v3926 = vadd.f32 %v3862, 1.0
        %v3927 = vadd.f32 %v3863, 1.0
        %v3928 = vadd.f32 %v3864, 1.0
        %v3929 = vadd.f32 %v3865, 1.0
        %v3930 = vadd.f32 %v3866, 1.0
        %v3931 = vadd.f32 %v3867, 1.0
        %v3932 = vadd.f32 %v3868, 1.0
        %v3933 = vadd.f32 %v3869, 1.0
        %v3934 = vadd.f32 %v3870, 1.0
        %v3935 = vadd.f32 %v3871, 1.0
        %v3936 = vmul.f32 %v3872, %v3904
        %v3937 = vmul.f32 %v3873, %v3905
        %v3938 = vmul.f32 %v3874, %v3906
        %v3939 = vmul.f32 %v3875, %v3907
        %v3940 = vmul.f32 %v3876, %v3908
        %v3941 = vmul.f32 %v3877, %v3909
        %v3942 = vmul.f32 %v3878, %v3910
        %v3943 = vmul.f32 %v3879, %v3911
        %v3944 = vmul.f32 %v3880, %v3912
        %v3945 = vmul.f32 %v3881, %v3913
        %v3946 = vmul.f32 %v3882, %v3914
        %v3947 = vmul.f32 %v3883, %v3915
        %v3948 = vmul.f32 %v3884, %v3916
        %v3949 = vmul.f32 %v3885, %v3917
        %v3950 = vmul.f32 %v3886, %v3918
        %v3951 = vmul.f32 %v3887, %v3919
        %v3952 = vmul.f32 %v3888, %v3920
        %v3953 = vmul.f32 %v3889, %v3921
        %v3954 = vmul.f32 %v3890, %v3922
        %v3955 = vmul.f32 %v3891, %v3923
        %v3956 = vmul.f32 %v3892, %v3924
        %v3957 = vmul.f32 %v3893, %v3925
        %v3958 = vmul.f32 %v3894, %v3926
        %v3959 = vmul.f32 %v3895, %v3927
        %v3960 = vmul.f32 %v3896, %v3928
        %v3961 = vmul.f32 %v3897, %v3929
        %v3962 = vmul.f32 %v3898, %v3930
        %v3963 = vmul.f32 %v3899, %v3931
        %v3964 = vmul.f32 %v3900, %v3932
        %v3965 = vmul.f32 %v3901, %v3933
        %v3966 = vmul.f32 %v3902, %v3934
        %v3967 = vmul.f32 %v3903, %v3935
        %v3968 = vld [vmem:[%s6] sm:$0xff]
        %v3969 = vld [vmem:[%s6 + $0x8] sm:$0xff]
        %v3970 = vld [vmem:[%s6 + $0x10] sm:$0xff]
        %v3971 = vld [vmem:[%s6 + $0x18] sm:$0xff]
        %v3972 = vld [vmem:[%s6 + $0x20] sm:$0xff]
        %v3973 = vld [vmem:[%s6 + $0x28] sm:$0xff]
        %v3974 = vld [vmem:[%s6 + $0x30] sm:$0xff]
        %v3975 = vld [vmem:[%s6 + $0x38] sm:$0xff]
        %v3976 = vld [vmem:[%s6 + $0x40] sm:$0xff]
        %v3977 = vld [vmem:[%s6 + $0x48] sm:$0xff]
        %v3978 = vld [vmem:[%s6 + $0x50] sm:$0xff]
        %v3979 = vld [vmem:[%s6 + $0x58] sm:$0xff]
        %v3980 = vld [vmem:[%s6 + $0x60] sm:$0xff]
        %v3981 = vld [vmem:[%s6 + $0x68] sm:$0xff]
        %v3982 = vld [vmem:[%s6 + $0x70] sm:$0xff]
        %v3983 = vld [vmem:[%s6 + $0x78] sm:$0xff]
        %v3984 = vld [vmem:[%s6 + $0x80] sm:$0xff]
        %v3985 = vld [vmem:[%s6 + $0x88] sm:$0xff]
        %v3986 = vld [vmem:[%s6 + $0x90] sm:$0xff]
        %v3987 = vld [vmem:[%s6 + $0x98] sm:$0xff]
        %v3988 = vld [vmem:[%s6 + $0xa0] sm:$0xff]
        %v3989 = vld [vmem:[%s6 + $0xa8] sm:$0xff]
        %v3990 = vld [vmem:[%s6 + $0xb0] sm:$0xff]
        %v3991 = vld [vmem:[%s6 + $0xb8] sm:$0xff]
        %v3992 = vld [vmem:[%s6 + $0xc0] sm:$0xff]
        %v3993 = vld [vmem:[%s6 + $0xc8] sm:$0xff]
        %v3994 = vld [vmem:[%s6 + $0xd0] sm:$0xff]
        %v3995 = vld [vmem:[%s6 + $0xd8] sm:$0xff]
        %v3996 = vld [vmem:[%s6 + $0xe0] sm:$0xff]
        %v3997 = vld [vmem:[%s6 + $0xe8] sm:$0xff]
        %v3998 = vld [vmem:[%s6 + $0xf0] sm:$0xff]
        %v3999 = vld [vmem:[%s6 + $0xf8] sm:$0xff]
        %4001 = vset.pattern.permute.xlu0 0
        %4002 = vperm.xlu0 %4001, %v3968
        %v4003 = vpop.permute.xlu0 %4002
        %4006 = vset.pattern.permute.xlu0 0
        %4007 = vperm.xlu0 %4006, %v3969
        %v4008 = vpop.permute.xlu0 %4007
        %4011 = vset.pattern.permute.xlu0 0
        %4012 = vperm.xlu0 %4011, %v3970
        %v4013 = vpop.permute.xlu0 %4012
        %4016 = vset.pattern.permute.xlu0 0
        %4017 = vperm.xlu0 %4016, %v3971
        %v4018 = vpop.permute.xlu0 %4017
        %4021 = vset.pattern.permute.xlu0 0
        %4022 = vperm.xlu0 %4021, %v3972
        %v4023 = vpop.permute.xlu0 %4022
        %4026 = vset.pattern.permute.xlu0 0
        %4027 = vperm.xlu0 %4026, %v3973
        %v4028 = vpop.permute.xlu0 %4027
        %4031 = vset.pattern.permute.xlu0 0
        %4032 = vperm.xlu0 %4031, %v3974
        %v4033 = vpop.permute.xlu0 %4032
        %4036 = vset.pattern.permute.xlu0 0
        %4037 = vperm.xlu0 %4036, %v3975
        %v4038 = vpop.permute.xlu0 %4037
        %4041 = vset.pattern.permute.xlu0 0
        %4042 = vperm.xlu0 %4041, %v3976
        %v4043 = vpop.permute.xlu0 %4042
        %4046 = vset.pattern.permute.xlu0 0
        %4047 = vperm.xlu0 %4046, %v3977
        %v4048 = vpop.permute.xlu0 %4047
        %4051 = vset.pattern.permute.xlu0 0
        %4052 = vperm.xlu0 %4051, %v3978
        %v4053 = vpop.permute.xlu0 %4052
        %4056 = vset.pattern.permute.xlu0 0
        %4057 = vperm.xlu0 %4056, %v3979
        %v4058 = vpop.permute.xlu0 %4057
        %4061 = vset.pattern.permute.xlu0 0
        %4062 = vperm.xlu0 %4061, %v3980
        %v4063 = vpop.permute.xlu0 %4062
        %4066 = vset.pattern.permute.xlu0 0
        %4067 = vperm.xlu0 %4066, %v3981
        %v4068 = vpop.permute.xlu0 %4067
        %4071 = vset.pattern.permute.xlu0 0
        %4072 = vperm.xlu0 %4071, %v3982
        %v4073 = vpop.permute.xlu0 %4072
        %4076 = vset.pattern.permute.xlu0 0
        %4077 = vperm.xlu0 %4076, %v3983
        %v4078 = vpop.permute.xlu0 %4077
        %4081 = vset.pattern.permute.xlu0 0
        %4082 = vperm.xlu0 %4081, %v3984
        %v4083 = vpop.permute.xlu0 %4082
        %4086 = vset.pattern.permute.xlu0 0
        %4087 = vperm.xlu0 %4086, %v3985
        %v4088 = vpop.permute.xlu0 %4087
        %4091 = vset.pattern.permute.xlu0 0
        %4092 = vperm.xlu0 %4091, %v3986
        %v4093 = vpop.permute.xlu0 %4092
        %4096 = vset.pattern.permute.xlu0 0
        %4097 = vperm.xlu0 %4096, %v3987
        %v4098 = vpop.permute.xlu0 %4097
        %4101 = vset.pattern.permute.xlu0 0
        %4102 = vperm.xlu0 %4101, %v3988
        %v4103 = vpop.permute.xlu0 %4102
        %4106 = vset.pattern.permute.xlu0 0
        %4107 = vperm.xlu0 %4106, %v3989
        %v4108 = vpop.permute.xlu0 %4107
        %4111 = vset.pattern.permute.xlu0 0
        %4112 = vperm.xlu0 %4111, %v3990
        %v4113 = vpop.permute.xlu0 %4112
        %4116 = vset.pattern.permute.xlu0 0
        %4117 = vperm.xlu0 %4116, %v3991
        %v4118 = vpop.permute.xlu0 %4117
        %4121 = vset.pattern.permute.xlu0 0
        %4122 = vperm.xlu0 %4121, %v3992
        %v4123 = vpop.permute.xlu0 %4122
        %4126 = vset.pattern.permute.xlu0 0
        %4127 = vperm.xlu0 %4126, %v3993
        %v4128 = vpop.permute.xlu0 %4127
        %4131 = vset.pattern.permute.xlu0 0
        %4132 = vperm.xlu0 %4131, %v3994
        %v4133 = vpop.permute.xlu0 %4132
        %4136 = vset.pattern.permute.xlu0 0
        %4137 = vperm.xlu0 %4136, %v3995
        %v4138 = vpop.permute.xlu0 %4137
        %4141 = vset.pattern.permute.xlu0 0
        %4142 = vperm.xlu0 %4141, %v3996
        %v4143 = vpop.permute.xlu0 %4142
        %4146 = vset.pattern.permute.xlu0 0
        %4147 = vperm.xlu0 %4146, %v3997
        %v4148 = vpop.permute.xlu0 %4147
        %4151 = vset.pattern.permute.xlu0 0
        %4152 = vperm.xlu0 %4151, %v3998
        %v4153 = vpop.permute.xlu0 %4152
        %4156 = vset.pattern.permute.xlu0 0
        %4157 = vperm.xlu0 %4156, %v3999
        %v4158 = vpop.permute.xlu0 %4157
        %v4160 = vmul.f32 %v3936, %v4003
        %v4161 = vmul.f32 %v3937, %v4008
        %v4162 = vmul.f32 %v3938, %v4013
        %v4163 = vmul.f32 %v3939, %v4018
        %v4164 = vmul.f32 %v3940, %v4023
        %v4165 = vmul.f32 %v3941, %v4028
        %v4166 = vmul.f32 %v3942, %v4033
        %v4167 = vmul.f32 %v3943, %v4038
        %v4168 = vmul.f32 %v3944, %v4043
        %v4169 = vmul.f32 %v3945, %v4048
        %v4170 = vmul.f32 %v3946, %v4053
        %v4171 = vmul.f32 %v3947, %v4058
        %v4172 = vmul.f32 %v3948, %v4063
        %v4173 = vmul.f32 %v3949, %v4068
        %v4174 = vmul.f32 %v3950, %v4073
        %v4175 = vmul.f32 %v3951, %v4078
        %v4176 = vmul.f32 %v3952, %v4083
        %v4177 = vmul.f32 %v3953, %v4088
        %v4178 = vmul.f32 %v3954, %v4093
        %v4179 = vmul.f32 %v3955, %v4098
        %v4180 = vmul.f32 %v3956, %v4103
        %v4181 = vmul.f32 %v3957, %v4108
        %v4182 = vmul.f32 %v3958, %v4113
        %v4183 = vmul.f32 %v3959, %v4118
        %v4184 = vmul.f32 %v3960, %v4123
        %v4185 = vmul.f32 %v3961, %v4128
        %v4186 = vmul.f32 %v3962, %v4133
        %v4187 = vmul.f32 %v3963, %v4138
        %v4188 = vmul.f32 %v3964, %v4143
        %v4189 = vmul.f32 %v3965, %v4148
        %v4190 = vmul.f32 %v3966, %v4153
        %v4191 = vmul.f32 %v3967, %v4158
        %v4192 = vadd.f32 %v4160, %v4161
        %v4193 = vadd.f32 %v4192, %v4162
        %v4194 = vadd.f32 %v4193, %v4163
        %v4195 = vadd.f32 %v4194, %v4164
        %v4196 = vadd.f32 %v4195, %v4165
        %v4197 = vadd.f32 %v4196, %v4166
        %v4198 = vadd.f32 %v4197, %v4167
        %v4199 = vadd.f32 %v4198, %v4168
        %v4200 = vadd.f32 %v4199, %v4169
        %v4201 = vadd.f32 %v4200, %v4170
        %v4202 = vadd.f32 %v4201, %v4171
        %v4203 = vadd.f32 %v4202, %v4172
        %v4204 = vadd.f32 %v4203, %v4173
        %v4205 = vadd.f32 %v4204, %v4174
        %v4206 = vadd.f32 %v4205, %v4175
        %v4207 = vadd.f32 %v4206, %v4176
        %v4208 = vadd.f32 %v4207, %v4177
        %v4209 = vadd.f32 %v4208, %v4178
        %v4210 = vadd.f32 %v4209, %v4179
        %v4211 = vadd.f32 %v4210, %v4180
        %v4212 = vadd.f32 %v4211, %v4181
        %v4213 = vadd.f32 %v4212, %v4182
        %v4214 = vadd.f32 %v4213, %v4183
        %v4215 = vadd.f32 %v4214, %v4184
        %v4216 = vadd.f32 %v4215, %v4185
        %v4217 = vadd.f32 %v4216, %v4186
        %v4218 = vadd.f32 %v4217, %v4187
        %v4219 = vadd.f32 %v4218, %v4188
        %v4220 = vadd.f32 %v4219, %v4189
        %v4221 = vadd.f32 %v4220, %v4190
        %v4222 = vadd.f32 %v4221, %v4191
        %v4223 = vrot.slane %v4222, 4
        %v4224 = vadd.f32 %v4222, %v4223
        %v4225 = vrot.slane %v4224, 2
        %v4226 = vadd.f32 %v4224, %v4225
        %v4227 = vrot.slane %v4226, 1
        %v4228 = vadd.f32 %v4226, %v4227
        %v4229 = vld [vmem:[#allocation2] sm:$0x1]
        %4231 = vset.pattern.permute.xlu0 0
        %4232 = vperm.xlu0 %4231, %v4229
        %v4233 = vpop.permute.xlu0 %4232
        %v4235 = vlaneseq
        %v4236 = vshrl.u32 %v4235, 7
        %v4237 = vsub.s32 0, %v4236
        %v4238 = vrot.slane %v4233, %v4237
        %v4239 = vadd.f32 %v4228, %v4238
        %v4240 = vmul.f32 %v4239, 0.70710677
        %v4241 = vand.u32 2147483647, %v4240
        %v4242 = vmul.f32 %v4241, 0.3275911
        %v4243 = vadd.f32 %v4242, 1.0
        %v4244 = vrcp.pop %v4243
        %v4245 = vmul.f32 %v4244, 1.0614054
        %v4246 = vadd.f32 %v4245, -1.4531521
        %v4247 = vmul.f32 %v4246, %v4244
        %v4248 = vadd.f32 %v4247, 1.4214138
        %v4249 = vmul.f32 %v4248, %v4244
        %v4250 = vadd.f32 %v4249, -0.28449672
        %v4251 = vmul.f32 %v4250, %v4244
        %v4252 = vadd.f32 %v4251, 0.2548296
        %v4253 = vmul.f32 %v4252, %v4244
        %v4254 = vmul.f32 %v4241, %v4241
        %v4255 = vsub.f32 0.0, %v4254
        %v4256 = vmul.f32 %v4255, 1.442695
        %v4257 = vpow.pop %v4256
        %v4258 = vmul.f32 %v4253, %v4257
        %v4259 = vsub.f32 1.0, %v4258
        %vm4260 = vcmp.lt.f32.partialorder %v4240, 0.0
        %v4261 = vsub.f32 0.0, %v4259
        %v4262 = vsel %vm4260, %v4261, %v4259
        %v4263 = vmul.f32 %v4239, 0.5
        %v4264 = vadd.f32 %v4262, 1.0
        %v4265 = vmul.f32 %v4263, %v4264
        %v4266 = vld [vmem:[#allocation9] sm:$0xff]
        %v4267 = vld [vmem:[#allocation9 + $0x8] sm:$0xff]
        %v4268 = vld [vmem:[#allocation9 + $0x10] sm:$0xff]
        %v4269 = vld [vmem:[#allocation9 + $0x18] sm:$0xff]
        %v4270 = vld [vmem:[#allocation9 + $0x20] sm:$0xff]
        %v4271 = vld [vmem:[#allocation9 + $0x28] sm:$0xff]
        %v4272 = vld [vmem:[#allocation9 + $0x30] sm:$0xff]
        %v4273 = vld [vmem:[#allocation9 + $0x38] sm:$0xff]
        %v4274 = vld [vmem:[#allocation9 + $0x40] sm:$0xff]
        %v4275 = vld [vmem:[#allocation9 + $0x48] sm:$0xff]
        %v4276 = vld [vmem:[#allocation9 + $0x50] sm:$0xff]
        %v4277 = vld [vmem:[#allocation9 + $0x58] sm:$0xff]
        %v4278 = vld [vmem:[#allocation9 + $0x60] sm:$0xff]
        %v4279 = vld [vmem:[#allocation9 + $0x68] sm:$0xff]
        %v4280 = vld [vmem:[#allocation9 + $0x70] sm:$0xff]
        %v4281 = vld [vmem:[#allocation9 + $0x78] sm:$0xff]
        %v4282 = vld [vmem:[#allocation9 + $0x80] sm:$0xff]
        %v4283 = vld [vmem:[#allocation9 + $0x88] sm:$0xff]
        %v4284 = vld [vmem:[#allocation9 + $0x90] sm:$0xff]
        %v4285 = vld [vmem:[#allocation9 + $0x98] sm:$0xff]
        %v4286 = vld [vmem:[#allocation9 + $0xa0] sm:$0xff]
        %v4287 = vld [vmem:[#allocation9 + $0xa8] sm:$0xff]
        %v4288 = vld [vmem:[#allocation9 + $0xb0] sm:$0xff]
        %v4289 = vld [vmem:[#allocation9 + $0xb8] sm:$0xff]
        %v4290 = vld [vmem:[#allocation9 + $0xc0] sm:$0xff]
        %v4291 = vld [vmem:[#allocation9 + $0xc8] sm:$0xff]
        %v4292 = vld [vmem:[#allocation9 + $0xd0] sm:$0xff]
        %v4293 = vld [vmem:[#allocation9 + $0xd8] sm:$0xff]
        %v4294 = vld [vmem:[#allocation9 + $0xe0] sm:$0xff]
        %v4295 = vld [vmem:[#allocation9 + $0xe8] sm:$0xff]
        %v4296 = vld [vmem:[#allocation9 + $0xf0] sm:$0xff]
        %v4297 = vld [vmem:[#allocation9 + $0xf8] sm:$0xff]
        %v4298 = vld [vmem:[#allocation11] sm:$0x3]
        %v4300 = vlaneseq
        %v4301 = vshrl.u32 %v4300, 7
        %v4302 = vsub.s32 0, %v4301
        %v4303 = vrot.slane %v4298, %v4302
        %v4304 = vlaneseq
        %v4305 = vshrl.u32 %v4304, 7
        %v4306 = vsub.s32 1, %v4305
        %v4307 = vrot.slane %v4298, %v4306
        %4310 = vmatprep.subr.mxu0 %v4267
        %4311 = vmatpush1.msra.mxu0 %v4266
        %4312 = vmatprep.subr.mxu0 %v4269
        %4313 = vmatpush1.msra.mxu0 %v4268
        %4314 = vmatprep.subr.mxu0 %v4271
        %4315 = vmatpush1.msra.mxu0 %v4270
        %4316 = vmatprep.subr.mxu0 %v4273
        %4317 = vmatpush1.msra.mxu0 %v4272
        %4318 = vmatprep.subr.mxu0 %v4275
        %4319 = vmatpush1.msra.mxu0 %v4274
        %4320 = vmatprep.subr.mxu0 %v4277
        %4321 = vmatpush1.msra.mxu0 %v4276
        %4322 = vmatprep.subr.mxu0 %v4279
        %4323 = vmatpush1.msra.mxu0 %v4278
        %4324 = vmatprep.subr.mxu0 %v4281
        %4325 = vmatpush1.msra.mxu0 %v4280
        %4326 = vmatprep.subr.mxu0 %v4283
        %4327 = vmatpush1.msra.mxu0 %v4282
        %4328 = vmatprep.subr.mxu0 %v4285
        %4329 = vmatpush1.msra.mxu0 %v4284
        %4330 = vmatprep.subr.mxu0 %v4287
        %4331 = vmatpush1.msra.mxu0 %v4286
        %4332 = vmatprep.subr.mxu0 %v4289
        %4333 = vmatpush1.msra.mxu0 %v4288
        %4334 = vmatprep.subr.mxu0 %v4291
        %4335 = vmatpush1.msra.mxu0 %v4290
        %4336 = vmatprep.subr.mxu0 %v4293
        %4337 = vmatpush1.msra.mxu0 %v4292
        %4338 = vmatprep.subr.mxu0 %v4295
        %4339 = vmatpush1.msra.mxu0 %v4294
        %4340 = vmatprep.subr.mxu0 %v4297
        %4341 = vmatpush1.msra.mxu0 %v4296
        %4342 = vmatprep.subr.mxu0 0.0
        %4343 = vmatpush1.msra.mxu0 0.0
        %4344 = vmatprep.subr.mxu0 0.0
        %4345 = vmatpush1.msra.mxu0 0.0
        %4346 = vmatprep.subr.mxu0 0.0
        %4347 = vmatpush1.msra.mxu0 0.0
        %4348 = vmatprep.subr.mxu0 0.0
        %4349 = vmatpush1.msra.mxu0 0.0
        %4350 = vmatprep.subr.mxu0 0.0
        %4351 = vmatpush1.msra.mxu0 0.0
        %4352 = vmatprep.subr.mxu0 0.0
        %4353 = vmatpush1.msra.mxu0 0.0
        %4354 = vmatprep.subr.mxu0 0.0
        %4355 = vmatpush1.msra.mxu0 0.0
        %4356 = vmatprep.subr.mxu0 0.0
        %4357 = vmatpush1.msra.mxu0 0.0
        %4358 = vmatprep.subr.mxu0 0.0
        %4359 = vmatpush1.msra.mxu0 0.0
        %4360 = vmatprep.subr.mxu0 0.0
        %4361 = vmatpush1.msra.mxu0 0.0
        %4362 = vmatprep.subr.mxu0 0.0
        %4363 = vmatpush1.msra.mxu0 0.0
        %4364 = vmatprep.subr.mxu0 0.0
        %4365 = vmatpush1.msra.mxu0 0.0
        %4366 = vmatprep.subr.mxu0 0.0
        %4367 = vmatpush1.msra.mxu0 0.0
        %4368 = vmatprep.subr.mxu0 0.0
        %4369 = vmatpush1.msra.mxu0 0.0
        %4370 = vmatprep.subr.mxu0 0.0
        %4371 = vmatpush1.msra.mxu0 0.0
        %4372 = vmatprep.subr.mxu0 0.0
        %4373 = vmatpush1.msra.mxu0 0.0
        %4374 = vmatprep.mubr.f32.mxu0 0.0
        %4375 = vmatmul.mubr.f32.gmra.mrb[0].mxu0 %v4265
        %v4376 = vpop.f32.mrb[0].mxu0
        %v4377 = vadd.f32 %v4303, %v4376
        %v4378 = vpop.f32.mrb[0].mxu0
        %v4379 = vadd.f32 %v4307, %v4378
        %4380 = vdwg.mxu0
        %v4381 = vmul.f32 %v4377, 0.70710677
        %v4382 = vmul.f32 %v4379, 0.70710677
        %v4383 = vand.u32 2147483647, %v4381
        %v4384 = vand.u32 2147483647, %v4382
        %v4385 = vmul.f32 %v4383, 0.3275911
        %v4386 = vmul.f32 %v4384, 0.3275911
        %v4387 = vadd.f32 %v4385, 1.0
        %v4388 = vadd.f32 %v4386, 1.0
        %v4389 = vrcp.pop %v4387
        %v4390 = vrcp.pop %v4388
        %v4391 = vmul.f32 %v4389, 1.0614054
        %v4392 = vmul.f32 %v4390, 1.0614054
        %v4393 = vadd.f32 %v4391, -1.4531521
        %v4394 = vadd.f32 %v4392, -1.4531521
        %v4395 = vmul.f32 %v4393, %v4389
        %v4396 = vmul.f32 %v4394, %v4390
        %v4397 = vadd.f32 %v4395, 1.4214138
        %v4398 = vadd.f32 %v4396, 1.4214138
        %v4399 = vmul.f32 %v4397, %v4389
        %v4400 = vmul.f32 %v4398, %v4390
        %v4401 = vadd.f32 %v4399, -0.28449672
        %v4402 = vadd.f32 %v4400, -0.28449672
        %v4403 = vmul.f32 %v4401, %v4389
        %v4404 = vmul.f32 %v4402, %v4390
        %v4405 = vadd.f32 %v4403, 0.2548296
        %v4406 = vadd.f32 %v4404, 0.2548296
        %v4407 = vmul.f32 %v4405, %v4389
        %v4408 = vmul.f32 %v4406, %v4390
        %v4409 = vmul.f32 %v4383, %v4383
        %v4410 = vmul.f32 %v4384, %v4384
        %v4411 = vsub.f32 0.0, %v4409
        %v4412 = vsub.f32 0.0, %v4410
        %v4413 = vmul.f32 %v4411, 1.442695
        %v4414 = vpow.pop %v4413
        %v4415 = vmul.f32 %v4412, 1.442695
        %v4416 = vpow.pop %v4415
        %v4417 = vmul.f32 %v4407, %v4414
        %v4418 = vmul.f32 %v4408, %v4416
        %v4419 = vsub.f32 1.0, %v4417
        %v4420 = vsub.f32 1.0, %v4418
        %vm4421 = vcmp.lt.f32.partialorder %v4381, 0.0
        %vm4422 = vcmp.lt.f32.partialorder %v4382, 0.0
        %v4423 = vsub.f32 0.0, %v4419
        %v4424 = vsub.f32 0.0, %v4420
        %v4425 = vsel %vm4421, %v4423, %v4419
        %v4426 = vsel %vm4422, %v4424, %v4420
        %v4427 = vmul.f32 %v4377, 0.5
        %v4428 = vmul.f32 %v4379, 0.5
        %v4429 = vadd.f32 %v4425, 1.0
        %v4430 = vadd.f32 %v4426, 1.0
        %v4431 = vmul.f32 %v4427, %v4429
        %v4432 = vmul.f32 %v4428, %v4430
        %v4433 = vld [vmem:[%s10] sm:$0xff]
        %v4434 = vld [vmem:[%s10 + $0x8] sm:$0xff]
        %v4435 = vld [vmem:[%s10 + $0x10] sm:$0xff]
        %v4436 = vld [vmem:[%s10 + $0x18] sm:$0xff]
        %v4437 = vld [vmem:[%s10 + $0x20] sm:$0xff]
        %v4438 = vld [vmem:[%s10 + $0x28] sm:$0xff]
        %v4439 = vld [vmem:[%s10 + $0x30] sm:$0xff]
        %v4440 = vld [vmem:[%s10 + $0x38] sm:$0xff]
        %v4441 = vld [vmem:[%s10 + $0x40] sm:$0xff]
        %v4442 = vld [vmem:[%s10 + $0x48] sm:$0xff]
        %v4443 = vld [vmem:[%s10 + $0x50] sm:$0xff]
        %v4444 = vld [vmem:[%s10 + $0x58] sm:$0xff]
        %v4445 = vld [vmem:[%s10 + $0x60] sm:$0xff]
        %v4446 = vld [vmem:[%s10 + $0x68] sm:$0xff]
        %v4447 = vld [vmem:[%s10 + $0x70] sm:$0xff]
        %v4448 = vld [vmem:[%s10 + $0x78] sm:$0xff]
        %v4449 = vld [vmem:[%s10 + $0x80] sm:$0xff]
        %v4450 = vld [vmem:[%s10 + $0x88] sm:$0xff]
        %v4451 = vld [vmem:[%s10 + $0x90] sm:$0xff]
        %v4452 = vld [vmem:[%s10 + $0x98] sm:$0xff]
        %v4453 = vld [vmem:[%s10 + $0xa0] sm:$0xff]
        %v4454 = vld [vmem:[%s10 + $0xa8] sm:$0xff]
        %v4455 = vld [vmem:[%s10 + $0xb0] sm:$0xff]
        %v4456 = vld [vmem:[%s10 + $0xb8] sm:$0xff]
        %v4457 = vld [vmem:[%s10 + $0xc0] sm:$0xff]
        %v4458 = vld [vmem:[%s10 + $0xc8] sm:$0xff]
        %v4459 = vld [vmem:[%s10 + $0xd0] sm:$0xff]
        %v4460 = vld [vmem:[%s10 + $0xd8] sm:$0xff]
        %v4461 = vld [vmem:[%s10 + $0xe0] sm:$0xff]
        %v4462 = vld [vmem:[%s10 + $0xe8] sm:$0xff]
        %v4463 = vld [vmem:[%s10 + $0xf0] sm:$0xff]
        %v4464 = vld [vmem:[%s10 + $0xf8] sm:$0xff]
        %v4465 = vld [vmem:[#allocation12] sm:$0x1]
        %4466 = vmatprep.subr.mxu0 0.0
        %4467 = vmatpush1.msra.mxu0 %v4433
        %4468 = vmatprep.subr.mxu0 0.0
        %4469 = vmatpush1.msra.mxu0 %v4434
        %4470 = vmatprep.subr.mxu0 0.0
        %4471 = vmatpush1.msra.mxu0 %v4435
        %4472 = vmatprep.subr.mxu0 0.0
        %4473 = vmatpush1.msra.mxu0 %v4436
        %4474 = vmatprep.subr.mxu0 0.0
        %4475 = vmatpush1.msra.mxu0 %v4437
        %4476 = vmatprep.subr.mxu0 0.0
        %4477 = vmatpush1.msra.mxu0 %v4438
        %4478 = vmatprep.subr.mxu0 0.0
        %4479 = vmatpush1.msra.mxu0 %v4439
        %4480 = vmatprep.subr.mxu0 0.0
        %4481 = vmatpush1.msra.mxu0 %v4440
        %4482 = vmatprep.subr.mxu0 0.0
        %4483 = vmatpush1.msra.mxu0 %v4441
        %4484 = vmatprep.subr.mxu0 0.0
        %4485 = vmatpush1.msra.mxu0 %v4442
        %4486 = vmatprep.subr.mxu0 0.0
        %4487 = vmatpush1.msra.mxu0 %v4443
        %4488 = vmatprep.subr.mxu0 0.0
        %4489 = vmatpush1.msra.mxu0 %v4444
        %4490 = vmatprep.subr.mxu0 0.0
        %4491 = vmatpush1.msra.mxu0 %v4445
        %4492 = vmatprep.subr.mxu0 0.0
        %4493 = vmatpush1.msra.mxu0 %v4446
        %4494 = vmatprep.subr.mxu0 0.0
        %4495 = vmatpush1.msra.mxu0 %v4447
        %4496 = vmatprep.subr.mxu0 0.0
        %4497 = vmatpush1.msra.mxu0 %v4448
        %4498 = vmatprep.subr.mxu0 0.0
        %4499 = vmatpush1.msra.mxu0 %v4449
        %4500 = vmatprep.subr.mxu0 0.0
        %4501 = vmatpush1.msra.mxu0 %v4450
        %4502 = vmatprep.subr.mxu0 0.0
        %4503 = vmatpush1.msra.mxu0 %v4451
        %4504 = vmatprep.subr.mxu0 0.0
        %4505 = vmatpush1.msra.mxu0 %v4452
        %4506 = vmatprep.subr.mxu0 0.0
        %4507 = vmatpush1.msra.mxu0 %v4453
        %4508 = vmatprep.subr.mxu0 0.0
        %4509 = vmatpush1.msra.mxu0 %v4454
        %4510 = vmatprep.subr.mxu0 0.0
        %4511 = vmatpush1.msra.mxu0 %v4455
        %4512 = vmatprep.subr.mxu0 0.0
        %4513 = vmatpush1.msra.mxu0 %v4456
        %4514 = vmatprep.subr.mxu0 0.0
        %4515 = vmatpush1.msra.mxu0 %v4457
        %4516 = vmatprep.subr.mxu0 0.0
        %4517 = vmatpush1.msra.mxu0 %v4458
        %4518 = vmatprep.subr.mxu0 0.0
        %4519 = vmatpush1.msra.mxu0 %v4459
        %4520 = vmatprep.subr.mxu0 0.0
        %4521 = vmatpush1.msra.mxu0 %v4460
        %4522 = vmatprep.subr.mxu0 0.0
        %4523 = vmatpush1.msra.mxu0 %v4461
        %4524 = vmatprep.subr.mxu0 0.0
        %4525 = vmatpush1.msra.mxu0 %v4462
        %4526 = vmatprep.subr.mxu0 0.0
        %4527 = vmatpush1.msra.mxu0 %v4463
        %4528 = vmatprep.subr.mxu0 0.0
        %4529 = vmatpush1.msra.mxu0 %v4464
        %4530 = vmatprep.mubr.f32.mxu0 %v4432
        %4531 = vmatmul.mubr.f32.gmra.mrb[0].mxu0 %v4431
        %v4532 = vpop.f32.mrb[0].mxu0
        %v4533 = vadd.f32 %v4465, %v4532
        %v4534 = vpop.f32.mrb[0].mxu0
        %4535 = vdwg.mxu0
        %s4536 = smul.u32 %s34, 8
        %s4537 = scalar_lea.vmem %s1, %s4536
        %v4538 = vld [vmem:[%s4537] sm:$0xff]
        %v4539 = vsub.f32 %v4533, %v4538
        %4541 = vrot.lane.b32.xlu0 %v4533, 2
        %v4542 = vpop.permute.xlu0 %4541
        %v4544 = vsub.f32 %v4533, %v4542
        %4546 = vrot.lane.b32.xlu0 %v4538, 1
        %v4547 = vpop.permute.xlu0 %4546
        %v4549 = vsub.f32 %v4544, %v4547
        %v4550 = vmul.f32 %v4539, %v4539
        %v4551 = vadd.f32 %v4550, 0.0
        %s4552 = vtos %v4551
        %4554 = vrot.lane.b32.xlu0 %v4551, 126
        %v4555 = vpop.permute.xlu0 %4554
        %s4557 = vtos %v4555
        %v4558 = vmul.f32 %v4549, %v4549
        %v4559 = vadd.f32 %v4558, 0.0
        %4561 = vrot.lane.b32.xlu0 %v4559, 126
        %v4562 = vpop.permute.xlu0 %4561
        %s4564 = vtos %v4562
        %v4565 = vand.u32 2147483647, %v4539
        %v4566 = vadd.f32 %v4565, 0.0
        %s4567 = vtos %v4566
        %4569 = vrot.lane.b32.xlu0 %v4566, 126
        %v4570 = vpop.permute.xlu0 %4569
        %s4572 = vtos %v4570
        %v4573 = vlaneseq
        %v4574 = vshrl.u32 %v4573, 7
        %vm4575 = vcmp.eq.s32.totalorder %v4574, 0
        %v4576 = vstv %s4552
        %v4577 = vsel %vm4575, %v4576, 0.0
        %vm4578 = vcmp.eq.s32.totalorder %v4574, 1
        %v4579 = vstv %s4557
        %v4580 = vsel %vm4578, %v4579, 0.0
        %v4581 = vadd.f32 %v4577, %v4580
        %vm4582 = vcmp.eq.s32.totalorder %v4574, 2
        %v4583 = vstv %s4564
        %v4584 = vsel %vm4582, %v4583, 0.0
        %v4585 = vadd.f32 %v4581, %v4584
        %vm4586 = vcmp.eq.s32.totalorder %v4574, 3
        %v4587 = vstv %s4567
        %v4588 = vsel %vm4586, %v4587, 0.0
        %v4589 = vadd.f32 %v4585, %v4588
        %vm4590 = vcmp.eq.s32.totalorder %v4574, 4
        %v4591 = vstv %s4572
        %v4592 = vsel %vm4590, %v4591, 0.0
        %v4593 = vadd.f32 %v4589, %v4592
        %4594 = vst [vmem:[%s502] sm:$0xff] %v4593
        %s4595 = sand.u32 %s299, 1
        %s4596 = scalar_lea.sflag [#allocation5], %s4595
        %s4597 = sand.u32 %s299, 1
        %s4598 = smul.addr %s4597, 8
        %s4599 = scalar_lea.vmem [#allocation14], %s4598
        // Predicated region
        $region93: #{tpu_custom_call.1} parent=67 // pred_check
          %p4600 = pneg %p309
        $region94: #{tpu_custom_call.1} parent=67 // pred_check_branch
          %4602 = sbr.rel (%p4600) target = $region96
        $region95: #{tpu_custom_call.1} parent=67 // pred_region
          %s4604 = ssub.s32 128, 128
          %4605 = vsyncadd %s4596, %s4604
          %s4606 = smul.addr %s34, 128
          %s4607 = scalar_lea.hbm %s12, %s4606
          %s4609 = sshll.u32 %s4599, 4
          %s4610 = int_to_ptr.vmem [resolvable:$true] %s4609
          %4612 = dma.vmem_to_hbm [thread:$0]  %s4610, 128, %s4607, %s4596
        $region96: #{tpu_custom_call.1} parent=67 // pred_fallthru
          _
      $region68: #{tpu_custom_call.1} parent=5 // pred_fallthru
        _
      %p4613 = scmp.le.s32.totalorder 2, %s29
      // Predicated region
      $region97: #{tpu_custom_call.1} parent=5 // pred_check
        %p4614 = pneg %p4613
      $region98: #{tpu_custom_call.1} parent=5 // pred_check_branch
        %4616 = sbr.rel (%p4614) target = $region100
      $region99: #{tpu_custom_call.1} parent=5 // pred_region
        %s4617 = ssub.s32 %s29, 2
        // Predicated region
        $region101: #{tpu_custom_call.1} parent=99 // pred_check
          %p4618 = pneg %p315
        $region102: #{tpu_custom_call.1} parent=99 // pred_check_branch
          %4620 = sbr.rel (%p4618) target = $region104
        $region103: #{tpu_custom_call.1} parent=99 // pred_region
          %s4621 = sand.u32 %s300, 1
          %s4622 = scalar_lea.sflag [#allocation5], %s4621
          %s4623 = sand.u32 %s300, 1
          %s4624 = smul.addr %s4623, 8
          %s4625 = scalar_lea.vmem [#allocation14], %s4624
          %4626 = dma.done %s4622, 128
        $region104: #{tpu_custom_call.1} parent=99 // pred_fallthru
          _
      $region100: #{tpu_custom_call.1} parent=5 // pred_fallthru
        _
    $region6: #{tpu_custom_call.1} parent=1 // loop_footer
      %s33 = sadd.s32 1, %s29
    $region7: #{tpu_custom_call.1} parent=1 // loop_footer_branch
      %28 = sbr.rel target = $region3
    $region8: #{tpu_custom_call.1} parent=1 // loop_exit
      _
    %4627 = vsyncpa [#allocation4], 1
    %s4628 = scalar_lea.sflag [#allocation4], 1
    %4629 = vsyncpa %s4628, 1
    %4630 = vsyncpa [#allocation7], 1
    %4631 = vsyncpa [#allocation10], 1
    %4632 = vsyncpa [#allocation13], 1
    %4633 = vsyncpa [#allocation5], 1
    %s4634 = scalar_lea.sflag [#allocation5], 1
    %4635 = vsyncpa %s4634, 1

// kernel: tpu_custom_call.1
$region0: #{tpu_custom_call.1}
  #allocation0 [shape = 'u32[]', space=smem, size = 0x4, offset = 0x4, fixed_abs, tag = 'smem constant byte address 0x4 - core index']
  #allocation1 [shape = 'u32[144,128]{1,0:T(1,128)}', space=vmem, size = 0x12000, scoped, tag = 'internal scratch']
  #allocation2 [shape = 'f32[1,1]{1,0:T(1,128)S(1)}', space=vmem, size = 0x200, scoped, tag = 'scoped memory for tpu_custom_call.1']
  %s0 = inlined_call_operand.hbm [shape: f32[2,1664,128], index: 0, kind: input, shape index: {}]
  %s1 = inlined_call_operand.vmem [shape: f32[2,8,3], index: 1, kind: input, shape index: {}]
  %s2 = inlined_call_operand.hbm [shape: bf16[128,1664], index: 2, kind: input, shape index: {}]
  %s3 = inlined_call_operand.vmem [shape: f32[128,1], index: 3, kind: input, shape index: {}]
  %s4 = inlined_call_operand.hbm [shape: bf16[256,128], index: 4, kind: input, shape index: {}]
  %s5 = inlined_call_operand.vmem [shape: f32[256,1], index: 5, kind: input, shape index: {}]
  %s6 = inlined_call_operand.vmem [shape: f32[256,1], index: 6, kind: input, shape index: {}]
  %s7 = inlined_call_operand.<no memory space> [shape: f32[1,1], index: 7, kind: input, shape index: {}]
  %s8 = inlined_call_operand.hbm [shape: f32[128,256], index: 8, kind: input, shape index: {}]
  %s9 = inlined_call_operand.hbm [shape: f32[1,256], index: 9, kind: input, shape index: {}]
  %s10 = inlined_call_operand.vmem [shape: f32[256,3], index: 10, kind: input, shape index: {}]
  %s11 = inlined_call_operand.hbm [shape: f32[1,3], index: 11, kind: input, shape index: {}]
  %s12 = inlined_call_operand.hbm [shape: f32[2,8,128], index: 12, kind: output, shape index: {}]
  %s13 = sld [smem:[#allocation0]]
  $region105: #{tpu_custom_call.1} parent=0
    _
  %s15 = ssub.s32 1, %s13
  %s16 = scalar_select 0, %s15, %s13
  %v17 = vstv %s7
  %18 = vst [vmem:[#allocation2] sm:$0x1] %v17
  $region1: #{tpu_custom_call.1} parent=0
    #allocation3 [shape = 'u8[1703936]{0}', space=vmem, size = 0x1a0000, scoped, tag = 'input window, operand 0']
    #allocation4 [shape = 's32[2]{0}', space=sflag, size = 0x8, scoped, tag = 'scoped memory for tpu_custom_call.1']
    #allocation5 [shape = 's32[2]{0}', space=sflag, size = 0x8, scoped, tag = 'scoped memory for tpu_custom_call.1']
    #allocation6 [shape = 'u8[425984]{0}', space=vmem, size = 0x68000, scoped, tag = 'input window, operand 2, single buffered']
    #allocation7 [shape = 's32[1]{0}', space=sflag, size = 0x4, scoped, tag = 'scoped memory for tpu_custom_call.1']
    #allocation8 [shape = 'u8[65536]{0}', space=vmem, size = 0x10000, scoped, tag = 'input window, operand 4, single buffered']
    #allocation9 [shape = 'u8[131072]{0}', space=vmem, size = 0x20000, scoped, tag = 'input window, operand 8, single buffered']
    #allocation10 [shape = 's32[1]{0}', space=sflag, size = 0x4, scoped, tag = 'scoped memory for tpu_custom_call.1']
    #allocation11 [shape = 'u8[1024]{0}', space=vmem, size = 0x400, scoped, tag = 'input window, operand 9, single buffered']
    #allocation12 [shape = 'u8[512]{0}', space=vmem, size = 0x400, scoped, tag = 'input window, operand 11, single buffered']
    #allocation13 [shape = 's32[1]{0}', space=sflag, size = 0x4, scoped, tag = 'scoped memory for tpu_custom_call.1']
    #allocation14 [shape = 'u8[8192]{0}', space=vmem, size = 0x2000, scoped, tag = 'output window, operand 0']
    %19 = vsyncpa [#allocation4], 0
    %s20 = scalar_lea.sflag [#allocation4], 1
    %21 = vsyncpa %s20, 0
    %22 = vsyncpa [#allocation7], 0
    %23 = vsyncpa [#allocation10], 0
    %24 = vsyncpa [#allocation13], 0
    %25 = vsyncpa [#allocation5], 0
    %s26 = scalar_lea.sflag [#allocation5], 1
    %27 = vsyncpa %s26, 0
    loop: start=0, step=1, limit=4
    $region2: #{tpu_custom_call.1} parent=1 // loop_pre_header
      _
    $region3: #{tpu_custom_call.1} parent=1 // loop_header
      %s29 = sphi 0, %s33
      %p30 = scmp.ge.s32.totalorder %s29, 4
      %s39 = sphi 0, %s41
      %s42 = sphi 0, %s39
      %s43 = sphi 0, %s42
      %s59 = sphi 0, %s43
      %s63 = sphi 0, %s63
      %s65 = sphi 0, %s63
      %s66 = sphi 0, %s65
      %s80 = sphi 0, %s66
      %s84 = sphi 0, %s84
      %s86 = sphi 0, %s84
      %s87 = sphi 0, %s86
      %s101 = sphi 0, %s87
      %s105 = sphi 0, %s105
      %s107 = sphi 0, %s105
      %s108 = sphi 0, %s107
      %s122 = sphi 0, %s108
      %s126 = sphi 0, %s126
      %s128 = sphi 0, %s126
      %s129 = sphi 0, %s128
      %s143 = sphi 0, %s129
      %s147 = sphi 0, %s147
      %s149 = sphi 0, %s147
      %s150 = sphi 0, %s149
      %s164 = sphi 0, %s150
      %s168 = sphi 0, %s168
      %s170 = sphi 0, %s168
      %s171 = sphi 0, %s170
      %s185 = sphi 0, %s171
      %s189 = sphi 0, %s189
      %s191 = sphi 0, %s189
      %s192 = sphi 0, %s191
      %s206 = sphi 0, %s192
      %s210 = sphi 0, %s210
      %s212 = sphi 0, %s210
      %s213 = sphi 0, %s212
      %s227 = sphi 0, %s213
      %s231 = sphi 0, %s231
      %s233 = sphi 0, %s231
      %s234 = sphi 0, %s233
      %s248 = sphi 0, %s234
      %s252 = sphi 0, %s252
      %s254 = sphi 0, %s252
      %s255 = sphi 0, %s254
      %s269 = sphi 0, %s255
      %s273 = sphi 0, %s273
      %s275 = sphi 0, %s273
      %s276 = sphi 0, %s275
      %s290 = sphi 0, %s276
      %s296 = sphi 0, %s298
      %s299 = sphi 0, %s296
      %s300 = sphi 0, %s299
      %s316 = sphi 0, %s300
    $region4: #{tpu_custom_call.1} parent=1 // loop_header_branch
      %32 = sbr.rel (%p30) target = $region8
    $region5: #{tpu_custom_call.1} parent=1 // loop_body
      %s34 = ssub.s32 %s29, 1
      %s35 = ssub.s32 %s29, 2
      %s36 = sadd.s32 %s29, 1
      %s37 = ssub.s32 %s29, %s36
      %p38 = scmp.eq.s32.totalorder %s37, 0
      %s40 = sadd.s32 %s39, 1
      %s41 = scalar_select %p38, %s39, %s40
      %p44 = pneg %p38
      %p45 = scmp.eq.s32.totalorder %s29, 1
      %p46 = por %p44, %p45
      %p47 = scmp.ne.s32.totalorder %s39, %s42
      %p48 = scmp.eq.s32.totalorder %s29, 0
      %p49 = por %p47, %p48
      %p50 = scmp.ne.s32.totalorder %s39, %s42
      %p51 = scmp.eq.s32.totalorder %s34, 1
      %p52 = por %p50, %p51
      %p53 = scmp.ne.s32.totalorder %s42, %s43
      %p54 = scmp.eq.s32.totalorder %s34, 0
      %p55 = por %p53, %p54
      %p56 = scmp.ne.s32.totalorder %s42, %s43
      %p57 = scmp.eq.s32.totalorder %s35, 1
      %p58 = por %p56, %p57
      %p60 = scmp.ne.s32.totalorder %s43, %s59
      %p61 = scmp.eq.s32.totalorder %s35, 0
      %p62 = por %p60, %p61
      %s64 = sadd.s32 %s63, 1
      %p67 = scmp.eq.s32.totalorder %s29, 1
      %p68 = scmp.ne.s32.totalorder %s63, %s65
      %p69 = scmp.eq.s32.totalorder %s29, 0
      %p70 = por %p68, %p69
      %p71 = scmp.ne.s32.totalorder %s63, %s65
      %p72 = scmp.eq.s32.totalorder %s34, 1
      %p73 = por %p71, %p72
      %p74 = scmp.ne.s32.totalorder %s65, %s66
      %p75 = scmp.eq.s32.totalorder %s34, 0
      %p76 = por %p74, %p75
      %p77 = scmp.ne.s32.totalorder %s65, %s66
      %p78 = scmp.eq.s32.totalorder %s35, 1
      %p79 = por %p77, %p78
      %p81 = scmp.ne.s32.totalorder %s66, %s80
      %p82 = scmp.eq.s32.totalorder %s35, 0
      %p83 = por %p81, %p82
      %s85 = sadd.s32 %s84, 1
      %p88 = scmp.eq.s32.totalorder %s29, 1
      %p89 = scmp.ne.s32.totalorder %s84, %s86
      %p90 = scmp.eq.s32.totalorder %s29, 0
      %p91 = por %p89, %p90
      %p92 = scmp.ne.s32.totalorder %s84, %s86
      %p93 = scmp.eq.s32.totalorder %s34, 1
      %p94 = por %p92, %p93
      %p95 = scmp.ne.s32.totalorder %s86, %s87
      %p96 = scmp.eq.s32.totalorder %s34, 0
      %p97 = por %p95, %p96
      %p98 = scmp.ne.s32.totalorder %s86, %s87
      %p99 = scmp.eq.s32.totalorder %s35, 1
      %p100 = por %p98, %p99
      %p102 = scmp.ne.s32.totalorder %s87, %s101
      %p103 = scmp.eq.s32.totalorder %s35, 0
      %p104 = por %p102, %p103
      %s106 = sadd.s32 %s105, 1
      %p109 = scmp.eq.s32.totalorder %s29, 1
      %p110 = scmp.ne.s32.totalorder %s105, %s107
      %p111 = scmp.eq.s32.totalorder %s29, 0
      %p112 = por %p110, %p111
      %p113 = scmp.ne.s32.totalorder %s105, %s107
      %p114 = scmp.eq.s32.totalorder %s34, 1
      %p115 = por %p113, %p114
      %p116 = scmp.ne.s32.totalorder %s107, %s108
      %p117 = scmp.eq.s32.totalorder %s34, 0
      %p118 = por %p116, %p117
      %p119 = scmp.ne.s32.totalorder %s107, %s108
      %p120 = scmp.eq.s32.totalorder %s35, 1
      %p121 = por %p119, %p120
      %p123 = scmp.ne.s32.totalorder %s108, %s122
      %p124 = scmp.eq.s32.totalorder %s35, 0
      %p125 = por %p123, %p124
      %s127 = sadd.s32 %s126, 1
      %p130 = scmp.eq.s32.totalorder %s29, 1
      %p131 = scmp.ne.s32.totalorder %s126, %s128
      %p132 = scmp.eq.s32.totalorder %s29, 0
      %p133 = por %p131, %p132
      %p134 = scmp.ne.s32.totalorder %s126, %s128
      %p135 = scmp.eq.s32.totalorder %s34, 1
      %p136 = por %p134, %p135
      %p137 = scmp.ne.s32.totalorder %s128, %s129
      %p138 = scmp.eq.s32.totalorder %s34, 0
      %p139 = por %p137, %p138
      %p140 = scmp.ne.s32.totalorder %s128, %s129
      %p141 = scmp.eq.s32.totalorder %s35, 1
      %p142 = por %p140, %p141
      %p144 = scmp.ne.s32.totalorder %s129, %s143
      %p145 = scmp.eq.s32.totalorder %s35, 0
      %p146 = por %p144, %p145
      %s148 = sadd.s32 %s147, 1
      %p151 = scmp.eq.s32.totalorder %s29, 1
      %p152 = scmp.ne.s32.totalorder %s147, %s149
      %p153 = scmp.eq.s32.totalorder %s29, 0
      %p154 = por %p152, %p153
      %p155 = scmp.ne.s32.totalorder %s147, %s149
      %p156 = scmp.eq.s32.totalorder %s34, 1
      %p157 = por %p155, %p156
      %p158 = scmp.ne.s32.totalorder %s149, %s150
      %p159 = scmp.eq.s32.totalorder %s34, 0
      %p160 = por %p158, %p159
      %p161 = scmp.ne.s32.totalorder %s149, %s150
      %p162 = scmp.eq.s32.totalorder %s35, 1
      %p163 = por %p161, %p162
      %p165 = scmp.ne.s32.totalorder %s150, %s164
      %p166 = scmp.eq.s32.totalorder %s35, 0
      %p167 = por %p165, %p166
      %s169 = sadd.s32 %s168, 1
      %p172 = scmp.eq.s32.totalorder %s29, 1
      %p173 = scmp.ne.s32.totalorder %s168, %s170
      %p174 = scmp.eq.s32.totalorder %s29, 0
      %p175 = por %p173, %p174
      %p176 = scmp.ne.s32.totalorder %s168, %s170
      %p177 = scmp.eq.s32.totalorder %s34, 1
      %p178 = por %p176, %p177
      %p179 = scmp.ne.s32.totalorder %s170, %s171
      %p180 = scmp.eq.s32.totalorder %s34, 0
      %p181 = por %p179, %p180
      %p182 = scmp.ne.s32.totalorder %s170, %s171
      %p183 = scmp.eq.s32.totalorder %s35, 1
      %p184 = por %p182, %p183
      %p186 = scmp.ne.s32.totalorder %s171, %s185
      %p187 = scmp.eq.s32.totalorder %s35, 0
      %p188 = por %p186, %p187
      %s190 = sadd.s32 %s189, 1
      %p193 = scmp.eq.s32.totalorder %s29, 1
      %p194 = scmp.ne.s32.totalorder %s189, %s191
      %p195 = scmp.eq.s32.totalorder %s29, 0
      %p196 = por %p194, %p195
      %p197 = scmp.ne.s32.totalorder %s189, %s191
      %p198 = scmp.eq.s32.totalorder %s34, 1
      %p199 = por %p197, %p198
      %p200 = scmp.ne.s32.totalorder %s191, %s192
      %p201 = scmp.eq.s32.totalorder %s34, 0
      %p202 = por %p200, %p201
      %p203 = scmp.ne.s32.totalorder %s191, %s192
      %p204 = scmp.eq.s32.totalorder %s35, 1
      %p205 = por %p203, %p204
      %p207 = scmp.ne.s32.totalorder %s192, %s206
      %p208 = scmp.eq.s32.totalorder %s35, 0
      %p209 = por %p207, %p208
      %s211 = sadd.s32 %s210, 1
      %p214 = scmp.eq.s32.totalorder %s29, 1
      %p215 = scmp.ne.s32.totalorder %s210, %s212
      %p216 = scmp.eq.s32.totalorder %s29, 0
      %p217 = por %p215, %p216
      %p218 = scmp.ne.s32.totalorder %s210, %s212
      %p219 = scmp.eq.s32.totalorder %s34, 1
      %p220 = por %p218, %p219
      %p221 = scmp.ne.s32.totalorder %s212, %s213
      %p222 = scmp.eq.s32.totalorder %s34, 0
      %p223 = por %p221, %p222
      %p224 = scmp.ne.s32.totalorder %s212, %s213
      %p225 = scmp.eq.s32.totalorder %s35, 1
      %p226 = por %p224, %p225
      %p228 = scmp.ne.s32.totalorder %s213, %s227
      %p229 = scmp.eq.s32.totalorder %s35, 0
      %p230 = por %p228, %p229
      %s232 = sadd.s32 %s231, 1
      %p235 = scmp.eq.s32.totalorder %s29, 1
      %p236 = scmp.ne.s32.totalorder %s231, %s233
      %p237 = scmp.eq.s32.totalorder %s29, 0
      %p238 = por %p236, %p237
      %p239 = scmp.ne.s32.totalorder %s231, %s233
      %p240 = scmp.eq.s32.totalorder %s34, 1
      %p241 = por %p239, %p240
      %p242 = scmp.ne.s32.totalorder %s233, %s234
      %p243 = scmp.eq.s32.totalorder %s34, 0
      %p244 = por %p242, %p243
      %p245 = scmp.ne.s32.totalorder %s233, %s234
      %p246 = scmp.eq.s32.totalorder %s35, 1
      %p247 = por %p245, %p246
      %p249 = scmp.ne.s32.totalorder %s234, %s248
      %p250 = scmp.eq.s32.totalorder %s35, 0
      %p251 = por %p249, %p250
      %s253 = sadd.s32 %s252, 1
      %p256 = scmp.eq.s32.totalorder %s29, 1
      %p257 = scmp.ne.s32.totalorder %s252, %s254
      %p258 = scmp.eq.s32.totalorder %s29, 0
      %p259 = por %p257, %p258
      %p260 = scmp.ne.s32.totalorder %s252, %s254
      %p261 = scmp.eq.s32.totalorder %s34, 1
      %p262 = por %p260, %p261
      %p263 = scmp.ne.s32.totalorder %s254, %s255
      %p264 = scmp.eq.s32.totalorder %s34, 0
      %p265 = por %p263, %p264
      %p266 = scmp.ne.s32.totalorder %s254, %s255
      %p267 = scmp.eq.s32.totalorder %s35, 1
      %p268 = por %p266, %p267
      %p270 = scmp.ne.s32.totalorder %s255, %s269
      %p271 = scmp.eq.s32.totalorder %s35, 0
      %p272 = por %p270, %p271
      %s274 = sadd.s32 %s273, 1
      %p277 = scmp.eq.s32.totalorder %s29, 1
      %p278 = scmp.ne.s32.totalorder %s273, %s275
      %p279 = scmp.eq.s32.totalorder %s29, 0
      %p280 = por %p278, %p279
      %p281 = scmp.ne.s32.totalorder %s273, %s275
      %p282 = scmp.eq.s32.totalorder %s34, 1
      %p283 = por %p281, %p282
      %p284 = scmp.ne.s32.totalorder %s275, %s276
      %p285 = scmp.eq.s32.totalorder %s34, 0
      %p286 = por %p284, %p285
      %p287 = scmp.ne.s32.totalorder %s275, %s276
      %p288 = scmp.eq.s32.totalorder %s35, 1
      %p289 = por %p287, %p288
      %p291 = scmp.ne.s32.totalorder %s276, %s290
      %p292 = scmp.eq.s32.totalorder %s35, 0
      %p293 = por %p291, %p292
      %s294 = ssub.s32 %s29, %s36
      %p295 = scmp.eq.s32.totalorder %s294, 0
      %s297 = sadd.s32 %s296, 1
      %s298 = scalar_select %p295, %s296, %s297
      %p301 = pneg %p295
      %p302 = scmp.eq.s32.totalorder %s29, 1
      %p303 = por %p301, %p302
      %p304 = scmp.ne.s32.totalorder %s296, %s299
      %p305 = scmp.eq.s32.totalorder %s29, 0
      %p306 = por %p304, %p305
      %p307 = scmp.ne.s32.totalorder %s296, %s299
      %p308 = scmp.eq.s32.totalorder %s34, 1
      %p309 = por %p307, %p308
      %p310 = scmp.ne.s32.totalorder %s299, %s300
      %p311 = scmp.eq.s32.totalorder %s34, 0
      %p312 = por %p310, %p311
      %p313 = scmp.ne.s32.totalorder %s299, %s300
      %p314 = scmp.eq.s32.totalorder %s35, 1
      %p315 = por %p313, %p314
      %p317 = scmp.ne.s32.totalorder %s300, %s316
      %p318 = scmp.eq.s32.totalorder %s35, 0
      %p319 = por %p317, %p318
      %p320 = scmp.le.s32.totalorder 1, %s29
      %p321 = scmp.lt.s32.totalorder %s29, 3
      %p322 = pnand %p320, %p321
      %p323 = pneg %p322
      // Predicated region
      $region9: #{tpu_custom_call.1} parent=5 // pred_check
        _
      $region10: #{tpu_custom_call.1} parent=5 // pred_check_branch
        %325 = sbr.rel (%p322) target = $region12
      $region11: #{tpu_custom_call.1} parent=5 // pred_region
        %s326 = ssub.s32 %s29, 1
        // Predicated region
        $region13: #{tpu_custom_call.1} parent=11 // pred_check
          %p327 = pneg %p76
        $region14: #{tpu_custom_call.1} parent=11 // pred_check_branch
          %329 = sbr.rel (%p327) target = $region16
        $region15: #{tpu_custom_call.1} parent=11 // pred_region
          _
        $region16: #{tpu_custom_call.1} parent=11 // pred_fallthru
          _
        // Predicated region
        $region17: #{tpu_custom_call.1} parent=11 // pred_check
          %p330 = pneg %p97
        $region18: #{tpu_custom_call.1} parent=11 // pred_check_branch
          %332 = sbr.rel (%p330) target = $region20
        $region19: #{tpu_custom_call.1} parent=11 // pred_region
          %s334 = ssub.s32 13312, 13312
          %335 = vsyncadd [#allocation7], %s334
          %s336 = sshll.u32 [#allocation6], 4
          %s337 = int_to_ptr.vmem [resolvable:$true] %s336
          %342 = dma.hbm_to_vmem [thread:$0]  %s2, 13312, %s337, [#allocation7], 832, 832, 52
        $region20: #{tpu_custom_call.1} parent=11 // pred_fallthru
          _
        // Predicated region
        $region21: #{tpu_custom_call.1} parent=11 // pred_check
          %p343 = pneg %p118
        $region22: #{tpu_custom_call.1} parent=11 // pred_check_branch
          %345 = sbr.rel (%p343) target = $region24
        $region23: #{tpu_custom_call.1} parent=11 // pred_region
          _
        $region24: #{tpu_custom_call.1} parent=11 // pred_fallthru
          _
        // Predicated region
        $region25: #{tpu_custom_call.1} parent=11 // pred_check
          %p346 = pneg %p139
        $region26: #{tpu_custom_call.1} parent=11 // pred_check_branch
          %348 = sbr.rel (%p346) target = $region28
        $region27: #{tpu_custom_call.1} parent=11 // pred_region
          %s350 = ssub.s32 2048, 2048
          %351 = vsyncadd [#allocation7], %s350
          %s352 = sshll.u32 [#allocation8], 4
          %s353 = int_to_ptr.vmem [resolvable:$true] %s352
          %358 = dma.hbm_to_vmem [thread:$0]  %s4, 2048, %s353, [#allocation7], 64, 64, 4
        $region28: #{tpu_custom_call.1} parent=11 // pred_fallthru
          _
        // Predicated region
        $region29: #{tpu_custom_call.1} parent=11 // pred_check
          %p359 = pneg %p160
        $region30: #{tpu_custom_call.1} parent=11 // pred_check_branch
          %361 = sbr.rel (%p359) target = $region32
        $region31: #{tpu_custom_call.1} parent=11 // pred_region
          _
        $region32: #{tpu_custom_call.1} parent=11 // pred_fallthru
          _
        // Predicated region
        $region33: #{tpu_custom_call.1} parent=11 // pred_check
          %p362 = pneg %p181
        $region34: #{tpu_custom_call.1} parent=11 // pred_check_branch
          %364 = sbr.rel (%p362) target = $region36
        $region35: #{tpu_custom_call.1} parent=11 // pred_region
          _
        $region36: #{tpu_custom_call.1} parent=11 // pred_fallthru
          _
        // Predicated region
        $region37: #{tpu_custom_call.1} parent=11 // pred_check
          %p365 = pneg %p202
        $region38: #{tpu_custom_call.1} parent=11 // pred_check_branch
          %367 = sbr.rel (%p365) target = $region40
        $region39: #{tpu_custom_call.1} parent=11 // pred_region
          _
        $region40: #{tpu_custom_call.1} parent=11 // pred_fallthru
          _
        // Predicated region
        $region41: #{tpu_custom_call.1} parent=11 // pred_check
          %p368 = pneg %p223
        $region42: #{tpu_custom_call.1} parent=11 // pred_check_branch
          %370 = sbr.rel (%p368) target = $region44
        $region43: #{tpu_custom_call.1} parent=11 // pred_region
          %s372 = ssub.s32 4096, 4096
          %373 = vsyncadd [#allocation10], %s372
          %s374 = sshll.u32 [#allocation9], 4
          %s375 = int_to_ptr.vmem [resolvable:$true] %s374
          %380 = dma.hbm_to_vmem [thread:$0]  %s8, 4096, %s375, [#allocation10], 256, 256, 16
        $region44: #{tpu_custom_call.1} parent=11 // pred_fallthru
          _
        // Predicated region
        $region45: #{tpu_custom_call.1} parent=11 // pred_check
          %p381 = pneg %p244
        $region46: #{tpu_custom_call.1} parent=11 // pred_check_branch
          %383 = sbr.rel (%p381) target = $region48
        $region47: #{tpu_custom_call.1} parent=11 // pred_region
          %s385 = ssub.s32 32, 32
          %386 = vsyncadd [#allocation10], %s385
          %s388 = sshll.u32 [#allocation11], 4
          %s389 = int_to_ptr.vmem [resolvable:$true] %s388
          %391 = dma.hbm_to_vmem [thread:$0]  %s9, 32, %s389, [#allocation10]
        $region48: #{tpu_custom_call.1} parent=11 // pred_fallthru
          _
        // Predicated region
        $region49: #{tpu_custom_call.1} parent=11 // pred_check
          %p392 = pneg %p265
        $region50: #{tpu_custom_call.1} parent=11 // pred_check_branch
          %394 = sbr.rel (%p392) target = $region52
        $region51: #{tpu_custom_call.1} parent=11 // pred_region
          _
        $region52: #{tpu_custom_call.1} parent=11 // pred_fallthru
          _
        // Predicated region
        $region53: #{tpu_custom_call.1} parent=11 // pred_check
          %p395 = pneg %p286
        $region54: #{tpu_custom_call.1} parent=11 // pred_check_branch
          %397 = sbr.rel (%p395) target = $region56
        $region55: #{tpu_custom_call.1} parent=11 // pred_region
          %s399 = ssub.s32 16, 16
          %400 = vsyncadd [#allocation13], %s399
          %s402 = sshll.u32 [#allocation12], 4
          %s403 = int_to_ptr.vmem [resolvable:$true] %s402
          %405 = dma.hbm_to_vmem [thread:$0]  %s11, 16, %s403, [#allocation13]
        $region56: #{tpu_custom_call.1} parent=11 // pred_fallthru
          _
      $region12: #{tpu_custom_call.1} parent=5 // pred_fallthru
        _
      %p406 = scmp.lt.s32.totalorder %s29, 2
      // Predicated region
      $region57: #{tpu_custom_call.1} parent=5 // pred_check
        %p407 = pneg %p406
      $region58: #{tpu_custom_call.1} parent=5 // pred_check_branch
        %409 = sbr.rel (%p407) target = $region60
      $region59: #{tpu_custom_call.1} parent=5 // pred_region
        // Predicated region
        $region61: #{tpu_custom_call.1} parent=59 // pred_check
          %p410 = pneg %p49
        $region62: #{tpu_custom_call.1} parent=59 // pred_check_branch
          %412 = sbr.rel (%p410) target = $region64
        $region63: #{tpu_custom_call.1} parent=59 // pred_region
          %s413 = sand.u32 %s39, 1
          %s414 = scalar_lea.sflag [#allocation4], %s413
          %s415 = sand.u32 %s39, 1
          %s416 = smul.addr %s415, 1664
          %s417 = scalar_lea.vmem [#allocation3], %s416
          %s419 = ssub.s32 26624, 26624
          %420 = vsyncadd %s414, %s419
          %s421 = smul.addr %s29, 208
          %s422 = smul.addr %s421, 128
          %s423 = scalar_lea.hbm %s0, %s422
          %s424 = sshll.u32 %s417, 4
          %s425 = int_to_ptr.vmem [resolvable:$true] %s424
          %430 = dma.hbm_to_vmem [thread:$0]  %s423, 26624, %s425, %s414, 128, 128, 8
        $region64: #{tpu_custom_call.1} parent=59 // pred_fallthru
          _
      $region60: #{tpu_custom_call.1} parent=5 // pred_fallthru
        _
      %p431 = scmp.le.s32.totalorder 1, %s29
      %p432 = scmp.lt.s32.totalorder %s29, 3
      %p433 = pnand %p431, %p432
      %p434 = pneg %p433
      // Predicated region
      $region65: #{tpu_custom_call.1} parent=5 // pred_check
        _
      $region66: #{tpu_custom_call.1} parent=5 // pred_check_branch
        %436 = sbr.rel (%p433) target = $region68
      $region67: #{tpu_custom_call.1} parent=5 // pred_region
        %s437 = ssub.s32 %s29, 1
        %s438 = sand.u32 %s42, 1
        %s439 = scalar_lea.sflag [#allocation4], %s438
        %s440 = sand.u32 %s42, 1
        %s441 = smul.addr %s440, 1664
        %s442 = scalar_lea.vmem [#allocation3], %s441
        // Predicated region
        $region69: #{tpu_custom_call.1} parent=67 // pred_check
          %p443 = pneg %p55
        $region70: #{tpu_custom_call.1} parent=67 // pred_check_branch
          %445 = sbr.rel (%p443) target = $region72
        $region71: #{tpu_custom_call.1} parent=67 // pred_region
          %446 = dma.done %s439, 26624
        $region72: #{tpu_custom_call.1} parent=67 // pred_fallthru
          _
        // Predicated region
        $region73: #{tpu_custom_call.1} parent=67 // pred_check
          %p447 = pneg %p97
        $region74: #{tpu_custom_call.1} parent=67 // pred_check_branch
          %449 = sbr.rel (%p447) target = $region76
        $region75: #{tpu_custom_call.1} parent=67 // pred_region
          %450 = dma.done [#allocation7], 13312
        $region76: #{tpu_custom_call.1} parent=67 // pred_fallthru
          _
        // Predicated region
        $region77: #{tpu_custom_call.1} parent=67 // pred_check
          %p451 = pneg %p139
        $region78: #{tpu_custom_call.1} parent=67 // pred_check_branch
          %453 = sbr.rel (%p451) target = $region80
        $region79: #{tpu_custom_call.1} parent=67 // pred_region
          %454 = dma.done [#allocation7], 2048
        $region80: #{tpu_custom_call.1} parent=67 // pred_fallthru
          _
        // Predicated region
        $region81: #{tpu_custom_call.1} parent=67 // pred_check
          %p455 = pneg %p223
        $region82: #{tpu_custom_call.1} parent=67 // pred_check_branch
          %457 = sbr.rel (%p455) target = $region84
        $region83: #{tpu_custom_call.1} parent=67 // pred_region
          %458 = dma.done [#allocation10], 4096
        $region84: #{tpu_custom_call.1} parent=67 // pred_fallthru
          _
        // Predicated region
        $region85: #{tpu_custom_call.1} parent=67 // pred_check
          %p459 = pneg %p244
        $region86: #{tpu_custom_call.1} parent=67 // pred_check_branch
          %461 = sbr.rel (%p459) target = $region88
        $region87: #{tpu_custom_call.1} parent=67 // pred_region
          %462 = dma.done [#allocation10], 32
        $region88: #{tpu_custom_call.1} parent=67 // pred_fallthru
          _
        // Predicated region
        $region89: #{tpu_custom_call.1} parent=67 // pred_check
          %p463 = pneg %p286
        $region90: #{tpu_custom_call.1} parent=67 // pred_check_branch
          %465 = sbr.rel (%p463) target = $region92
        $region91: #{tpu_custom_call.1} parent=67 // pred_region
          %466 = dma.done [#allocation13], 16
        $region92: #{tpu_custom_call.1} parent=67 // pred_fallthru
          _
        %s467 = sand.u32 %s42, 1
        %s468 = scalar_lea.sflag [#allocation4], %s467
        %s469 = sand.u32 %s42, 1
        %s470 = smul.addr %s469, 1664
        %s471 = scalar_lea.vmem [#allocation3], %s470
        %p472 = pneg %p55
        %p473 = pneg %p52
        %p474 = pneg %p76
        %p475 = pneg %p73
        %p476 = pneg %p97
        %p477 = pneg %p94
        %p478 = pneg %p118
        %p479 = pneg %p115
        %p480 = pneg %p139
        %p481 = pneg %p136
        %p482 = pneg %p160
        %p483 = pneg %p157
        %p484 = pneg %p181
        %p485 = pneg %p178
        %p486 = pneg %p202
        %p487 = pneg %p199
        %p488 = pneg %p223
        %p489 = pneg %p220
        %p490 = pneg %p244
        %p491 = pneg %p241
        %p492 = pneg %p265
        %p493 = pneg %p262
        %p494 = pneg %p286
        %p495 = pneg %p283
        %p496 = pneg %p312
        %p497 = pneg %p309
        %s498 = sand.u32 %s299, 1
        %s499 = scalar_lea.sflag [#allocation5], %s498
        %s500 = sand.u32 %s299, 1
        %s501 = smul.addr %s500, 8
        %s502 = scalar_lea.vmem [#allocation14], %s501
        %v504 = vld [vmem:[%s442] sm:$0xff]
        %v505 = vld [vmem:[%s442 + $0x8] sm:$0xff]
        %v506 = vld [vmem:[%s442 + $0x10] sm:$0xff]
        %v507 = vld [vmem:[%s442 + $0x18] sm:$0xff]
        %v508 = vld [vmem:[%s442 + $0x20] sm:$0xff]
        %v509 = vld [vmem:[%s442 + $0x28] sm:$0xff]
        %v510 = vld [vmem:[%s442 + $0x30] sm:$0xff]
        %v511 = vld [vmem:[%s442 + $0x38] sm:$0xff]
        %v512 = vld [vmem:[%s442 + $0x40] sm:$0xff]
        %v513 = vld [vmem:[%s442 + $0x48] sm:$0xff]
        %v514 = vld [vmem:[%s442 + $0x50] sm:$0xff]
        %v515 = vld [vmem:[%s442 + $0x58] sm:$0xff]
        %v516 = vld [vmem:[%s442 + $0x60] sm:$0xff]
        %v517 = vld [vmem:[%s442 + $0x68] sm:$0xff]
        %v518 = vld [vmem:[%s442 + $0x70] sm:$0xff]
        %v519 = vld [vmem:[%s442 + $0x78] sm:$0xff]
        %v520 = vld [vmem:[%s442 + $0x80] sm:$0xff]
        %v521 = vld [vmem:[%s442 + $0x88] sm:$0xff]
        %v522 = vld [vmem:[%s442 + $0x90] sm:$0xff]
        %v523 = vld [vmem:[%s442 + $0x98] sm:$0xff]
        %v524 = vld [vmem:[%s442 + $0xa0] sm:$0xff]
        %v525 = vld [vmem:[%s442 + $0xa8] sm:$0xff]
        %v526 = vld [vmem:[%s442 + $0xb0] sm:$0xff]
        %v527 = vld [vmem:[%s442 + $0xb8] sm:$0xff]
        %v528 = vld [vmem:[%s442 + $0xc0] sm:$0xff]
        %v529 = vld [vmem:[%s442 + $0xc8] sm:$0xff]
        %v530 = vld [vmem:[%s442 + $0xd0] sm:$0xff]
        %v531 = vld [vmem:[%s442 + $0xd8] sm:$0xff]
        %v532 = vld [vmem:[%s442 + $0xe0] sm:$0xff]
        %v533 = vld [vmem:[%s442 + $0xe8] sm:$0xff]
        %v534 = vld [vmem:[%s442 + $0xf0] sm:$0xff]
        %v535 = vld [vmem:[%s442 + $0xf8] sm:$0xff]
        %v536 = vld [vmem:[%s442 + $0x100] sm:$0xff]
        %v537 = vld [vmem:[%s442 + $0x108] sm:$0xff]
        %v538 = vld [vmem:[%s442 + $0x110] sm:$0xff]
        %v539 = vld [vmem:[%s442 + $0x118] sm:$0xff]
        %v540 = vld [vmem:[%s442 + $0x120] sm:$0xff]
        %v541 = vld [vmem:[%s442 + $0x128] sm:$0xff]
        %v542 = vld [vmem:[%s442 + $0x130] sm:$0xff]
        %v543 = vld [vmem:[%s442 + $0x138] sm:$0xff]
        %v544 = vld [vmem:[%s442 + $0x140] sm:$0xff]
        %v545 = vld [vmem:[%s442 + $0x148] sm:$0xff]
        %v546 = vld [vmem:[%s442 + $0x150] sm:$0xff]
        %v547 = vld [vmem:[%s442 + $0x158] sm:$0xff]
        %v548 = vld [vmem:[%s442 + $0x160] sm:$0xff]
        %v549 = vld [vmem:[%s442 + $0x168] sm:$0xff]
        %v550 = vld [vmem:[%s442 + $0x170] sm:$0xff]
        %v551 = vld [vmem:[%s442 + $0x178] sm:$0xff]
        %v552 = vld [vmem:[%s442 + $0x180] sm:$0xff]
        %v553 = vld [vmem:[%s442 + $0x188] sm:$0xff]
        %v554 = vld [vmem:[%s442 + $0x190] sm:$0xff]
        %v555 = vld [vmem:[%s442 + $0x198] sm:$0xff]
        %v556 = vld [vmem:[%s442 + $0x1a0] sm:$0xff]
        %v557 = vld [vmem:[%s442 + $0x1a8] sm:$0xff]
        %v558 = vld [vmem:[%s442 + $0x1b0] sm:$0xff]
        %v559 = vld [vmem:[%s442 + $0x1b8] sm:$0xff]
        %v560 = vld [vmem:[%s442 + $0x1c0] sm:$0xff]
        %v561 = vld [vmem:[%s442 + $0x1c8] sm:$0xff]
        %v562 = vld [vmem:[%s442 + $0x1d0] sm:$0xff]
        %v563 = vld [vmem:[%s442 + $0x1d8] sm:$0xff]
        %v564 = vld [vmem:[%s442 + $0x1e0] sm:$0xff]
        %v565 = vld [vmem:[%s442 + $0x1e8] sm:$0xff]
        %v566 = vld [vmem:[%s442 + $0x1f0] sm:$0xff]
        %v567 = vld [vmem:[%s442 + $0x1f8] sm:$0xff]
        %v568 = vld [vmem:[%s442 + $0x200] sm:$0xff]
        %v569 = vld [vmem:[%s442 + $0x208] sm:$0xff]
        %v570 = vld [vmem:[%s442 + $0x210] sm:$0xff]
        %v571 = vld [vmem:[%s442 + $0x218] sm:$0xff]
        %v572 = vld [vmem:[%s442 + $0x220] sm:$0xff]
        %v573 = vld [vmem:[%s442 + $0x228] sm:$0xff]
        %v574 = vld [vmem:[%s442 + $0x230] sm:$0xff]
        %v575 = vld [vmem:[%s442 + $0x238] sm:$0xff]
        %v576 = vld [vmem:[%s442 + $0x240] sm:$0xff]
        %v577 = vld [vmem:[%s442 + $0x248] sm:$0xff]
        %v578 = vld [vmem:[%s442 + $0x250] sm:$0xff]
        %v579 = vld [vmem:[%s442 + $0x258] sm:$0xff]
        %v580 = vld [vmem:[%s442 + $0x260] sm:$0xff]
        %v581 = vld [vmem:[%s442 + $0x268] sm:$0xff]
        %v582 = vld [vmem:[%s442 + $0x270] sm:$0xff]
        %v583 = vld [vmem:[%s442 + $0x278] sm:$0xff]
        %v584 = vld [vmem:[%s442 + $0x280] sm:$0xff]
        %v585 = vld [vmem:[%s442 + $0x288] sm:$0xff]
        %v586 = vld [vmem:[%s442 + $0x290] sm:$0xff]
        %v587 = vld [vmem:[%s442 + $0x298] sm:$0xff]
        %v588 = vld [vmem:[%s442 + $0x2a0] sm:$0xff]
        %v589 = vld [vmem:[%s442 + $0x2a8] sm:$0xff]
        %v590 = vld [vmem:[%s442 + $0x2b0] sm:$0xff]
        %v591 = vld [vmem:[%s442 + $0x2b8] sm:$0xff]
        %v592 = vld [vmem:[%s442 + $0x2c0] sm:$0xff]
        %v593 = vld [vmem:[%s442 + $0x2c8] sm:$0xff]
        %v594 = vld [vmem:[%s442 + $0x2d0] sm:$0xff]
        %v595 = vld [vmem:[%s442 + $0x2d8] sm:$0xff]
        %v596 = vld [vmem:[%s442 + $0x2e0] sm:$0xff]
        %v597 = vld [vmem:[%s442 + $0x2e8] sm:$0xff]
        %v598 = vld [vmem:[%s442 + $0x2f0] sm:$0xff]
        %v599 = vld [vmem:[%s442 + $0x2f8] sm:$0xff]
        %v600 = vld [vmem:[%s442 + $0x300] sm:$0xff]
        %v601 = vld [vmem:[%s442 + $0x308] sm:$0xff]
        %v602 = vld [vmem:[%s442 + $0x310] sm:$0xff]
        %v603 = vld [vmem:[%s442 + $0x318] sm:$0xff]
        %v604 = vld [vmem:[%s442 + $0x320] sm:$0xff]
        %v605 = vld [vmem:[%s442 + $0x328] sm:$0xff]
        %v606 = vld [vmem:[%s442 + $0x330] sm:$0xff]
        %v607 = vld [vmem:[%s442 + $0x338] sm:$0xff]
        %v608 = vld [vmem:[%s442 + $0x340] sm:$0xff]
        %v609 = vld [vmem:[%s442 + $0x348] sm:$0xff]
        %v610 = vld [vmem:[%s442 + $0x350] sm:$0xff]
        %v611 = vld [vmem:[%s442 + $0x358] sm:$0xff]
        %v612 = vld [vmem:[%s442 + $0x360] sm:$0xff]
        %v613 = vld [vmem:[%s442 + $0x368] sm:$0xff]
        %v614 = vld [vmem:[%s442 + $0x370] sm:$0xff]
        %v615 = vld [vmem:[%s442 + $0x378] sm:$0xff]
        %v616 = vld [vmem:[%s442 + $0x380] sm:$0xff]
        %v617 = vld [vmem:[%s442 + $0x388] sm:$0xff]
        %v618 = vld [vmem:[%s442 + $0x390] sm:$0xff]
        %v619 = vld [vmem:[%s442 + $0x398] sm:$0xff]
        %v620 = vld [vmem:[%s442 + $0x3a0] sm:$0xff]
        %v621 = vld [vmem:[%s442 + $0x3a8] sm:$0xff]
        %v622 = vld [vmem:[%s442 + $0x3b0] sm:$0xff]
        %v623 = vld [vmem:[%s442 + $0x3b8] sm:$0xff]
        %v624 = vld [vmem:[%s442 + $0x3c0] sm:$0xff]
        %v625 = vld [vmem:[%s442 + $0x3c8] sm:$0xff]
        %v626 = vld [vmem:[%s442 + $0x3d0] sm:$0xff]
        %v627 = vld [vmem:[%s442 + $0x3d8] sm:$0xff]
        %v628 = vld [vmem:[%s442 + $0x3e0] sm:$0xff]
        %v629 = vld [vmem:[%s442 + $0x3e8] sm:$0xff]
        %v630 = vld [vmem:[%s442 + $0x3f0] sm:$0xff]
        %v631 = vld [vmem:[%s442 + $0x3f8] sm:$0xff]
        %v632 = vld [vmem:[%s442 + $0x400] sm:$0xff]
        %v633 = vld [vmem:[%s442 + $0x408] sm:$0xff]
        %v634 = vld [vmem:[%s442 + $0x410] sm:$0xff]
        %v635 = vld [vmem:[%s442 + $0x418] sm:$0xff]
        %v636 = vld [vmem:[%s442 + $0x420] sm:$0xff]
        %v637 = vld [vmem:[%s442 + $0x428] sm:$0xff]
        %v638 = vld [vmem:[%s442 + $0x430] sm:$0xff]
        %v639 = vld [vmem:[%s442 + $0x438] sm:$0xff]
        %v640 = vld [vmem:[%s442 + $0x440] sm:$0xff]
        %v641 = vld [vmem:[%s442 + $0x448] sm:$0xff]
        %v642 = vld [vmem:[%s442 + $0x450] sm:$0xff]
        %v643 = vld [vmem:[%s442 + $0x458] sm:$0xff]
        %v644 = vld [vmem:[%s442 + $0x460] sm:$0xff]
        %v645 = vld [vmem:[%s442 + $0x468] sm:$0xff]
        %v646 = vld [vmem:[%s442 + $0x470] sm:$0xff]
        %v647 = vld [vmem:[%s442 + $0x478] sm:$0xff]
        %v648 = vld [vmem:[%s442 + $0x480] sm:$0xff]
        %v649 = vld [vmem:[%s442 + $0x488] sm:$0xff]
        %v650 = vld [vmem:[%s442 + $0x490] sm:$0xff]
        %v651 = vld [vmem:[%s442 + $0x498] sm:$0xff]
        %v652 = vld [vmem:[%s442 + $0x4a0] sm:$0xff]
        %v653 = vld [vmem:[%s442 + $0x4a8] sm:$0xff]
        %v654 = vld [vmem:[%s442 + $0x4b0] sm:$0xff]
        %v655 = vld [vmem:[%s442 + $0x4b8] sm:$0xff]
        %v656 = vld [vmem:[%s442 + $0x4c0] sm:$0xff]
        %v657 = vld [vmem:[%s442 + $0x4c8] sm:$0xff]
        %v658 = vld [vmem:[%s442 + $0x4d0] sm:$0xff]
        %v659 = vld [vmem:[%s442 + $0x4d8] sm:$0xff]
        %v660 = vld [vmem:[%s442 + $0x4e0] sm:$0xff]
        %v661 = vld [vmem:[%s442 + $0x4e8] sm:$0xff]
        %v662 = vld [vmem:[%s442 + $0x4f0] sm:$0xff]
        %v663 = vld [vmem:[%s442 + $0x4f8] sm:$0xff]
        %v664 = vld [vmem:[%s442 + $0x500] sm:$0xff]
        %v665 = vld [vmem:[%s442 + $0x508] sm:$0xff]
        %v666 = vld [vmem:[%s442 + $0x510] sm:$0xff]
        %v667 = vld [vmem:[%s442 + $0x518] sm:$0xff]
        %v668 = vld [vmem:[%s442 + $0x520] sm:$0xff]
        %v669 = vld [vmem:[%s442 + $0x528] sm:$0xff]
        %v670 = vld [vmem:[%s442 + $0x530] sm:$0xff]
        %v671 = vld [vmem:[%s442 + $0x538] sm:$0xff]
        %v672 = vld [vmem:[%s442 + $0x540] sm:$0xff]
        %v673 = vld [vmem:[%s442 + $0x548] sm:$0xff]
        %v674 = vld [vmem:[%s442 + $0x550] sm:$0xff]
        %v675 = vld [vmem:[%s442 + $0x558] sm:$0xff]
        %v676 = vld [vmem:[%s442 + $0x560] sm:$0xff]
        %v677 = vld [vmem:[%s442 + $0x568] sm:$0xff]
        %v678 = vld [vmem:[%s442 + $0x570] sm:$0xff]
        %v679 = vld [vmem:[%s442 + $0x578] sm:$0xff]
        %v680 = vld [vmem:[%s442 + $0x580] sm:$0xff]
        %v681 = vld [vmem:[%s442 + $0x588] sm:$0xff]
        %v682 = vld [vmem:[%s442 + $0x590] sm:$0xff]
        %v683 = vld [vmem:[%s442 + $0x598] sm:$0xff]
        %v684 = vld [vmem:[%s442 + $0x5a0] sm:$0xff]
        %v685 = vld [vmem:[%s442 + $0x5a8] sm:$0xff]
        %v686 = vld [vmem:[%s442 + $0x5b0] sm:$0xff]
        %v687 = vld [vmem:[%s442 + $0x5b8] sm:$0xff]
        %v688 = vld [vmem:[%s442 + $0x5c0] sm:$0xff]
        %v689 = vld [vmem:[%s442 + $0x5c8] sm:$0xff]
        %v690 = vld [vmem:[%s442 + $0x5d0] sm:$0xff]
        %v691 = vld [vmem:[%s442 + $0x5d8] sm:$0xff]
        %v692 = vld [vmem:[%s442 + $0x5e0] sm:$0xff]
        %v693 = vld [vmem:[%s442 + $0x5e8] sm:$0xff]
        %v694 = vld [vmem:[%s442 + $0x5f0] sm:$0xff]
        %v695 = vld [vmem:[%s442 + $0x5f8] sm:$0xff]
        %v696 = vld [vmem:[%s442 + $0x600] sm:$0xff]
        %v697 = vld [vmem:[%s442 + $0x608] sm:$0xff]
        %v698 = vld [vmem:[%s442 + $0x610] sm:$0xff]
        %v699 = vld [vmem:[%s442 + $0x618] sm:$0xff]
        %v700 = vld [vmem:[%s442 + $0x620] sm:$0xff]
        %v701 = vld [vmem:[%s442 + $0x628] sm:$0xff]
        %v702 = vld [vmem:[%s442 + $0x630] sm:$0xff]
        %v703 = vld [vmem:[%s442 + $0x638] sm:$0xff]
        %v704 = vld [vmem:[%s442 + $0x640] sm:$0xff]
        %v705 = vld [vmem:[%s442 + $0x648] sm:$0xff]
        %v706 = vld [vmem:[%s442 + $0x650] sm:$0xff]
        %v707 = vld [vmem:[%s442 + $0x658] sm:$0xff]
        %v708 = vld [vmem:[%s442 + $0x660] sm:$0xff]
        %v709 = vld [vmem:[%s442 + $0x668] sm:$0xff]
        %v710 = vld [vmem:[%s442 + $0x670] sm:$0xff]
        %v711 = vld [vmem:[%s442 + $0x678] sm:$0xff]
        %v712 = vpack.c.bf16 %v505, %v504
        %v713 = vpack.c.bf16 %v507, %v506
        %v714 = vpack.c.bf16 %v509, %v508
        %v715 = vpack.c.bf16 %v511, %v510
        %v716 = vpack.c.bf16 %v513, %v512
        %v717 = vpack.c.bf16 %v515, %v514
        %v718 = vpack.c.bf16 %v517, %v516
        %v719 = vpack.c.bf16 %v519, %v518
        %v720 = vpack.c.bf16 %v521, %v520
        %v721 = vpack.c.bf16 %v523, %v522
        %v722 = vpack.c.bf16 %v525, %v524
        %v723 = vpack.c.bf16 %v527, %v526
        %v724 = vpack.c.bf16 %v529, %v528
        %v725 = vpack.c.bf16 %v531, %v530
        %v726 = vpack.c.bf16 %v533, %v532
        %v727 = vpack.c.bf16 %v535, %v534
        %v728 = vpack.c.bf16 %v537, %v536
        %v729 = vpack.c.bf16 %v539, %v538
        %v730 = vpack.c.bf16 %v541, %v540
        %v731 = vpack.c.bf16 %v543, %v542
        %v732 = vpack.c.bf16 %v545, %v544
        %v733 = vpack.c.bf16 %v547, %v546
        %v734 = vpack.c.bf16 %v549, %v548
        %v735 = vpack.c.bf16 %v551, %v550
        %v736 = vpack.c.bf16 %v553, %v552
        %v737 = vpack.c.bf16 %v555, %v554
        %v738 = vpack.c.bf16 %v557, %v556
        %v739 = vpack.c.bf16 %v559, %v558
        %v740 = vpack.c.bf16 %v561, %v560
        %v741 = vpack.c.bf16 %v563, %v562
        %v742 = vpack.c.bf16 %v565, %v564
        %v743 = vpack.c.bf16 %v567, %v566
        %v744 = vpack.c.bf16 %v569, %v568
        %v745 = vpack.c.bf16 %v571, %v570
        %v746 = vpack.c.bf16 %v573, %v572
        %v747 = vpack.c.bf16 %v575, %v574
        %v748 = vpack.c.bf16 %v577, %v576
        %v749 = vpack.c.bf16 %v579, %v578
        %v750 = vpack.c.bf16 %v581, %v580
        %v751 = vpack.c.bf16 %v583, %v582
        %v752 = vpack.c.bf16 %v585, %v584
        %v753 = vpack.c.bf16 %v587, %v586
        %v754 = vpack.c.bf16 %v589, %v588
        %v755 = vpack.c.bf16 %v591, %v590
        %v756 = vpack.c.bf16 %v593, %v592
        %v757 = vpack.c.bf16 %v595, %v594
        %v758 = vpack.c.bf16 %v597, %v596
        %v759 = vpack.c.bf16 %v599, %v598
        %v760 = vpack.c.bf16 %v601, %v600
        %v761 = vpack.c.bf16 %v603, %v602
        %v762 = vpack.c.bf16 %v605, %v604
        %v763 = vpack.c.bf16 %v607, %v606
        %v764 = vpack.c.bf16 %v609, %v608
        %v765 = vpack.c.bf16 %v611, %v610
        %v766 = vpack.c.bf16 %v613, %v612
        %v767 = vpack.c.bf16 %v615, %v614
        %v768 = vpack.c.bf16 %v617, %v616
        %v769 = vpack.c.bf16 %v619, %v618
        %v770 = vpack.c.bf16 %v621, %v620
        %v771 = vpack.c.bf16 %v623, %v622
        %v772 = vpack.c.bf16 %v625, %v624
        %v773 = vpack.c.bf16 %v627, %v626
        %v774 = vpack.c.bf16 %v629, %v628
        %v775 = vpack.c.bf16 %v631, %v630
        %v776 = vpack.c.bf16 %v633, %v632
        %v777 = vpack.c.bf16 %v635, %v634
        %v778 = vpack.c.bf16 %v637, %v636
        %v779 = vpack.c.bf16 %v639, %v638
        %v780 = vpack.c.bf16 %v641, %v640
        %v781 = vpack.c.bf16 %v643, %v642
        %v782 = vpack.c.bf16 %v645, %v644
        %v783 = vpack.c.bf16 %v647, %v646
        %v784 = vpack.c.bf16 %v649, %v648
        %v785 = vpack.c.bf16 %v651, %v650
        %v786 = vpack.c.bf16 %v653, %v652
        %v787 = vpack.c.bf16 %v655, %v654
        %v788 = vpack.c.bf16 %v657, %v656
        %v789 = vpack.c.bf16 %v659, %v658
        %v790 = vpack.c.bf16 %v661, %v660
        %v791 = vpack.c.bf16 %v663, %v662
        %v792 = vpack.c.bf16 %v665, %v664
        %v793 = vpack.c.bf16 %v667, %v666
        %v794 = vpack.c.bf16 %v669, %v668
        %v795 = vpack.c.bf16 %v671, %v670
        %v796 = vpack.c.bf16 %v673, %v672
        %v797 = vpack.c.bf16 %v675, %v674
        %v798 = vpack.c.bf16 %v677, %v676
        %v799 = vpack.c.bf16 %v679, %v678
        %v800 = vpack.c.bf16 %v681, %v680
        %v801 = vpack.c.bf16 %v683, %v682
        %v802 = vpack.c.bf16 %v685, %v684
        %v803 = vpack.c.bf16 %v687, %v686
        %v804 = vpack.c.bf16 %v689, %v688
        %v805 = vpack.c.bf16 %v691, %v690
        %v806 = vpack.c.bf16 %v693, %v692
        %v807 = vpack.c.bf16 %v695, %v694
        %v808 = vpack.c.bf16 %v697, %v696
        %v809 = vpack.c.bf16 %v699, %v698
        %v810 = vpack.c.bf16 %v701, %v700
        %v811 = vpack.c.bf16 %v703, %v702
        %v812 = vpack.c.bf16 %v705, %v704
        %v813 = vpack.c.bf16 %v707, %v706
        %v814 = vpack.c.bf16 %v709, %v708
        %v815 = vpack.c.bf16 %v711, %v710
        %v816 = vld [vmem:[#allocation6] sm:$0xff]
        %v817 = vld [vmem:[#allocation6 + $0x8] sm:$0xff]
        %v818 = vld [vmem:[#allocation6 + $0x10] sm:$0xff]
        %v819 = vld [vmem:[#allocation6 + $0x18] sm:$0xff]
        %v820 = vld [vmem:[#allocation6 + $0x20] sm:$0xff]
        %v821 = vld [vmem:[#allocation6 + $0x28] sm:$0xff]
        %v822 = vld [vmem:[#allocation6 + $0x30] sm:$0xf]
        %v823 = vld [vmem:[#allocation6 + $0x34] sm:$0xff]
        %v824 = vld [vmem:[#allocation6 + $0x3c] sm:$0xff]
        %v825 = vld [vmem:[#allocation6 + $0x44] sm:$0xff]
        %v826 = vld [vmem:[#allocation6 + $0x4c] sm:$0xff]
        %v827 = vld [vmem:[#allocation6 + $0x54] sm:$0xff]
        %v828 = vld [vmem:[#allocation6 + $0x5c] sm:$0xff]
        %v829 = vld [vmem:[#allocation6 + $0x64] sm:$0xf]
        %v830 = vld [vmem:[#allocation6 + $0x68] sm:$0xff]
        %v831 = vld [vmem:[#allocation6 + $0x70] sm:$0xff]
        %v832 = vld [vmem:[#allocation6 + $0x78] sm:$0xff]
        %v833 = vld [vmem:[#allocation6 + $0x80] sm:$0xff]
        %v834 = vld [vmem:[#allocation6 + $0x88] sm:$0xff]
        %v835 = vld [vmem:[#allocation6 + $0x90] sm:$0xff]
        %v836 = vld [vmem:[#allocation6 + $0x98] sm:$0xf]
        %v837 = vld [vmem:[#allocation6 + $0x9c] sm:$0xff]
        %v838 = vld [vmem:[#allocation6 + $0xa4] sm:$0xff]
        %v839 = vld [vmem:[#allocation6 + $0xac] sm:$0xff]
        %v840 = vld [vmem:[#allocation6 + $0xb4] sm:$0xff]
        %v841 = vld [vmem:[#allocation6 + $0xbc] sm:$0xff]
        %v842 = vld [vmem:[#allocation6 + $0xc4] sm:$0xff]
        %v843 = vld [vmem:[#allocation6 + $0xcc] sm:$0xf]
        %v844 = vld [vmem:[#allocation6 + $0xd0] sm:$0xff]
        %v845 = vld [vmem:[#allocation6 + $0xd8] sm:$0xff]
        %v846 = vld [vmem:[#allocation6 + $0xe0] sm:$0xff]
        %v847 = vld [vmem:[#allocation6 + $0xe8] sm:$0xff]
        %v848 = vld [vmem:[#allocation6 + $0xf0] sm:$0xff]
        %v849 = vld [vmem:[#allocation6 + $0xf8] sm:$0xff]
        %v850 = vld [vmem:[#allocation6 + $0x100] sm:$0xf]
        %v851 = vld [vmem:[#allocation6 + $0x104] sm:$0xff]
        %v852 = vld [vmem:[#allocation6 + $0x10c] sm:$0xff]
        %v853 = vld [vmem:[#allocation6 + $0x114] sm:$0xff]
        %v854 = vld [vmem:[#allocation6 + $0x11c] sm:$0xff]
        %v855 = vld [vmem:[#allocation6 + $0x124] sm:$0xff]
        %v856 = vld [vmem:[#allocation6 + $0x12c] sm:$0xff]
        %v857 = vld [vmem:[#allocation6 + $0x134] sm:$0xf]
        %v858 = vld [vmem:[#allocation6 + $0x138] sm:$0xff]
        %v859 = vld [vmem:[#allocation6 + $0x140] sm:$0xff]
        %v860 = vld [vmem:[#allocation6 + $0x148] sm:$0xff]
        %v861 = vld [vmem:[#allocation6 + $0x150] sm:$0xff]
        %v862 = vld [vmem:[#allocation6 + $0x158] sm:$0xff]
        %v863 = vld [vmem:[#allocation6 + $0x160] sm:$0xff]
        %v864 = vld [vmem:[#allocation6 + $0x168] sm:$0xf]
        %v865 = vld [vmem:[#allocation6 + $0x16c] sm:$0xff]
        %v866 = vld [vmem:[#allocation6 + $0x174] sm:$0xff]
        %v867 = vld [vmem:[#allocation6 + $0x17c] sm:$0xff]
        %v868 = vld [vmem:[#allocation6 + $0x184] sm:$0xff]
        %v869 = vld [vmem:[#allocation6 + $0x18c] sm:$0xff]
        %v870 = vld [vmem:[#allocation6 + $0x194] sm:$0xff]
        %v871 = vld [vmem:[#allocation6 + $0x19c] sm:$0xf]
        %v872 = vld [vmem:[#allocation6 + $0x1a0] sm:$0xff]
        %v873 = vld [vmem:[#allocation6 + $0x1a8] sm:$0xff]
        %v874 = vld [vmem:[#allocation6 + $0x1b0] sm:$0xff]
        %v875 = vld [vmem:[#allocation6 + $0x1b8] sm:$0xff]
        %v876 = vld [vmem:[#allocation6 + $0x1c0] sm:$0xff]
        %v877 = vld [vmem:[#allocation6 + $0x1c8] sm:$0xff]
        %v878 = vld [vmem:[#allocation6 + $0x1d0] sm:$0xf]
        %v879 = vld [vmem:[#allocation6 + $0x1d4] sm:$0xff]
        %v880 = vld [vmem:[#allocation6 + $0x1dc] sm:$0xff]
        %v881 = vld [vmem:[#allocation6 + $0x1e4] sm:$0xff]
        %v882 = vld [vmem:[#allocation6 + $0x1ec] sm:$0xff]
        %v883 = vld [vmem:[#allocation6 + $0x1f4] sm:$0xff]
        %v884 = vld [vmem:[#allocation6 + $0x1fc] sm:$0xff]
        %v885 = vld [vmem:[#allocation6 + $0x204] sm:$0xf]
        %v886 = vld [vmem:[#allocation6 + $0x208] sm:$0xff]
        %v887 = vld [vmem:[#allocation6 + $0x210] sm:$0xff]
        %v888 = vld [vmem:[#allocation6 + $0x218] sm:$0xff]
        %v889 = vld [vmem:[#allocation6 + $0x220] sm:$0xff]
        %v890 = vld [vmem:[#allocation6 + $0x228] sm:$0xff]
        %v891 = vld [vmem:[#allocation6 + $0x230] sm:$0xff]
        %v892 = vld [vmem:[#allocation6 + $0x238] sm:$0xf]
        %v893 = vld [vmem:[#allocation6 + $0x23c] sm:$0xff]
        %v894 = vld [vmem:[#allocation6 + $0x244] sm:$0xff]
        %v895 = vld [vmem:[#allocation6 + $0x24c] sm:$0xff]
        %v896 = vld [vmem:[#allocation6 + $0x254] sm:$0xff]
        %v897 = vld [vmem:[#allocation6 + $0x25c] sm:$0xff]
        %v898 = vld [vmem:[#allocation6 + $0x264] sm:$0xff]
        %v899 = vld [vmem:[#allocation6 + $0x26c] sm:$0xf]
        %v900 = vld [vmem:[#allocation6 + $0x270] sm:$0xff]
        %v901 = vld [vmem:[#allocation6 + $0x278] sm:$0xff]
        %v902 = vld [vmem:[#allocation6 + $0x280] sm:$0xff]
        %v903 = vld [vmem:[#allocation6 + $0x288] sm:$0xff]
        %v904 = vld [vmem:[#allocation6 + $0x290] sm:$0xff]
        %v905 = vld [vmem:[#allocation6 + $0x298] sm:$0xff]
        %v906 = vld [vmem:[#allocation6 + $0x2a0] sm:$0xf]
        %v907 = vld [vmem:[#allocation6 + $0x2a4] sm:$0xff]
        %v908 = vld [vmem:[#allocation6 + $0x2ac] sm:$0xff]
        %v909 = vld [vmem:[#allocation6 + $0x2b4] sm:$0xff]
        %v910 = vld [vmem:[#allocation6 + $0x2bc] sm:$0xff]
        %v911 = vld [vmem:[#allocation6 + $0x2c4] sm:$0xff]
        %v912 = vld [vmem:[#allocation6 + $0x2cc] sm:$0xff]
        %v913 = vld [vmem:[#allocation6 + $0x2d4] sm:$0xf]
        %v914 = vld [vmem:[#allocation6 + $0x2d8] sm:$0xff]
        %v915 = vld [vmem:[#allocation6 + $0x2e0] sm:$0xff]
        %v916 = vld [vmem:[#allocation6 + $0x2e8] sm:$0xff]
        %v917 = vld [vmem:[#allocation6 + $0x2f0] sm:$0xff]
        %v918 = vld [vmem:[#allocation6 + $0x2f8] sm:$0xff]
        %v919 = vld [vmem:[#allocation6 + $0x300] sm:$0xff]
        %v920 = vld [vmem:[#allocation6 + $0x308] sm:$0xf]
        %v921 = vld [vmem:[#allocation6 + $0x30c] sm:$0xff]
        %v922 = vld [vmem:[#allocation6 + $0x314] sm:$0xff]
        %v923 = vld [vmem:[#allocation6 + $0x31c] sm:$0xff]
        %v924 = vld [vmem:[#allocation6 + $0x324] sm:$0xff]
        %v925 = vld [vmem:[#allocation6 + $0x32c] sm:$0xff]
        %v926 = vld [vmem:[#allocation6 + $0x334] sm:$0xff]
        %v927 = vld [vmem:[#allocation6 + $0x33c] sm:$0xf]
        %v928 = vld [vmem:[%s3] sm:$0xff]
        %v929 = vld [vmem:[%s3 + $0x8] sm:$0xff]
        %v930 = vld [vmem:[%s3 + $0x10] sm:$0xff]
        %v931 = vld [vmem:[%s3 + $0x18] sm:$0xff]
        %v932 = vld [vmem:[%s3 + $0x20] sm:$0xff]
        %v933 = vld [vmem:[%s3 + $0x28] sm:$0xff]
        %v934 = vld [vmem:[%s3 + $0x30] sm:$0xff]
        %v935 = vld [vmem:[%s3 + $0x38] sm:$0xff]
        %v936 = vld [vmem:[%s3 + $0x40] sm:$0xff]
        %v937 = vld [vmem:[%s3 + $0x48] sm:$0xff]
        %v938 = vld [vmem:[%s3 + $0x50] sm:$0xff]
        %v939 = vld [vmem:[%s3 + $0x58] sm:$0xff]
        %v940 = vld [vmem:[%s3 + $0x60] sm:$0xff]
        %v941 = vld [vmem:[%s3 + $0x68] sm:$0xff]
        %v942 = vld [vmem:[%s3 + $0x70] sm:$0xff]
        %v943 = vld [vmem:[%s3 + $0x78] sm:$0xff]
        %945 = vset.pattern.permute.xlu0 0
        %946 = vperm.xlu0 %945, %v928
        %v947 = vpop.permute.xlu0 %946
        %950 = vset.pattern.permute.xlu0 0
        %951 = vperm.xlu0 %950, %v929
        %v952 = vpop.permute.xlu0 %951
        %955 = vset.pattern.permute.xlu0 0
        %956 = vperm.xlu0 %955, %v930
        %v957 = vpop.permute.xlu0 %956
        %960 = vset.pattern.permute.xlu0 0
        %961 = vperm.xlu0 %960, %v931
        %v962 = vpop.permute.xlu0 %961
        %965 = vset.pattern.permute.xlu0 0
        %966 = vperm.xlu0 %965, %v932
        %v967 = vpop.permute.xlu0 %966
        %970 = vset.pattern.permute.xlu0 0
        %971 = vperm.xlu0 %970, %v933
        %v972 = vpop.permute.xlu0 %971
        %975 = vset.pattern.permute.xlu0 0
        %976 = vperm.xlu0 %975, %v934
        %v977 = vpop.permute.xlu0 %976
        %980 = vset.pattern.permute.xlu0 0
        %981 = vperm.xlu0 %980, %v935
        %v982 = vpop.permute.xlu0 %981
        %985 = vset.pattern.permute.xlu0 0
        %986 = vperm.xlu0 %985, %v936
        %v987 = vpop.permute.xlu0 %986
        %990 = vset.pattern.permute.xlu0 0
        %991 = vperm.xlu0 %990, %v937
        %v992 = vpop.permute.xlu0 %991
        %995 = vset.pattern.permute.xlu0 0
        %996 = vperm.xlu0 %995, %v938
        %v997 = vpop.permute.xlu0 %996
        %1000 = vset.pattern.permute.xlu0 0
        %1001 = vperm.xlu0 %1000, %v939
        %v1002 = vpop.permute.xlu0 %1001
        %1005 = vset.pattern.permute.xlu0 0
        %1006 = vperm.xlu0 %1005, %v940
        %v1007 = vpop.permute.xlu0 %1006
        %1010 = vset.pattern.permute.xlu0 0
        %1011 = vperm.xlu0 %1010, %v941
        %v1012 = vpop.permute.xlu0 %1011
        %1015 = vset.pattern.permute.xlu0 0
        %1016 = vperm.xlu0 %1015, %v942
        %v1017 = vpop.permute.xlu0 %1016
        %1020 = vset.pattern.permute.xlu0 0
        %1021 = vperm.xlu0 %1020, %v943
        %v1022 = vpop.permute.xlu0 %1021
        %v1136 = vunpack.c.l.b16 %v816
        %v1137 = vunpack.c.h.b16 %v816
        %v1138 = vunpack.c.l.b16 %v817
        %v1139 = vunpack.c.h.b16 %v817
        %v1140 = vunpack.c.l.b16 %v818
        %v1141 = vunpack.c.h.b16 %v818
        %v1142 = vunpack.c.l.b16 %v819
        %v1143 = vunpack.c.h.b16 %v819
        %v1144 = vunpack.c.l.b16 %v820
        %v1145 = vunpack.c.h.b16 %v820
        %v1146 = vunpack.c.l.b16 %v821
        %v1147 = vunpack.c.h.b16 %v821
        %v1148 = vunpack.c.l.b16 %v822
        %v1149 = vunpack.c.l.b16 %v823
        %v1150 = vunpack.c.h.b16 %v823
        %v1151 = vunpack.c.l.b16 %v824
        %v1152 = vunpack.c.h.b16 %v824
        %v1153 = vunpack.c.l.b16 %v825
        %v1154 = vunpack.c.h.b16 %v825
        %v1155 = vunpack.c.l.b16 %v826
        %v1156 = vunpack.c.h.b16 %v826
        %v1157 = vunpack.c.l.b16 %v827
        %v1158 = vunpack.c.h.b16 %v827
        %v1159 = vunpack.c.l.b16 %v828
        %v1160 = vunpack.c.h.b16 %v828
        %v1161 = vunpack.c.l.b16 %v829
        %v1162 = vunpack.c.l.b16 %v830
        %v1163 = vunpack.c.h.b16 %v830
        %v1164 = vunpack.c.l.b16 %v831
        %v1165 = vunpack.c.h.b16 %v831
        %v1166 = vunpack.c.l.b16 %v832
        %v1167 = vunpack.c.h.b16 %v832
        %v1168 = vunpack.c.l.b16 %v833
        %v1169 = vunpack.c.h.b16 %v833
        %v1170 = vunpack.c.l.b16 %v834
        %v1171 = vunpack.c.h.b16 %v834
        %v1172 = vunpack.c.l.b16 %v835
        %v1173 = vunpack.c.h.b16 %v835
        %v1174 = vunpack.c.l.b16 %v836
        %v1175 = vunpack.c.l.b16 %v837
        %v1176 = vunpack.c.h.b16 %v837
        %v1177 = vunpack.c.l.b16 %v838
        %v1178 = vunpack.c.h.b16 %v838
        %v1179 = vunpack.c.l.b16 %v839
        %v1180 = vunpack.c.h.b16 %v839
        %v1181 = vunpack.c.l.b16 %v840
        %v1182 = vunpack.c.h.b16 %v840
        %v1183 = vunpack.c.l.b16 %v841
        %v1184 = vunpack.c.h.b16 %v841
        %v1185 = vunpack.c.l.b16 %v842
        %v1186 = vunpack.c.h.b16 %v842
        %v1187 = vunpack.c.l.b16 %v843
        %v1188 = vunpack.c.l.b16 %v844
        %v1189 = vunpack.c.h.b16 %v844
        %v1190 = vunpack.c.l.b16 %v845
        %v1191 = vunpack.c.h.b16 %v845
        %v1192 = vunpack.c.l.b16 %v846
        %v1193 = vunpack.c.h.b16 %v846
        %v1194 = vunpack.c.l.b16 %v847
        %v1195 = vunpack.c.h.b16 %v847
        %v1196 = vunpack.c.l.b16 %v848
        %v1197 = vunpack.c.h.b16 %v848
        %v1198 = vunpack.c.l.b16 %v849
        %v1199 = vunpack.c.h.b16 %v849
        %v1200 = vunpack.c.l.b16 %v850
        %v1201 = vunpack.c.l.b16 %v851
        %v1202 = vunpack.c.h.b16 %v851
        %v1203 = vunpack.c.l.b16 %v852
        %v1204 = vunpack.c.h.b16 %v852
        %v1205 = vunpack.c.l.b16 %v853
        %v1206 = vunpack.c.h.b16 %v853
        %v1207 = vunpack.c.l.b16 %v854
        %v1208 = vunpack.c.h.b16 %v854
        %v1209 = vunpack.c.l.b16 %v855
        %v1210 = vunpack.c.h.b16 %v855
        %v1211 = vunpack.c.l.b16 %v856
        %v1212 = vunpack.c.h.b16 %v856
        %v1213 = vunpack.c.l.b16 %v857
        %v1214 = vunpack.c.l.b16 %v858
        %v1215 = vunpack.c.h.b16 %v858
        %v1216 = vunpack.c.l.b16 %v859
        %v1217 = vunpack.c.h.b16 %v859
        %v1218 = vunpack.c.l.b16 %v860
        %v1219 = vunpack.c.h.b16 %v860
        %v1220 = vunpack.c.l.b16 %v861
        %v1221 = vunpack.c.h.b16 %v861
        %v1222 = vunpack.c.l.b16 %v862
        %v1223 = vunpack.c.h.b16 %v862
        %v1224 = vunpack.c.l.b16 %v863
        %v1225 = vunpack.c.h.b16 %v863
        %v1226 = vunpack.c.l.b16 %v864
        %v1227 = vunpack.c.l.b16 %v865
        %v1228 = vunpack.c.h.b16 %v865
        %v1229 = vunpack.c.l.b16 %v866
        %v1230 = vunpack.c.h.b16 %v866
        %v1231 = vunpack.c.l.b16 %v867
        %v1232 = vunpack.c.h.b16 %v867
        %v1233 = vunpack.c.l.b16 %v868
        %v1234 = vunpack.c.h.b16 %v868
        %v1235 = vunpack.c.l.b16 %v869
        %v1236 = vunpack.c.h.b16 %v869
        %v1237 = vunpack.c.l.b16 %v870
        %v1238 = vunpack.c.h.b16 %v870
        %v1239 = vunpack.c.l.b16 %v871
        %v1240 = vunpack.c.l.b16 %v872
        %v1241 = vunpack.c.h.b16 %v872
        %v1242 = vunpack.c.l.b16 %v873
        %v1243 = vunpack.c.h.b16 %v873
        %v1244 = vunpack.c.l.b16 %v874
        %v1245 = vunpack.c.h.b16 %v874
        %v1246 = vunpack.c.l.b16 %v875
        %v1247 = vunpack.c.h.b16 %v875
        %v1248 = vunpack.c.l.b16 %v876
        %v1249 = vunpack.c.h.b16 %v876
        %v1250 = vunpack.c.l.b16 %v877
        %v1251 = vunpack.c.h.b16 %v877
        %v1252 = vunpack.c.l.b16 %v878
        %v1253 = vunpack.c.l.b16 %v879
        %v1254 = vunpack.c.h.b16 %v879
        %v1255 = vunpack.c.l.b16 %v880
        %v1256 = vunpack.c.h.b16 %v880
        %v1257 = vunpack.c.l.b16 %v881
        %v1258 = vunpack.c.h.b16 %v881
        %v1259 = vunpack.c.l.b16 %v882
        %v1260 = vunpack.c.h.b16 %v882
        %v1261 = vunpack.c.l.b16 %v883
        %v1262 = vunpack.c.h.b16 %v883
        %v1263 = vunpack.c.l.b16 %v884
        %v1264 = vunpack.c.h.b16 %v884
        %v1265 = vunpack.c.l.b16 %v885
        %v1266 = vunpack.c.l.b16 %v886
        %v1267 = vunpack.c.h.b16 %v886
        %v1268 = vunpack.c.l.b16 %v887
        %v1269 = vunpack.c.h.b16 %v887
        %v1270 = vunpack.c.l.b16 %v888
        %v1271 = vunpack.c.h.b16 %v888
        %v1272 = vunpack.c.l.b16 %v889
        %v1273 = vunpack.c.h.b16 %v889
        %v1274 = vunpack.c.l.b16 %v890
        %v1275 = vunpack.c.h.b16 %v890
        %v1276 = vunpack.c.l.b16 %v891
        %v1277 = vunpack.c.h.b16 %v891
        %v1278 = vunpack.c.l.b16 %v892
        %v1279 = vunpack.c.l.b16 %v893
        %v1280 = vunpack.c.h.b16 %v893
        %v1281 = vunpack.c.l.b16 %v894
        %v1282 = vunpack.c.h.b16 %v894
        %v1283 = vunpack.c.l.b16 %v895
        %v1284 = vunpack.c.h.b16 %v895
        %v1285 = vunpack.c.l.b16 %v896
        %v1286 = vunpack.c.h.b16 %v896
        %v1287 = vunpack.c.l.b16 %v897
        %v1288 = vunpack.c.h.b16 %v897
        %v1289 = vunpack.c.l.b16 %v898
        %v1290 = vunpack.c.h.b16 %v898
        %v1291 = vunpack.c.l.b16 %v899
        %v1292 = vunpack.c.l.b16 %v900
        %v1293 = vunpack.c.h.b16 %v900
        %v1294 = vunpack.c.l.b16 %v901
        %v1295 = vunpack.c.h.b16 %v901
        %v1296 = vunpack.c.l.b16 %v902
        %v1297 = vunpack.c.h.b16 %v902
        %v1298 = vunpack.c.l.b16 %v903
        %v1299 = vunpack.c.h.b16 %v903
        %v1300 = vunpack.c.l.b16 %v904
        %v1301 = vunpack.c.h.b16 %v904
        %v1302 = vunpack.c.l.b16 %v905
        %v1303 = vunpack.c.h.b16 %v905
        %v1304 = vunpack.c.l.b16 %v906
        %v1305 = vunpack.c.l.b16 %v907
        %v1306 = vunpack.c.h.b16 %v907
        %v1307 = vunpack.c.l.b16 %v908
        %v1308 = vunpack.c.h.b16 %v908
        %v1309 = vunpack.c.l.b16 %v909
        %v1310 = vunpack.c.h.b16 %v909
        %v1311 = vunpack.c.l.b16 %v910
        %v1312 = vunpack.c.h.b16 %v910
        %v1313 = vunpack.c.l.b16 %v911
        %v1314 = vunpack.c.h.b16 %v911
        %v1315 = vunpack.c.l.b16 %v912
        %v1316 = vunpack.c.h.b16 %v912
        %v1317 = vunpack.c.l.b16 %v913
        %v1318 = vunpack.c.l.b16 %v914
        %v1319 = vunpack.c.h.b16 %v914
        %v1320 = vunpack.c.l.b16 %v915
        %v1321 = vunpack.c.h.b16 %v915
        %v1322 = vunpack.c.l.b16 %v916
        %v1323 = vunpack.c.h.b16 %v916
        %v1324 = vunpack.c.l.b16 %v917
        %v1325 = vunpack.c.h.b16 %v917
        %v1326 = vunpack.c.l.b16 %v918
        %v1327 = vunpack.c.h.b16 %v918
        %v1328 = vunpack.c.l.b16 %v919
        %v1329 = vunpack.c.h.b16 %v919
        %v1330 = vunpack.c.l.b16 %v920
        %v1331 = vunpack.c.l.b16 %v921
        %v1332 = vunpack.c.h.b16 %v921
        %v1333 = vunpack.c.l.b16 %v922
        %v1334 = vunpack.c.h.b16 %v922
        %v1335 = vunpack.c.l.b16 %v923
        %v1336 = vunpack.c.h.b16 %v923
        %v1337 = vunpack.c.l.b16 %v924
        %v1338 = vunpack.c.h.b16 %v924
        %v1339 = vunpack.c.l.b16 %v925
        %v1340 = vunpack.c.h.b16 %v925
        %v1341 = vunpack.c.l.b16 %v926
        %v1342 = vunpack.c.h.b16 %v926
        %v1343 = vunpack.c.l.b16 %v927
        %v1344 = vpack.c.b16 %v1149, %v1136
        %v1345 = vpack.c.b16 %v1150, %v1137
        %v1346 = vpack.c.b16 %v1151, %v1138
        %v1347 = vpack.c.b16 %v1152, %v1139
        %v1348 = vpack.c.b16 %v1153, %v1140
        %v1349 = vpack.c.b16 %v1154, %v1141
        %v1350 = vpack.c.b16 %v1155, %v1142
        %v1351 = vpack.c.b16 %v1156, %v1143
        %v1352 = vpack.c.b16 %v1157, %v1144
        %v1353 = vpack.c.b16 %v1158, %v1145
        %v1354 = vpack.c.b16 %v1159, %v1146
        %v1355 = vpack.c.b16 %v1160, %v1147
        %v1356 = vpack.c.b16 %v1161, %v1148
        %v1357 = vpack.c.b16 %v1175, %v1162
        %v1358 = vpack.c.b16 %v1176, %v1163
        %v1359 = vpack.c.b16 %v1177, %v1164
        %v1360 = vpack.c.b16 %v1178, %v1165
        %v1361 = vpack.c.b16 %v1179, %v1166
        %v1362 = vpack.c.b16 %v1180, %v1167
        %v1363 = vpack.c.b16 %v1181, %v1168
        %v1364 = vpack.c.b16 %v1182, %v1169
        %v1365 = vpack.c.b16 %v1183, %v1170
        %v1366 = vpack.c.b16 %v1184, %v1171
        %v1367 = vpack.c.b16 %v1185, %v1172
        %v1368 = vpack.c.b16 %v1186, %v1173
        %v1369 = vpack.c.b16 %v1187, %v1174
        %v1370 = vpack.c.b16 %v1201, %v1188
        %v1371 = vpack.c.b16 %v1202, %v1189
        %v1372 = vpack.c.b16 %v1203, %v1190
        %v1373 = vpack.c.b16 %v1204, %v1191
        %v1374 = vpack.c.b16 %v1205, %v1192
        %v1375 = vpack.c.b16 %v1206, %v1193
        %v1376 = vpack.c.b16 %v1207, %v1194
        %v1377 = vpack.c.b16 %v1208, %v1195
        %v1378 = vpack.c.b16 %v1209, %v1196
        %v1379 = vpack.c.b16 %v1210, %v1197
        %v1380 = vpack.c.b16 %v1211, %v1198
        %v1381 = vpack.c.b16 %v1212, %v1199
        %v1382 = vpack.c.b16 %v1213, %v1200
        %v1383 = vpack.c.b16 %v1227, %v1214
        %v1384 = vpack.c.b16 %v1228, %v1215
        %v1385 = vpack.c.b16 %v1229, %v1216
        %v1386 = vpack.c.b16 %v1230, %v1217
        %v1387 = vpack.c.b16 %v1231, %v1218
        %v1388 = vpack.c.b16 %v1232, %v1219
        %v1389 = vpack.c.b16 %v1233, %v1220
        %v1390 = vpack.c.b16 %v1234, %v1221
        %v1391 = vpack.c.b16 %v1235, %v1222
        %v1392 = vpack.c.b16 %v1236, %v1223
        %v1393 = vpack.c.b16 %v1237, %v1224
        %v1394 = vpack.c.b16 %v1238, %v1225
        %v1395 = vpack.c.b16 %v1239, %v1226
        %v1396 = vpack.c.b16 %v1253, %v1240
        %v1397 = vpack.c.b16 %v1254, %v1241
        %v1398 = vpack.c.b16 %v1255, %v1242
        %v1399 = vpack.c.b16 %v1256, %v1243
        %v1400 = vpack.c.b16 %v1257, %v1244
        %v1401 = vpack.c.b16 %v1258, %v1245
        %v1402 = vpack.c.b16 %v1259, %v1246
        %v1403 = vpack.c.b16 %v1260, %v1247
        %v1404 = vpack.c.b16 %v1261, %v1248
        %v1405 = vpack.c.b16 %v1262, %v1249
        %v1406 = vpack.c.b16 %v1263, %v1250
        %v1407 = vpack.c.b16 %v1264, %v1251
        %v1408 = vpack.c.b16 %v1265, %v1252
        %v1409 = vpack.c.b16 %v1279, %v1266
        %v1410 = vpack.c.b16 %v1280, %v1267
        %v1411 = vpack.c.b16 %v1281, %v1268
        %v1412 = vpack.c.b16 %v1282, %v1269
        %v1413 = vpack.c.b16 %v1283, %v1270
        %v1414 = vpack.c.b16 %v1284, %v1271
        %v1415 = vpack.c.b16 %v1285, %v1272
        %v1416 = vpack.c.b16 %v1286, %v1273
        %v1417 = vpack.c.b16 %v1287, %v1274
        %v1418 = vpack.c.b16 %v1288, %v1275
        %v1419 = vpack.c.b16 %v1289, %v1276
        %v1420 = vpack.c.b16 %v1290, %v1277
        %v1421 = vpack.c.b16 %v1291, %v1278
        %v1422 = vpack.c.b16 %v1305, %v1292
        %v1423 = vpack.c.b16 %v1306, %v1293
        %v1424 = vpack.c.b16 %v1307, %v1294
        %v1425 = vpack.c.b16 %v1308, %v1295
        %v1426 = vpack.c.b16 %v1309, %v1296
        %v1427 = vpack.c.b16 %v1310, %v1297
        %v1428 = vpack.c.b16 %v1311, %v1298
        %v1429 = vpack.c.b16 %v1312, %v1299
        %v1430 = vpack.c.b16 %v1313, %v1300
        %v1431 = vpack.c.b16 %v1314, %v1301
        %v1432 = vpack.c.b16 %v1315, %v1302
        %v1433 = vpack.c.b16 %v1316, %v1303
        %v1434 = vpack.c.b16 %v1317, %v1304
        %v1435 = vpack.c.b16 %v1331, %v1318
        %v1436 = vpack.c.b16 %v1332, %v1319
        %v1437 = vpack.c.b16 %v1333, %v1320
        %v1438 = vpack.c.b16 %v1334, %v1321
        %v1439 = vpack.c.b16 %v1335, %v1322
        %v1440 = vpack.c.b16 %v1336, %v1323
        %v1441 = vpack.c.b16 %v1337, %v1324
        %v1442 = vpack.c.b16 %v1338, %v1325
        %v1443 = vpack.c.b16 %v1339, %v1326
        %v1444 = vpack.c.b16 %v1340, %v1327
        %v1445 = vpack.c.b16 %v1341, %v1328
        %v1446 = vpack.c.b16 %v1342, %v1329
        %v1447 = vpack.c.b16 %v1343, %v1330
        %1552 = vmatprep.subr.bf16.mxu0 0
        %1553 = vmatpush1.bf16.msra.mxu0 %v712
        %1554 = vmatprep.subr.bf16.mxu0 0
        %1555 = vmatpush1.bf16.msra.mxu0 %v713
        %1556 = vmatprep.subr.bf16.mxu0 0
        %1557 = vmatpush1.bf16.msra.mxu0 %v714
        %1558 = vmatprep.subr.bf16.mxu0 0
        %1559 = vmatpush1.bf16.msra.mxu0 %v715
        %1560 = vmatprep.subr.bf16.mxu0 0
        %1561 = vmatpush1.bf16.msra.mxu0 %v716
        %1562 = vmatprep.subr.bf16.mxu0 0
        %1563 = vmatpush1.bf16.msra.mxu0 %v717
        %1564 = vmatprep.subr.bf16.mxu0 0
        %1565 = vmatpush1.bf16.msra.mxu0 %v718
        %1566 = vmatprep.subr.bf16.mxu0 0
        %1567 = vmatpush1.bf16.msra.mxu0 %v719
        %1568 = vmatprep.subr.bf16.mxu0 0
        %1569 = vmatpush1.bf16.msra.mxu0 %v720
        %1570 = vmatprep.subr.bf16.mxu0 0
        %1571 = vmatpush1.bf16.msra.mxu0 %v721
        %1572 = vmatprep.subr.bf16.mxu0 0
        %1573 = vmatpush1.bf16.msra.mxu0 %v722
        %1574 = vmatprep.subr.bf16.mxu0 0
        %1575 = vmatpush1.bf16.msra.mxu0 %v723
        %1576 = vmatprep.subr.bf16.mxu0 0
        %1577 = vmatpush1.bf16.msra.mxu0 %v724
        %1578 = vmatprep.subr.bf16.mxu0 0
        %1579 = vmatpush1.bf16.msra.mxu0 %v725
        %1580 = vmatprep.subr.bf16.mxu0 0
        %1581 = vmatpush1.bf16.msra.mxu0 %v726
        %1582 = vmatprep.subr.bf16.mxu0 0
        %1583 = vmatpush1.bf16.msra.mxu0 %v727
        %1584 = vmatprep.mubr.bf16.mxu0 %v1345
        %1585 = vmatmul.mubr.bf16.gmra.mrb[0].mxu0 %v1344
        %v1586 = vpop.f32.mrb[0].mxu0
        %v1587 = vadd.f32 %v947, %v1586
        %v1588 = vpop.f32.mrb[0].mxu0
        %v1589 = vpop.f32.mrb[0].mxu0
        %v1590 = vadd.f32 %v952, %v1589
        %v1591 = vpop.f32.mrb[0].mxu0
        %1592 = vmatprep.mubr.bf16.mxu0 %v1358
        %1593 = vmatmul.mubr.bf16.gmra.mrb[0].mxu0 %v1357
        %v1594 = vpop.f32.mrb[0].mxu0
        %v1595 = vadd.f32 %v957, %v1594
        %v1596 = vpop.f32.mrb[0].mxu0
        %v1597 = vpop.f32.mrb[0].mxu0
        %v1598 = vadd.f32 %v962, %v1597
        %v1599 = vpop.f32.mrb[0].mxu0
        %1600 = vmatprep.mubr.bf16.mxu0 %v1371
        %1601 = vmatmul.mubr.bf16.gmra.mrb[0].mxu0 %v1370
        %v1602 = vpop.f32.mrb[0].mxu0
        %v1603 = vadd.f32 %v967, %v1602
        %v1604 = vpop.f32.mrb[0].mxu0
        %v1605 = vpop.f32.mrb[0].mxu0
        %v1606 = vadd.f32 %v972, %v1605
        %v1607 = vpop.f32.mrb[0].mxu0
        %1608 = vmatprep.mubr.bf16.mxu0 %v1384
        %1609 = vmatmul.mubr.bf16.gmra.mrb[0].mxu0 %v1383
        %v1610 = vpop.f32.mrb[0].mxu0
        %v1611 = vadd.f32 %v977, %v1610
        %v1612 = vpop.f32.mrb[0].mxu0
        %v1613 = vpop.f32.mrb[0].mxu0
        %v1614 = vadd.f32 %v982, %v1613
        %v1615 = vpop.f32.mrb[0].mxu0
        %1616 = vmatprep.mubr.bf16.mxu0 %v1397
        %1617 = vmatmul.mubr.bf16.gmra.mrb[0].mxu0 %v1396
        %v1618 = vpop.f32.mrb[0].mxu0
        %v1619 = vadd.f32 %v987, %v1618
        %v1620 = vpop.f32.mrb[0].mxu0
        %v1621 = vpop.f32.mrb[0].mxu0
        %v1622 = vadd.f32 %v992, %v1621
        %v1623 = vpop.f32.mrb[0].mxu0
        %1624 = vmatprep.mubr.bf16.mxu0 %v1410
        %1625 = vmatmul.mubr.bf16.gmra.mrb[0].mxu0 %v1409
        %v1626 = vpop.f32.mrb[0].mxu0
        %v1627 = vadd.f32 %v997, %v1626
        %v1628 = vpop.f32.mrb[0].mxu0
        %v1629 = vpop.f32.mrb[0].mxu0
        %v1630 = vadd.f32 %v1002, %v1629
        %v1631 = vpop.f32.mrb[0].mxu0
        %1632 = vmatprep.mubr.bf16.mxu0 %v1423
        %1633 = vmatmul.mubr.bf16.gmra.mrb[0].mxu0 %v1422
        %v1634 = vpop.f32.mrb[0].mxu0
        %v1635 = vadd.f32 %v1007, %v1634
        %v1636 = vpop.f32.mrb[0].mxu0
        %v1637 = vpop.f32.mrb[0].mxu0
        %v1638 = vadd.f32 %v1012, %v1637
        %v1639 = vpop.f32.mrb[0].mxu0
        %1640 = vmatprep.mubr.bf16.mxu0 %v1436
        %1641 = vmatmul.mubr.bf16.gmra.mrb[0].mxu0 %v1435
        %v1642 = vpop.f32.mrb[0].mxu0
        %v1643 = vadd.f32 %v1017, %v1642
        %v1644 = vpop.f32.mrb[0].mxu0
        %v1645 = vpop.f32.mrb[0].mxu0
        %v1646 = vadd.f32 %v1022, %v1645
        %v1647 = vpop.f32.mrb[0].mxu0
        %1648 = vdwg.mxu0
        %1649 = vmatprep.subr.bf16.mxu0 0
        %1650 = vmatpush1.bf16.msra.mxu0 %v728
        %1651 = vmatprep.subr.bf16.mxu0 0
        %1652 = vmatpush1.bf16.msra.mxu0 %v729
        %1653 = vmatprep.subr.bf16.mxu0 0
        %1654 = vmatpush1.bf16.msra.mxu0 %v730
        %1655 = vmatprep.subr.bf16.mxu0 0
        %1656 = vmatpush1.bf16.msra.mxu0 %v731
        %1657 = vmatprep.subr.bf16.mxu0 0
        %1658 = vmatpush1.bf16.msra.mxu0 %v732
        %1659 = vmatprep.subr.bf16.mxu0 0
        %1660 = vmatpush1.bf16.msra.mxu0 %v733
        %1661 = vmatprep.subr.bf16.mxu0 0
        %1662 = vmatpush1.bf16.msra.mxu0 %v734
        %1663 = vmatprep.subr.bf16.mxu0 0
        %1664 = vmatpush1.bf16.msra.mxu0 %v735
        %1665 = vmatprep.subr.bf16.mxu0 0
        %1666 = vmatpush1.bf16.msra.mxu0 %v736
        %1667 = vmatprep.subr.bf16.mxu0 0
        %1668 = vmatpush1.bf16.msra.mxu0 %v737
        %1669 = vmatprep.subr.bf16.mxu0 0
        %1670 = vmatpush1.bf16.msra.mxu0 %v738
        %1671 = vmatprep.subr.bf16.mxu0 0
        %1672 = vmatpush1.bf16.msra.mxu0 %v739
        %1673 = vmatprep.subr.bf16.mxu0 0
        %1674 = vmatpush1.bf16.msra.mxu0 %v740
        %1675 = vmatprep.subr.bf16.mxu0 0
        %1676 = vmatpush1.bf16.msra.mxu0 %v741
        %1677 = vmatprep.subr.bf16.mxu0 0
        %1678 = vmatpush1.bf16.msra.mxu0 %v742
        %1679 = vmatprep.subr.bf16.mxu0 0
        %1680 = vmatpush1.bf16.msra.mxu0 %v743
        %1681 = vmatprep.mubr.bf16.mxu0 %v1347
        %1682 = vmatmul.mubr.bf16.gmra.mrb[0].mxu0 %v1346
        %v1683 = vpop.f32.mrb[0].mxu0
        %v1684 = vadd.f32 %v1587, %v1683
        %v1685 = vpop.f32.mrb[0].mxu0
        %v1686 = vpop.f32.mrb[0].mxu0
        %v1687 = vadd.f32 %v1590, %v1686
        %v1688 = vpop.f32.mrb[0].mxu0
        %1689 = vmatprep.mubr.bf16.mxu0 %v1360
        %1690 = vmatmul.mubr.bf16.gmra.mrb[0].mxu0 %v1359
        %v1691 = vpop.f32.mrb[0].mxu0
        %v1692 = vadd.f32 %v1595, %v1691
        %v1693 = vpop.f32.mrb[0].mxu0
        %v1694 = vpop.f32.mrb[0].mxu0
        %v1695 = vadd.f32 %v1598, %v1694
        %v1696 = vpop.f32.mrb[0].mxu0
        %1697 = vmatprep.mubr.bf16.mxu0 %v1373
        %1698 = vmatmul.mubr.bf16.gmra.mrb[0].mxu0 %v1372
        %v1699 = vpop.f32.mrb[0].mxu0
        %v1700 = vadd.f32 %v1603, %v1699
        %v1701 = vpop.f32.mrb[0].mxu0
        %v1702 = vpop.f32.mrb[0].mxu0
        %v1703 = vadd.f32 %v1606, %v1702
        %v1704 = vpop.f32.mrb[0].mxu0
        %1705 = vmatprep.mubr.bf16.mxu0 %v1386
        %1706 = vmatmul.mubr.bf16.gmra.mrb[0].mxu0 %v1385
        %v1707 = vpop.f32.mrb[0].mxu0
        %v1708 = vadd.f32 %v1611, %v1707
        %v1709 = vpop.f32.mrb[0].mxu0
        %v1710 = vpop.f32.mrb[0].mxu0
        %v1711 = vadd.f32 %v1614, %v1710
        %v1712 = vpop.f32.mrb[0].mxu0
        %1713 = vmatprep.mubr.bf16.mxu0 %v1399
        %1714 = vmatmul.mubr.bf16.gmra.mrb[0].mxu0 %v1398
        %v1715 = vpop.f32.mrb[0].mxu0
        %v1716 = vadd.f32 %v1619, %v1715
        %v1717 = vpop.f32.mrb[0].mxu0
        %v1718 = vpop.f32.mrb[0].mxu0
        %v1719 = vadd.f32 %v1622, %v1718
        %v1720 = vpop.f32.mrb[0].mxu0
        %1721 = vmatprep.mubr.bf16.mxu0 %v1412
        %1722 = vmatmul.mubr.bf16.gmra.mrb[0].mxu0 %v1411
        %v1723 = vpop.f32.mrb[0].mxu0
        %v1724 = vadd.f32 %v1627, %v1723
        %v1725 = vpop.f32.mrb[0].mxu0
        %v1726 = vpop.f32.mrb[0].mxu0
        %v1727 = vadd.f32 %v1630, %v1726
        %v1728 = vpop.f32.mrb[0].mxu0
        %1729 = vmatprep.mubr.bf16.mxu0 %v1425
        %1730 = vmatmul.mubr.bf16.gmra.mrb[0].mxu0 %v1424
        %v1731 = vpop.f32.mrb[0].mxu0
        %v1732 = vadd.f32 %v1635, %v1731
        %v1733 = vpop.f32.mrb[0].mxu0
        %v1734 = vpop.f32.mrb[0].mxu0
        %v1735 = vadd.f32 %v1638, %v1734
        %v1736 = vpop.f32.mrb[0].mxu0
        %1737 = vmatprep.mubr.bf16.mxu0 %v1438
        %1738 = vmatmul.mubr.bf16.gmra.mrb[0].mxu0 %v1437
        %v1739 = vpop.f32.mrb[0].mxu0
        %v1740 = vadd.f32 %v1643, %v1739
        %v1741 = vpop.f32.mrb[0].mxu0
        %v1742 = vpop.f32.mrb[0].mxu0
        %v1743 = vadd.f32 %v1646, %v1742
        %v1744 = vpop.f32.mrb[0].mxu0
        %1745 = vdwg.mxu0
        %1746 = vmatprep.subr.bf16.mxu0 0
        %1747 = vmatpush1.bf16.msra.mxu0 %v744
        %1748 = vmatprep.subr.bf16.mxu0 0
        %1749 = vmatpush1.bf16.msra.mxu0 %v745
        %1750 = vmatprep.subr.bf16.mxu0 0
        %1751 = vmatpush1.bf16.msra.mxu0 %v746
        %1752 = vmatprep.subr.bf16.mxu0 0
        %1753 = vmatpush1.bf16.msra.mxu0 %v747
        %1754 = vmatprep.subr.bf16.mxu0 0
        %1755 = vmatpush1.bf16.msra.mxu0 %v748
        %1756 = vmatprep.subr.bf16.mxu0 0
        %1757 = vmatpush1.bf16.msra.mxu0 %v749
        %1758 = vmatprep.subr.bf16.mxu0 0
        %1759 = vmatpush1.bf16.msra.mxu0 %v750
        %1760 = vmatprep.subr.bf16.mxu0 0
        %1761 = vmatpush1.bf16.msra.mxu0 %v751
        %1762 = vmatprep.subr.bf16.mxu0 0
        %1763 = vmatpush1.bf16.msra.mxu0 %v752
        %1764 = vmatprep.subr.bf16.mxu0 0
        %1765 = vmatpush1.bf16.msra.mxu0 %v753
        %1766 = vmatprep.subr.bf16.mxu0 0
        %1767 = vmatpush1.bf16.msra.mxu0 %v754
        %1768 = vmatprep.subr.bf16.mxu0 0
        %1769 = vmatpush1.bf16.msra.mxu0 %v755
        %1770 = vmatprep.subr.bf16.mxu0 0
        %1771 = vmatpush1.bf16.msra.mxu0 %v756
        %1772 = vmatprep.subr.bf16.mxu0 0
        %1773 = vmatpush1.bf16.msra.mxu0 %v757
        %1774 = vmatprep.subr.bf16.mxu0 0
        %1775 = vmatpush1.bf16.msra.mxu0 %v758
        %1776 = vmatprep.subr.bf16.mxu0 0
        %1777 = vmatpush1.bf16.msra.mxu0 %v759
        %1778 = vmatprep.mubr.bf16.mxu0 %v1349
        %1779 = vmatmul.mubr.bf16.gmra.mrb[0].mxu0 %v1348
        %v1780 = vpop.f32.mrb[0].mxu0
        %v1781 = vadd.f32 %v1684, %v1780
        %v1782 = vpop.f32.mrb[0].mxu0
        %v1783 = vpop.f32.mrb[0].mxu0
        %v1784 = vadd.f32 %v1687, %v1783
        %v1785 = vpop.f32.mrb[0].mxu0
        %1786 = vmatprep.mubr.bf16.mxu0 %v1362
        %1787 = vmatmul.mubr.bf16.gmra.mrb[0].mxu0 %v1361
        %v1788 = vpop.f32.mrb[0].mxu0
        %v1789 = vadd.f32 %v1692, %v1788
        %v1790 = vpop.f32.mrb[0].mxu0
        %v1791 = vpop.f32.mrb[0].mxu0
        %v1792 = vadd.f32 %v1695, %v1791
        %v1793 = vpop.f32.mrb[0].mxu0
        %1794 = vmatprep.mubr.bf16.mxu0 %v1375
        %1795 = vmatmul.mubr.bf16.gmra.mrb[0].mxu0 %v1374
        %v1796 = vpop.f32.mrb[0].mxu0
        %v1797 = vadd.f32 %v1700, %v1796
        %v1798 = vpop.f32.mrb[0].mxu0
        %v1799 = vpop.f32.mrb[0].mxu0
        %v1800 = vadd.f32 %v1703, %v1799
        %v1801 = vpop.f32.mrb[0].mxu0
        %1802 = vmatprep.mubr.bf16.mxu0 %v1388
        %1803 = vmatmul.mubr.bf16.gmra.mrb[0].mxu0 %v1387
        %v1804 = vpop.f32.mrb[0].mxu0
        %v1805 = vadd.f32 %v1708, %v1804
        %v1806 = vpop.f32.mrb[0].mxu0
        %v1807 = vpop.f32.mrb[0].mxu0
        %v1808 = vadd.f32 %v1711, %v1807
        %v1809 = vpop.f32.mrb[0].mxu0
        %1810 = vmatprep.mubr.bf16.mxu0 %v1401
        %1811 = vmatmul.mubr.bf16.gmra.mrb[0].mxu0 %v1400
        %v1812 = vpop.f32.mrb[0].mxu0
        %v1813 = vadd.f32 %v1716, %v1812
        %v1814 = vpop.f32.mrb[0].mxu0
        %v1815 = vpop.f32.mrb[0].mxu0
        %v1816 = vadd.f32 %v1719, %v1815
        %v1817 = vpop.f32.mrb[0].mxu0
        %1818 = vmatprep.mubr.bf16.mxu0 %v1414
        %1819 = vmatmul.mubr.bf16.gmra.mrb[0].mxu0 %v1413
        %v1820 = vpop.f32.mrb[0].mxu0
        %v1821 = vadd.f32 %v1724, %v1820
        %v1822 = vpop.f32.mrb[0].mxu0
        %v1823 = vpop.f32.mrb[0].mxu0
        %v1824 = vadd.f32 %v1727, %v1823
        %v1825 = vpop.f32.mrb[0].mxu0
        %1826 = vmatprep.mubr.bf16.mxu0 %v1427
        %1827 = vmatmul.mubr.bf16.gmra.mrb[0].mxu0 %v1426
        %v1828 = vpop.f32.mrb[0].mxu0
        %v1829 = vadd.f32 %v1732, %v1828
        %v1830 = vpop.f32.mrb[0].mxu0
        %v1831 = vpop.f32.mrb[0].mxu0
        %v1832 = vadd.f32 %v1735, %v1831
        %v1833 = vpop.f32.mrb[0].mxu0
        %1834 = vmatprep.mubr.bf16.mxu0 %v1440
        %1835 = vmatmul.mubr.bf16.gmra.mrb[0].mxu0 %v1439
        %v1836 = vpop.f32.mrb[0].mxu0
        %v1837 = vadd.f32 %v1740, %v1836
        %v1838 = vpop.f32.mrb[0].mxu0
        %v1839 = vpop.f32.mrb[0].mxu0
        %v1840 = vadd.f32 %v1743, %v1839
        %v1841 = vpop.f32.mrb[0].mxu0
        %1842 = vdwg.mxu0
        %1843 = vmatprep.subr.bf16.mxu0 0
        %1844 = vmatpush1.bf16.msra.mxu0 %v760
        %1845 = vmatprep.subr.bf16.mxu0 0
        %1846 = vmatpush1.bf16.msra.mxu0 %v761
        %1847 = vmatprep.subr.bf16.mxu0 0
        %1848 = vmatpush1.bf16.msra.mxu0 %v762
        %1849 = vmatprep.subr.bf16.mxu0 0
        %1850 = vmatpush1.bf16.msra.mxu0 %v763
        %1851 = vmatprep.subr.bf16.mxu0 0
        %1852 = vmatpush1.bf16.msra.mxu0 %v764
        %1853 = vmatprep.subr.bf16.mxu0 0
        %1854 = vmatpush1.bf16.msra.mxu0 %v765
        %1855 = vmatprep.subr.bf16.mxu0 0
        %1856 = vmatpush1.bf16.msra.mxu0 %v766
        %1857 = vmatprep.subr.bf16.mxu0 0
        %1858 = vmatpush1.bf16.msra.mxu0 %v767
        %1859 = vmatprep.subr.bf16.mxu0 0
        %1860 = vmatpush1.bf16.msra.mxu0 %v768
        %1861 = vmatprep.subr.bf16.mxu0 0
        %1862 = vmatpush1.bf16.msra.mxu0 %v769
        %1863 = vmatprep.subr.bf16.mxu0 0
        %1864 = vmatpush1.bf16.msra.mxu0 %v770
        %1865 = vmatprep.subr.bf16.mxu0 0
        %1866 = vmatpush1.bf16.msra.mxu0 %v771
        %1867 = vmatprep.subr.bf16.mxu0 0
        %1868 = vmatpush1.bf16.msra.mxu0 %v772
        %1869 = vmatprep.subr.bf16.mxu0 0
        %1870 = vmatpush1.bf16.msra.mxu0 %v773
        %1871 = vmatprep.subr.bf16.mxu0 0
        %1872 = vmatpush1.bf16.msra.mxu0 %v774
        %1873 = vmatprep.subr.bf16.mxu0 0
        %1874 = vmatpush1.bf16.msra.mxu0 %v775
        %1875 = vmatprep.mubr.bf16.mxu0 %v1351
        %1876 = vmatmul.mubr.bf16.gmra.mrb[0].mxu0 %v1350
        %v1877 = vpop.f32.mrb[0].mxu0
        %v1878 = vadd.f32 %v1781, %v1877
        %v1879 = vpop.f32.mrb[0].mxu0
        %v1880 = vpop.f32.mrb[0].mxu0
        %v1881 = vadd.f32 %v1784, %v1880
        %v1882 = vpop.f32.mrb[0].mxu0
        %1883 = vmatprep.mubr.bf16.mxu0 %v1364
        %1884 = vmatmul.mubr.bf16.gmra.mrb[0].mxu0 %v1363
        %v1885 = vpop.f32.mrb[0].mxu0
        %v1886 = vadd.f32 %v1789, %v1885
        %v1887 = vpop.f32.mrb[0].mxu0
        %v1888 = vpop.f32.mrb[0].mxu0
        %v1889 = vadd.f32 %v1792, %v1888
        %v1890 = vpop.f32.mrb[0].mxu0
        %1891 = vmatprep.mubr.bf16.mxu0 %v1377
        %1892 = vmatmul.mubr.bf16.gmra.mrb[0].mxu0 %v1376
        %v1893 = vpop.f32.mrb[0].mxu0
        %v1894 = vadd.f32 %v1797, %v1893
        %v1895 = vpop.f32.mrb[0].mxu0
        %v1896 = vpop.f32.mrb[0].mxu0
        %v1897 = vadd.f32 %v1800, %v1896
        %v1898 = vpop.f32.mrb[0].mxu0
        %1899 = vmatprep.mubr.bf16.mxu0 %v1390
        %1900 = vmatmul.mubr.bf16.gmra.mrb[0].mxu0 %v1389
        %v1901 = vpop.f32.mrb[0].mxu0
        %v1902 = vadd.f32 %v1805, %v1901
        %v1903 = vpop.f32.mrb[0].mxu0
        %v1904 = vpop.f32.mrb[0].mxu0
        %v1905 = vadd.f32 %v1808, %v1904
        %v1906 = vpop.f32.mrb[0].mxu0
        %1907 = vmatprep.mubr.bf16.mxu0 %v1403
        %1908 = vmatmul.mubr.bf16.gmra.mrb[0].mxu0 %v1402
        %v1909 = vpop.f32.mrb[0].mxu0
        %v1910 = vadd.f32 %v1813, %v1909
        %v1911 = vpop.f32.mrb[0].mxu0
        %v1912 = vpop.f32.mrb[0].mxu0
        %v1913 = vadd.f32 %v1816, %v1912
        %v1914 = vpop.f32.mrb[0].mxu0
        %1915 = vmatprep.mubr.bf16.mxu0 %v1416
        %1916 = vmatmul.mubr.bf16.gmra.mrb[0].mxu0 %v1415
        %v1917 = vpop.f32.mrb[0].mxu0
        %v1918 = vadd.f32 %v1821, %v1917
        %v1919 = vpop.f32.mrb[0].mxu0
        %v1920 = vpop.f32.mrb[0].mxu0
        %v1921 = vadd.f32 %v1824, %v1920
        %v1922 = vpop.f32.mrb[0].mxu0
        %1923 = vmatprep.mubr.bf16.mxu0 %v1429
        %1924 = vmatmul.mubr.bf16.gmra.mrb[0].mxu0 %v1428
        %v1925 = vpop.f32.mrb[0].mxu0
        %v1926 = vadd.f32 %v1829, %v1925
        %v1927 = vpop.f32.mrb[0].mxu0
        %v1928 = vpop.f32.mrb[0].mxu0
        %v1929 = vadd.f32 %v1832, %v1928
        %v1930 = vpop.f32.mrb[0].mxu0
        %1931 = vmatprep.mubr.bf16.mxu0 %v1442
        %1932 = vmatmul.mubr.bf16.gmra.mrb[0].mxu0 %v1441
        %v1933 = vpop.f32.mrb[0].mxu0
        %v1934 = vadd.f32 %v1837, %v1933
        %v1935 = vpop.f32.mrb[0].mxu0
        %v1936 = vpop.f32.mrb[0].mxu0
        %v1937 = vadd.f32 %v1840, %v1936
        %v1938 = vpop.f32.mrb[0].mxu0
        %1939 = vdwg.mxu0
        %1940 = vmatprep.subr.bf16.mxu0 0
        %1941 = vmatpush1.bf16.msra.mxu0 %v776
        %1942 = vmatprep.subr.bf16.mxu0 0
        %1943 = vmatpush1.bf16.msra.mxu0 %v777
        %1944 = vmatprep.subr.bf16.mxu0 0
        %1945 = vmatpush1.bf16.msra.mxu0 %v778
        %1946 = vmatprep.subr.bf16.mxu0 0
        %1947 = vmatpush1.bf16.msra.mxu0 %v779
        %1948 = vmatprep.subr.bf16.mxu0 0
        %1949 = vmatpush1.bf16.msra.mxu0 %v780
        %1950 = vmatprep.subr.bf16.mxu0 0
        %1951 = vmatpush1.bf16.msra.mxu0 %v781
        %1952 = vmatprep.subr.bf16.mxu0 0
        %1953 = vmatpush1.bf16.msra.mxu0 %v782
        %1954 = vmatprep.subr.bf16.mxu0 0
        %1955 = vmatpush1.bf16.msra.mxu0 %v783
        %1956 = vmatprep.subr.bf16.mxu0 0
        %1957 = vmatpush1.bf16.msra.mxu0 %v784
        %1958 = vmatprep.subr.bf16.mxu0 0
        %1959 = vmatpush1.bf16.msra.mxu0 %v785
        %1960 = vmatprep.subr.bf16.mxu0 0
        %1961 = vmatpush1.bf16.msra.mxu0 %v786
        %1962 = vmatprep.subr.bf16.mxu0 0
        %1963 = vmatpush1.bf16.msra.mxu0 %v787
        %1964 = vmatprep.subr.bf16.mxu0 0
        %1965 = vmatpush1.bf16.msra.mxu0 %v788
        %1966 = vmatprep.subr.bf16.mxu0 0
        %1967 = vmatpush1.bf16.msra.mxu0 %v789
        %1968 = vmatprep.subr.bf16.mxu0 0
        %1969 = vmatpush1.bf16.msra.mxu0 %v790
        %1970 = vmatprep.subr.bf16.mxu0 0
        %1971 = vmatpush1.bf16.msra.mxu0 %v791
        %1972 = vmatprep.mubr.bf16.mxu0 %v1353
        %1973 = vmatmul.mubr.bf16.gmra.mrb[0].mxu0 %v1352
        %v1974 = vpop.f32.mrb[0].mxu0
        %v1975 = vadd.f32 %v1878, %v1974
        %v1976 = vpop.f32.mrb[0].mxu0
        %v1977 = vpop.f32.mrb[0].mxu0
        %v1978 = vadd.f32 %v1881, %v1977
        %v1979 = vpop.f32.mrb[0].mxu0
        %1980 = vmatprep.mubr.bf16.mxu0 %v1366
        %1981 = vmatmul.mubr.bf16.gmra.mrb[0].mxu0 %v1365
        %v1982 = vpop.f32.mrb[0].mxu0
        %v1983 = vadd.f32 %v1886, %v1982
        %v1984 = vpop.f32.mrb[0].mxu0
        %v1985 = vpop.f32.mrb[0].mxu0
        %v1986 = vadd.f32 %v1889, %v1985
        %v1987 = vpop.f32.mrb[0].mxu0
        %1988 = vmatprep.mubr.bf16.mxu0 %v1379
        %1989 = vmatmul.mubr.bf16.gmra.mrb[0].mxu0 %v1378
        %v1990 = vpop.f32.mrb[0].mxu0
        %v1991 = vadd.f32 %v1894, %v1990
        %v1992 = vpop.f32.mrb[0].mxu0
        %v1993 = vpop.f32.mrb[0].mxu0
        %v1994 = vadd.f32 %v1897, %v1993
        %v1995 = vpop.f32.mrb[0].mxu0
        %1996 = vmatprep.mubr.bf16.mxu0 %v1392
        %1997 = vmatmul.mubr.bf16.gmra.mrb[0].mxu0 %v1391
        %v1998 = vpop.f32.mrb[0].mxu0
        %v1999 = vadd.f32 %v1902, %v1998
        %v2000 = vpop.f32.mrb[0].mxu0
        %v2001 = vpop.f32.mrb[0].mxu0
        %v2002 = vadd.f32 %v1905, %v2001
        %v2003 = vpop.f32.mrb[0].mxu0
        %2004 = vmatprep.mubr.bf16.mxu0 %v1405
        %2005 = vmatmul.mubr.bf16.gmra.mrb[0].mxu0 %v1404
        %v2006 = vpop.f32.mrb[0].mxu0
        %v2007 = vadd.f32 %v1910, %v2006
        %v2008 = vpop.f32.mrb[0].mxu0
        %v2009 = vpop.f32.mrb[0].mxu0
        %v2010 = vadd.f32 %v1913, %v2009
        %v2011 = vpop.f32.mrb[0].mxu0
        %2012 = vmatprep.mubr.bf16.mxu0 %v1418
        %2013 = vmatmul.mubr.bf16.gmra.mrb[0].mxu0 %v1417
        %v2014 = vpop.f32.mrb[0].mxu0
        %v2015 = vadd.f32 %v1918, %v2014
        %v2016 = vpop.f32.mrb[0].mxu0
        %v2017 = vpop.f32.mrb[0].mxu0
        %v2018 = vadd.f32 %v1921, %v2017
        %v2019 = vpop.f32.mrb[0].mxu0
        %2020 = vmatprep.mubr.bf16.mxu0 %v1431
        %2021 = vmatmul.mubr.bf16.gmra.mrb[0].mxu0 %v1430
        %v2022 = vpop.f32.mrb[0].mxu0
        %v2023 = vadd.f32 %v1926, %v2022
        %v2024 = vpop.f32.mrb[0].mxu0
        %v2025 = vpop.f32.mrb[0].mxu0
        %v2026 = vadd.f32 %v1929, %v2025
        %v2027 = vpop.f32.mrb[0].mxu0
        %2028 = vmatprep.mubr.bf16.mxu0 %v1444
        %2029 = vmatmul.mubr.bf16.gmra.mrb[0].mxu0 %v1443
        %v2030 = vpop.f32.mrb[0].mxu0
        %v2031 = vadd.f32 %v1934, %v2030
        %v2032 = vpop.f32.mrb[0].mxu0
        %v2033 = vpop.f32.mrb[0].mxu0
        %v2034 = vadd.f32 %v1937, %v2033
        %v2035 = vpop.f32.mrb[0].mxu0
        %2036 = vdwg.mxu0
        %2037 = vmatprep.subr.bf16.mxu0 0
        %2038 = vmatpush1.bf16.msra.mxu0 %v792
        %2039 = vmatprep.subr.bf16.mxu0 0
        %2040 = vmatpush1.bf16.msra.mxu0 %v793
        %2041 = vmatprep.subr.bf16.mxu0 0
        %2042 = vmatpush1.bf16.msra.mxu0 %v794
        %2043 = vmatprep.subr.bf16.mxu0 0
        %2044 = vmatpush1.bf16.msra.mxu0 %v795
        %2045 = vmatprep.subr.bf16.mxu0 0
        %2046 = vmatpush1.bf16.msra.mxu0 %v796
        %2047 = vmatprep.subr.bf16.mxu0 0
        %2048 = vmatpush1.bf16.msra.mxu0 %v797
        %2049 = vmatprep.subr.bf16.mxu0 0
        %2050 = vmatpush1.bf16.msra.mxu0 %v798
        %2051 = vmatprep.subr.bf16.mxu0 0
        %2052 = vmatpush1.bf16.msra.mxu0 %v799
        %2053 = vmatprep.subr.bf16.mxu0 0
        %2054 = vmatpush1.bf16.msra.mxu0 %v800
        %2055 = vmatprep.subr.bf16.mxu0 0
        %2056 = vmatpush1.bf16.msra.mxu0 %v801
        %2057 = vmatprep.subr.bf16.mxu0 0
        %2058 = vmatpush1.bf16.msra.mxu0 %v802
        %2059 = vmatprep.subr.bf16.mxu0 0
        %2060 = vmatpush1.bf16.msra.mxu0 %v803
        %2061 = vmatprep.subr.bf16.mxu0 0
        %2062 = vmatpush1.bf16.msra.mxu0 %v804
        %2063 = vmatprep.subr.bf16.mxu0 0
        %2064 = vmatpush1.bf16.msra.mxu0 %v805
        %2065 = vmatprep.subr.bf16.mxu0 0
        %2066 = vmatpush1.bf16.msra.mxu0 %v806
        %2067 = vmatprep.subr.bf16.mxu0 0
        %2068 = vmatpush1.bf16.msra.mxu0 %v807
        %2069 = vmatprep.mubr.bf16.mxu0 %v1355
        %2070 = vmatmul.mubr.bf16.gmra.mrb[0].mxu0 %v1354
        %v2071 = vpop.f32.mrb[0].mxu0
        %v2072 = vadd.f32 %v1975, %v2071
        %v2073 = vpop.f32.mrb[0].mxu0
        %v2074 = vpop.f32.mrb[0].mxu0
        %v2075 = vadd.f32 %v1978, %v2074
        %v2076 = vpop.f32.mrb[0].mxu0
        %2077 = vmatprep.mubr.bf16.mxu0 %v1368
        %2078 = vmatmul.mubr.bf16.gmra.mrb[0].mxu0 %v1367
        %v2079 = vpop.f32.mrb[0].mxu0
        %v2080 = vadd.f32 %v1983, %v2079
        %v2081 = vpop.f32.mrb[0].mxu0
        %v2082 = vpop.f32.mrb[0].mxu0
        %v2083 = vadd.f32 %v1986, %v2082
        %v2084 = vpop.f32.mrb[0].mxu0
        %2085 = vmatprep.mubr.bf16.mxu0 %v1381
        %2086 = vmatmul.mubr.bf16.gmra.mrb[0].mxu0 %v1380
        %v2087 = vpop.f32.mrb[0].mxu0
        %v2088 = vadd.f32 %v1991, %v2087
        %v2089 = vpop.f32.mrb[0].mxu0
        %v2090 = vpop.f32.mrb[0].mxu0
        %v2091 = vadd.f32 %v1994, %v2090
        %v2092 = vpop.f32.mrb[0].mxu0
        %2093 = vmatprep.mubr.bf16.mxu0 %v1394
        %2094 = vmatmul.mubr.bf16.gmra.mrb[0].mxu0 %v1393
        %v2095 = vpop.f32.mrb[0].mxu0
        %v2096 = vadd.f32 %v1999, %v2095
        %v2097 = vpop.f32.mrb[0].mxu0
        %v2098 = vpop.f32.mrb[0].mxu0
        %v2099 = vadd.f32 %v2002, %v2098
        %v2100 = vpop.f32.mrb[0].mxu0
        %2101 = vmatprep.mubr.bf16.mxu0 %v1407
        %2102 = vmatmul.mubr.bf16.gmra.mrb[0].mxu0 %v1406
        %v2103 = vpop.f32.mrb[0].mxu0
        %v2104 = vadd.f32 %v2007, %v2103
        %v2105 = vpop.f32.mrb[0].mxu0
        %v2106 = vpop.f32.mrb[0].mxu0
        %v2107 = vadd.f32 %v2010, %v2106
        %v2108 = vpop.f32.mrb[0].mxu0
        %2109 = vmatprep.mubr.bf16.mxu0 %v1420
        %2110 = vmatmul.mubr.bf16.gmra.mrb[0].mxu0 %v1419
        %v2111 = vpop.f32.mrb[0].mxu0
        %v2112 = vadd.f32 %v2015, %v2111
        %v2113 = vpop.f32.mrb[0].mxu0
        %v2114 = vpop.f32.mrb[0].mxu0
        %v2115 = vadd.f32 %v2018, %v2114
        %v2116 = vpop.f32.mrb[0].mxu0
        %2117 = vmatprep.mubr.bf16.mxu0 %v1433
        %2118 = vmatmul.mubr.bf16.gmra.mrb[0].mxu0 %v1432
        %v2119 = vpop.f32.mrb[0].mxu0
        %v2120 = vadd.f32 %v2023, %v2119
        %v2121 = vpop.f32.mrb[0].mxu0
        %v2122 = vpop.f32.mrb[0].mxu0
        %v2123 = vadd.f32 %v2026, %v2122
        %v2124 = vpop.f32.mrb[0].mxu0
        %2125 = vmatprep.mubr.bf16.mxu0 %v1446
        %2126 = vmatmul.mubr.bf16.gmra.mrb[0].mxu0 %v1445
        %v2127 = vpop.f32.mrb[0].mxu0
        %v2128 = vadd.f32 %v2031, %v2127
        %v2129 = vpop.f32.mrb[0].mxu0
        %v2130 = vpop.f32.mrb[0].mxu0
        %v2131 = vadd.f32 %v2034, %v2130
        %v2132 = vpop.f32.mrb[0].mxu0
        %2133 = vdwg.mxu0
        %2134 = vmatprep.subr.bf16.mxu0 0
        %2135 = vmatpush1.bf16.msra.mxu0 %v808
        %2136 = vmatprep.subr.bf16.mxu0 0
        %2137 = vmatpush1.bf16.msra.mxu0 %v809
        %2138 = vmatprep.subr.bf16.mxu0 0
        %2139 = vmatpush1.bf16.msra.mxu0 %v810
        %2140 = vmatprep.subr.bf16.mxu0 0
        %2141 = vmatpush1.bf16.msra.mxu0 %v811
        %2142 = vmatprep.subr.bf16.mxu0 0
        %2143 = vmatpush1.bf16.msra.mxu0 %v812
        %2144 = vmatprep.subr.bf16.mxu0 0
        %2145 = vmatpush1.bf16.msra.mxu0 %v813
        %2146 = vmatprep.subr.bf16.mxu0 0
        %2147 = vmatpush1.bf16.msra.mxu0 %v814
        %2148 = vmatprep.subr.bf16.mxu0 0
        %2149 = vmatpush1.bf16.msra.mxu0 %v815
        %2150 = vmatprep.subr.bf16.mxu0 0
        %2151 = vmatpush1.bf16.msra.mxu0 0
        %2152 = vmatprep.subr.bf16.mxu0 0
        %2153 = vmatpush1.bf16.msra.mxu0 0
        %2154 = vmatprep.subr.bf16.mxu0 0
        %2155 = vmatpush1.bf16.msra.mxu0 0
        %2156 = vmatprep.subr.bf16.mxu0 0
        %2157 = vmatpush1.bf16.msra.mxu0 0
        %2158 = vmatprep.subr.bf16.mxu0 0
        %2159 = vmatpush1.bf16.msra.mxu0 0
        %2160 = vmatprep.subr.bf16.mxu0 0
        %2161 = vmatpush1.bf16.msra.mxu0 0
        %2162 = vmatprep.subr.bf16.mxu0 0
        %2163 = vmatpush1.bf16.msra.mxu0 0
        %2164 = vmatprep.subr.bf16.mxu0 0
        %2165 = vmatpush1.bf16.msra.mxu0 0
        %2166 = vmatprep.mubr.bf16.mxu0 0
        %2167 = vmatmul.mubr.bf16.gmra.mrb[0].mxu0 %v1356
        %v2168 = vpop.f32.mrb[0].mxu0
        %v2169 = vadd.f32 %v2072, %v2168
        %v2170 = vpop.f32.mrb[0].mxu0
        %v2171 = vpop.f32.mrb[0].mxu0
        %v2172 = vadd.f32 %v2075, %v2171
        %v2173 = vpop.f32.mrb[0].mxu0
        %2174 = vmatprep.mubr.bf16.mxu0 0
        %2175 = vmatmul.mubr.bf16.gmra.mrb[0].mxu0 %v1369
        %v2176 = vpop.f32.mrb[0].mxu0
        %v2177 = vadd.f32 %v2080, %v2176
        %v2178 = vpop.f32.mrb[0].mxu0
        %v2179 = vpop.f32.mrb[0].mxu0
        %v2180 = vadd.f32 %v2083, %v2179
        %v2181 = vpop.f32.mrb[0].mxu0
        %2182 = vmatprep.mubr.bf16.mxu0 0
        %2183 = vmatmul.mubr.bf16.gmra.mrb[0].mxu0 %v1382
        %v2184 = vpop.f32.mrb[0].mxu0
        %v2185 = vadd.f32 %v2088, %v2184
        %v2186 = vpop.f32.mrb[0].mxu0
        %v2187 = vpop.f32.mrb[0].mxu0
        %v2188 = vadd.f32 %v2091, %v2187
        %v2189 = vpop.f32.mrb[0].mxu0
        %2190 = vmatprep.mubr.bf16.mxu0 0
        %2191 = vmatmul.mubr.bf16.gmra.mrb[0].mxu0 %v1395
        %v2192 = vpop.f32.mrb[0].mxu0
        %v2193 = vadd.f32 %v2096, %v2192
        %v2194 = vpop.f32.mrb[0].mxu0
        %v2195 = vpop.f32.mrb[0].mxu0
        %v2196 = vadd.f32 %v2099, %v2195
        %v2197 = vpop.f32.mrb[0].mxu0
        %2198 = vmatprep.mubr.bf16.mxu0 0
        %2199 = vmatmul.mubr.bf16.gmra.mrb[0].mxu0 %v1408
        %v2200 = vpop.f32.mrb[0].mxu0
        %v2201 = vadd.f32 %v2104, %v2200
        %v2202 = vpop.f32.mrb[0].mxu0
        %v2203 = vpop.f32.mrb[0].mxu0
        %v2204 = vadd.f32 %v2107, %v2203
        %v2205 = vpop.f32.mrb[0].mxu0
        %2206 = vmatprep.mubr.bf16.mxu0 0
        %2207 = vmatmul.mubr.bf16.gmra.mrb[0].mxu0 %v1421
        %v2208 = vpop.f32.mrb[0].mxu0
        %v2209 = vadd.f32 %v2112, %v2208
        %v2210 = vpop.f32.mrb[0].mxu0
        %v2211 = vpop.f32.mrb[0].mxu0
        %v2212 = vadd.f32 %v2115, %v2211
        %v2213 = vpop.f32.mrb[0].mxu0
        %2214 = vmatprep.mubr.bf16.mxu0 0
        %2215 = vmatmul.mubr.bf16.gmra.mrb[0].mxu0 %v1434
        %v2216 = vpop.f32.mrb[0].mxu0
        %v2217 = vadd.f32 %v2120, %v2216
        %v2218 = vpop.f32.mrb[0].mxu0
        %v2219 = vpop.f32.mrb[0].mxu0
        %v2220 = vadd.f32 %v2123, %v2219
        %v2221 = vpop.f32.mrb[0].mxu0
        %2222 = vmatprep.mubr.bf16.mxu0 0
        %2223 = vmatmul.mubr.bf16.gmra.mrb[0].mxu0 %v1447
        %v2224 = vpop.f32.mrb[0].mxu0
        %v2225 = vadd.f32 %v2128, %v2224
        %v2226 = vpop.f32.mrb[0].mxu0
        %v2227 = vpop.f32.mrb[0].mxu0
        %v2228 = vadd.f32 %v2131, %v2227
        %v2229 = vpop.f32.mrb[0].mxu0
        %2230 = vdwg.mxu0
        %v2231 = vmul.f32 %v2169, 0.70710677
        %v2232 = vmul.f32 %v2172, 0.70710677
        %v2233 = vmul.f32 %v2177, 0.70710677
        %v2234 = vmul.f32 %v2180, 0.70710677
        %v2235 = vmul.f32 %v2185, 0.70710677
        %v2236 = vmul.f32 %v2188, 0.70710677
        %v2237 = vmul.f32 %v2193, 0.70710677
        %v2238 = vmul.f32 %v2196, 0.70710677
        %v2239 = vmul.f32 %v2201, 0.70710677
        %v2240 = vmul.f32 %v2204, 0.70710677
        %v2241 = vmul.f32 %v2209, 0.70710677
        %v2242 = vmul.f32 %v2212, 0.70710677
        %v2243 = vmul.f32 %v2217, 0.70710677
        %v2244 = vmul.f32 %v2220, 0.70710677
        %v2245 = vmul.f32 %v2225, 0.70710677
        %v2246 = vmul.f32 %v2228, 0.70710677
        %v2247 = vand.u32 2147483647, %v2231
        %v2248 = vand.u32 2147483647, %v2232
        %v2249 = vand.u32 2147483647, %v2233
        %v2250 = vand.u32 2147483647, %v2234
        %v2251 = vand.u32 2147483647, %v2235
        %v2252 = vand.u32 2147483647, %v2236
        %v2253 = vand.u32 2147483647, %v2237
        %v2254 = vand.u32 2147483647, %v2238
        %v2255 = vand.u32 2147483647, %v2239
        %v2256 = vand.u32 2147483647, %v2240
        %v2257 = vand.u32 2147483647, %v2241
        %v2258 = vand.u32 2147483647, %v2242
        %v2259 = vand.u32 2147483647, %v2243
        %v2260 = vand.u32 2147483647, %v2244
        %v2261 = vand.u32 2147483647, %v2245
        %v2262 = vand.u32 2147483647, %v2246
        %v2263 = vmul.f32 %v2247, 0.3275911
        %v2264 = vmul.f32 %v2248, 0.3275911
        %v2265 = vmul.f32 %v2249, 0.3275911
        %v2266 = vmul.f32 %v2250, 0.3275911
        %v2267 = vmul.f32 %v2251, 0.3275911
        %v2268 = vmul.f32 %v2252, 0.3275911
        %v2269 = vmul.f32 %v2253, 0.3275911
        %v2270 = vmul.f32 %v2254, 0.3275911
        %v2271 = vmul.f32 %v2255, 0.3275911
        %v2272 = vmul.f32 %v2256, 0.3275911
        %v2273 = vmul.f32 %v2257, 0.3275911
        %v2274 = vmul.f32 %v2258, 0.3275911
        %v2275 = vmul.f32 %v2259, 0.3275911
        %v2276 = vmul.f32 %v2260, 0.3275911
        %v2277 = vmul.f32 %v2261, 0.3275911
        %v2278 = vmul.f32 %v2262, 0.3275911
        %v2279 = vadd.f32 %v2263, 1.0
        %v2280 = vadd.f32 %v2264, 1.0
        %v2281 = vadd.f32 %v2265, 1.0
        %v2282 = vadd.f32 %v2266, 1.0
        %v2283 = vadd.f32 %v2267, 1.0
        %v2284 = vadd.f32 %v2268, 1.0
        %v2285 = vadd.f32 %v2269, 1.0
        %v2286 = vadd.f32 %v2270, 1.0
        %v2287 = vadd.f32 %v2271, 1.0
        %v2288 = vadd.f32 %v2272, 1.0
        %v2289 = vadd.f32 %v2273, 1.0
        %v2290 = vadd.f32 %v2274, 1.0
        %v2291 = vadd.f32 %v2275, 1.0
        %v2292 = vadd.f32 %v2276, 1.0
        %v2293 = vadd.f32 %v2277, 1.0
        %v2294 = vadd.f32 %v2278, 1.0
        %v2295 = vrcp.pop %v2279
        %v2296 = vrcp.pop %v2280
        %v2297 = vrcp.pop %v2281
        %v2298 = vrcp.pop %v2282
        %v2299 = vrcp.pop %v2283
        %v2300 = vrcp.pop %v2284
        %v2301 = vrcp.pop %v2285
        %v2302 = vrcp.pop %v2286
        %v2303 = vrcp.pop %v2287
        %v2304 = vrcp.pop %v2288
        %v2305 = vrcp.pop %v2289
        %v2306 = vrcp.pop %v2290
        %v2307 = vrcp.pop %v2291
        %v2308 = vrcp.pop %v2292
        %v2309 = vrcp.pop %v2293
        %v2310 = vrcp.pop %v2294
        %v2311 = vmul.f32 %v2295, 1.0614054
        %v2312 = vmul.f32 %v2296, 1.0614054
        %v2313 = vmul.f32 %v2297, 1.0614054
        %v2314 = vmul.f32 %v2298, 1.0614054
        %v2315 = vmul.f32 %v2299, 1.0614054
        %v2316 = vmul.f32 %v2300, 1.0614054
        %v2317 = vmul.f32 %v2301, 1.0614054
        %v2318 = vmul.f32 %v2302, 1.0614054
        %v2319 = vmul.f32 %v2303, 1.0614054
        %v2320 = vmul.f32 %v2304, 1.0614054
        %v2321 = vmul.f32 %v2305, 1.0614054
        %v2322 = vmul.f32 %v2306, 1.0614054
        %v2323 = vmul.f32 %v2307, 1.0614054
        %v2324 = vmul.f32 %v2308, 1.0614054
        %v2325 = vmul.f32 %v2309, 1.0614054
        %v2326 = vmul.f32 %v2310, 1.0614054
        %v2327 = vadd.f32 %v2311, -1.4531521
        %v2328 = vadd.f32 %v2312, -1.4531521
        %v2329 = vadd.f32 %v2313, -1.4531521
        %v2330 = vadd.f32 %v2314, -1.4531521
        %v2331 = vadd.f32 %v2315, -1.4531521
        %v2332 = vadd.f32 %v2316, -1.4531521
        %v2333 = vadd.f32 %v2317, -1.4531521
        %v2334 = vadd.f32 %v2318, -1.4531521
        %v2335 = vadd.f32 %v2319, -1.4531521
        %v2336 = vadd.f32 %v2320, -1.4531521
        %v2337 = vadd.f32 %v2321, -1.4531521
        %v2338 = vadd.f32 %v2322, -1.4531521
        %v2339 = vadd.f32 %v2323, -1.4531521
        %v2340 = vadd.f32 %v2324, -1.4531521
        %v2341 = vadd.f32 %v2325, -1.4531521
        %v2342 = vadd.f32 %v2326, -1.4531521
        %v2343 = vmul.f32 %v2327, %v2295
        %v2344 = vmul.f32 %v2328, %v2296
        %v2345 = vmul.f32 %v2329, %v2297
        %v2346 = vmul.f32 %v2330, %v2298
        %v2347 = vmul.f32 %v2331, %v2299
        %v2348 = vmul.f32 %v2332, %v2300
        %v2349 = vmul.f32 %v2333, %v2301
        %v2350 = vmul.f32 %v2334, %v2302
        %v2351 = vmul.f32 %v2335, %v2303
        %v2352 = vmul.f32 %v2336, %v2304
        %v2353 = vmul.f32 %v2337, %v2305
        %v2354 = vmul.f32 %v2338, %v2306
        %v2355 = vmul.f32 %v2339, %v2307
        %v2356 = vmul.f32 %v2340, %v2308
        %v2357 = vmul.f32 %v2341, %v2309
        %v2358 = vmul.f32 %v2342, %v2310
        %v2359 = vadd.f32 %v2343, 1.4214138
        %v2360 = vadd.f32 %v2344, 1.4214138
        %v2361 = vadd.f32 %v2345, 1.4214138
        %v2362 = vadd.f32 %v2346, 1.4214138
        %v2363 = vadd.f32 %v2347, 1.4214138
        %v2364 = vadd.f32 %v2348, 1.4214138
        %v2365 = vadd.f32 %v2349, 1.4214138
        %v2366 = vadd.f32 %v2350, 1.4214138
        %v2367 = vadd.f32 %v2351, 1.4214138
        %v2368 = vadd.f32 %v2352, 1.4214138
        %v2369 = vadd.f32 %v2353, 1.4214138
        %v2370 = vadd.f32 %v2354, 1.4214138
        %v2371 = vadd.f32 %v2355, 1.4214138
        %v2372 = vadd.f32 %v2356, 1.4214138
        %v2373 = vadd.f32 %v2357, 1.4214138
        %v2374 = vadd.f32 %v2358, 1.4214138
        %v2375 = vmul.f32 %v2359, %v2295
        %v2376 = vmul.f32 %v2360, %v2296
        %v2377 = vmul.f32 %v2361, %v2297
        %v2378 = vmul.f32 %v2362, %v2298
        %v2379 = vmul.f32 %v2363, %v2299
        %v2380 = vmul.f32 %v2364, %v2300
        %v2381 = vmul.f32 %v2365, %v2301
        %v2382 = vmul.f32 %v2366, %v2302
        %v2383 = vmul.f32 %v2367, %v2303
        %v2384 = vmul.f32 %v2368, %v2304
        %v2385 = vmul.f32 %v2369, %v2305
        %v2386 = vmul.f32 %v2370, %v2306
        %v2387 = vmul.f32 %v2371, %v2307
        %v2388 = vmul.f32 %v2372, %v2308
        %v2389 = vmul.f32 %v2373, %v2309
        %v2390 = vmul.f32 %v2374, %v2310
        %v2391 = vadd.f32 %v2375, -0.28449672
        %v2392 = vadd.f32 %v2376, -0.28449672
        %v2393 = vadd.f32 %v2377, -0.28449672
        %v2394 = vadd.f32 %v2378, -0.28449672
        %v2395 = vadd.f32 %v2379, -0.28449672
        %v2396 = vadd.f32 %v2380, -0.28449672
        %v2397 = vadd.f32 %v2381, -0.28449672
        %v2398 = vadd.f32 %v2382, -0.28449672
        %v2399 = vadd.f32 %v2383, -0.28449672
        %v2400 = vadd.f32 %v2384, -0.28449672
        %v2401 = vadd.f32 %v2385, -0.28449672
        %v2402 = vadd.f32 %v2386, -0.28449672
        %v2403 = vadd.f32 %v2387, -0.28449672
        %v2404 = vadd.f32 %v2388, -0.28449672
        %v2405 = vadd.f32 %v2389, -0.28449672
        %v2406 = vadd.f32 %v2390, -0.28449672
        %v2407 = vmul.f32 %v2391, %v2295
        %v2408 = vmul.f32 %v2392, %v2296
        %v2409 = vmul.f32 %v2393, %v2297
        %v2410 = vmul.f32 %v2394, %v2298
        %v2411 = vmul.f32 %v2395, %v2299
        %v2412 = vmul.f32 %v2396, %v2300
        %v2413 = vmul.f32 %v2397, %v2301
        %v2414 = vmul.f32 %v2398, %v2302
        %v2415 = vmul.f32 %v2399, %v2303
        %v2416 = vmul.f32 %v2400, %v2304
        %v2417 = vmul.f32 %v2401, %v2305
        %v2418 = vmul.f32 %v2402, %v2306
        %v2419 = vmul.f32 %v2403, %v2307
        %v2420 = vmul.f32 %v2404, %v2308
        %v2421 = vmul.f32 %v2405, %v2309
        %v2422 = vmul.f32 %v2406, %v2310
        %v2423 = vadd.f32 %v2407, 0.2548296
        %v2424 = vadd.f32 %v2408, 0.2548296
        %v2425 = vadd.f32 %v2409, 0.2548296
        %v2426 = vadd.f32 %v2410, 0.2548296
        %v2427 = vadd.f32 %v2411, 0.2548296
        %v2428 = vadd.f32 %v2412, 0.2548296
        %v2429 = vadd.f32 %v2413, 0.2548296
        %v2430 = vadd.f32 %v2414, 0.2548296
        %v2431 = vadd.f32 %v2415, 0.2548296
        %v2432 = vadd.f32 %v2416, 0.2548296
        %v2433 = vadd.f32 %v2417, 0.2548296
        %v2434 = vadd.f32 %v2418, 0.2548296
        %v2435 = vadd.f32 %v2419, 0.2548296
        %v2436 = vadd.f32 %v2420, 0.2548296
        %v2437 = vadd.f32 %v2421, 0.2548296
        %v2438 = vadd.f32 %v2422, 0.2548296
        %v2439 = vmul.f32 %v2423, %v2295
        %v2440 = vmul.f32 %v2424, %v2296
        %v2441 = vmul.f32 %v2425, %v2297
        %v2442 = vmul.f32 %v2426, %v2298
        %v2443 = vmul.f32 %v2427, %v2299
        %v2444 = vmul.f32 %v2428, %v2300
        %v2445 = vmul.f32 %v2429, %v2301
        %v2446 = vmul.f32 %v2430, %v2302
        %v2447 = vmul.f32 %v2431, %v2303
        %v2448 = vmul.f32 %v2432, %v2304
        %v2449 = vmul.f32 %v2433, %v2305
        %v2450 = vmul.f32 %v2434, %v2306
        %v2451 = vmul.f32 %v2435, %v2307
        %v2452 = vmul.f32 %v2436, %v2308
        %v2453 = vmul.f32 %v2437, %v2309
        %v2454 = vmul.f32 %v2438, %v2310
        %v2455 = vmul.f32 %v2247, %v2247
        %v2456 = vmul.f32 %v2248, %v2248
        %v2457 = vmul.f32 %v2249, %v2249
        %v2458 = vmul.f32 %v2250, %v2250
        %v2459 = vmul.f32 %v2251, %v2251
        %v2460 = vmul.f32 %v2252, %v2252
        %v2461 = vmul.f32 %v2253, %v2253
        %v2462 = vmul.f32 %v2254, %v2254
        %v2463 = vmul.f32 %v2255, %v2255
        %v2464 = vmul.f32 %v2256, %v2256
        %v2465 = vmul.f32 %v2257, %v2257
        %v2466 = vmul.f32 %v2258, %v2258
        %v2467 = vmul.f32 %v2259, %v2259
        %v2468 = vmul.f32 %v2260, %v2260
        %v2469 = vmul.f32 %v2261, %v2261
        %v2470 = vmul.f32 %v2262, %v2262
        %v2471 = vsub.f32 0.0, %v2455
        %v2472 = vsub.f32 0.0, %v2456
        %v2473 = vsub.f32 0.0, %v2457
        %v2474 = vsub.f32 0.0, %v2458
        %v2475 = vsub.f32 0.0, %v2459
        %v2476 = vsub.f32 0.0, %v2460
        %v2477 = vsub.f32 0.0, %v2461
        %v2478 = vsub.f32 0.0, %v2462
        %v2479 = vsub.f32 0.0, %v2463
        %v2480 = vsub.f32 0.0, %v2464
        %v2481 = vsub.f32 0.0, %v2465
        %v2482 = vsub.f32 0.0, %v2466
        %v2483 = vsub.f32 0.0, %v2467
        %v2484 = vsub.f32 0.0, %v2468
        %v2485 = vsub.f32 0.0, %v2469
        %v2486 = vsub.f32 0.0, %v2470
        %v2487 = vmul.f32 %v2471, 1.442695
        %v2488 = vpow.pop %v2487
        %v2489 = vmul.f32 %v2472, 1.442695
        %v2490 = vpow.pop %v2489
        %v2491 = vmul.f32 %v2473, 1.442695
        %v2492 = vpow.pop %v2491
        %v2493 = vmul.f32 %v2474, 1.442695
        %v2494 = vpow.pop %v2493
        %v2495 = vmul.f32 %v2475, 1.442695
        %v2496 = vpow.pop %v2495
        %v2497 = vmul.f32 %v2476, 1.442695
        %v2498 = vpow.pop %v2497
        %v2499 = vmul.f32 %v2477, 1.442695
        %v2500 = vpow.pop %v2499
        %v2501 = vmul.f32 %v2478, 1.442695
        %v2502 = vpow.pop %v2501
        %v2503 = vmul.f32 %v2479, 1.442695
        %v2504 = vpow.pop %v2503
        %v2505 = vmul.f32 %v2480, 1.442695
        %v2506 = vpow.pop %v2505
        %v2507 = vmul.f32 %v2481, 1.442695
        %v2508 = vpow.pop %v2507
        %v2509 = vmul.f32 %v2482, 1.442695
        %v2510 = vpow.pop %v2509
        %v2511 = vmul.f32 %v2483, 1.442695
        %v2512 = vpow.pop %v2511
        %v2513 = vmul.f32 %v2484, 1.442695
        %v2514 = vpow.pop %v2513
        %v2515 = vmul.f32 %v2485, 1.442695
        %v2516 = vpow.pop %v2515
        %v2517 = vmul.f32 %v2486, 1.442695
        %v2518 = vpow.pop %v2517
        %v2519 = vmul.f32 %v2439, %v2488
        %v2520 = vmul.f32 %v2440, %v2490
        %v2521 = vmul.f32 %v2441, %v2492
        %v2522 = vmul.f32 %v2442, %v2494
        %v2523 = vmul.f32 %v2443, %v2496
        %v2524 = vmul.f32 %v2444, %v2498
        %v2525 = vmul.f32 %v2445, %v2500
        %v2526 = vmul.f32 %v2446, %v2502
        %v2527 = vmul.f32 %v2447, %v2504
        %v2528 = vmul.f32 %v2448, %v2506
        %v2529 = vmul.f32 %v2449, %v2508
        %v2530 = vmul.f32 %v2450, %v2510
        %v2531 = vmul.f32 %v2451, %v2512
        %v2532 = vmul.f32 %v2452, %v2514
        %v2533 = vmul.f32 %v2453, %v2516
        %v2534 = vmul.f32 %v2454, %v2518
        %v2535 = vsub.f32 1.0, %v2519
        %v2536 = vsub.f32 1.0, %v2520
        %v2537 = vsub.f32 1.0, %v2521
        %v2538 = vsub.f32 1.0, %v2522
        %v2539 = vsub.f32 1.0, %v2523
        %v2540 = vsub.f32 1.0, %v2524
        %v2541 = vsub.f32 1.0, %v2525
        %v2542 = vsub.f32 1.0, %v2526
        %v2543 = vsub.f32 1.0, %v2527
        %v2544 = vsub.f32 1.0, %v2528
        %v2545 = vsub.f32 1.0, %v2529
        %v2546 = vsub.f32 1.0, %v2530
        %v2547 = vsub.f32 1.0, %v2531
        %v2548 = vsub.f32 1.0, %v2532
        %v2549 = vsub.f32 1.0, %v2533
        %v2550 = vsub.f32 1.0, %v2534
        %vm2551 = vcmp.lt.f32.partialorder %v2231, 0.0
        %vm2552 = vcmp.lt.f32.partialorder %v2232, 0.0
        %vm2553 = vcmp.lt.f32.partialorder %v2233, 0.0
        %vm2554 = vcmp.lt.f32.partialorder %v2234, 0.0
        %vm2555 = vcmp.lt.f32.partialorder %v2235, 0.0
        %vm2556 = vcmp.lt.f32.partialorder %v2236, 0.0
        %vm2557 = vcmp.lt.f32.partialorder %v2237, 0.0
        %vm2558 = vcmp.lt.f32.partialorder %v2238, 0.0
        %vm2559 = vcmp.lt.f32.partialorder %v2239, 0.0
        %vm2560 = vcmp.lt.f32.partialorder %v2240, 0.0
        %vm2561 = vcmp.lt.f32.partialorder %v2241, 0.0
        %vm2562 = vcmp.lt.f32.partialorder %v2242, 0.0
        %vm2563 = vcmp.lt.f32.partialorder %v2243, 0.0
        %vm2564 = vcmp.lt.f32.partialorder %v2244, 0.0
        %vm2565 = vcmp.lt.f32.partialorder %v2245, 0.0
        %vm2566 = vcmp.lt.f32.partialorder %v2246, 0.0
        %v2567 = vsub.f32 0.0, %v2535
        %v2568 = vsub.f32 0.0, %v2536
        %v2569 = vsub.f32 0.0, %v2537
        %v2570 = vsub.f32 0.0, %v2538
        %v2571 = vsub.f32 0.0, %v2539
        %v2572 = vsub.f32 0.0, %v2540
        %v2573 = vsub.f32 0.0, %v2541
        %v2574 = vsub.f32 0.0, %v2542
        %v2575 = vsub.f32 0.0, %v2543
        %v2576 = vsub.f32 0.0, %v2544
        %v2577 = vsub.f32 0.0, %v2545
        %v2578 = vsub.f32 0.0, %v2546
        %v2579 = vsub.f32 0.0, %v2547
        %v2580 = vsub.f32 0.0, %v2548
        %v2581 = vsub.f32 0.0, %v2549
        %v2582 = vsub.f32 0.0, %v2550
        %v2583 = vsel %vm2551, %v2567, %v2535
        %v2584 = vsel %vm2552, %v2568, %v2536
        %v2585 = vsel %vm2553, %v2569, %v2537
        %v2586 = vsel %vm2554, %v2570, %v2538
        %v2587 = vsel %vm2555, %v2571, %v2539
        %v2588 = vsel %vm2556, %v2572, %v2540
        %v2589 = vsel %vm2557, %v2573, %v2541
        %v2590 = vsel %vm2558, %v2574, %v2542
        %v2591 = vsel %vm2559, %v2575, %v2543
        %v2592 = vsel %vm2560, %v2576, %v2544
        %v2593 = vsel %vm2561, %v2577, %v2545
        %v2594 = vsel %vm2562, %v2578, %v2546
        %v2595 = vsel %vm2563, %v2579, %v2547
        %v2596 = vsel %vm2564, %v2580, %v2548
        %v2597 = vsel %vm2565, %v2581, %v2549
        %v2598 = vsel %vm2566, %v2582, %v2550
        %v2599 = vmul.f32 %v2169, 0.5
        %v2600 = vmul.f32 %v2172, 0.5
        %v2601 = vmul.f32 %v2177, 0.5
        %v2602 = vmul.f32 %v2180, 0.5
        %v2603 = vmul.f32 %v2185, 0.5
        %v2604 = vmul.f32 %v2188, 0.5
        %v2605 = vmul.f32 %v2193, 0.5
        %v2606 = vmul.f32 %v2196, 0.5
        %v2607 = vmul.f32 %v2201, 0.5
        %v2608 = vmul.f32 %v2204, 0.5
        %v2609 = vmul.f32 %v2209, 0.5
        %v2610 = vmul.f32 %v2212, 0.5
        %v2611 = vmul.f32 %v2217, 0.5
        %v2612 = vmul.f32 %v2220, 0.5
        %v2613 = vmul.f32 %v2225, 0.5
        %v2614 = vmul.f32 %v2228, 0.5
        %v2615 = vadd.f32 %v2583, 1.0
        %v2616 = vadd.f32 %v2584, 1.0
        %v2617 = vadd.f32 %v2585, 1.0
        %v2618 = vadd.f32 %v2586, 1.0
        %v2619 = vadd.f32 %v2587, 1.0
        %v2620 = vadd.f32 %v2588, 1.0
        %v2621 = vadd.f32 %v2589, 1.0
        %v2622 = vadd.f32 %v2590, 1.0
        %v2623 = vadd.f32 %v2591, 1.0
        %v2624 = vadd.f32 %v2592, 1.0
        %v2625 = vadd.f32 %v2593, 1.0
        %v2626 = vadd.f32 %v2594, 1.0
        %v2627 = vadd.f32 %v2595, 1.0
        %v2628 = vadd.f32 %v2596, 1.0
        %v2629 = vadd.f32 %v2597, 1.0
        %v2630 = vadd.f32 %v2598, 1.0
        %v2631 = vmul.f32 %v2599, %v2615
        %v2632 = vmul.f32 %v2600, %v2616
        %v2633 = vmul.f32 %v2601, %v2617
        %v2634 = vmul.f32 %v2602, %v2618
        %v2635 = vmul.f32 %v2603, %v2619
        %v2636 = vmul.f32 %v2604, %v2620
        %v2637 = vmul.f32 %v2605, %v2621
        %v2638 = vmul.f32 %v2606, %v2622
        %v2639 = vmul.f32 %v2607, %v2623
        %v2640 = vmul.f32 %v2608, %v2624
        %v2641 = vmul.f32 %v2609, %v2625
        %v2642 = vmul.f32 %v2610, %v2626
        %v2643 = vmul.f32 %v2611, %v2627
        %v2644 = vmul.f32 %v2612, %v2628
        %v2645 = vmul.f32 %v2613, %v2629
        %v2646 = vmul.f32 %v2614, %v2630
        %v2647 = vld [vmem:[#allocation8] sm:$0xf]
        %v2648 = vld [vmem:[#allocation8 + $0x4] sm:$0xf]
        %v2649 = vld [vmem:[#allocation8 + $0x8] sm:$0xf]
        %v2650 = vld [vmem:[#allocation8 + $0xc] sm:$0xf]
        %v2651 = vld [vmem:[#allocation8 + $0x10] sm:$0xf]
        %v2652 = vld [vmem:[#allocation8 + $0x14] sm:$0xf]
        %v2653 = vld [vmem:[#allocation8 + $0x18] sm:$0xf]
        %v2654 = vld [vmem:[#allocation8 + $0x1c] sm:$0xf]
        %v2655 = vld [vmem:[#allocation8 + $0x20] sm:$0xf]
        %v2656 = vld [vmem:[#allocation8 + $0x24] sm:$0xf]
        %v2657 = vld [vmem:[#allocation8 + $0x28] sm:$0xf]
        %v2658 = vld [vmem:[#allocation8 + $0x2c] sm:$0xf]
        %v2659 = vld [vmem:[#allocation8 + $0x30] sm:$0xf]
        %v2660 = vld [vmem:[#allocation8 + $0x34] sm:$0xf]
        %v2661 = vld [vmem:[#allocation8 + $0x38] sm:$0xf]
        %v2662 = vld [vmem:[#allocation8 + $0x3c] sm:$0xf]
        %v2663 = vld [vmem:[#allocation8 + $0x40] sm:$0xf]
        %v2664 = vld [vmem:[#allocation8 + $0x44] sm:$0xf]
        %v2665 = vld [vmem:[#allocation8 + $0x48] sm:$0xf]
        %v2666 = vld [vmem:[#allocation8 + $0x4c] sm:$0xf]
        %v2667 = vld [vmem:[#allocation8 + $0x50] sm:$0xf]
        %v2668 = vld [vmem:[#allocation8 + $0x54] sm:$0xf]
        %v2669 = vld [vmem:[#allocation8 + $0x58] sm:$0xf]
        %v2670 = vld [vmem:[#allocation8 + $0x5c] sm:$0xf]
        %v2671 = vld [vmem:[#allocation8 + $0x60] sm:$0xf]
        %v2672 = vld [vmem:[#allocation8 + $0x64] sm:$0xf]
        %v2673 = vld [vmem:[#allocation8 + $0x68] sm:$0xf]
        %v2674 = vld [vmem:[#allocation8 + $0x6c] sm:$0xf]
        %v2675 = vld [vmem:[#allocation8 + $0x70] sm:$0xf]
        %v2676 = vld [vmem:[#allocation8 + $0x74] sm:$0xf]
        %v2677 = vld [vmem:[#allocation8 + $0x78] sm:$0xf]
        %v2678 = vld [vmem:[#allocation8 + $0x7c] sm:$0xf]
        %v2679 = vpack.c.bf16 %v2632, %v2631
        %v2680 = vpack.c.bf16 %v2634, %v2633
        %v2681 = vpack.c.bf16 %v2636, %v2635
        %v2682 = vpack.c.bf16 %v2638, %v2637
        %v2683 = vpack.c.bf16 %v2640, %v2639
        %v2684 = vpack.c.bf16 %v2642, %v2641
        %v2685 = vpack.c.bf16 %v2644, %v2643
        %v2686 = vpack.c.bf16 %v2646, %v2645
        %v2687 = vld [vmem:[%s5] sm:$0xff]
        %v2688 = vld [vmem:[%s5 + $0x8] sm:$0xff]
        %v2689 = vld [vmem:[%s5 + $0x10] sm:$0xff]
        %v2690 = vld [vmem:[%s5 + $0x18] sm:$0xff]
        %v2691 = vld [vmem:[%s5 + $0x20] sm:$0xff]
        %v2692 = vld [vmem:[%s5 + $0x28] sm:$0xff]
        %v2693 = vld [vmem:[%s5 + $0x30] sm:$0xff]
        %v2694 = vld [vmem:[%s5 + $0x38] sm:$0xff]
        %v2695 = vld [vmem:[%s5 + $0x40] sm:$0xff]
        %v2696 = vld [vmem:[%s5 + $0x48] sm:$0xff]
        %v2697 = vld [vmem:[%s5 + $0x50] sm:$0xff]
        %v2698 = vld [vmem:[%s5 + $0x58] sm:$0xff]
        %v2699 = vld [vmem:[%s5 + $0x60] sm:$0xff]
        %v2700 = vld [vmem:[%s5 + $0x68] sm:$0xff]
        %v2701 = vld [vmem:[%s5 + $0x70] sm:$0xff]
        %v2702 = vld [vmem:[%s5 + $0x78] sm:$0xff]
        %v2703 = vld [vmem:[%s5 + $0x80] sm:$0xff]
        %v2704 = vld [vmem:[%s5 + $0x88] sm:$0xff]
        %v2705 = vld [vmem:[%s5 + $0x90] sm:$0xff]
        %v2706 = vld [vmem:[%s5 + $0x98] sm:$0xff]
        %v2707 = vld [vmem:[%s5 + $0xa0] sm:$0xff]
        %v2708 = vld [vmem:[%s5 + $0xa8] sm:$0xff]
        %v2709 = vld [vmem:[%s5 + $0xb0] sm:$0xff]
        %v2710 = vld [vmem:[%s5 + $0xb8] sm:$0xff]
        %v2711 = vld [vmem:[%s5 + $0xc0] sm:$0xff]
        %v2712 = vld [vmem:[%s5 + $0xc8] sm:$0xff]
        %v2713 = vld [vmem:[%s5 + $0xd0] sm:$0xff]
        %v2714 = vld [vmem:[%s5 + $0xd8] sm:$0xff]
        %v2715 = vld [vmem:[%s5 + $0xe0] sm:$0xff]
        %v2716 = vld [vmem:[%s5 + $0xe8] sm:$0xff]
        %v2717 = vld [vmem:[%s5 + $0xf0] sm:$0xff]
        %v2718 = vld [vmem:[%s5 + $0xf8] sm:$0xff]
        %2720 = vset.pattern.permute.xlu0 0
        %2721 = vperm.xlu0 %2720, %v2687
        %v2722 = vpop.permute.xlu0 %2721
        %2725 = vset.pattern.permute.xlu0 0
        %2726 = vperm.xlu0 %2725, %v2688
        %v2727 = vpop.permute.xlu0 %2726
        %2730 = vset.pattern.permute.xlu0 0
        %2731 = vperm.xlu0 %2730, %v2689
        %v2732 = vpop.permute.xlu0 %2731
        %2735 = vset.pattern.permute.xlu0 0
        %2736 = vperm.xlu0 %2735, %v2690
        %v2737 = vpop.permute.xlu0 %2736
        %2740 = vset.pattern.permute.xlu0 0
        %2741 = vperm.xlu0 %2740, %v2691
        %v2742 = vpop.permute.xlu0 %2741
        %2745 = vset.pattern.permute.xlu0 0
        %2746 = vperm.xlu0 %2745, %v2692
        %v2747 = vpop.permute.xlu0 %2746
        %2750 = vset.pattern.permute.xlu0 0
        %2751 = vperm.xlu0 %2750, %v2693
        %v2752 = vpop.permute.xlu0 %2751
        %2755 = vset.pattern.permute.xlu0 0
        %2756 = vperm.xlu0 %2755, %v2694
        %v2757 = vpop.permute.xlu0 %2756
        %2760 = vset.pattern.permute.xlu0 0
        %2761 = vperm.xlu0 %2760, %v2695
        %v2762 = vpop.permute.xlu0 %2761
        %2765 = vset.pattern.permute.xlu0 0
        %2766 = vperm.xlu0 %2765, %v2696
        %v2767 = vpop.permute.xlu0 %2766
        %2770 = vset.pattern.permute.xlu0 0
        %2771 = vperm.xlu0 %2770, %v2697
        %v2772 = vpop.permute.xlu0 %2771
        %2775 = vset.pattern.permute.xlu0 0
        %2776 = vperm.xlu0 %2775, %v2698
        %v2777 = vpop.permute.xlu0 %2776
        %2780 = vset.pattern.permute.xlu0 0
        %2781 = vperm.xlu0 %2780, %v2699
        %v2782 = vpop.permute.xlu0 %2781
        %2785 = vset.pattern.permute.xlu0 0
        %2786 = vperm.xlu0 %2785, %v2700
        %v2787 = vpop.permute.xlu0 %2786
        %2790 = vset.pattern.permute.xlu0 0
        %2791 = vperm.xlu0 %2790, %v2701
        %v2792 = vpop.permute.xlu0 %2791
        %2795 = vset.pattern.permute.xlu0 0
        %2796 = vperm.xlu0 %2795, %v2702
        %v2797 = vpop.permute.xlu0 %2796
        %2800 = vset.pattern.permute.xlu0 0
        %2801 = vperm.xlu0 %2800, %v2703
        %v2802 = vpop.permute.xlu0 %2801
        %2805 = vset.pattern.permute.xlu0 0
        %2806 = vperm.xlu0 %2805, %v2704
        %v2807 = vpop.permute.xlu0 %2806
        %2810 = vset.pattern.permute.xlu0 0
        %2811 = vperm.xlu0 %2810, %v2705
        %v2812 = vpop.permute.xlu0 %2811
        %2815 = vset.pattern.permute.xlu0 0
        %2816 = vperm.xlu0 %2815, %v2706
        %v2817 = vpop.permute.xlu0 %2816
        %2820 = vset.pattern.permute.xlu0 0
        %2821 = vperm.xlu0 %2820, %v2707
        %v2822 = vpop.permute.xlu0 %2821
        %2825 = vset.pattern.permute.xlu0 0
        %2826 = vperm.xlu0 %2825, %v2708
        %v2827 = vpop.permute.xlu0 %2826
        %2830 = vset.pattern.permute.xlu0 0
        %2831 = vperm.xlu0 %2830, %v2709
        %v2832 = vpop.permute.xlu0 %2831
        %2835 = vset.pattern.permute.xlu0 0
        %2836 = vperm.xlu0 %2835, %v2710
        %v2837 = vpop.permute.xlu0 %2836
        %2840 = vset.pattern.permute.xlu0 0
        %2841 = vperm.xlu0 %2840, %v2711
        %v2842 = vpop.permute.xlu0 %2841
        %2845 = vset.pattern.permute.xlu0 0
        %2846 = vperm.xlu0 %2845, %v2712
        %v2847 = vpop.permute.xlu0 %2846
        %2850 = vset.pattern.permute.xlu0 0
        %2851 = vperm.xlu0 %2850, %v2713
        %v2852 = vpop.permute.xlu0 %2851
        %2855 = vset.pattern.permute.xlu0 0
        %2856 = vperm.xlu0 %2855, %v2714
        %v2857 = vpop.permute.xlu0 %2856
        %2860 = vset.pattern.permute.xlu0 0
        %2861 = vperm.xlu0 %2860, %v2715
        %v2862 = vpop.permute.xlu0 %2861
        %2865 = vset.pattern.permute.xlu0 0
        %2866 = vperm.xlu0 %2865, %v2716
        %v2867 = vpop.permute.xlu0 %2866
        %2870 = vset.pattern.permute.xlu0 0
        %2871 = vperm.xlu0 %2870, %v2717
        %v2872 = vpop.permute.xlu0 %2871
        %2875 = vset.pattern.permute.xlu0 0
        %2876 = vperm.xlu0 %2875, %v2718
        %v2877 = vpop.permute.xlu0 %2876
        %v2911 = vunpack.c.l.b16 %v2647
        %v2912 = vunpack.c.l.b16 %v2648
        %v2913 = vunpack.c.l.b16 %v2649
        %v2914 = vunpack.c.l.b16 %v2650
        %v2915 = vunpack.c.l.b16 %v2651
        %v2916 = vunpack.c.l.b16 %v2652
        %v2917 = vunpack.c.l.b16 %v2653
        %v2918 = vunpack.c.l.b16 %v2654
        %v2919 = vunpack.c.l.b16 %v2655
        %v2920 = vunpack.c.l.b16 %v2656
        %v2921 = vunpack.c.l.b16 %v2657
        %v2922 = vunpack.c.l.b16 %v2658
        %v2923 = vunpack.c.l.b16 %v2659
        %v2924 = vunpack.c.l.b16 %v2660
        %v2925 = vunpack.c.l.b16 %v2661
        %v2926 = vunpack.c.l.b16 %v2662
        %v2927 = vunpack.c.l.b16 %v2663
        %v2928 = vunpack.c.l.b16 %v2664
        %v2929 = vunpack.c.l.b16 %v2665
        %v2930 = vunpack.c.l.b16 %v2666
        %v2931 = vunpack.c.l.b16 %v2667
        %v2932 = vunpack.c.l.b16 %v2668
        %v2933 = vunpack.c.l.b16 %v2669
        %v2934 = vunpack.c.l.b16 %v2670
        %v2935 = vunpack.c.l.b16 %v2671
        %v2936 = vunpack.c.l.b16 %v2672
        %v2937 = vunpack.c.l.b16 %v2673
        %v2938 = vunpack.c.l.b16 %v2674
        %v2939 = vunpack.c.l.b16 %v2675
        %v2940 = vunpack.c.l.b16 %v2676
        %v2941 = vunpack.c.l.b16 %v2677
        %v2942 = vunpack.c.l.b16 %v2678
        %v2943 = vpack.c.b16 %v2912, %v2911
        %v2944 = vpack.c.b16 %v2914, %v2913
        %v2945 = vpack.c.b16 %v2916, %v2915
        %v2946 = vpack.c.b16 %v2918, %v2917
        %v2947 = vpack.c.b16 %v2920, %v2919
        %v2948 = vpack.c.b16 %v2922, %v2921
        %v2949 = vpack.c.b16 %v2924, %v2923
        %v2950 = vpack.c.b16 %v2926, %v2925
        %v2951 = vpack.c.b16 %v2928, %v2927
        %v2952 = vpack.c.b16 %v2930, %v2929
        %v2953 = vpack.c.b16 %v2932, %v2931
        %v2954 = vpack.c.b16 %v2934, %v2933
        %v2955 = vpack.c.b16 %v2936, %v2935
        %v2956 = vpack.c.b16 %v2938, %v2937
        %v2957 = vpack.c.b16 %v2940, %v2939
        %v2958 = vpack.c.b16 %v2942, %v2941
        %2975 = vmatprep.subr.bf16.mxu0 0
        %2976 = vmatpush1.bf16.msra.mxu0 %v2679
        %2977 = vmatprep.subr.bf16.mxu0 0
        %2978 = vmatpush1.bf16.msra.mxu0 %v2680
        %2979 = vmatprep.subr.bf16.mxu0 0
        %2980 = vmatpush1.bf16.msra.mxu0 %v2681
        %2981 = vmatprep.subr.bf16.mxu0 0
        %2982 = vmatpush1.bf16.msra.mxu0 %v2682
        %2983 = vmatprep.subr.bf16.mxu0 0
        %2984 = vmatpush1.bf16.msra.mxu0 %v2683
        %2985 = vmatprep.subr.bf16.mxu0 0
        %2986 = vmatpush1.bf16.msra.mxu0 %v2684
        %2987 = vmatprep.subr.bf16.mxu0 0
        %2988 = vmatpush1.bf16.msra.mxu0 %v2685
        %2989 = vmatprep.subr.bf16.mxu0 0
        %2990 = vmatpush1.bf16.msra.mxu0 %v2686
        %2991 = vmatprep.subr.bf16.mxu0 0
        %2992 = vmatpush1.bf16.msra.mxu0 0
        %2993 = vmatprep.subr.bf16.mxu0 0
        %2994 = vmatpush1.bf16.msra.mxu0 0
        %2995 = vmatprep.subr.bf16.mxu0 0
        %2996 = vmatpush1.bf16.msra.mxu0 0
        %2997 = vmatprep.subr.bf16.mxu0 0
        %2998 = vmatpush1.bf16.msra.mxu0 0
        %2999 = vmatprep.subr.bf16.mxu0 0
        %3000 = vmatpush1.bf16.msra.mxu0 0
        %3001 = vmatprep.subr.bf16.mxu0 0
        %3002 = vmatpush1.bf16.msra.mxu0 0
        %3003 = vmatprep.subr.bf16.mxu0 0
        %3004 = vmatpush1.bf16.msra.mxu0 0
        %3005 = vmatprep.subr.bf16.mxu0 0
        %3006 = vmatpush1.bf16.msra.mxu0 0
        %3007 = vmatprep.mubr.bf16.mxu0 0
        %3008 = vmatmul.mubr.bf16.gmra.mrb[0].mxu0 %v2943
        %v3009 = vpop.f32.mrb[0].mxu0
        %v3010 = vadd.f32 %v2722, %v3009
        %v3011 = vpop.f32.mrb[0].mxu0
        %v3012 = vpop.f32.mrb[0].mxu0
        %v3013 = vadd.f32 %v2727, %v3012
        %v3014 = vpop.f32.mrb[0].mxu0
        %3015 = vmatprep.mubr.bf16.mxu0 0
        %3016 = vmatmul.mubr.bf16.gmra.mrb[0].mxu0 %v2944
        %v3017 = vpop.f32.mrb[0].mxu0
        %v3018 = vadd.f32 %v2732, %v3017
        %v3019 = vpop.f32.mrb[0].mxu0
        %v3020 = vpop.f32.mrb[0].mxu0
        %v3021 = vadd.f32 %v2737, %v3020
        %v3022 = vpop.f32.mrb[0].mxu0
        %3023 = vmatprep.mubr.bf16.mxu0 0
        %3024 = vmatmul.mubr.bf16.gmra.mrb[0].mxu0 %v2945
        %v3025 = vpop.f32.mrb[0].mxu0
        %v3026 = vadd.f32 %v2742, %v3025
        %v3027 = vpop.f32.mrb[0].mxu0
        %v3028 = vpop.f32.mrb[0].mxu0
        %v3029 = vadd.f32 %v2747, %v3028
        %v3030 = vpop.f32.mrb[0].mxu0
        %3031 = vmatprep.mubr.bf16.mxu0 0
        %3032 = vmatmul.mubr.bf16.gmra.mrb[0].mxu0 %v2946
        %v3033 = vpop.f32.mrb[0].mxu0
        %v3034 = vadd.f32 %v2752, %v3033
        %v3035 = vpop.f32.mrb[0].mxu0
        %v3036 = vpop.f32.mrb[0].mxu0
        %v3037 = vadd.f32 %v2757, %v3036
        %v3038 = vpop.f32.mrb[0].mxu0
        %3039 = vmatprep.mubr.bf16.mxu0 0
        %3040 = vmatmul.mubr.bf16.gmra.mrb[0].mxu0 %v2947
        %v3041 = vpop.f32.mrb[0].mxu0
        %v3042 = vadd.f32 %v2762, %v3041
        %v3043 = vpop.f32.mrb[0].mxu0
        %v3044 = vpop.f32.mrb[0].mxu0
        %v3045 = vadd.f32 %v2767, %v3044
        %v3046 = vpop.f32.mrb[0].mxu0
        %3047 = vmatprep.mubr.bf16.mxu0 0
        %3048 = vmatmul.mubr.bf16.gmra.mrb[0].mxu0 %v2948
        %v3049 = vpop.f32.mrb[0].mxu0
        %v3050 = vadd.f32 %v2772, %v3049
        %v3051 = vpop.f32.mrb[0].mxu0
        %v3052 = vpop.f32.mrb[0].mxu0
        %v3053 = vadd.f32 %v2777, %v3052
        %v3054 = vpop.f32.mrb[0].mxu0
        %3055 = vmatprep.mubr.bf16.mxu0 0
        %3056 = vmatmul.mubr.bf16.gmra.mrb[0].mxu0 %v2949
        %v3057 = vpop.f32.mrb[0].mxu0
        %v3058 = vadd.f32 %v2782, %v3057
        %v3059 = vpop.f32.mrb[0].mxu0
        %v3060 = vpop.f32.mrb[0].mxu0
        %v3061 = vadd.f32 %v2787, %v3060
        %v3062 = vpop.f32.mrb[0].mxu0
        %3063 = vmatprep.mubr.bf16.mxu0 0
        %3064 = vmatmul.mubr.bf16.gmra.mrb[0].mxu0 %v2950
        %v3065 = vpop.f32.mrb[0].mxu0
        %v3066 = vadd.f32 %v2792, %v3065
        %v3067 = vpop.f32.mrb[0].mxu0
        %v3068 = vpop.f32.mrb[0].mxu0
        %v3069 = vadd.f32 %v2797, %v3068
        %v3070 = vpop.f32.mrb[0].mxu0
        %3071 = vmatprep.mubr.bf16.mxu0 0
        %3072 = vmatmul.mubr.bf16.gmra.mrb[0].mxu0 %v2951
        %v3073 = vpop.f32.mrb[0].mxu0
        %v3074 = vadd.f32 %v2802, %v3073
        %v3075 = vpop.f32.mrb[0].mxu0
        %v3076 = vpop.f32.mrb[0].mxu0
        %v3077 = vadd.f32 %v2807, %v3076
        %v3078 = vpop.f32.mrb[0].mxu0
        %3079 = vmatprep.mubr.bf16.mxu0 0
        %3080 = vmatmul.mubr.bf16.gmra.mrb[0].mxu0 %v2952
        %v3081 = vpop.f32.mrb[0].mxu0
        %v3082 = vadd.f32 %v2812, %v3081
        %v3083 = vpop.f32.mrb[0].mxu0
        %v3084 = vpop.f32.mrb[0].mxu0
        %v3085 = vadd.f32 %v2817, %v3084
        %v3086 = vpop.f32.mrb[0].mxu0
        %3087 = vmatprep.mubr.bf16.mxu0 0
        %3088 = vmatmul.mubr.bf16.gmra.mrb[0].mxu0 %v2953
        %v3089 = vpop.f32.mrb[0].mxu0
        %v3090 = vadd.f32 %v2822, %v3089
        %v3091 = vpop.f32.mrb[0].mxu0
        %v3092 = vpop.f32.mrb[0].mxu0
        %v3093 = vadd.f32 %v2827, %v3092
        %v3094 = vpop.f32.mrb[0].mxu0
        %3095 = vmatprep.mubr.bf16.mxu0 0
        %3096 = vmatmul.mubr.bf16.gmra.mrb[0].mxu0 %v2954
        %v3097 = vpop.f32.mrb[0].mxu0
        %v3098 = vadd.f32 %v2832, %v3097
        %v3099 = vpop.f32.mrb[0].mxu0
        %v3100 = vpop.f32.mrb[0].mxu0
        %v3101 = vadd.f32 %v2837, %v3100
        %v3102 = vpop.f32.mrb[0].mxu0
        %3103 = vmatprep.mubr.bf16.mxu0 0
        %3104 = vmatmul.mubr.bf16.gmra.mrb[0].mxu0 %v2955
        %v3105 = vpop.f32.mrb[0].mxu0
        %v3106 = vadd.f32 %v2842, %v3105
        %v3107 = vpop.f32.mrb[0].mxu0
        %v3108 = vpop.f32.mrb[0].mxu0
        %v3109 = vadd.f32 %v2847, %v3108
        %v3110 = vpop.f32.mrb[0].mxu0
        %3111 = vmatprep.mubr.bf16.mxu0 0
        %3112 = vmatmul.mubr.bf16.gmra.mrb[0].mxu0 %v2956
        %v3113 = vpop.f32.mrb[0].mxu0
        %v3114 = vadd.f32 %v2852, %v3113
        %v3115 = vpop.f32.mrb[0].mxu0
        %v3116 = vpop.f32.mrb[0].mxu0
        %v3117 = vadd.f32 %v2857, %v3116
        %v3118 = vpop.f32.mrb[0].mxu0
        %3119 = vmatprep.mubr.bf16.mxu0 0
        %3120 = vmatmul.mubr.bf16.gmra.mrb[0].mxu0 %v2957
        %v3121 = vpop.f32.mrb[0].mxu0
        %v3122 = vadd.f32 %v2862, %v3121
        %v3123 = vpop.f32.mrb[0].mxu0
        %v3124 = vpop.f32.mrb[0].mxu0
        %v3125 = vadd.f32 %v2867, %v3124
        %v3126 = vpop.f32.mrb[0].mxu0
        %3127 = vmatprep.mubr.bf16.mxu0 0
        %3128 = vmatmul.mubr.bf16.gmra.mrb[0].mxu0 %v2958
        %v3129 = vpop.f32.mrb[0].mxu0
        %v3130 = vadd.f32 %v2872, %v3129
        %v3131 = vpop.f32.mrb[0].mxu0
        %v3132 = vpop.f32.mrb[0].mxu0
        %v3133 = vadd.f32 %v2877, %v3132
        %v3134 = vpop.f32.mrb[0].mxu0
        %3135 = vdwg.mxu0
        %v3136 = vmul.f32 %v3010, 0.70710677
        %v3137 = vmul.f32 %v3013, 0.70710677
        %v3138 = vmul.f32 %v3018, 0.70710677
        %v3139 = vmul.f32 %v3021, 0.70710677
        %v3140 = vmul.f32 %v3026, 0.70710677
        %v3141 = vmul.f32 %v3029, 0.70710677
        %v3142 = vmul.f32 %v3034, 0.70710677
        %v3143 = vmul.f32 %v3037, 0.70710677
        %v3144 = vmul.f32 %v3042, 0.70710677
        %v3145 = vmul.f32 %v3045, 0.70710677
        %v3146 = vmul.f32 %v3050, 0.70710677
        %v3147 = vmul.f32 %v3053, 0.70710677
        %v3148 = vmul.f32 %v3058, 0.70710677
        %v3149 = vmul.f32 %v3061, 0.70710677
        %v3150 = vmul.f32 %v3066, 0.70710677
        %v3151 = vmul.f32 %v3069, 0.70710677
        %v3152 = vmul.f32 %v3074, 0.70710677
        %v3153 = vmul.f32 %v3077, 0.70710677
        %v3154 = vmul.f32 %v3082, 0.70710677
        %v3155 = vmul.f32 %v3085, 0.70710677
        %v3156 = vmul.f32 %v3090, 0.70710677
        %v3157 = vmul.f32 %v3093, 0.70710677
        %v3158 = vmul.f32 %v3098, 0.70710677
        %v3159 = vmul.f32 %v3101, 0.70710677
        %v3160 = vmul.f32 %v3106, 0.70710677
        %v3161 = vmul.f32 %v3109, 0.70710677
        %v3162 = vmul.f32 %v3114, 0.70710677
        %v3163 = vmul.f32 %v3117, 0.70710677
        %v3164 = vmul.f32 %v3122, 0.70710677
        %v3165 = vmul.f32 %v3125, 0.70710677
        %v3166 = vmul.f32 %v3130, 0.70710677
        %v3167 = vmul.f32 %v3133, 0.70710677
        %v3168 = vand.u32 2147483647, %v3136
        %v3169 = vand.u32 2147483647, %v3137
        %v3170 = vand.u32 2147483647, %v3138
        %v3171 = vand.u32 2147483647, %v3139
        %v3172 = vand.u32 2147483647, %v3140
        %v3173 = vand.u32 2147483647, %v3141
        %v3174 = vand.u32 2147483647, %v3142
        %v3175 = vand.u32 2147483647, %v3143
        %v3176 = vand.u32 2147483647, %v3144
        %v3177 = vand.u32 2147483647, %v3145
        %v3178 = vand.u32 2147483647, %v3146
        %v3179 = vand.u32 2147483647, %v3147
        %v3180 = vand.u32 2147483647, %v3148
        %v3181 = vand.u32 2147483647, %v3149
        %v3182 = vand.u32 2147483647, %v3150
        %v3183 = vand.u32 2147483647, %v3151
        %v3184 = vand.u32 2147483647, %v3152
        %v3185 = vand.u32 2147483647, %v3153
        %v3186 = vand.u32 2147483647, %v3154
        %v3187 = vand.u32 2147483647, %v3155
        %v3188 = vand.u32 2147483647, %v3156
        %v3189 = vand.u32 2147483647, %v3157
        %v3190 = vand.u32 2147483647, %v3158
        %v3191 = vand.u32 2147483647, %v3159
        %v3192 = vand.u32 2147483647, %v3160
        %v3193 = vand.u32 2147483647, %v3161
        %v3194 = vand.u32 2147483647, %v3162
        %v3195 = vand.u32 2147483647, %v3163
        %v3196 = vand.u32 2147483647, %v3164
        %v3197 = vand.u32 2147483647, %v3165
        %v3198 = vand.u32 2147483647, %v3166
        %v3199 = vand.u32 2147483647, %v3167
        %v3200 = vmul.f32 %v3168, 0.3275911
        %v3201 = vmul.f32 %v3169, 0.3275911
        %v3202 = vmul.f32 %v3170, 0.3275911
        %v3203 = vmul.f32 %v3171, 0.3275911
        %v3204 = vmul.f32 %v3172, 0.3275911
        %v3205 = vmul.f32 %v3173, 0.3275911
        %v3206 = vmul.f32 %v3174, 0.3275911
        %v3207 = vmul.f32 %v3175, 0.3275911
        %v3208 = vmul.f32 %v3176, 0.3275911
        %v3209 = vmul.f32 %v3177, 0.3275911
        %v3210 = vmul.f32 %v3178, 0.3275911
        %v3211 = vmul.f32 %v3179, 0.3275911
        %v3212 = vmul.f32 %v3180, 0.3275911
        %v3213 = vmul.f32 %v3181, 0.3275911
        %v3214 = vmul.f32 %v3182, 0.3275911
        %v3215 = vmul.f32 %v3183, 0.3275911
        %v3216 = vmul.f32 %v3184, 0.3275911
        %v3217 = vmul.f32 %v3185, 0.3275911
        %v3218 = vmul.f32 %v3186, 0.3275911
        %v3219 = vmul.f32 %v3187, 0.3275911
        %v3220 = vmul.f32 %v3188, 0.3275911
        %v3221 = vmul.f32 %v3189, 0.3275911
        %v3222 = vmul.f32 %v3190, 0.3275911
        %v3223 = vmul.f32 %v3191, 0.3275911
        %v3224 = vmul.f32 %v3192, 0.3275911
        %v3225 = vmul.f32 %v3193, 0.3275911
        %v3226 = vmul.f32 %v3194, 0.3275911
        %v3227 = vmul.f32 %v3195, 0.3275911
        %v3228 = vmul.f32 %v3196, 0.3275911
        %v3229 = vmul.f32 %v3197, 0.3275911
        %v3230 = vmul.f32 %v3198, 0.3275911
        %v3231 = vmul.f32 %v3199, 0.3275911
        %v3232 = vadd.f32 %v3200, 1.0
        %v3233 = vadd.f32 %v3201, 1.0
        %v3234 = vadd.f32 %v3202, 1.0
        %v3235 = vadd.f32 %v3203, 1.0
        %v3236 = vadd.f32 %v3204, 1.0
        %v3237 = vadd.f32 %v3205, 1.0
        %v3238 = vadd.f32 %v3206, 1.0
        %v3239 = vadd.f32 %v3207, 1.0
        %v3240 = vadd.f32 %v3208, 1.0
        %v3241 = vadd.f32 %v3209, 1.0
        %v3242 = vadd.f32 %v3210, 1.0
        %v3243 = vadd.f32 %v3211, 1.0
        %v3244 = vadd.f32 %v3212, 1.0
        %v3245 = vadd.f32 %v3213, 1.0
        %v3246 = vadd.f32 %v3214, 1.0
        %v3247 = vadd.f32 %v3215, 1.0
        %v3248 = vadd.f32 %v3216, 1.0
        %v3249 = vadd.f32 %v3217, 1.0
        %v3250 = vadd.f32 %v3218, 1.0
        %v3251 = vadd.f32 %v3219, 1.0
        %v3252 = vadd.f32 %v3220, 1.0
        %v3253 = vadd.f32 %v3221, 1.0
        %v3254 = vadd.f32 %v3222, 1.0
        %v3255 = vadd.f32 %v3223, 1.0
        %v3256 = vadd.f32 %v3224, 1.0
        %v3257 = vadd.f32 %v3225, 1.0
        %v3258 = vadd.f32 %v3226, 1.0
        %v3259 = vadd.f32 %v3227, 1.0
        %v3260 = vadd.f32 %v3228, 1.0
        %v3261 = vadd.f32 %v3229, 1.0
        %v3262 = vadd.f32 %v3230, 1.0
        %v3263 = vadd.f32 %v3231, 1.0
        %v3264 = vrcp.pop %v3232
        %v3265 = vrcp.pop %v3233
        %v3266 = vrcp.pop %v3234
        %v3267 = vrcp.pop %v3235
        %v3268 = vrcp.pop %v3236
        %v3269 = vrcp.pop %v3237
        %v3270 = vrcp.pop %v3238
        %v3271 = vrcp.pop %v3239
        %v3272 = vrcp.pop %v3240
        %v3273 = vrcp.pop %v3241
        %v3274 = vrcp.pop %v3242
        %v3275 = vrcp.pop %v3243
        %v3276 = vrcp.pop %v3244
        %v3277 = vrcp.pop %v3245
        %v3278 = vrcp.pop %v3246
        %v3279 = vrcp.pop %v3247
        %v3280 = vrcp.pop %v3248
        %v3281 = vrcp.pop %v3249
        %v3282 = vrcp.pop %v3250
        %v3283 = vrcp.pop %v3251
        %v3284 = vrcp.pop %v3252
        %v3285 = vrcp.pop %v3253
        %v3286 = vrcp.pop %v3254
        %v3287 = vrcp.pop %v3255
        %v3288 = vrcp.pop %v3256
        %v3289 = vrcp.pop %v3257
        %v3290 = vrcp.pop %v3258
        %v3291 = vrcp.pop %v3259
        %v3292 = vrcp.pop %v3260
        %v3293 = vrcp.pop %v3261
        %v3294 = vrcp.pop %v3262
        %v3295 = vrcp.pop %v3263
        %v3296 = vmul.f32 %v3264, 1.0614054
        %v3297 = vmul.f32 %v3265, 1.0614054
        %v3298 = vmul.f32 %v3266, 1.0614054
        %v3299 = vmul.f32 %v3267, 1.0614054
        %v3300 = vmul.f32 %v3268, 1.0614054
        %v3301 = vmul.f32 %v3269, 1.0614054
        %v3302 = vmul.f32 %v3270, 1.0614054
        %v3303 = vmul.f32 %v3271, 1.0614054
        %v3304 = vmul.f32 %v3272, 1.0614054
        %v3305 = vmul.f32 %v3273, 1.0614054
        %v3306 = vmul.f32 %v3274, 1.0614054
        %v3307 = vmul.f32 %v3275, 1.0614054
        %v3308 = vmul.f32 %v3276, 1.0614054
        %v3309 = vmul.f32 %v3277, 1.0614054
        %v3310 = vmul.f32 %v3278, 1.0614054
        %v3311 = vmul.f32 %v3279, 1.0614054
        %v3312 = vmul.f32 %v3280, 1.0614054
        %v3313 = vmul.f32 %v3281, 1.0614054
        %v3314 = vmul.f32 %v3282, 1.0614054
        %v3315 = vmul.f32 %v3283, 1.0614054
        %v3316 = vmul.f32 %v3284, 1.0614054
        %v3317 = vmul.f32 %v3285, 1.0614054
        %v3318 = vmul.f32 %v3286, 1.0614054
        %v3319 = vmul.f32 %v3287, 1.0614054
        %v3320 = vmul.f32 %v3288, 1.0614054
        %v3321 = vmul.f32 %v3289, 1.0614054
        %v3322 = vmul.f32 %v3290, 1.0614054
        %v3323 = vmul.f32 %v3291, 1.0614054
        %v3324 = vmul.f32 %v3292, 1.0614054
        %v3325 = vmul.f32 %v3293, 1.0614054
        %v3326 = vmul.f32 %v3294, 1.0614054
        %v3327 = vmul.f32 %v3295, 1.0614054
        %v3328 = vadd.f32 %v3296, -1.4531521
        %v3329 = vadd.f32 %v3297, -1.4531521
        %v3330 = vadd.f32 %v3298, -1.4531521
        %v3331 = vadd.f32 %v3299, -1.4531521
        %v3332 = vadd.f32 %v3300, -1.4531521
        %v3333 = vadd.f32 %v3301, -1.4531521
        %v3334 = vadd.f32 %v3302, -1.4531521
        %v3335 = vadd.f32 %v3303, -1.4531521
        %v3336 = vadd.f32 %v3304, -1.4531521
        %v3337 = vadd.f32 %v3305, -1.4531521
        %v3338 = vadd.f32 %v3306, -1.4531521
        %v3339 = vadd.f32 %v3307, -1.4531521
        %v3340 = vadd.f32 %v3308, -1.4531521
        %v3341 = vadd.f32 %v3309, -1.4531521
        %v3342 = vadd.f32 %v3310, -1.4531521
        %v3343 = vadd.f32 %v3311, -1.4531521
        %v3344 = vadd.f32 %v3312, -1.4531521
        %v3345 = vadd.f32 %v3313, -1.4531521
        %v3346 = vadd.f32 %v3314, -1.4531521
        %v3347 = vadd.f32 %v3315, -1.4531521
        %v3348 = vadd.f32 %v3316, -1.4531521
        %v3349 = vadd.f32 %v3317, -1.4531521
        %v3350 = vadd.f32 %v3318, -1.4531521
        %v3351 = vadd.f32 %v3319, -1.4531521
        %v3352 = vadd.f32 %v3320, -1.4531521
        %v3353 = vadd.f32 %v3321, -1.4531521
        %v3354 = vadd.f32 %v3322, -1.4531521
        %v3355 = vadd.f32 %v3323, -1.4531521
        %v3356 = vadd.f32 %v3324, -1.4531521
        %v3357 = vadd.f32 %v3325, -1.4531521
        %v3358 = vadd.f32 %v3326, -1.4531521
        %v3359 = vadd.f32 %v3327, -1.4531521
        %v3360 = vmul.f32 %v3328, %v3264
        %v3361 = vmul.f32 %v3329, %v3265
        %v3362 = vmul.f32 %v3330, %v3266
        %v3363 = vmul.f32 %v3331, %v3267
        %v3364 = vmul.f32 %v3332, %v3268
        %v3365 = vmul.f32 %v3333, %v3269
        %v3366 = vmul.f32 %v3334, %v3270
        %v3367 = vmul.f32 %v3335, %v3271
        %v3368 = vmul.f32 %v3336, %v3272
        %v3369 = vmul.f32 %v3337, %v3273
        %v3370 = vmul.f32 %v3338, %v3274
        %v3371 = vmul.f32 %v3339, %v3275
        %v3372 = vmul.f32 %v3340, %v3276
        %v3373 = vmul.f32 %v3341, %v3277
        %v3374 = vmul.f32 %v3342, %v3278
        %v3375 = vmul.f32 %v3343, %v3279
        %v3376 = vmul.f32 %v3344, %v3280
        %v3377 = vmul.f32 %v3345, %v3281
        %v3378 = vmul.f32 %v3346, %v3282
        %v3379 = vmul.f32 %v3347, %v3283
        %v3380 = vmul.f32 %v3348, %v3284
        %v3381 = vmul.f32 %v3349, %v3285
        %v3382 = vmul.f32 %v3350, %v3286
        %v3383 = vmul.f32 %v3351, %v3287
        %v3384 = vmul.f32 %v3352, %v3288
        %v3385 = vmul.f32 %v3353, %v3289
        %v3386 = vmul.f32 %v3354, %v3290
        %v3387 = vmul.f32 %v3355, %v3291
        %v3388 = vmul.f32 %v3356, %v3292
        %v3389 = vmul.f32 %v3357, %v3293
        %v3390 = vmul.f32 %v3358, %v3294
        %v3391 = vmul.f32 %v3359, %v3295
        %v3392 = vadd.f32 %v3360, 1.4214138
        %v3393 = vadd.f32 %v3361, 1.4214138
        %v3394 = vadd.f32 %v3362, 1.4214138
        %v3395 = vadd.f32 %v3363, 1.4214138
        %v3396 = vadd.f32 %v3364, 1.4214138
        %v3397 = vadd.f32 %v3365, 1.4214138
        %v3398 = vadd.f32 %v3366, 1.4214138
        %v3399 = vadd.f32 %v3367, 1.4214138
        %v3400 = vadd.f32 %v3368, 1.4214138
        %v3401 = vadd.f32 %v3369, 1.4214138
        %v3402 = vadd.f32 %v3370, 1.4214138
        %v3403 = vadd.f32 %v3371, 1.4214138
        %v3404 = vadd.f32 %v3372, 1.4214138
        %v3405 = vadd.f32 %v3373, 1.4214138
        %v3406 = vadd.f32 %v3374, 1.4214138
        %v3407 = vadd.f32 %v3375, 1.4214138
        %v3408 = vadd.f32 %v3376, 1.4214138
        %v3409 = vadd.f32 %v3377, 1.4214138
        %v3410 = vadd.f32 %v3378, 1.4214138
        %v3411 = vadd.f32 %v3379, 1.4214138
        %v3412 = vadd.f32 %v3380, 1.4214138
        %v3413 = vadd.f32 %v3381, 1.4214138
        %v3414 = vadd.f32 %v3382, 1.4214138
        %v3415 = vadd.f32 %v3383, 1.4214138
        %v3416 = vadd.f32 %v3384, 1.4214138
        %v3417 = vadd.f32 %v3385, 1.4214138
        %v3418 = vadd.f32 %v3386, 1.4214138
        %v3419 = vadd.f32 %v3387, 1.4214138
        %v3420 = vadd.f32 %v3388, 1.4214138
        %v3421 = vadd.f32 %v3389, 1.4214138
        %v3422 = vadd.f32 %v3390, 1.4214138
        %v3423 = vadd.f32 %v3391, 1.4214138
        %v3424 = vmul.f32 %v3392, %v3264
        %v3425 = vmul.f32 %v3393, %v3265
        %v3426 = vmul.f32 %v3394, %v3266
        %v3427 = vmul.f32 %v3395, %v3267
        %v3428 = vmul.f32 %v3396, %v3268
        %v3429 = vmul.f32 %v3397, %v3269
        %v3430 = vmul.f32 %v3398, %v3270
        %v3431 = vmul.f32 %v3399, %v3271
        %v3432 = vmul.f32 %v3400, %v3272
        %v3433 = vmul.f32 %v3401, %v3273
        %v3434 = vmul.f32 %v3402, %v3274
        %v3435 = vmul.f32 %v3403, %v3275
        %v3436 = vmul.f32 %v3404, %v3276
        %v3437 = vmul.f32 %v3405, %v3277
        %v3438 = vmul.f32 %v3406, %v3278
        %v3439 = vmul.f32 %v3407, %v3279
        %v3440 = vmul.f32 %v3408, %v3280
        %v3441 = vmul.f32 %v3409, %v3281
        %v3442 = vmul.f32 %v3410, %v3282
        %v3443 = vmul.f32 %v3411, %v3283
        %v3444 = vmul.f32 %v3412, %v3284
        %v3445 = vmul.f32 %v3413, %v3285
        %v3446 = vmul.f32 %v3414, %v3286
        %v3447 = vmul.f32 %v3415, %v3287
        %v3448 = vmul.f32 %v3416, %v3288
        %v3449 = vmul.f32 %v3417, %v3289
        %v3450 = vmul.f32 %v3418, %v3290
        %v3451 = vmul.f32 %v3419, %v3291
        %v3452 = vmul.f32 %v3420, %v3292
        %v3453 = vmul.f32 %v3421, %v3293
        %v3454 = vmul.f32 %v3422, %v3294
        %v3455 = vmul.f32 %v3423, %v3295
        %v3456 = vadd.f32 %v3424, -0.28449672
        %v3457 = vadd.f32 %v3425, -0.28449672
        %v3458 = vadd.f32 %v3426, -0.28449672
        %v3459 = vadd.f32 %v3427, -0.28449672
        %v3460 = vadd.f32 %v3428, -0.28449672
        %v3461 = vadd.f32 %v3429, -0.28449672
        %v3462 = vadd.f32 %v3430, -0.28449672
        %v3463 = vadd.f32 %v3431, -0.28449672
        %v3464 = vadd.f32 %v3432, -0.28449672
        %v3465 = vadd.f32 %v3433, -0.28449672
        %v3466 = vadd.f32 %v3434, -0.28449672
        %v3467 = vadd.f32 %v3435, -0.28449672
        %v3468 = vadd.f32 %v3436, -0.28449672
        %v3469 = vadd.f32 %v3437, -0.28449672
        %v3470 = vadd.f32 %v3438, -0.28449672
        %v3471 = vadd.f32 %v3439, -0.28449672
        %v3472 = vadd.f32 %v3440, -0.28449672
        %v3473 = vadd.f32 %v3441, -0.28449672
        %v3474 = vadd.f32 %v3442, -0.28449672
        %v3475 = vadd.f32 %v3443, -0.28449672
        %v3476 = vadd.f32 %v3444, -0.28449672
        %v3477 = vadd.f32 %v3445, -0.28449672
        %v3478 = vadd.f32 %v3446, -0.28449672
        %v3479 = vadd.f32 %v3447, -0.28449672
        %v3480 = vadd.f32 %v3448, -0.28449672
        %v3481 = vadd.f32 %v3449, -0.28449672
        %v3482 = vadd.f32 %v3450, -0.28449672
        %v3483 = vadd.f32 %v3451, -0.28449672
        %v3484 = vadd.f32 %v3452, -0.28449672
        %v3485 = vadd.f32 %v3453, -0.28449672
        %v3486 = vadd.f32 %v3454, -0.28449672
        %v3487 = vadd.f32 %v3455, -0.28449672
        %v3488 = vmul.f32 %v3456, %v3264
        %v3489 = vmul.f32 %v3457, %v3265
        %v3490 = vmul.f32 %v3458, %v3266
        %v3491 = vmul.f32 %v3459, %v3267
        %v3492 = vmul.f32 %v3460, %v3268
        %v3493 = vmul.f32 %v3461, %v3269
        %v3494 = vmul.f32 %v3462, %v3270
        %v3495 = vmul.f32 %v3463, %v3271
        %v3496 = vmul.f32 %v3464, %v3272
        %v3497 = vmul.f32 %v3465, %v3273
        %v3498 = vmul.f32 %v3466, %v3274
        %v3499 = vmul.f32 %v3467, %v3275
        %v3500 = vmul.f32 %v3468, %v3276
        %v3501 = vmul.f32 %v3469, %v3277
        %v3502 = vmul.f32 %v3470, %v3278
        %v3503 = vmul.f32 %v3471, %v3279
        %v3504 = vmul.f32 %v3472, %v3280
        %v3505 = vmul.f32 %v3473, %v3281
        %v3506 = vmul.f32 %v3474, %v3282
        %v3507 = vmul.f32 %v3475, %v3283
        %v3508 = vmul.f32 %v3476, %v3284
        %v3509 = vmul.f32 %v3477, %v3285
        %v3510 = vmul.f32 %v3478, %v3286
        %v3511 = vmul.f32 %v3479, %v3287
        %v3512 = vmul.f32 %v3480, %v3288
        %v3513 = vmul.f32 %v3481, %v3289
        %v3514 = vmul.f32 %v3482, %v3290
        %v3515 = vmul.f32 %v3483, %v3291
        %v3516 = vmul.f32 %v3484, %v3292
        %v3517 = vmul.f32 %v3485, %v3293
        %v3518 = vmul.f32 %v3486, %v3294
        %v3519 = vmul.f32 %v3487, %v3295
        %v3520 = vadd.f32 %v3488, 0.2548296
        %v3521 = vadd.f32 %v3489, 0.2548296
        %v3522 = vadd.f32 %v3490, 0.2548296
        %v3523 = vadd.f32 %v3491, 0.2548296
        %v3524 = vadd.f32 %v3492, 0.2548296
        %v3525 = vadd.f32 %v3493, 0.2548296
        %v3526 = vadd.f32 %v3494, 0.2548296
        %v3527 = vadd.f32 %v3495, 0.2548296
        %v3528 = vadd.f32 %v3496, 0.2548296
        %v3529 = vadd.f32 %v3497, 0.2548296
        %v3530 = vadd.f32 %v3498, 0.2548296
        %v3531 = vadd.f32 %v3499, 0.2548296
        %v3532 = vadd.f32 %v3500, 0.2548296
        %v3533 = vadd.f32 %v3501, 0.2548296
        %v3534 = vadd.f32 %v3502, 0.2548296
        %v3535 = vadd.f32 %v3503, 0.2548296
        %v3536 = vadd.f32 %v3504, 0.2548296
        %v3537 = vadd.f32 %v3505, 0.2548296
        %v3538 = vadd.f32 %v3506, 0.2548296
        %v3539 = vadd.f32 %v3507, 0.2548296
        %v3540 = vadd.f32 %v3508, 0.2548296
        %v3541 = vadd.f32 %v3509, 0.2548296
        %v3542 = vadd.f32 %v3510, 0.2548296
        %v3543 = vadd.f32 %v3511, 0.2548296
        %v3544 = vadd.f32 %v3512, 0.2548296
        %v3545 = vadd.f32 %v3513, 0.2548296
        %v3546 = vadd.f32 %v3514, 0.2548296
        %v3547 = vadd.f32 %v3515, 0.2548296
        %v3548 = vadd.f32 %v3516, 0.2548296
        %v3549 = vadd.f32 %v3517, 0.2548296
        %v3550 = vadd.f32 %v3518, 0.2548296
        %v3551 = vadd.f32 %v3519, 0.2548296
        %v3552 = vmul.f32 %v3520, %v3264
        %v3553 = vmul.f32 %v3521, %v3265
        %v3554 = vmul.f32 %v3522, %v3266
        %v3555 = vmul.f32 %v3523, %v3267
        %v3556 = vmul.f32 %v3524, %v3268
        %v3557 = vmul.f32 %v3525, %v3269
        %v3558 = vmul.f32 %v3526, %v3270
        %v3559 = vmul.f32 %v3527, %v3271
        %v3560 = vmul.f32 %v3528, %v3272
        %v3561 = vmul.f32 %v3529, %v3273
        %v3562 = vmul.f32 %v3530, %v3274
        %v3563 = vmul.f32 %v3531, %v3275
        %v3564 = vmul.f32 %v3532, %v3276
        %v3565 = vmul.f32 %v3533, %v3277
        %v3566 = vmul.f32 %v3534, %v3278
        %v3567 = vmul.f32 %v3535, %v3279
        %v3568 = vmul.f32 %v3536, %v3280
        %v3569 = vmul.f32 %v3537, %v3281
        %v3570 = vmul.f32 %v3538, %v3282
        %v3571 = vmul.f32 %v3539, %v3283
        %v3572 = vmul.f32 %v3540, %v3284
        %v3573 = vmul.f32 %v3541, %v3285
        %v3574 = vmul.f32 %v3542, %v3286
        %v3575 = vmul.f32 %v3543, %v3287
        %v3576 = vmul.f32 %v3544, %v3288
        %v3577 = vmul.f32 %v3545, %v3289
        %v3578 = vmul.f32 %v3546, %v3290
        %v3579 = vmul.f32 %v3547, %v3291
        %v3580 = vmul.f32 %v3548, %v3292
        %v3581 = vmul.f32 %v3549, %v3293
        %v3582 = vmul.f32 %v3550, %v3294
        %v3583 = vmul.f32 %v3551, %v3295
        %v3584 = vmul.f32 %v3168, %v3168
        %v3585 = vmul.f32 %v3169, %v3169
        %v3586 = vmul.f32 %v3170, %v3170
        %v3587 = vmul.f32 %v3171, %v3171
        %v3588 = vmul.f32 %v3172, %v3172
        %v3589 = vmul.f32 %v3173, %v3173
        %v3590 = vmul.f32 %v3174, %v3174
        %v3591 = vmul.f32 %v3175, %v3175
        %v3592 = vmul.f32 %v3176, %v3176
        %v3593 = vmul.f32 %v3177, %v3177
        %v3594 = vmul.f32 %v3178, %v3178
        %v3595 = vmul.f32 %v3179, %v3179
        %v3596 = vmul.f32 %v3180, %v3180
        %v3597 = vmul.f32 %v3181, %v3181
        %v3598 = vmul.f32 %v3182, %v3182
        %v3599 = vmul.f32 %v3183, %v3183
        %v3600 = vmul.f32 %v3184, %v3184
        %v3601 = vmul.f32 %v3185, %v3185
        %v3602 = vmul.f32 %v3186, %v3186
        %v3603 = vmul.f32 %v3187, %v3187
        %v3604 = vmul.f32 %v3188, %v3188
        %v3605 = vmul.f32 %v3189, %v3189
        %v3606 = vmul.f32 %v3190, %v3190
        %v3607 = vmul.f32 %v3191, %v3191
        %v3608 = vmul.f32 %v3192, %v3192
        %v3609 = vmul.f32 %v3193, %v3193
        %v3610 = vmul.f32 %v3194, %v3194
        %v3611 = vmul.f32 %v3195, %v3195
        %v3612 = vmul.f32 %v3196, %v3196
        %v3613 = vmul.f32 %v3197, %v3197
        %v3614 = vmul.f32 %v3198, %v3198
        %v3615 = vmul.f32 %v3199, %v3199
        %v3616 = vsub.f32 0.0, %v3584
        %v3617 = vsub.f32 0.0, %v3585
        %v3618 = vsub.f32 0.0, %v3586
        %v3619 = vsub.f32 0.0, %v3587
        %v3620 = vsub.f32 0.0, %v3588
        %v3621 = vsub.f32 0.0, %v3589
        %v3622 = vsub.f32 0.0, %v3590
        %v3623 = vsub.f32 0.0, %v3591
        %v3624 = vsub.f32 0.0, %v3592
        %v3625 = vsub.f32 0.0, %v3593
        %v3626 = vsub.f32 0.0, %v3594
        %v3627 = vsub.f32 0.0, %v3595
        %v3628 = vsub.f32 0.0, %v3596
        %v3629 = vsub.f32 0.0, %v3597
        %v3630 = vsub.f32 0.0, %v3598
        %v3631 = vsub.f32 0.0, %v3599
        %v3632 = vsub.f32 0.0, %v3600
        %v3633 = vsub.f32 0.0, %v3601
        %v3634 = vsub.f32 0.0, %v3602
        %v3635 = vsub.f32 0.0, %v3603
        %v3636 = vsub.f32 0.0, %v3604
        %v3637 = vsub.f32 0.0, %v3605
        %v3638 = vsub.f32 0.0, %v3606
        %v3639 = vsub.f32 0.0, %v3607
        %v3640 = vsub.f32 0.0, %v3608
        %v3641 = vsub.f32 0.0, %v3609
        %v3642 = vsub.f32 0.0, %v3610
        %v3643 = vsub.f32 0.0, %v3611
        %v3644 = vsub.f32 0.0, %v3612
        %v3645 = vsub.f32 0.0, %v3613
        %v3646 = vsub.f32 0.0, %v3614
        %v3647 = vsub.f32 0.0, %v3615
        %v3648 = vmul.f32 %v3616, 1.442695
        %v3649 = vpow.pop %v3648
        %v3650 = vmul.f32 %v3617, 1.442695
        %v3651 = vpow.pop %v3650
        %v3652 = vmul.f32 %v3618, 1.442695
        %v3653 = vpow.pop %v3652
        %v3654 = vmul.f32 %v3619, 1.442695
        %v3655 = vpow.pop %v3654
        %v3656 = vmul.f32 %v3620, 1.442695
        %v3657 = vpow.pop %v3656
        %v3658 = vmul.f32 %v3621, 1.442695
        %v3659 = vpow.pop %v3658
        %v3660 = vmul.f32 %v3622, 1.442695
        %v3661 = vpow.pop %v3660
        %v3662 = vmul.f32 %v3623, 1.442695
        %v3663 = vpow.pop %v3662
        %v3664 = vmul.f32 %v3624, 1.442695
        %v3665 = vpow.pop %v3664
        %v3666 = vmul.f32 %v3625, 1.442695
        %v3667 = vpow.pop %v3666
        %v3668 = vmul.f32 %v3626, 1.442695
        %v3669 = vpow.pop %v3668
        %v3670 = vmul.f32 %v3627, 1.442695
        %v3671 = vpow.pop %v3670
        %v3672 = vmul.f32 %v3628, 1.442695
        %v3673 = vpow.pop %v3672
        %v3674 = vmul.f32 %v3629, 1.442695
        %v3675 = vpow.pop %v3674
        %v3676 = vmul.f32 %v3630, 1.442695
        %v3677 = vpow.pop %v3676
        %v3678 = vmul.f32 %v3631, 1.442695
        %v3679 = vpow.pop %v3678
        %v3680 = vmul.f32 %v3632, 1.442695
        %v3681 = vpow.pop %v3680
        %v3682 = vmul.f32 %v3633, 1.442695
        %v3683 = vpow.pop %v3682
        %v3684 = vmul.f32 %v3634, 1.442695
        %v3685 = vpow.pop %v3684
        %v3686 = vmul.f32 %v3635, 1.442695
        %v3687 = vpow.pop %v3686
        %v3688 = vmul.f32 %v3636, 1.442695
        %v3689 = vpow.pop %v3688
        %v3690 = vmul.f32 %v3637, 1.442695
        %v3691 = vpow.pop %v3690
        %v3692 = vmul.f32 %v3638, 1.442695
        %v3693 = vpow.pop %v3692
        %v3694 = vmul.f32 %v3639, 1.442695
        %v3695 = vpow.pop %v3694
        %v3696 = vmul.f32 %v3640, 1.442695
        %v3697 = vpow.pop %v3696
        %v3698 = vmul.f32 %v3641, 1.442695
        %v3699 = vpow.pop %v3698
        %v3700 = vmul.f32 %v3642, 1.442695
        %v3701 = vpow.pop %v3700
        %v3702 = vmul.f32 %v3643, 1.442695
        %v3703 = vpow.pop %v3702
        %v3704 = vmul.f32 %v3644, 1.442695
        %v3705 = vpow.pop %v3704
        %v3706 = vmul.f32 %v3645, 1.442695
        %v3707 = vpow.pop %v3706
        %v3708 = vmul.f32 %v3646, 1.442695
        %v3709 = vpow.pop %v3708
        %v3710 = vmul.f32 %v3647, 1.442695
        %v3711 = vpow.pop %v3710
        %v3712 = vmul.f32 %v3552, %v3649
        %v3713 = vmul.f32 %v3553, %v3651
        %v3714 = vmul.f32 %v3554, %v3653
        %v3715 = vmul.f32 %v3555, %v3655
        %v3716 = vmul.f32 %v3556, %v3657
        %v3717 = vmul.f32 %v3557, %v3659
        %v3718 = vmul.f32 %v3558, %v3661
        %v3719 = vmul.f32 %v3559, %v3663
        %v3720 = vmul.f32 %v3560, %v3665
        %v3721 = vmul.f32 %v3561, %v3667
        %v3722 = vmul.f32 %v3562, %v3669
        %v3723 = vmul.f32 %v3563, %v3671
        %v3724 = vmul.f32 %v3564, %v3673
        %v3725 = vmul.f32 %v3565, %v3675
        %v3726 = vmul.f32 %v3566, %v3677
        %v3727 = vmul.f32 %v3567, %v3679
        %v3728 = vmul.f32 %v3568, %v3681
        %v3729 = vmul.f32 %v3569, %v3683
        %v3730 = vmul.f32 %v3570, %v3685
        %v3731 = vmul.f32 %v3571, %v3687
        %v3732 = vmul.f32 %v3572, %v3689
        %v3733 = vmul.f32 %v3573, %v3691
        %v3734 = vmul.f32 %v3574, %v3693
        %v3735 = vmul.f32 %v3575, %v3695
        %v3736 = vmul.f32 %v3576, %v3697
        %v3737 = vmul.f32 %v3577, %v3699
        %v3738 = vmul.f32 %v3578, %v3701
        %v3739 = vmul.f32 %v3579, %v3703
        %v3740 = vmul.f32 %v3580, %v3705
        %v3741 = vmul.f32 %v3581, %v3707
        %v3742 = vmul.f32 %v3582, %v3709
        %v3743 = vmul.f32 %v3583, %v3711
        %v3744 = vsub.f32 1.0, %v3712
        %v3745 = vsub.f32 1.0, %v3713
        %v3746 = vsub.f32 1.0, %v3714
        %v3747 = vsub.f32 1.0, %v3715
        %v3748 = vsub.f32 1.0, %v3716
        %v3749 = vsub.f32 1.0, %v3717
        %v3750 = vsub.f32 1.0, %v3718
        %v3751 = vsub.f32 1.0, %v3719
        %v3752 = vsub.f32 1.0, %v3720
        %v3753 = vsub.f32 1.0, %v3721
        %v3754 = vsub.f32 1.0, %v3722
        %v3755 = vsub.f32 1.0, %v3723
        %v3756 = vsub.f32 1.0, %v3724
        %v3757 = vsub.f32 1.0, %v3725
        %v3758 = vsub.f32 1.0, %v3726
        %v3759 = vsub.f32 1.0, %v3727
        %v3760 = vsub.f32 1.0, %v3728
        %v3761 = vsub.f32 1.0, %v3729
        %v3762 = vsub.f32 1.0, %v3730
        %v3763 = vsub.f32 1.0, %v3731
        %v3764 = vsub.f32 1.0, %v3732
        %v3765 = vsub.f32 1.0, %v3733
        %v3766 = vsub.f32 1.0, %v3734
        %v3767 = vsub.f32 1.0, %v3735
        %v3768 = vsub.f32 1.0, %v3736
        %v3769 = vsub.f32 1.0, %v3737
        %v3770 = vsub.f32 1.0, %v3738
        %v3771 = vsub.f32 1.0, %v3739
        %v3772 = vsub.f32 1.0, %v3740
        %v3773 = vsub.f32 1.0, %v3741
        %v3774 = vsub.f32 1.0, %v3742
        %v3775 = vsub.f32 1.0, %v3743
        %vm3776 = vcmp.lt.f32.partialorder %v3136, 0.0
        %vm3777 = vcmp.lt.f32.partialorder %v3137, 0.0
        %vm3778 = vcmp.lt.f32.partialorder %v3138, 0.0
        %vm3779 = vcmp.lt.f32.partialorder %v3139, 0.0
        %vm3780 = vcmp.lt.f32.partialorder %v3140, 0.0
        %vm3781 = vcmp.lt.f32.partialorder %v3141, 0.0
        %vm3782 = vcmp.lt.f32.partialorder %v3142, 0.0
        %vm3783 = vcmp.lt.f32.partialorder %v3143, 0.0
        %vm3784 = vcmp.lt.f32.partialorder %v3144, 0.0
        %vm3785 = vcmp.lt.f32.partialorder %v3145, 0.0
        %vm3786 = vcmp.lt.f32.partialorder %v3146, 0.0
        %vm3787 = vcmp.lt.f32.partialorder %v3147, 0.0
        %vm3788 = vcmp.lt.f32.partialorder %v3148, 0.0
        %vm3789 = vcmp.lt.f32.partialorder %v3149, 0.0
        %vm3790 = vcmp.lt.f32.partialorder %v3150, 0.0
        %vm3791 = vcmp.lt.f32.partialorder %v3151, 0.0
        %vm3792 = vcmp.lt.f32.partialorder %v3152, 0.0
        %vm3793 = vcmp.lt.f32.partialorder %v3153, 0.0
        %vm3794 = vcmp.lt.f32.partialorder %v3154, 0.0
        %vm3795 = vcmp.lt.f32.partialorder %v3155, 0.0
        %vm3796 = vcmp.lt.f32.partialorder %v3156, 0.0
        %vm3797 = vcmp.lt.f32.partialorder %v3157, 0.0
        %vm3798 = vcmp.lt.f32.partialorder %v3158, 0.0
        %vm3799 = vcmp.lt.f32.partialorder %v3159, 0.0
        %vm3800 = vcmp.lt.f32.partialorder %v3160, 0.0
        %vm3801 = vcmp.lt.f32.partialorder %v3161, 0.0
        %vm3802 = vcmp.lt.f32.partialorder %v3162, 0.0
        %vm3803 = vcmp.lt.f32.partialorder %v3163, 0.0
        %vm3804 = vcmp.lt.f32.partialorder %v3164, 0.0
        %vm3805 = vcmp.lt.f32.partialorder %v3165, 0.0
        %vm3806 = vcmp.lt.f32.partialorder %v3166, 0.0
        %vm3807 = vcmp.lt.f32.partialorder %v3167, 0.0
        %v3808 = vsub.f32 0.0, %v3744
        %v3809 = vsub.f32 0.0, %v3745
        %v3810 = vsub.f32 0.0, %v3746
        %v3811 = vsub.f32 0.0, %v3747
        %v3812 = vsub.f32 0.0, %v3748
        %v3813 = vsub.f32 0.0, %v3749
        %v3814 = vsub.f32 0.0, %v3750
        %v3815 = vsub.f32 0.0, %v3751
        %v3816 = vsub.f32 0.0, %v3752
        %v3817 = vsub.f32 0.0, %v3753
        %v3818 = vsub.f32 0.0, %v3754
        %v3819 = vsub.f32 0.0, %v3755
        %v3820 = vsub.f32 0.0, %v3756
        %v3821 = vsub.f32 0.0, %v3757
        %v3822 = vsub.f32 0.0, %v3758
        %v3823 = vsub.f32 0.0, %v3759
        %v3824 = vsub.f32 0.0, %v3760
        %v3825 = vsub.f32 0.0, %v3761
        %v3826 = vsub.f32 0.0, %v3762
        %v3827 = vsub.f32 0.0, %v3763
        %v3828 = vsub.f32 0.0, %v3764
        %v3829 = vsub.f32 0.0, %v3765
        %v3830 = vsub.f32 0.0, %v3766
        %v3831 = vsub.f32 0.0, %v3767
        %v3832 = vsub.f32 0.0, %v3768
        %v3833 = vsub.f32 0.0, %v3769
        %v3834 = vsub.f32 0.0, %v3770
        %v3835 = vsub.f32 0.0, %v3771
        %v3836 = vsub.f32 0.0, %v3772
        %v3837 = vsub.f32 0.0, %v3773
        %v3838 = vsub.f32 0.0, %v3774
        %v3839 = vsub.f32 0.0, %v3775
        %v3840 = vsel %vm3776, %v3808, %v3744
        %v3841 = vsel %vm3777, %v3809, %v3745
        %v3842 = vsel %vm3778, %v3810, %v3746
        %v3843 = vsel %vm3779, %v3811, %v3747
        %v3844 = vsel %vm3780, %v3812, %v3748
        %v3845 = vsel %vm3781, %v3813, %v3749
        %v3846 = vsel %vm3782, %v3814, %v3750
        %v3847 = vsel %vm3783, %v3815, %v3751
        %v3848 = vsel %vm3784, %v3816, %v3752
        %v3849 = vsel %vm3785, %v3817, %v3753
        %v3850 = vsel %vm3786, %v3818, %v3754
        %v3851 = vsel %vm3787, %v3819, %v3755
        %v3852 = vsel %vm3788, %v3820, %v3756
        %v3853 = vsel %vm3789, %v3821, %v3757
        %v3854 = vsel %vm3790, %v3822, %v3758
        %v3855 = vsel %vm3791, %v3823, %v3759
        %v3856 = vsel %vm3792, %v3824, %v3760
        %v3857 = vsel %vm3793, %v3825, %v3761
        %v3858 = vsel %vm3794, %v3826, %v3762
        %v3859 = vsel %vm3795, %v3827, %v3763
        %v3860 = vsel %vm3796, %v3828, %v3764
        %v3861 = vsel %vm3797, %v3829, %v3765
        %v3862 = vsel %vm3798, %v3830, %v3766
        %v3863 = vsel %vm3799, %v3831, %v3767
        %v3864 = vsel %vm3800, %v3832, %v3768
        %v3865 = vsel %vm3801, %v3833, %v3769
        %v3866 = vsel %vm3802, %v3834, %v3770
        %v3867 = vsel %vm3803, %v3835, %v3771
        %v3868 = vsel %vm3804, %v3836, %v3772
        %v3869 = vsel %vm3805, %v3837, %v3773
        %v3870 = vsel %vm3806, %v3838, %v3774
        %v3871 = vsel %vm3807, %v3839, %v3775
        %v3872 = vmul.f32 %v3010, 0.5
        %v3873 = vmul.f32 %v3013, 0.5
        %v3874 = vmul.f32 %v3018, 0.5
        %v3875 = vmul.f32 %v3021, 0.5
        %v3876 = vmul.f32 %v3026, 0.5
        %v3877 = vmul.f32 %v3029, 0.5
        %v3878 = vmul.f32 %v3034, 0.5
        %v3879 = vmul.f32 %v3037, 0.5
        %v3880 = vmul.f32 %v3042, 0.5
        %v3881 = vmul.f32 %v3045, 0.5
        %v3882 = vmul.f32 %v3050, 0.5
        %v3883 = vmul.f32 %v3053, 0.5
        %v3884 = vmul.f32 %v3058, 0.5
        %v3885 = vmul.f32 %v3061, 0.5
        %v3886 = vmul.f32 %v3066, 0.5
        %v3887 = vmul.f32 %v3069, 0.5
        %v3888 = vmul.f32 %v3074, 0.5
        %v3889 = vmul.f32 %v3077, 0.5
        %v3890 = vmul.f32 %v3082, 0.5
        %v3891 = vmul.f32 %v3085, 0.5
        %v3892 = vmul.f32 %v3090, 0.5
        %v3893 = vmul.f32 %v3093, 0.5
        %v3894 = vmul.f32 %v3098, 0.5
        %v3895 = vmul.f32 %v3101, 0.5
        %v3896 = vmul.f32 %v3106, 0.5
        %v3897 = vmul.f32 %v3109, 0.5
        %v3898 = vmul.f32 %v3114, 0.5
        %v3899 = vmul.f32 %v3117, 0.5
        %v3900 = vmul.f32 %v3122, 0.5
        %v3901 = vmul.f32 %v3125, 0.5
        %v3902 = vmul.f32 %v3130, 0.5
        %v3903 = vmul.f32 %v3133, 0.5
        %v3904 = vadd.f32 %v3840, 1.0
        %v3905 = vadd.f32 %v3841, 1.0
        %v3906 = vadd.f32 %v3842, 1.0
        %v3907 = vadd.f32 %v3843, 1.0
        %v3908 = vadd.f32 %v3844, 1.0
        %v3909 = vadd.f32 %v3845, 1.0
        %v3910 = vadd.f32 %v3846, 1.0
        %v3911 = vadd.f32 %v3847, 1.0
        %v3912 = vadd.f32 %v3848, 1.0
        %v3913 = vadd.f32 %v3849, 1.0
        %v3914 = vadd.f32 %v3850, 1.0
        %v3915 = vadd.f32 %v3851, 1.0
        %v3916 = vadd.f32 %v3852, 1.0
        %v3917 = vadd.f32 %v3853, 1.0
        %v3918 = vadd.f32 %v3854, 1.0
        %v3919 = vadd.f32 %v3855, 1.0
        %v3920 = vadd.f32 %v3856, 1.0
        %v3921 = vadd.f32 %v3857, 1.0
        %v3922 = vadd.f32 %v3858, 1.0
        %v3923 = vadd.f32 %v3859, 1.0
        %v3924 = vadd.f32 %v3860, 1.0
        %v3925 = vadd.f32 %v3861, 1.0
        %v3926 = vadd.f32 %v3862, 1.0
        %v3927 = vadd.f32 %v3863, 1.0
        %v3928 = vadd.f32 %v3864, 1.0
        %v3929 = vadd.f32 %v3865, 1.0
        %v3930 = vadd.f32 %v3866, 1.0
        %v3931 = vadd.f32 %v3867, 1.0
        %v3932 = vadd.f32 %v3868, 1.0
        %v3933 = vadd.f32 %v3869, 1.0
        %v3934 = vadd.f32 %v3870, 1.0
        %v3935 = vadd.f32 %v3871, 1.0
        %v3936 = vmul.f32 %v3872, %v3904
        %v3937 = vmul.f32 %v3873, %v3905
        %v3938 = vmul.f32 %v3874, %v3906
        %v3939 = vmul.f32 %v3875, %v3907
        %v3940 = vmul.f32 %v3876, %v3908
        %v3941 = vmul.f32 %v3877, %v3909
        %v3942 = vmul.f32 %v3878, %v3910
        %v3943 = vmul.f32 %v3879, %v3911
        %v3944 = vmul.f32 %v3880, %v3912
        %v3945 = vmul.f32 %v3881, %v3913
        %v3946 = vmul.f32 %v3882, %v3914
        %v3947 = vmul.f32 %v3883, %v3915
        %v3948 = vmul.f32 %v3884, %v3916
        %v3949 = vmul.f32 %v3885, %v3917
        %v3950 = vmul.f32 %v3886, %v3918
        %v3951 = vmul.f32 %v3887, %v3919
        %v3952 = vmul.f32 %v3888, %v3920
        %v3953 = vmul.f32 %v3889, %v3921
        %v3954 = vmul.f32 %v3890, %v3922
        %v3955 = vmul.f32 %v3891, %v3923
        %v3956 = vmul.f32 %v3892, %v3924
        %v3957 = vmul.f32 %v3893, %v3925
        %v3958 = vmul.f32 %v3894, %v3926
        %v3959 = vmul.f32 %v3895, %v3927
        %v3960 = vmul.f32 %v3896, %v3928
        %v3961 = vmul.f32 %v3897, %v3929
        %v3962 = vmul.f32 %v3898, %v3930
        %v3963 = vmul.f32 %v3899, %v3931
        %v3964 = vmul.f32 %v3900, %v3932
        %v3965 = vmul.f32 %v3901, %v3933
        %v3966 = vmul.f32 %v3902, %v3934
        %v3967 = vmul.f32 %v3903, %v3935
        %v3968 = vld [vmem:[%s6] sm:$0xff]
        %v3969 = vld [vmem:[%s6 + $0x8] sm:$0xff]
        %v3970 = vld [vmem:[%s6 + $0x10] sm:$0xff]
        %v3971 = vld [vmem:[%s6 + $0x18] sm:$0xff]
        %v3972 = vld [vmem:[%s6 + $0x20] sm:$0xff]
        %v3973 = vld [vmem:[%s6 + $0x28] sm:$0xff]
        %v3974 = vld [vmem:[%s6 + $0x30] sm:$0xff]
        %v3975 = vld [vmem:[%s6 + $0x38] sm:$0xff]
        %v3976 = vld [vmem:[%s6 + $0x40] sm:$0xff]
        %v3977 = vld [vmem:[%s6 + $0x48] sm:$0xff]
        %v3978 = vld [vmem:[%s6 + $0x50] sm:$0xff]
        %v3979 = vld [vmem:[%s6 + $0x58] sm:$0xff]
        %v3980 = vld [vmem:[%s6 + $0x60] sm:$0xff]
        %v3981 = vld [vmem:[%s6 + $0x68] sm:$0xff]
        %v3982 = vld [vmem:[%s6 + $0x70] sm:$0xff]
        %v3983 = vld [vmem:[%s6 + $0x78] sm:$0xff]
        %v3984 = vld [vmem:[%s6 + $0x80] sm:$0xff]
        %v3985 = vld [vmem:[%s6 + $0x88] sm:$0xff]
        %v3986 = vld [vmem:[%s6 + $0x90] sm:$0xff]
        %v3987 = vld [vmem:[%s6 + $0x98] sm:$0xff]
        %v3988 = vld [vmem:[%s6 + $0xa0] sm:$0xff]
        %v3989 = vld [vmem:[%s6 + $0xa8] sm:$0xff]
        %v3990 = vld [vmem:[%s6 + $0xb0] sm:$0xff]
        %v3991 = vld [vmem:[%s6 + $0xb8] sm:$0xff]
        %v3992 = vld [vmem:[%s6 + $0xc0] sm:$0xff]
        %v3993 = vld [vmem:[%s6 + $0xc8] sm:$0xff]
        %v3994 = vld [vmem:[%s6 + $0xd0] sm:$0xff]
        %v3995 = vld [vmem:[%s6 + $0xd8] sm:$0xff]
        %v3996 = vld [vmem:[%s6 + $0xe0] sm:$0xff]
        %v3997 = vld [vmem:[%s6 + $0xe8] sm:$0xff]
        %v3998 = vld [vmem:[%s6 + $0xf0] sm:$0xff]
        %v3999 = vld [vmem:[%s6 + $0xf8] sm:$0xff]
        %4001 = vset.pattern.permute.xlu0 0
        %4002 = vperm.xlu0 %4001, %v3968
        %v4003 = vpop.permute.xlu0 %4002
        %4006 = vset.pattern.permute.xlu0 0
        %4007 = vperm.xlu0 %4006, %v3969
        %v4008 = vpop.permute.xlu0 %4007
        %4011 = vset.pattern.permute.xlu0 0
        %4012 = vperm.xlu0 %4011, %v3970
        %v4013 = vpop.permute.xlu0 %4012
        %4016 = vset.pattern.permute.xlu0 0
        %4017 = vperm.xlu0 %4016, %v3971
        %v4018 = vpop.permute.xlu0 %4017
        %4021 = vset.pattern.permute.xlu0 0
        %4022 = vperm.xlu0 %4021, %v3972
        %v4023 = vpop.permute.xlu0 %4022
        %4026 = vset.pattern.permute.xlu0 0
        %4027 = vperm.xlu0 %4026, %v3973
        %v4028 = vpop.permute.xlu0 %4027
        %4031 = vset.pattern.permute.xlu0 0
        %4032 = vperm.xlu0 %4031, %v3974
        %v4033 = vpop.permute.xlu0 %4032
        %4036 = vset.pattern.permute.xlu0 0
        %4037 = vperm.xlu0 %4036, %v3975
        %v4038 = vpop.permute.xlu0 %4037
        %4041 = vset.pattern.permute.xlu0 0
        %4042 = vperm.xlu0 %4041, %v3976
        %v4043 = vpop.permute.xlu0 %4042
        %4046 = vset.pattern.permute.xlu0 0
        %4047 = vperm.xlu0 %4046, %v3977
        %v4048 = vpop.permute.xlu0 %4047
        %4051 = vset.pattern.permute.xlu0 0
        %4052 = vperm.xlu0 %4051, %v3978
        %v4053 = vpop.permute.xlu0 %4052
        %4056 = vset.pattern.permute.xlu0 0
        %4057 = vperm.xlu0 %4056, %v3979
        %v4058 = vpop.permute.xlu0 %4057
        %4061 = vset.pattern.permute.xlu0 0
        %4062 = vperm.xlu0 %4061, %v3980
        %v4063 = vpop.permute.xlu0 %4062
        %4066 = vset.pattern.permute.xlu0 0
        %4067 = vperm.xlu0 %4066, %v3981
        %v4068 = vpop.permute.xlu0 %4067
        %4071 = vset.pattern.permute.xlu0 0
        %4072 = vperm.xlu0 %4071, %v3982
        %v4073 = vpop.permute.xlu0 %4072
        %4076 = vset.pattern.permute.xlu0 0
        %4077 = vperm.xlu0 %4076, %v3983
        %v4078 = vpop.permute.xlu0 %4077
        %4081 = vset.pattern.permute.xlu0 0
        %4082 = vperm.xlu0 %4081, %v3984
        %v4083 = vpop.permute.xlu0 %4082
        %4086 = vset.pattern.permute.xlu0 0
        %4087 = vperm.xlu0 %4086, %v3985
        %v4088 = vpop.permute.xlu0 %4087
        %4091 = vset.pattern.permute.xlu0 0
        %4092 = vperm.xlu0 %4091, %v3986
        %v4093 = vpop.permute.xlu0 %4092
        %4096 = vset.pattern.permute.xlu0 0
        %4097 = vperm.xlu0 %4096, %v3987
        %v4098 = vpop.permute.xlu0 %4097
        %4101 = vset.pattern.permute.xlu0 0
        %4102 = vperm.xlu0 %4101, %v3988
        %v4103 = vpop.permute.xlu0 %4102
        %4106 = vset.pattern.permute.xlu0 0
        %4107 = vperm.xlu0 %4106, %v3989
        %v4108 = vpop.permute.xlu0 %4107
        %4111 = vset.pattern.permute.xlu0 0
        %4112 = vperm.xlu0 %4111, %v3990
        %v4113 = vpop.permute.xlu0 %4112
        %4116 = vset.pattern.permute.xlu0 0
        %4117 = vperm.xlu0 %4116, %v3991
        %v4118 = vpop.permute.xlu0 %4117
        %4121 = vset.pattern.permute.xlu0 0
        %4122 = vperm.xlu0 %4121, %v3992
        %v4123 = vpop.permute.xlu0 %4122
        %4126 = vset.pattern.permute.xlu0 0
        %4127 = vperm.xlu0 %4126, %v3993
        %v4128 = vpop.permute.xlu0 %4127
        %4131 = vset.pattern.permute.xlu0 0
        %4132 = vperm.xlu0 %4131, %v3994
        %v4133 = vpop.permute.xlu0 %4132
        %4136 = vset.pattern.permute.xlu0 0
        %4137 = vperm.xlu0 %4136, %v3995
        %v4138 = vpop.permute.xlu0 %4137
        %4141 = vset.pattern.permute.xlu0 0
        %4142 = vperm.xlu0 %4141, %v3996
        %v4143 = vpop.permute.xlu0 %4142
        %4146 = vset.pattern.permute.xlu0 0
        %4147 = vperm.xlu0 %4146, %v3997
        %v4148 = vpop.permute.xlu0 %4147
        %4151 = vset.pattern.permute.xlu0 0
        %4152 = vperm.xlu0 %4151, %v3998
        %v4153 = vpop.permute.xlu0 %4152
        %4156 = vset.pattern.permute.xlu0 0
        %4157 = vperm.xlu0 %4156, %v3999
        %v4158 = vpop.permute.xlu0 %4157
        %v4160 = vmul.f32 %v3936, %v4003
        %v4161 = vmul.f32 %v3937, %v4008
        %v4162 = vmul.f32 %v3938, %v4013
        %v4163 = vmul.f32 %v3939, %v4018
        %v4164 = vmul.f32 %v3940, %v4023
        %v4165 = vmul.f32 %v3941, %v4028
        %v4166 = vmul.f32 %v3942, %v4033
        %v4167 = vmul.f32 %v3943, %v4038
        %v4168 = vmul.f32 %v3944, %v4043
        %v4169 = vmul.f32 %v3945, %v4048
        %v4170 = vmul.f32 %v3946, %v4053
        %v4171 = vmul.f32 %v3947, %v4058
        %v4172 = vmul.f32 %v3948, %v4063
        %v4173 = vmul.f32 %v3949, %v4068
        %v4174 = vmul.f32 %v3950, %v4073
        %v4175 = vmul.f32 %v3951, %v4078
        %v4176 = vmul.f32 %v3952, %v4083
        %v4177 = vmul.f32 %v3953, %v4088
        %v4178 = vmul.f32 %v3954, %v4093
        %v4179 = vmul.f32 %v3955, %v4098
        %v4180 = vmul.f32 %v3956, %v4103
        %v4181 = vmul.f32 %v3957, %v4108
        %v4182 = vmul.f32 %v3958, %v4113
        %v4183 = vmul.f32 %v3959, %v4118
        %v4184 = vmul.f32 %v3960, %v4123
        %v4185 = vmul.f32 %v3961, %v4128
        %v4186 = vmul.f32 %v3962, %v4133
        %v4187 = vmul.f32 %v3963, %v4138
        %v4188 = vmul.f32 %v3964, %v4143
        %v4189 = vmul.f32 %v3965, %v4148
        %v4190 = vmul.f32 %v3966, %v4153
        %v4191 = vmul.f32 %v3967, %v4158
        %v4192 = vadd.f32 %v4160, %v4161
        %v4193 = vadd.f32 %v4192, %v4162
        %v4194 = vadd.f32 %v4193, %v4163
        %v4195 = vadd.f32 %v4194, %v4164
        %v4196 = vadd.f32 %v4195, %v4165
        %v4197 = vadd.f32 %v4196, %v4166
        %v4198 = vadd.f32 %v4197, %v4167
        %v4199 = vadd.f32 %v4198, %v4168
        %v4200 = vadd.f32 %v4199, %v4169
        %v4201 = vadd.f32 %v4200, %v4170
        %v4202 = vadd.f32 %v4201, %v4171
        %v4203 = vadd.f32 %v4202, %v4172
        %v4204 = vadd.f32 %v4203, %v4173
        %v4205 = vadd.f32 %v4204, %v4174
        %v4206 = vadd.f32 %v4205, %v4175
        %v4207 = vadd.f32 %v4206, %v4176
        %v4208 = vadd.f32 %v4207, %v4177
        %v4209 = vadd.f32 %v4208, %v4178
        %v4210 = vadd.f32 %v4209, %v4179
        %v4211 = vadd.f32 %v4210, %v4180
        %v4212 = vadd.f32 %v4211, %v4181
        %v4213 = vadd.f32 %v4212, %v4182
        %v4214 = vadd.f32 %v4213, %v4183
        %v4215 = vadd.f32 %v4214, %v4184
        %v4216 = vadd.f32 %v4215, %v4185
        %v4217 = vadd.f32 %v4216, %v4186
        %v4218 = vadd.f32 %v4217, %v4187
        %v4219 = vadd.f32 %v4218, %v4188
        %v4220 = vadd.f32 %v4219, %v4189
        %v4221 = vadd.f32 %v4220, %v4190
        %v4222 = vadd.f32 %v4221, %v4191
        %v4223 = vrot.slane %v4222, 4
        %v4224 = vadd.f32 %v4222, %v4223
        %v4225 = vrot.slane %v4224, 2
        %v4226 = vadd.f32 %v4224, %v4225
        %v4227 = vrot.slane %v4226, 1
        %v4228 = vadd.f32 %v4226, %v4227
        %v4229 = vld [vmem:[#allocation2] sm:$0x1]
        %4231 = vset.pattern.permute.xlu0 0
        %4232 = vperm.xlu0 %4231, %v4229
        %v4233 = vpop.permute.xlu0 %4232
        %v4235 = vlaneseq
        %v4236 = vshrl.u32 %v4235, 7
        %v4237 = vsub.s32 0, %v4236
        %v4238 = vrot.slane %v4233, %v4237
        %v4239 = vadd.f32 %v4228, %v4238
        %v4240 = vmul.f32 %v4239, 0.70710677
        %v4241 = vand.u32 2147483647, %v4240
        %v4242 = vmul.f32 %v4241, 0.3275911
        %v4243 = vadd.f32 %v4242, 1.0
        %v4244 = vrcp.pop %v4243
        %v4245 = vmul.f32 %v4244, 1.0614054
        %v4246 = vadd.f32 %v4245, -1.4531521
        %v4247 = vmul.f32 %v4246, %v4244
        %v4248 = vadd.f32 %v4247, 1.4214138
        %v4249 = vmul.f32 %v4248, %v4244
        %v4250 = vadd.f32 %v4249, -0.28449672
        %v4251 = vmul.f32 %v4250, %v4244
        %v4252 = vadd.f32 %v4251, 0.2548296
        %v4253 = vmul.f32 %v4252, %v4244
        %v4254 = vmul.f32 %v4241, %v4241
        %v4255 = vsub.f32 0.0, %v4254
        %v4256 = vmul.f32 %v4255, 1.442695
        %v4257 = vpow.pop %v4256
        %v4258 = vmul.f32 %v4253, %v4257
        %v4259 = vsub.f32 1.0, %v4258
        %vm4260 = vcmp.lt.f32.partialorder %v4240, 0.0
        %v4261 = vsub.f32 0.0, %v4259
        %v4262 = vsel %vm4260, %v4261, %v4259
        %v4263 = vmul.f32 %v4239, 0.5
        %v4264 = vadd.f32 %v4262, 1.0
        %v4265 = vmul.f32 %v4263, %v4264
        %v4266 = vld [vmem:[#allocation9] sm:$0xff]
        %v4267 = vld [vmem:[#allocation9 + $0x8] sm:$0xff]
        %v4268 = vld [vmem:[#allocation9 + $0x10] sm:$0xff]
        %v4269 = vld [vmem:[#allocation9 + $0x18] sm:$0xff]
        %v4270 = vld [vmem:[#allocation9 + $0x20] sm:$0xff]
        %v4271 = vld [vmem:[#allocation9 + $0x28] sm:$0xff]
        %v4272 = vld [vmem:[#allocation9 + $0x30] sm:$0xff]
        %v4273 = vld [vmem:[#allocation9 + $0x38] sm:$0xff]
        %v4274 = vld [vmem:[#allocation9 + $0x40] sm:$0xff]
        %v4275 = vld [vmem:[#allocation9 + $0x48] sm:$0xff]
        %v4276 = vld [vmem:[#allocation9 + $0x50] sm:$0xff]
        %v4277 = vld [vmem:[#allocation9 + $0x58] sm:$0xff]
        %v4278 = vld [vmem:[#allocation9 + $0x60] sm:$0xff]
        %v4279 = vld [vmem:[#allocation9 + $0x68] sm:$0xff]
        %v4280 = vld [vmem:[#allocation9 + $0x70] sm:$0xff]
        %v4281 = vld [vmem:[#allocation9 + $0x78] sm:$0xff]
        %v4282 = vld [vmem:[#allocation9 + $0x80] sm:$0xff]
        %v4283 = vld [vmem:[#allocation9 + $0x88] sm:$0xff]
        %v4284 = vld [vmem:[#allocation9 + $0x90] sm:$0xff]
        %v4285 = vld [vmem:[#allocation9 + $0x98] sm:$0xff]
        %v4286 = vld [vmem:[#allocation9 + $0xa0] sm:$0xff]
        %v4287 = vld [vmem:[#allocation9 + $0xa8] sm:$0xff]
        %v4288 = vld [vmem:[#allocation9 + $0xb0] sm:$0xff]
        %v4289 = vld [vmem:[#allocation9 + $0xb8] sm:$0xff]
        %v4290 = vld [vmem:[#allocation9 + $0xc0] sm:$0xff]
        %v4291 = vld [vmem:[#allocation9 + $0xc8] sm:$0xff]
        %v4292 = vld [vmem:[#allocation9 + $0xd0] sm:$0xff]
        %v4293 = vld [vmem:[#allocation9 + $0xd8] sm:$0xff]
        %v4294 = vld [vmem:[#allocation9 + $0xe0] sm:$0xff]
        %v4295 = vld [vmem:[#allocation9 + $0xe8] sm:$0xff]
        %v4296 = vld [vmem:[#allocation9 + $0xf0] sm:$0xff]
        %v4297 = vld [vmem:[#allocation9 + $0xf8] sm:$0xff]
        %v4298 = vld [vmem:[#allocation11] sm:$0x3]
        %v4300 = vlaneseq
        %v4301 = vshrl.u32 %v4300, 7
        %v4302 = vsub.s32 0, %v4301
        %v4303 = vrot.slane %v4298, %v4302
        %v4304 = vlaneseq
        %v4305 = vshrl.u32 %v4304, 7
        %v4306 = vsub.s32 1, %v4305
        %v4307 = vrot.slane %v4298, %v4306
        %4310 = vmatprep.subr.mxu0 %v4267
        %4311 = vmatpush1.msra.mxu0 %v4266
        %4312 = vmatprep.subr.mxu0 %v4269
        %4313 = vmatpush1.msra.mxu0 %v4268
        %4314 = vmatprep.subr.mxu0 %v4271
        %4315 = vmatpush1.msra.mxu0 %v4270
        %4316 = vmatprep.subr.mxu0 %v4273
        %4317 = vmatpush1.msra.mxu0 %v4272
        %4318 = vmatprep.subr.mxu0 %v4275
        %4319 = vmatpush1.msra.mxu0 %v4274
        %4320 = vmatprep.subr.mxu0 %v4277
        %4321 = vmatpush1.msra.mxu0 %v4276
        %4322 = vmatprep.subr.mxu0 %v4279
        %4323 = vmatpush1.msra.mxu0 %v4278
        %4324 = vmatprep.subr.mxu0 %v4281
        %4325 = vmatpush1.msra.mxu0 %v4280
        %4326 = vmatprep.subr.mxu0 %v4283
        %4327 = vmatpush1.msra.mxu0 %v4282
        %4328 = vmatprep.subr.mxu0 %v4285
        %4329 = vmatpush1.msra.mxu0 %v4284
        %4330 = vmatprep.subr.mxu0 %v4287
        %4331 = vmatpush1.msra.mxu0 %v4286
        %4332 = vmatprep.subr.mxu0 %v4289
        %4333 = vmatpush1.msra.mxu0 %v4288
        %4334 = vmatprep.subr.mxu0 %v4291
        %4335 = vmatpush1.msra.mxu0 %v4290
        %4336 = vmatprep.subr.mxu0 %v4293
        %4337 = vmatpush1.msra.mxu0 %v4292
        %4338 = vmatprep.subr.mxu0 %v4295
        %4339 = vmatpush1.msra.mxu0 %v4294
        %4340 = vmatprep.subr.mxu0 %v4297
        %4341 = vmatpush1.msra.mxu0 %v4296
        %4342 = vmatprep.subr.mxu0 0.0
        %4343 = vmatpush1.msra.mxu0 0.0
        %4344 = vmatprep.subr.mxu0 0.0
        %4345 = vmatpush1.msra.mxu0 0.0
        %4346 = vmatprep.subr.mxu0 0.0
        %4347 = vmatpush1.msra.mxu0 0.0
        %4348 = vmatprep.subr.mxu0 0.0
        %4349 = vmatpush1.msra.mxu0 0.0
        %4350 = vmatprep.subr.mxu0 0.0
        %4351 = vmatpush1.msra.mxu0 0.0
        %4352 = vmatprep.subr.mxu0 0.0
        %4353 = vmatpush1.msra.mxu0 0.0
        %4354 = vmatprep.subr.mxu0 0.0
        %4355 = vmatpush1.msra.mxu0 0.0
        %4356 = vmatprep.subr.mxu0 0.0
        %4357 = vmatpush1.msra.mxu0 0.0
        %4358 = vmatprep.subr.mxu0 0.0
        %4359 = vmatpush1.msra.mxu0 0.0
        %4360 = vmatprep.subr.mxu0 0.0
        %4361 = vmatpush1.msra.mxu0 0.0
        %4362 = vmatprep.subr.mxu0 0.0
        %4363 = vmatpush1.msra.mxu0 0.0
        %4364 = vmatprep.subr.mxu0 0.0
        %4365 = vmatpush1.msra.mxu0 0.0
        %4366 = vmatprep.subr.mxu0 0.0
        %4367 = vmatpush1.msra.mxu0 0.0
        %4368 = vmatprep.subr.mxu0 0.0
        %4369 = vmatpush1.msra.mxu0 0.0
        %4370 = vmatprep.subr.mxu0 0.0
        %4371 = vmatpush1.msra.mxu0 0.0
        %4372 = vmatprep.subr.mxu0 0.0
        %4373 = vmatpush1.msra.mxu0 0.0
        %4374 = vmatprep.mubr.f32.mxu0 0.0
        %4375 = vmatmul.mubr.f32.gmra.mrb[0].mxu0 %v4265
        %v4376 = vpop.f32.mrb[0].mxu0
        %v4377 = vadd.f32 %v4303, %v4376
        %v4378 = vpop.f32.mrb[0].mxu0
        %v4379 = vadd.f32 %v4307, %v4378
        %4380 = vdwg.mxu0
        %v4381 = vmul.f32 %v4377, 0.70710677
        %v4382 = vmul.f32 %v4379, 0.70710677
        %v4383 = vand.u32 2147483647, %v4381
        %v4384 = vand.u32 2147483647, %v4382
        %v4385 = vmul.f32 %v4383, 0.3275911
        %v4386 = vmul.f32 %v4384, 0.3275911
        %v4387 = vadd.f32 %v4385, 1.0
        %v4388 = vadd.f32 %v4386, 1.0
        %v4389 = vrcp.pop %v4387
        %v4390 = vrcp.pop %v4388
        %v4391 = vmul.f32 %v4389, 1.0614054
        %v4392 = vmul.f32 %v4390, 1.0614054
        %v4393 = vadd.f32 %v4391, -1.4531521
        %v4394 = vadd.f32 %v4392, -1.4531521
        %v4395 = vmul.f32 %v4393, %v4389
        %v4396 = vmul.f32 %v4394, %v4390
        %v4397 = vadd.f32 %v4395, 1.4214138
        %v4398 = vadd.f32 %v4396, 1.4214138
        %v4399 = vmul.f32 %v4397, %v4389
        %v4400 = vmul.f32 %v4398, %v4390
        %v4401 = vadd.f32 %v4399, -0.28449672
        %v4402 = vadd.f32 %v4400, -0.28449672
        %v4403 = vmul.f32 %v4401, %v4389
        %v4404 = vmul.f32 %v4402, %v4390
        %v4405 = vadd.f32 %v4403, 0.2548296
        %v4406 = vadd.f32 %v4404, 0.2548296
        %v4407 = vmul.f32 %v4405, %v4389
        %v4408 = vmul.f32 %v4406, %v4390
        %v4409 = vmul.f32 %v4383, %v4383
        %v4410 = vmul.f32 %v4384, %v4384
        %v4411 = vsub.f32 0.0, %v4409
        %v4412 = vsub.f32 0.0, %v4410
        %v4413 = vmul.f32 %v4411, 1.442695
        %v4414 = vpow.pop %v4413
        %v4415 = vmul.f32 %v4412, 1.442695
        %v4416 = vpow.pop %v4415
        %v4417 = vmul.f32 %v4407, %v4414
        %v4418 = vmul.f32 %v4408, %v4416
        %v4419 = vsub.f32 1.0, %v4417
        %v4420 = vsub.f32 1.0, %v4418
        %vm4421 = vcmp.lt.f32.partialorder %v4381, 0.0
        %vm4422 = vcmp.lt.f32.partialorder %v4382, 0.0
        %v4423 = vsub.f32 0.0, %v4419
        %v4424 = vsub.f32 0.0, %v4420
        %v4425 = vsel %vm4421, %v4423, %v4419
        %v4426 = vsel %vm4422, %v4424, %v4420
        %v4427 = vmul.f32 %v4377, 0.5
        %v4428 = vmul.f32 %v4379, 0.5
        %v4429 = vadd.f32 %v4425, 1.0
        %v4430 = vadd.f32 %v4426, 1.0
        %v4431 = vmul.f32 %v4427, %v4429
        %v4432 = vmul.f32 %v4428, %v4430
        %v4433 = vld [vmem:[%s10] sm:$0xff]
        %v4434 = vld [vmem:[%s10 + $0x8] sm:$0xff]
        %v4435 = vld [vmem:[%s10 + $0x10] sm:$0xff]
        %v4436 = vld [vmem:[%s10 + $0x18] sm:$0xff]
        %v4437 = vld [vmem:[%s10 + $0x20] sm:$0xff]
        %v4438 = vld [vmem:[%s10 + $0x28] sm:$0xff]
        %v4439 = vld [vmem:[%s10 + $0x30] sm:$0xff]
        %v4440 = vld [vmem:[%s10 + $0x38] sm:$0xff]
        %v4441 = vld [vmem:[%s10 + $0x40] sm:$0xff]
        %v4442 = vld [vmem:[%s10 + $0x48] sm:$0xff]
        %v4443 = vld [vmem:[%s10 + $0x50] sm:$0xff]
        %v4444 = vld [vmem:[%s10 + $0x58] sm:$0xff]
        %v4445 = vld [vmem:[%s10 + $0x60] sm:$0xff]
        %v4446 = vld [vmem:[%s10 + $0x68] sm:$0xff]
        %v4447 = vld [vmem:[%s10 + $0x70] sm:$0xff]
        %v4448 = vld [vmem:[%s10 + $0x78] sm:$0xff]
        %v4449 = vld [vmem:[%s10 + $0x80] sm:$0xff]
        %v4450 = vld [vmem:[%s10 + $0x88] sm:$0xff]
        %v4451 = vld [vmem:[%s10 + $0x90] sm:$0xff]
        %v4452 = vld [vmem:[%s10 + $0x98] sm:$0xff]
        %v4453 = vld [vmem:[%s10 + $0xa0] sm:$0xff]
        %v4454 = vld [vmem:[%s10 + $0xa8] sm:$0xff]
        %v4455 = vld [vmem:[%s10 + $0xb0] sm:$0xff]
        %v4456 = vld [vmem:[%s10 + $0xb8] sm:$0xff]
        %v4457 = vld [vmem:[%s10 + $0xc0] sm:$0xff]
        %v4458 = vld [vmem:[%s10 + $0xc8] sm:$0xff]
        %v4459 = vld [vmem:[%s10 + $0xd0] sm:$0xff]
        %v4460 = vld [vmem:[%s10 + $0xd8] sm:$0xff]
        %v4461 = vld [vmem:[%s10 + $0xe0] sm:$0xff]
        %v4462 = vld [vmem:[%s10 + $0xe8] sm:$0xff]
        %v4463 = vld [vmem:[%s10 + $0xf0] sm:$0xff]
        %v4464 = vld [vmem:[%s10 + $0xf8] sm:$0xff]
        %v4465 = vld [vmem:[#allocation12] sm:$0x1]
        %4466 = vmatprep.subr.mxu0 0.0
        %4467 = vmatpush1.msra.mxu0 %v4433
        %4468 = vmatprep.subr.mxu0 0.0
        %4469 = vmatpush1.msra.mxu0 %v4434
        %4470 = vmatprep.subr.mxu0 0.0
        %4471 = vmatpush1.msra.mxu0 %v4435
        %4472 = vmatprep.subr.mxu0 0.0
        %4473 = vmatpush1.msra.mxu0 %v4436
        %4474 = vmatprep.subr.mxu0 0.0
        %4475 = vmatpush1.msra.mxu0 %v4437
        %4476 = vmatprep.subr.mxu0 0.0
        %4477 = vmatpush1.msra.mxu0 %v4438
        %4478 = vmatprep.subr.mxu0 0.0
        %4479 = vmatpush1.msra.mxu0 %v4439
        %4480 = vmatprep.subr.mxu0 0.0
        %4481 = vmatpush1.msra.mxu0 %v4440
        %4482 = vmatprep.subr.mxu0 0.0
        %4483 = vmatpush1.msra.mxu0 %v4441
        %4484 = vmatprep.subr.mxu0 0.0
        %4485 = vmatpush1.msra.mxu0 %v4442
        %4486 = vmatprep.subr.mxu0 0.0
        %4487 = vmatpush1.msra.mxu0 %v4443
        %4488 = vmatprep.subr.mxu0 0.0
        %4489 = vmatpush1.msra.mxu0 %v4444
        %4490 = vmatprep.subr.mxu0 0.0
        %4491 = vmatpush1.msra.mxu0 %v4445
        %4492 = vmatprep.subr.mxu0 0.0
        %4493 = vmatpush1.msra.mxu0 %v4446
        %4494 = vmatprep.subr.mxu0 0.0
        %4495 = vmatpush1.msra.mxu0 %v4447
        %4496 = vmatprep.subr.mxu0 0.0
        %4497 = vmatpush1.msra.mxu0 %v4448
        %4498 = vmatprep.subr.mxu0 0.0
        %4499 = vmatpush1.msra.mxu0 %v4449
        %4500 = vmatprep.subr.mxu0 0.0
        %4501 = vmatpush1.msra.mxu0 %v4450
        %4502 = vmatprep.subr.mxu0 0.0
        %4503 = vmatpush1.msra.mxu0 %v4451
        %4504 = vmatprep.subr.mxu0 0.0
        %4505 = vmatpush1.msra.mxu0 %v4452
        %4506 = vmatprep.subr.mxu0 0.0
        %4507 = vmatpush1.msra.mxu0 %v4453
        %4508 = vmatprep.subr.mxu0 0.0
        %4509 = vmatpush1.msra.mxu0 %v4454
        %4510 = vmatprep.subr.mxu0 0.0
        %4511 = vmatpush1.msra.mxu0 %v4455
        %4512 = vmatprep.subr.mxu0 0.0
        %4513 = vmatpush1.msra.mxu0 %v4456
        %4514 = vmatprep.subr.mxu0 0.0
        %4515 = vmatpush1.msra.mxu0 %v4457
        %4516 = vmatprep.subr.mxu0 0.0
        %4517 = vmatpush1.msra.mxu0 %v4458
        %4518 = vmatprep.subr.mxu0 0.0
        %4519 = vmatpush1.msra.mxu0 %v4459
        %4520 = vmatprep.subr.mxu0 0.0
        %4521 = vmatpush1.msra.mxu0 %v4460
        %4522 = vmatprep.subr.mxu0 0.0
        %4523 = vmatpush1.msra.mxu0 %v4461
        %4524 = vmatprep.subr.mxu0 0.0
        %4525 = vmatpush1.msra.mxu0 %v4462
        %4526 = vmatprep.subr.mxu0 0.0
        %4527 = vmatpush1.msra.mxu0 %v4463
        %4528 = vmatprep.subr.mxu0 0.0
        %4529 = vmatpush1.msra.mxu0 %v4464
        %4530 = vmatprep.mubr.f32.mxu0 %v4432
        %4531 = vmatmul.mubr.f32.gmra.mrb[0].mxu0 %v4431
        %v4532 = vpop.f32.mrb[0].mxu0
        %v4533 = vadd.f32 %v4465, %v4532
        %v4534 = vpop.f32.mrb[0].mxu0
        %4535 = vdwg.mxu0
        %s4536 = smul.u32 %s34, 8
        %s4537 = scalar_lea.vmem %s1, %s4536
        %v4538 = vld [vmem:[%s4537] sm:$0xff]
        %v4539 = vsub.f32 %v4533, %v4538
        %4541 = vrot.lane.b32.xlu0 %v4533, 2
        %v4542 = vpop.permute.xlu0 %4541
        %v4544 = vsub.f32 %v4533, %v4542
        %4546 = vrot.lane.b32.xlu0 %v4538, 1
        %v4547 = vpop.permute.xlu0 %4546
        %v4549 = vsub.f32 %v4544, %v4547
        %v4550 = vmul.f32 %v4539, %v4539
        %v4551 = vadd.f32 %v4550, 0.0
        %s4552 = vtos %v4551
        %4554 = vrot.lane.b32.xlu0 %v4551, 126
        %v4555 = vpop.permute.xlu0 %4554
        %s4557 = vtos %v4555
        %v4558 = vmul.f32 %v4549, %v4549
        %v4559 = vadd.f32 %v4558, 0.0
        %4561 = vrot.lane.b32.xlu0 %v4559, 126
        %v4562 = vpop.permute.xlu0 %4561
        %s4564 = vtos %v4562
        %v4565 = vand.u32 2147483647, %v4539
        %v4566 = vadd.f32 %v4565, 0.0
        %s4567 = vtos %v4566
        %4569 = vrot.lane.b32.xlu0 %v4566, 126
        %v4570 = vpop.permute.xlu0 %4569
        %s4572 = vtos %v4570
        %v4573 = vlaneseq
        %v4574 = vshrl.u32 %v4573, 7
        %vm4575 = vcmp.eq.s32.totalorder %v4574, 0
        %v4576 = vstv %s4552
        %v4577 = vsel %vm4575, %v4576, 0.0
        %vm4578 = vcmp.eq.s32.totalorder %v4574, 1
        %v4579 = vstv %s4557
        %v4580 = vsel %vm4578, %v4579, 0.0
        %v4581 = vadd.f32 %v4577, %v4580
        %vm4582 = vcmp.eq.s32.totalorder %v4574, 2
        %v4583 = vstv %s4564
        %v4584 = vsel %vm4582, %v4583, 0.0
        %v4585 = vadd.f32 %v4581, %v4584
        %vm4586 = vcmp.eq.s32.totalorder %v4574, 3
        %v4587 = vstv %s4567
        %v4588 = vsel %vm4586, %v4587, 0.0
        %v4589 = vadd.f32 %v4585, %v4588
        %vm4590 = vcmp.eq.s32.totalorder %v4574, 4
        %v4591 = vstv %s4572
        %v4592 = vsel %vm4590, %v4591, 0.0
        %v4593 = vadd.f32 %v4589, %v4592
        %4594 = vst [vmem:[%s502] sm:$0xff] %v4593
        %s4595 = sand.u32 %s299, 1
        %s4596 = scalar_lea.sflag [#allocation5], %s4595
        %s4597 = sand.u32 %s299, 1
        %s4598 = smul.addr %s4597, 8
        %s4599 = scalar_lea.vmem [#allocation14], %s4598
        // Predicated region
        $region93: #{tpu_custom_call.1} parent=67 // pred_check
          %p4600 = pneg %p309
        $region94: #{tpu_custom_call.1} parent=67 // pred_check_branch
          %4602 = sbr.rel (%p4600) target = $region96
        $region95: #{tpu_custom_call.1} parent=67 // pred_region
          %s4604 = ssub.s32 128, 128
          %4605 = vsyncadd %s4596, %s4604
          %s4606 = smul.addr %s34, 128
          %s4607 = scalar_lea.hbm %s12, %s4606
          %s4609 = sshll.u32 %s4599, 4
          %s4610 = int_to_ptr.vmem [resolvable:$true] %s4609
          %4612 = dma.vmem_to_hbm [thread:$0]  %s4610, 128, %s4607, %s4596
        $region96: #{tpu_custom_call.1} parent=67 // pred_fallthru
          _
      $region68: #{tpu_custom_call.1} parent=5 // pred_fallthru
        _
      %p4613 = scmp.le.s32.totalorder 2, %s29
      // Predicated region
      $region97: #{tpu_custom_call.1} parent=5 // pred_check
        %p4614 = pneg %p4613
      $region98: #{tpu_custom_call.1} parent=5 // pred_check_branch
        %4616 = sbr.rel (%p4614) target = $region100
      $region99: #{tpu_custom_call.1} parent=5 // pred_region
        %s4617 = ssub.s32 %s29, 2
        // Predicated region
        $region101: #{tpu_custom_call.1} parent=99 // pred_check
          %p4618 = pneg %p315
        $region102: #{tpu_custom_call.1} parent=99 // pred_check_branch
          %4620 = sbr.rel (%p4618) target = $region104
        $region103: #{tpu_custom_call.1} parent=99 // pred_region
          %s4621 = sand.u32 %s300, 1
          %s4622 = scalar_lea.sflag [#allocation5], %s4621
          %s4623 = sand.u32 %s300, 1
          %s4624 = smul.addr %s4623, 8
          %s4625 = scalar_lea.vmem [#allocation14], %s4624
          %4626 = dma.done %s4622, 128
        $region104: #{tpu_custom_call.1} parent=99 // pred_fallthru
          _
      $region100: #{tpu_custom_call.1} parent=5 // pred_fallthru
        _
    $region6: #{tpu_custom_call.1} parent=1 // loop_footer
      %s33 = sadd.s32 1, %s29
    $region7: #{tpu_custom_call.1} parent=1 // loop_footer_branch
      %28 = sbr.rel target = $region3
    $region8: #{tpu_custom_call.1} parent=1 // loop_exit
      _
    %4627 = vsyncpa [#allocation4], 1
    %s4628 = scalar_lea.sflag [#allocation4], 1
    %4629 = vsyncpa %s4628, 1
    %4630 = vsyncpa [#allocation7], 1
    %4631 = vsyncpa [#allocation10], 1
    %4632 = vsyncpa [#allocation13], 1
    %4633 = vsyncpa [#allocation5], 1
    %s4634 = scalar_lea.sflag [#allocation5], 1
    %4635 = vsyncpa %s4634, 1

</llo_original>
